<compile_context>
chip_gen: v7x
topology: tpu7x:2x2x1
jax: 0.10.0
libtpu: 0.0.40
codegen_flags: <defaults>
</compile_context>

<pallas_src>
import functools

import jax
import jax.numpy as jnp
from jax.experimental import pallas as pl
from jax.experimental.pallas import tpu as pltpu


# ----------------------------- in-kernel helpers ----------------------------

def _pad_hw(t, H, W):
    """Zero-pad a (H, W, C) value by 1 on each spatial side, in-register."""
    C = t.shape[-1]
    zr = jnp.zeros((1, W, C), jnp.float32)
    t = jnp.concatenate([zr, t, zr], axis=0)            # (H+2, W, C)
    zc = jnp.zeros((H + 2, 1, C), jnp.float32)
    return jnp.concatenate([zc, t, zc], axis=1)          # (H+2, W+2, C)


def _im2col3x3(tp, H, W):
    """(H+2, W+2, C) padded value -> (H*W, 9*C) patches (kh-major, kw, c order)."""
    C = tp.shape[-1]
    cols = []
    for kh in range(3):
        for kw in range(3):
            cols.append(tp[kh:kh + H, kw:kw + W, :].reshape(H * W, C))
    return jnp.concatenate(cols, axis=-1)


# ------------------------------ Pallas kernels ------------------------------

def _sft_kernel(x_ref, p_ref, w1_ref, b1_ref, w2_ref, b2_ref, o_ref, *, H, W, nf):
    # x_ref: (1,H,W,nf)  p_ref: (1,H,W,Cp)
    # w1_ref: (9*(nf+Cp), 64) merged (mul||add) stage-1 weight
    # w2_ref: (9*64, 2*nf)    block-diagonal merged stage-2 weight
    x = x_ref[0]                                         # (H, W, nf)
    para = p_ref[0]                                      # (H, W, Cp)
    cat = jnp.concatenate([x, para], axis=-1)            # (H, W, nf+Cp)

    # stage 1: merged 3x3 conv + LeakyReLU(0.2), one im2col matmul (K = 9*(nf+Cp))
    patches1 = _im2col3x3(_pad_hw(cat, H, W), H, W)
    h1 = jnp.dot(patches1, w1_ref[...], preferred_element_type=jnp.float32) + b1_ref[0, :]
    h1 = jnp.where(h1 >= 0.0, h1, 0.2 * h1)              # (H*W, 64): [mul-chans | add-chans]

    # stage 2: block-diagonal merged 3x3 conv -> 128-lane matmul output (mul | add)
    patches2 = _im2col3x3(_pad_hw(h1.reshape(H, W, h1.shape[-1]), H, W), H, W)
    h2 = jnp.dot(patches2, w2_ref[...], preferred_element_type=jnp.float32) + b2_ref[0, :]
    mul = jax.nn.sigmoid(h2[:, :nf])
    add = h2[:, nf:]

    v = x.reshape(H * W, nf) * mul + add                 # fused SFT epilogue
    o_ref[0] = v.reshape(H, W, nf)


def _spectral_kernel(v_ref, mh_ref, mw_ref, o_ref, *, C, H, W, gamma):
    # v_ref: (1, C, W, H) (per-sample, channels leading).
    # mh_ref: (H, 2H) = [cos | sin] DFT-over-H matrix, fftshift pre-baked into columns.
    # mw_ref: (W, 2W) = [cos | sin] DFT-over-W matrix, fftshift pre-baked into columns.
    v = v_ref[0]                                                      # (C, W, H)
    # DFT over H: one dense matmul, K = H
    t = jnp.dot(v.reshape(C * W, H), mh_ref[...],
                preferred_element_type=jnp.float32)                   # (C*W, 2H)
    t = jnp.swapaxes(t.reshape(C, W, 2 * H), 1, 2)                    # (C, 2H, W)
    # DFT over W: one dense matmul, K = W
    u = jnp.dot(t.reshape(C * 2 * H, W), mw_ref[...],
                preferred_element_type=jnp.float32)                   # (C*2H, 2W)
    u = u.reshape(C, 2 * H, 2 * W)
    y_re = u[:, :H, :W] - u[:, H:, W:]
    y_im = u[:, :H, W:] + u[:, H:, :W]
    mag2 = y_re * y_re + y_im * y_im
    # (|F| + 1e-8)^gamma  ~=  (|F|^2 + 1e-16)^(gamma/2): one log + one exp on the EUP
    o_ref[0] = jnp.exp((0.5 * gamma) * jnp.log(mag2 + 1e-16))         # (C, H, W), already shifted


def _fca_tail_kernel(xs_ref, v_ref, x_ref, wc_ref, bc_ref, w1_ref, b1_ref,
                     w2_ref, b2_ref, o_ref, *, H, W, C):
    # conv3x3 + ReLU, global avg-pool, two 1x1 FC layers, sigmoid, att*v + x  -- all fused.
    xs = xs_ref[0]                                                    # (H, W, C)
    patches = _im2col3x3(_pad_hw(xs, H, W), H, W)                     # (H*W, 9C)
    y = jnp.dot(patches, wc_ref[...], preferred_element_type=jnp.float32) + bc_ref[0, :]
    y = jnp.maximum(y, 0.0)
    z = jnp.mean(y, axis=0, keepdims=True)                            # (1, C) global avg pool
    h1 = jnp.maximum(
        jnp.dot(z, w1_ref[...], preferred_element_type=jnp.float32) + b1_ref[0, :], 0.0)
    att = jax.nn.sigmoid(
        jnp.dot(h1, w2_ref[...], preferred_element_type=jnp.float32) + b2_ref[0, :])  # (1, C)
    v = v_ref[0].reshape(H * W, C)
    x = x_ref[0].reshape(H * W, C)
    o_ref[0] = (att * v + x).reshape(H, W, C)                         # residual fused


# ------------------------------ model wrapper -------------------------------

def _dft_matrices(H, W):
    """Stacked [cos | sin] DFT matrices with fftshift baked into the output frequencies."""
    def stacked(n):
        src = ((jnp.arange(n) + n // 2) % n).astype(jnp.float32)
        ang = -2.0 * jnp.pi * jnp.outer(jnp.arange(n, dtype=jnp.float32), src) / n
        return jnp.concatenate([jnp.cos(ang), jnp.sin(ang)], axis=1)  # (n, 2n)
    return stacked(H), stacked(W)


def sft_fcab_forward(x_nchw, para_nchw, P, gamma=0.8):
    N, nf, H, W = x_nchw.shape
    Cp = para_nchw.shape[1]
    cin = nf + Cp
    c_half = P["w_mul1"].shape[-1]                      # 32
    c1 = 2 * c_half                                     # 64 merged stage-1 channels
    R = P["w_fd1"].shape[-1]

    x = jnp.transpose(x_nchw, (0, 2, 3, 1)).astype(jnp.float32)       # NHWC
    para = jnp.transpose(para_nchw, (0, 2, 3, 1)).astype(jnp.float32)

    # merged stage-1 weight (mul || add along Cout), flattened for im2col
    w1m = jnp.concatenate([P["w_mul1"], P["w_add1"]], axis=-1).reshape(9 * cin, c1)
    b1m = jnp.concatenate([P["b_mul1"], P["b_add1"]], axis=-1)
    # block-diagonal merged stage-2 weight -> single 128-lane-wide matmul (mul | add)
    w2m = jnp.zeros((3, 3, c1, 2 * nf), jnp.float32)
    w2m = w2m.at[:, :, :c_half, :nf].set(P["w_mul2"])
    w2m = w2m.at[:, :, c_half:, nf:].set(P["w_add2"])
    w2m = w2m.reshape(9 * c1, 2 * nf)
    b2m = jnp.concatenate([P["b_mul2"], P["b_add2"]], axis=-1)

    blk = lambda c: pl.BlockSpec((1, H, W, c), lambda n: (n, 0, 0, 0))
    full2d = lambda a, b: pl.BlockSpec((a, b), lambda n: (0, 0))
    cparams = pltpu.CompilerParams(dimension_semantics=("parallel",))

    # --- kernel A: fused SFT stage -> v = x * sigmoid(conv_mul) + conv_add ---
    v = pl.pallas_call(
        functools.partial(_sft_kernel, H=H, W=W, nf=nf),
        out_shape=jax.ShapeDtypeStruct((N, H, W, nf), jnp.float32),
        grid=(N,),
        in_specs=[blk(nf), blk(Cp),
                  full2d(9 * cin, c1), full2d(1, c1),
                  full2d(9 * c1, 2 * nf), full2d(1, 2 * nf)],
        out_specs=blk(nf),
        compiler_params=cparams,
    )(x, para, w1m, b1m, w2m, b2m)

    # --- kernel B: fftshift((|FFT2(v)| + eps)^gamma) via two dense DFT matmuls ---
    mh, mw = _dft_matrices(H, W)
    v_cwh = jnp.transpose(v, (0, 3, 2, 1))                            # (N, C, W, H)
    # TODO(synk): the NHWC<->NCHW transposes around the spectral kernel are still host-side;
    # an NHWC-native DFT would need lane-splitting reshapes inside the kernel.
    xs_nchw = pl.pallas_call(
        functools.partial(_spectral_kernel, C=nf, H=H, W=W, gamma=gamma),
        out_shape=jax.ShapeDtypeStruct((N, nf, H, W), jnp.float32),
        grid=(N,),
        in_specs=[pl.BlockSpec((1, nf, W, H), lambda n: (n, 0, 0, 0)),
                  full2d(H, 2 * H), full2d(W, 2 * W)],
        out_specs=pl.BlockSpec((1, nf, H, W), lambda n: (n, 0, 0, 0)),
        compiler_params=cparams,
    )(v_cwh, mh, mw)
    xs = jnp.transpose(xs_nchw, (0, 2, 3, 1))                         # NHWC

    # --- kernel C: fused FCA tail (conv+relu, avg-pool, FCs, att*v + x) ---
    wc = P["w_fc1"].reshape(9 * nf, nf)
    res = pl.pallas_call(
        functools.partial(_fca_tail_kernel, H=H, W=W, C=nf),
        out_shape=jax.ShapeDtypeStruct((N, H, W, nf), jnp.float32),
        grid=(N,),
        in_specs=[blk(nf), blk(nf), blk(nf),
                  full2d(9 * nf, nf), full2d(1, nf),
                  full2d(nf, R), full2d(1, R),
                  full2d(R, nf), full2d(1, nf)],
        out_specs=blk(nf),
        compiler_params=cparams,
    )(xs, v, x, wc, P["b_fc1"], P["w_fd1"], P["b_fd1"], P["w_fd2"], P["b_fd2"])

    return jnp.transpose(res, (0, 3, 1, 2))                           # back to NCHW
    # TODO(synk): very large H,W on v7x would additionally want a spatial grid axis
    # (row-halo tiling) + explicit vmem_limit_bytes; whole-sample blocks are fine here.


def init_params(key, nf, para):
    cin = nf + para
    r = nf // 16
    keys = jax.random.split(key, 14)

    def w(k, shape, scale=0.05):
        return (scale * jax.random.normal(k, shape)).astype(jnp.float32)

    return {
        "w_mul1": w(keys[0], (3, 3, cin, 32)), "b_mul1": w(keys[1], (1, 32)),
        "w_mul2": w(keys[2], (3, 3, 32, nf)),  "b_mul2": w(keys[3], (1, nf)),
        "w_add1": w(keys[4], (3, 3, cin, 32)), "b_add1": w(keys[5], (1, 32)),
        "w_add2": w(keys[6], (3, 3, 32, nf)),  "b_add2": w(keys[7], (1, nf)),
        "w_fc1":  w(keys[8], (3, 3, nf, nf)),  "b_fc1":  w(keys[9], (1, nf)),
        "w_fd1":  w(keys[10], (nf, r)),        "b_fd1":  w(keys[11], (1, r)),
        "w_fd2":  w(keys[12], (r, nf)),        "b_fd2":  w(keys[13], (1, nf)),
    }


# ------------------------- pure-JAX reference check -------------------------

def ref_forward(x_nchw, para_nchw, P, gamma=0.8):
    def conv(xn, wt, b):
        out = jax.lax.conv_general_dilated(
            xn, wt, window_strides=(1, 1), padding="SAME",
            dimension_numbers=("NHWC", "HWIO", "NHWC"))
        return out + b.reshape(1, 1, 1, -1)

    lrelu = lambda t: jnp.where(t >= 0, t, 0.2 * t)
    x = jnp.transpose(x_nchw, (0, 2, 3, 1))
    pm = jnp.transpose(para_nchw, (0, 2, 3, 1))
    cat = jnp.concatenate([x, pm], axis=-1)
    mul = jax.nn.sigmoid(conv(lrelu(conv(cat, P["w_mul1"], P["b_mul1"])),
                              P["w_mul2"], P["b_mul2"]))
    add = conv(lrelu(conv(cat, P["w_add1"], P["b_add1"])), P["w_add2"], P["b_add2"])
    v = x * mul + add
    v_nchw = jnp.transpose(v, (0, 3, 1, 2))
    F = jnp.fft.fftn(v_nchw, axes=(-1, -2))
    mag = (jnp.abs(F) + 1e-8) ** gamma
    h, w_ = mag.shape[2], mag.shape[3]
    s = jnp.concatenate([mag[:, :, h // 2:, :], mag[:, :, :h // 2, :]], axis=2)
    s = jnp.concatenate([s[:, :, :, w_ // 2:], s[:, :, :, :w_ // 2]], axis=3)
    xs = jnp.transpose(s, (0, 2, 3, 1))
    y = jax.nn.relu(conv(xs, P["w_fc1"], P["b_fc1"]))
    z = jnp.mean(y, axis=(1, 2))
    h1 = jax.nn.relu(z @ P["w_fd1"] + P["b_fd1"][0])
    att = jax.nn.sigmoid(h1 @ P["w_fd2"] + P["b_fd2"][0])
    res = att[:, None, None, :] * v + x
    return jnp.transpose(res, (0, 3, 1, 2))


if __name__ == "__main__":
    nf, para, N, H, W = 64, 9, 2, 8, 8
    key = jax.random.PRNGKey(0)
    kx, kp, kw = jax.random.split(key, 3)
    x = jax.random.normal(kx, (N, nf, H, W), dtype=jnp.float32)
    para_maps = jax.random.normal(kp, (N, para, H, W), dtype=jnp.float32)
    params = init_params(kw, nf, para)

    fwd = jax.jit(sft_fcab_forward)
    out = jax.block_until_ready(fwd(x, para_maps, params))
    ref = jax.block_until_ready(ref_forward(x, para_maps, params))

    assert out.shape == (N, nf, H, W), out.shape
    max_err = float(jnp.max(jnp.abs(out - ref)))
    if max_err > 5e-3:
        raise AssertionError(f"mismatch vs pure-JAX reference, max abs err = {max_err}")
    print("KERNEL_OK")
</pallas_src>

<mosaic_0001>
module attributes {stable_mosaic.version = 11 : i64} {
  func.func @_sft_kernel(%arg0: i32, %arg1: memref<1x8x8x64xf32, #tpu.memory_space<vmem>>, %arg2: memref<1x8x8x9xf32, #tpu.memory_space<vmem>>, %arg3: memref<657x64xf32, #tpu.memory_space<vmem>>, %arg4: memref<1x64xf32, #tpu.memory_space<vmem>>, %arg5: memref<576x128xf32, #tpu.memory_space<vmem>>, %arg6: memref<1x128xf32, #tpu.memory_space<vmem>>, %arg7: memref<1x8x8x64xf32, #tpu.memory_space<vmem>>) attributes {dimension_semantics = [#tpu.dimension_semantics<parallel>], iteration_bounds = array<i64: 2>, scalar_prefetch = 0 : i64, scratch_operands = 0 : i64, tpu.core_type = #tpu.core_type<tc>, window_params = [{transform_indices = @transform_0, window_bounds = array<i64: 1, 8, 8, 64>}, {transform_indices = @transform_1, window_bounds = array<i64: 1, 8, 8, 9>}, {pipeline_mode = #tpu.pipeline_mode<synchronous>, transform_indices = @transform_2, window_bounds = array<i64: 657, 64>}, {pipeline_mode = #tpu.pipeline_mode<synchronous>, transform_indices = @transform_3, window_bounds = array<i64: 1, 64>}, {pipeline_mode = #tpu.pipeline_mode<synchronous>, transform_indices = @transform_4, window_bounds = array<i64: 576, 128>}, {pipeline_mode = #tpu.pipeline_mode<synchronous>, transform_indices = @transform_5, window_bounds = array<i64: 1, 128>}, {transform_indices = @transform_6, window_bounds = array<i64: 1, 8, 8, 64>}]} {
    %c0 = arith.constant 0 : index
    %c0_0 = arith.constant 0 : index
    %c0_1 = arith.constant 0 : index
    %c0_2 = arith.constant 0 : index
    %0 = vector.load %arg1[%c0, %c0_0, %c0_1, %c0_2] : memref<1x8x8x64xf32, #tpu.memory_space<vmem>>, vector<1x8x8x64xf32>
    %1 = vector.shape_cast %0 : vector<1x8x8x64xf32> to vector<8x8x64xf32>
    %c0_3 = arith.constant 0 : index
    %c0_4 = arith.constant 0 : index
    %c0_5 = arith.constant 0 : index
    %c0_6 = arith.constant 0 : index
    %2 = vector.load %arg2[%c0_3, %c0_4, %c0_5, %c0_6] : memref<1x8x8x9xf32, #tpu.memory_space<vmem>>, vector<1x8x8x9xf32>
    %3 = vector.shape_cast %2 : vector<1x8x8x9xf32> to vector<8x8x9xf32>
    %4 = tpu.concatenate %1, %3 in 2 : vector<8x8x64xf32>, vector<8x8x9xf32> -> vector<8x8x73xf32>
    %cst = arith.constant 0.000000e+00 : f32
    %5 = vector.broadcast %cst : f32 to vector<1x8x73xf32>
    %6 = tpu.concatenate %5, %4, %5 in 0 : vector<1x8x73xf32>, vector<8x8x73xf32>, vector<1x8x73xf32> -> vector<10x8x73xf32>
    %cst_7 = arith.constant 0.000000e+00 : f32
    %7 = vector.broadcast %cst_7 : f32 to vector<10x1x73xf32>
    %8 = tpu.concatenate %7, %6, %7 in 1 : vector<10x1x73xf32>, vector<10x8x73xf32>, vector<10x1x73xf32> -> vector<10x10x73xf32>
    %9 = vector.extract_strided_slice %8 {offsets = [0, 0, 0], sizes = [8, 8, 73], strides = [1, 1, 1]} : vector<10x10x73xf32> to vector<8x8x73xf32>
    %10 = vector.shape_cast %9 : vector<8x8x73xf32> to vector<64x73xf32>
    %11 = vector.extract_strided_slice %8 {offsets = [0, 1, 0], sizes = [8, 8, 73], strides = [1, 1, 1]} : vector<10x10x73xf32> to vector<8x8x73xf32>
    %12 = vector.shape_cast %11 : vector<8x8x73xf32> to vector<64x73xf32>
    %13 = vector.extract_strided_slice %8 {offsets = [0, 2, 0], sizes = [8, 8, 73], strides = [1, 1, 1]} : vector<10x10x73xf32> to vector<8x8x73xf32>
    %14 = vector.shape_cast %13 : vector<8x8x73xf32> to vector<64x73xf32>
    %15 = vector.extract_strided_slice %8 {offsets = [1, 0, 0], sizes = [8, 8, 73], strides = [1, 1, 1]} : vector<10x10x73xf32> to vector<8x8x73xf32>
    %16 = vector.shape_cast %15 : vector<8x8x73xf32> to vector<64x73xf32>
    %17 = vector.extract_strided_slice %8 {offsets = [1, 1, 0], sizes = [8, 8, 73], strides = [1, 1, 1]} : vector<10x10x73xf32> to vector<8x8x73xf32>
    %18 = vector.shape_cast %17 : vector<8x8x73xf32> to vector<64x73xf32>
    %19 = vector.extract_strided_slice %8 {offsets = [1, 2, 0], sizes = [8, 8, 73], strides = [1, 1, 1]} : vector<10x10x73xf32> to vector<8x8x73xf32>
    %20 = vector.shape_cast %19 : vector<8x8x73xf32> to vector<64x73xf32>
    %21 = vector.extract_strided_slice %8 {offsets = [2, 0, 0], sizes = [8, 8, 73], strides = [1, 1, 1]} : vector<10x10x73xf32> to vector<8x8x73xf32>
    %22 = vector.shape_cast %21 : vector<8x8x73xf32> to vector<64x73xf32>
    %23 = vector.extract_strided_slice %8 {offsets = [2, 1, 0], sizes = [8, 8, 73], strides = [1, 1, 1]} : vector<10x10x73xf32> to vector<8x8x73xf32>
    %24 = vector.shape_cast %23 : vector<8x8x73xf32> to vector<64x73xf32>
    %25 = vector.extract_strided_slice %8 {offsets = [2, 2, 0], sizes = [8, 8, 73], strides = [1, 1, 1]} : vector<10x10x73xf32> to vector<8x8x73xf32>
    %26 = vector.shape_cast %25 : vector<8x8x73xf32> to vector<64x73xf32>
    %27 = tpu.concatenate %10, %12, %14, %16, %18, %20, %22, %24, %26 in 1 : vector<64x73xf32>, vector<64x73xf32>, vector<64x73xf32>, vector<64x73xf32>, vector<64x73xf32>, vector<64x73xf32>, vector<64x73xf32>, vector<64x73xf32>, vector<64x73xf32> -> vector<64x657xf32>
    %c0_8 = arith.constant 0 : index
    %c0_9 = arith.constant 0 : index
    %28 = vector.load %arg3[%c0_8, %c0_9] : memref<657x64xf32, #tpu.memory_space<vmem>>, vector<657x64xf32>
    %cst_10 = arith.constant dense<0.000000e+00> : vector<64x64xf32>
    %29 = tpu.matmul %27, %28, %cst_10 {dimension_numbers = #tpu.dot_dimension_numbers<[1], [0], [0], [1], [0, 0, 1, 1], [], []>} : vector<64x657xf32>, vector<657x64xf32>, vector<64x64xf32> -> vector<64x64xf32>
    %c0_11 = arith.constant 0 : index
    %c0_12 = arith.constant 0 : index
    %30 = vector.load %arg4[%c0_11, %c0_12] : memref<1x64xf32, #tpu.memory_space<vmem>>, vector<1x64xf32>
    %31 = vector.shape_cast %30 : vector<1x64xf32> to vector<64xf32>
    %32 = vector.shape_cast %31 : vector<64xf32> to vector<1x64xf32>
    %33 = vector.broadcast %32 : vector<1x64xf32> to vector<64x64xf32>
    %34 = arith.addf %29, %33 : vector<64x64xf32>
    %cst_13 = arith.constant 0.000000e+00 : f32
    %35 = vector.broadcast %cst_13 : f32 to vector<64x64xf32>
    %36 = arith.cmpf oge, %34, %35 : vector<64x64xf32>
    %cst_14 = arith.constant 2.000000e-01 : f32
    %37 = vector.broadcast %cst_14 : f32 to vector<64x64xf32>
    %38 = arith.mulf %37, %34 : vector<64x64xf32>
    %39 = arith.select %36, %34, %38 : vector<64x64xi1>, vector<64x64xf32>
    %40 = vector.shape_cast %39 : vector<64x64xf32> to vector<8x8x64xf32>
    %cst_15 = arith.constant 0.000000e+00 : f32
    %41 = vector.broadcast %cst_15 : f32 to vector<1x8x64xf32>
    %42 = tpu.concatenate %41, %40, %41 in 0 : vector<1x8x64xf32>, vector<8x8x64xf32>, vector<1x8x64xf32> -> vector<10x8x64xf32>
    %cst_16 = arith.constant 0.000000e+00 : f32
    %43 = vector.broadcast %cst_16 : f32 to vector<10x1x64xf32>
    %44 = tpu.concatenate %43, %42, %43 in 1 : vector<10x1x64xf32>, vector<10x8x64xf32>, vector<10x1x64xf32> -> vector<10x10x64xf32>
    %45 = vector.extract_strided_slice %44 {offsets = [0, 0, 0], sizes = [8, 8, 64], strides = [1, 1, 1]} : vector<10x10x64xf32> to vector<8x8x64xf32>
    %46 = vector.shape_cast %45 : vector<8x8x64xf32> to vector<64x64xf32>
    %47 = vector.extract_strided_slice %44 {offsets = [0, 1, 0], sizes = [8, 8, 64], strides = [1, 1, 1]} : vector<10x10x64xf32> to vector<8x8x64xf32>
    %48 = vector.shape_cast %47 : vector<8x8x64xf32> to vector<64x64xf32>
    %49 = vector.extract_strided_slice %44 {offsets = [0, 2, 0], sizes = [8, 8, 64], strides = [1, 1, 1]} : vector<10x10x64xf32> to vector<8x8x64xf32>
    %50 = vector.shape_cast %49 : vector<8x8x64xf32> to vector<64x64xf32>
    %51 = vector.extract_strided_slice %44 {offsets = [1, 0, 0], sizes = [8, 8, 64], strides = [1, 1, 1]} : vector<10x10x64xf32> to vector<8x8x64xf32>
    %52 = vector.shape_cast %51 : vector<8x8x64xf32> to vector<64x64xf32>
    %53 = vector.extract_strided_slice %44 {offsets = [1, 1, 0], sizes = [8, 8, 64], strides = [1, 1, 1]} : vector<10x10x64xf32> to vector<8x8x64xf32>
    %54 = vector.shape_cast %53 : vector<8x8x64xf32> to vector<64x64xf32>
    %55 = vector.extract_strided_slice %44 {offsets = [1, 2, 0], sizes = [8, 8, 64], strides = [1, 1, 1]} : vector<10x10x64xf32> to vector<8x8x64xf32>
    %56 = vector.shape_cast %55 : vector<8x8x64xf32> to vector<64x64xf32>
    %57 = vector.extract_strided_slice %44 {offsets = [2, 0, 0], sizes = [8, 8, 64], strides = [1, 1, 1]} : vector<10x10x64xf32> to vector<8x8x64xf32>
    %58 = vector.shape_cast %57 : vector<8x8x64xf32> to vector<64x64xf32>
    %59 = vector.extract_strided_slice %44 {offsets = [2, 1, 0], sizes = [8, 8, 64], strides = [1, 1, 1]} : vector<10x10x64xf32> to vector<8x8x64xf32>
    %60 = vector.shape_cast %59 : vector<8x8x64xf32> to vector<64x64xf32>
    %61 = vector.extract_strided_slice %44 {offsets = [2, 2, 0], sizes = [8, 8, 64], strides = [1, 1, 1]} : vector<10x10x64xf32> to vector<8x8x64xf32>
    %62 = vector.shape_cast %61 : vector<8x8x64xf32> to vector<64x64xf32>
    %63 = tpu.concatenate %46, %48, %50, %52, %54, %56, %58, %60, %62 in 1 : vector<64x64xf32>, vector<64x64xf32>, vector<64x64xf32>, vector<64x64xf32>, vector<64x64xf32>, vector<64x64xf32>, vector<64x64xf32>, vector<64x64xf32>, vector<64x64xf32> -> vector<64x576xf32>
    %c0_17 = arith.constant 0 : index
    %c0_18 = arith.constant 0 : index
    %64 = vector.load %arg5[%c0_17, %c0_18] : memref<576x128xf32, #tpu.memory_space<vmem>>, vector<576x128xf32>
    %cst_19 = arith.constant dense<0.000000e+00> : vector<64x128xf32>
    %65 = tpu.matmul %63, %64, %cst_19 {dimension_numbers = #tpu.dot_dimension_numbers<[1], [0], [0], [1], [0, 0, 1, 1], [], []>} : vector<64x576xf32>, vector<576x128xf32>, vector<64x128xf32> -> vector<64x128xf32>
    %c0_20 = arith.constant 0 : index
    %c0_21 = arith.constant 0 : index
    %66 = vector.load %arg6[%c0_20, %c0_21] : memref<1x128xf32, #tpu.memory_space<vmem>>, vector<1x128xf32>
    %67 = vector.shape_cast %66 : vector<1x128xf32> to vector<128xf32>
    %68 = vector.shape_cast %67 : vector<128xf32> to vector<1x128xf32>
    %69 = vector.broadcast %68 : vector<1x128xf32> to vector<64x128xf32>
    %70 = arith.addf %65, %69 : vector<64x128xf32>
    %71 = vector.extract_strided_slice %70 {offsets = [0, 0], sizes = [64, 64], strides = [1, 1]} : vector<64x128xf32> to vector<64x64xf32>
    %72 = arith.negf %71 : vector<64x64xf32>
    %73 = math.exp %72 : vector<64x64xf32>
    %cst_22 = arith.constant 1.000000e+00 : f32
    %74 = vector.broadcast %cst_22 : f32 to vector<64x64xf32>
    %75 = arith.addf %74, %73 : vector<64x64xf32>
    %76 = arith.divf %74, %75 : vector<64x64xf32>
    %77 = vector.extract_strided_slice %70 {offsets = [0, 64], sizes = [64, 64], strides = [1, 1]} : vector<64x128xf32> to vector<64x64xf32>
    %78 = vector.shape_cast %1 : vector<8x8x64xf32> to vector<64x64xf32>
    %79 = arith.mulf %78, %76 : vector<64x64xf32>
    %80 = arith.addf %79, %77 : vector<64x64xf32>
    %81 = vector.shape_cast %80 : vector<64x64xf32> to vector<8x8x64xf32>
    %c0_23 = arith.constant 0 : index
    %c0_24 = arith.constant 0 : index
    %c0_25 = arith.constant 0 : index
    %c0_26 = arith.constant 0 : index
    %82 = vector.load %arg7[%c0_23, %c0_24, %c0_25, %c0_26] : memref<1x8x8x64xf32, #tpu.memory_space<vmem>>, vector<1x8x8x64xf32>
    %83 = vector.shape_cast %82 : vector<1x8x8x64xf32> to vector<8x8x64xf32>
    %84 = vector.shape_cast %81 : vector<8x8x64xf32> to vector<1x8x8x64xf32>
    tpu.vector_store %arg7[%c0_23, %c0_24, %c0_25, %c0_26], %84 {strides = array<i32>} : memref<1x8x8x64xf32, #tpu.memory_space<vmem>>, vector<1x8x8x64xf32>,
    return
  }
  func.func @transform_0(%arg0: i32) -> (i32, i32, i32, i32) {
    %c0_i32 = arith.constant 0 : i32
    %c0_i32_0 = arith.constant 0 : i32
    %c0_i32_1 = arith.constant 0 : i32
    %c0_i32_2 = arith.constant 0 : i32
    return %arg0, %c0_i32, %c0_i32_0, %c0_i32_1 : i32, i32, i32, i32
  }
  func.func @transform_1(%arg0: i32) -> (i32, i32, i32, i32) {
    %c0_i32 = arith.constant 0 : i32
    %c0_i32_0 = arith.constant 0 : i32
    %c0_i32_1 = arith.constant 0 : i32
    %c0_i32_2 = arith.constant 0 : i32
    return %arg0, %c0_i32, %c0_i32_0, %c0_i32_1 : i32, i32, i32, i32
  }
  func.func @transform_2(%arg0: i32) -> (i32, i32) {
    %c0_i32 = arith.constant 0 : i32
    %c0_i32_0 = arith.constant 0 : i32
    %c0_i32_1 = arith.constant 0 : i32
    return %c0_i32, %c0_i32_0 : i32, i32
  }
  func.func @transform_3(%arg0: i32) -> (i32, i32) {
    %c0_i32 = arith.constant 0 : i32
    %c0_i32_0 = arith.constant 0 : i32
    %c0_i32_1 = arith.constant 0 : i32
    return %c0_i32, %c0_i32_0 : i32, i32
  }
  func.func @transform_4(%arg0: i32) -> (i32, i32) {
    %c0_i32 = arith.constant 0 : i32
    %c0_i32_0 = arith.constant 0 : i32
    %c0_i32_1 = arith.constant 0 : i32
    return %c0_i32, %c0_i32_0 : i32, i32
  }
  func.func @transform_5(%arg0: i32) -> (i32, i32) {
    %c0_i32 = arith.constant 0 : i32
    %c0_i32_0 = arith.constant 0 : i32
    %c0_i32_1 = arith.constant 0 : i32
    return %c0_i32, %c0_i32_0 : i32, i32
  }
  func.func @transform_6(%arg0: i32) -> (i32, i32, i32, i32) {
    %c0_i32 = arith.constant 0 : i32
    %c0_i32_0 = arith.constant 0 : i32
    %c0_i32_1 = arith.constant 0 : i32
    %c0_i32_2 = arith.constant 0 : i32
    return %arg0, %c0_i32, %c0_i32_0, %c0_i32_1 : i32, i32, i32, i32
  }
}

module attributes {stable_mosaic.version = 11 : i64} {
  func.func @_spectral_kernel(%arg0: i32, %arg1: memref<1x64x8x8xf32, #tpu.memory_space<vmem>>, %arg2: memref<8x16xf32, #tpu.memory_space<vmem>>, %arg3: memref<8x16xf32, #tpu.memory_space<vmem>>, %arg4: memref<1x64x8x8xf32, #tpu.memory_space<vmem>>) attributes {dimension_semantics = [#tpu.dimension_semantics<parallel>], iteration_bounds = array<i64: 2>, scalar_prefetch = 0 : i64, scratch_operands = 0 : i64, tpu.core_type = #tpu.core_type<tc>, window_params = [{transform_indices = @transform_0, window_bounds = array<i64: 1, 64, 8, 8>}, {pipeline_mode = #tpu.pipeline_mode<synchronous>, transform_indices = @transform_1, window_bounds = array<i64: 8, 16>}, {pipeline_mode = #tpu.pipeline_mode<synchronous>, transform_indices = @transform_2, window_bounds = array<i64: 8, 16>}, {transform_indices = @transform_3, window_bounds = array<i64: 1, 64, 8, 8>}]} {
    %c0 = arith.constant 0 : index
    %c0_0 = arith.constant 0 : index
    %c0_1 = arith.constant 0 : index
    %c0_2 = arith.constant 0 : index
    %0 = vector.load %arg1[%c0, %c0_0, %c0_1, %c0_2] : memref<1x64x8x8xf32, #tpu.memory_space<vmem>>, vector<1x64x8x8xf32>
    %1 = vector.shape_cast %0 : vector<1x64x8x8xf32> to vector<64x8x8xf32>
    %2 = vector.shape_cast %1 : vector<64x8x8xf32> to vector<512x8xf32>
    %c0_3 = arith.constant 0 : index
    %c0_4 = arith.constant 0 : index
    %3 = vector.load %arg2[%c0_3, %c0_4] : memref<8x16xf32, #tpu.memory_space<vmem>>, vector<8x16xf32>
    %cst = arith.constant dense<0.000000e+00> : vector<512x16xf32>
    %4 = tpu.matmul %2, %3, %cst {dimension_numbers = #tpu.dot_dimension_numbers<[1], [0], [0], [1], [0, 0, 1, 1], [], []>} : vector<512x8xf32>, vector<8x16xf32>, vector<512x16xf32> -> vector<512x16xf32>
    %5 = vector.shape_cast %4 : vector<512x16xf32> to vector<64x8x16xf32>
    %6 = tpu.transpose %5, [0, 2, 1] : vector<64x8x16xf32> -> vector<64x16x8xf32>
    %7 = vector.shape_cast %6 : vector<64x16x8xf32> to vector<1024x8xf32>
    %c0_5 = arith.constant 0 : index
    %c0_6 = arith.constant 0 : index
    %8 = vector.load %arg3[%c0_5, %c0_6] : memref<8x16xf32, #tpu.memory_space<vmem>>, vector<8x16xf32>
    %cst_7 = arith.constant dense<0.000000e+00> : vector<1024x16xf32>
    %9 = tpu.matmul %7, %8, %cst_7 {dimension_numbers = #tpu.dot_dimension_numbers<[1], [0], [0], [1], [0, 0, 1, 1], [], []>} : vector<1024x8xf32>, vector<8x16xf32>, vector<1024x16xf32> -> vector<1024x16xf32>
    %10 = vector.shape_cast %9 : vector<1024x16xf32> to vector<64x16x16xf32>
    %11 = vector.extract_strided_slice %10 {offsets = [0, 0, 0], sizes = [64, 8, 8], strides = [1, 1, 1]} : vector<64x16x16xf32> to vector<64x8x8xf32>
    %12 = vector.extract_strided_slice %10 {offsets = [0, 8, 8], sizes = [64, 8, 8], strides = [1, 1, 1]} : vector<64x16x16xf32> to vector<64x8x8xf32>
    %13 = arith.subf %11, %12 : vector<64x8x8xf32>
    %14 = vector.extract_strided_slice %10 {offsets = [0, 0, 8], sizes = [64, 8, 8], strides = [1, 1, 1]} : vector<64x16x16xf32> to vector<64x8x8xf32>
    %15 = vector.extract_strided_slice %10 {offsets = [0, 8, 0], sizes = [64, 8, 8], strides = [1, 1, 1]} : vector<64x16x16xf32> to vector<64x8x8xf32>
    %16 = arith.addf %14, %15 : vector<64x8x8xf32>
    %17 = arith.mulf %13, %13 : vector<64x8x8xf32>
    %18 = arith.mulf %16, %16 : vector<64x8x8xf32>
    %19 = arith.addf %17, %18 : vector<64x8x8xf32>
    %cst_8 = arith.constant 1.000000e-16 : f32
    %20 = vector.broadcast %cst_8 : f32 to vector<64x8x8xf32>
    %21 = arith.addf %19, %20 : vector<64x8x8xf32>
    %22 = math.log %21 : vector<64x8x8xf32>
    %cst_9 = arith.constant 4.000000e-01 : f32
    %23 = vector.broadcast %cst_9 : f32 to vector<64x8x8xf32>
    %24 = arith.mulf %23, %22 : vector<64x8x8xf32>
    %25 = math.exp %24 : vector<64x8x8xf32>
    %c0_10 = arith.constant 0 : index
    %c0_11 = arith.constant 0 : index
    %c0_12 = arith.constant 0 : index
    %c0_13 = arith.constant 0 : index
    %26 = vector.load %arg4[%c0_10, %c0_11, %c0_12, %c0_13] : memref<1x64x8x8xf32, #tpu.memory_space<vmem>>, vector<1x64x8x8xf32>
    %27 = vector.shape_cast %26 : vector<1x64x8x8xf32> to vector<64x8x8xf32>
    %28 = vector.shape_cast %25 : vector<64x8x8xf32> to vector<1x64x8x8xf32>
    tpu.vector_store %arg4[%c0_10, %c0_11, %c0_12, %c0_13], %28 {strides = array<i32>} : memref<1x64x8x8xf32, #tpu.memory_space<vmem>>, vector<1x64x8x8xf32>,
    return
  }
  func.func @transform_0(%arg0: i32) -> (i32, i32, i32, i32) {
    %c0_i32 = arith.constant 0 : i32
    %c0_i32_0 = arith.constant 0 : i32
    %c0_i32_1 = arith.constant 0 : i32
    %c0_i32_2 = arith.constant 0 : i32
    return %arg0, %c0_i32, %c0_i32_0, %c0_i32_1 : i32, i32, i32, i32
  }
  func.func @transform_1(%arg0: i32) -> (i32, i32) {
    %c0_i32 = arith.constant 0 : i32
    %c0_i32_0 = arith.constant 0 : i32
    %c0_i32_1 = arith.constant 0 : i32
    return %c0_i32, %c0_i32_0 : i32, i32
  }
  func.func @transform_2(%arg0: i32) -> (i32, i32) {
    %c0_i32 = arith.constant 0 : i32
    %c0_i32_0 = arith.constant 0 : i32
    %c0_i32_1 = arith.constant 0 : i32
    return %c0_i32, %c0_i32_0 : i32, i32
  }
  func.func @transform_3(%arg0: i32) -> (i32, i32, i32, i32) {
    %c0_i32 = arith.constant 0 : i32
    %c0_i32_0 = arith.constant 0 : i32
    %c0_i32_1 = arith.constant 0 : i32
    %c0_i32_2 = arith.constant 0 : i32
    return %arg0, %c0_i32, %c0_i32_0, %c0_i32_1 : i32, i32, i32, i32
  }
}

module attributes {stable_mosaic.version = 11 : i64} {
  func.func @_fca_tail_kernel(%arg0: i32, %arg1: memref<1x8x8x64xf32, #tpu.memory_space<vmem>>, %arg2: memref<1x8x8x64xf32, #tpu.memory_space<vmem>>, %arg3: memref<1x8x8x64xf32, #tpu.memory_space<vmem>>, %arg4: memref<576x64xf32, #tpu.memory_space<vmem>>, %arg5: memref<1x64xf32, #tpu.memory_space<vmem>>, %arg6: memref<64x4xf32, #tpu.memory_space<vmem>>, %arg7: memref<1x4xf32, #tpu.memory_space<vmem>>, %arg8: memref<4x64xf32, #tpu.memory_space<vmem>>, %arg9: memref<1x64xf32, #tpu.memory_space<vmem>>, %arg10: memref<1x8x8x64xf32, #tpu.memory_space<vmem>>) attributes {dimension_semantics = [#tpu.dimension_semantics<parallel>], iteration_bounds = array<i64: 2>, scalar_prefetch = 0 : i64, scratch_operands = 0 : i64, tpu.core_type = #tpu.core_type<tc>, window_params = [{transform_indices = @transform_0, window_bounds = array<i64: 1, 8, 8, 64>}, {transform_indices = @transform_1, window_bounds = array<i64: 1, 8, 8, 64>}, {transform_indices = @transform_2, window_bounds = array<i64: 1, 8, 8, 64>}, {pipeline_mode = #tpu.pipeline_mode<synchronous>, transform_indices = @transform_3, window_bounds = array<i64: 576, 64>}, {pipeline_mode = #tpu.pipeline_mode<synchronous>, transform_indices = @transform_4, window_bounds = array<i64: 1, 64>}, {pipeline_mode = #tpu.pipeline_mode<synchronous>, transform_indices = @transform_5, window_bounds = array<i64: 64, 4>}, {pipeline_mode = #tpu.pipeline_mode<synchronous>, transform_indices = @transform_6, window_bounds = array<i64: 1, 4>}, {pipeline_mode = #tpu.pipeline_mode<synchronous>, transform_indices = @transform_7, window_bounds = array<i64: 4, 64>}, {pipeline_mode = #tpu.pipeline_mode<synchronous>, transform_indices = @transform_8, window_bounds = array<i64: 1, 64>}, {transform_indices = @transform_9, window_bounds = array<i64: 1, 8, 8, 64>}]} {
    %c0 = arith.constant 0 : index
    %c0_0 = arith.constant 0 : index
    %c0_1 = arith.constant 0 : index
    %c0_2 = arith.constant 0 : index
    %0 = vector.load %arg1[%c0, %c0_0, %c0_1, %c0_2] : memref<1x8x8x64xf32, #tpu.memory_space<vmem>>, vector<1x8x8x64xf32>
    %1 = vector.shape_cast %0 : vector<1x8x8x64xf32> to vector<8x8x64xf32>
    %cst = arith.constant 0.000000e+00 : f32
    %2 = vector.broadcast %cst : f32 to vector<1x8x64xf32>
    %3 = tpu.concatenate %2, %1, %2 in 0 : vector<1x8x64xf32>, vector<8x8x64xf32>, vector<1x8x64xf32> -> vector<10x8x64xf32>
    %cst_3 = arith.constant 0.000000e+00 : f32
    %4 = vector.broadcast %cst_3 : f32 to vector<10x1x64xf32>
    %5 = tpu.concatenate %4, %3, %4 in 1 : vector<10x1x64xf32>, vector<10x8x64xf32>, vector<10x1x64xf32> -> vector<10x10x64xf32>
    %6 = vector.extract_strided_slice %5 {offsets = [0, 0, 0], sizes = [8, 8, 64], strides = [1, 1, 1]} : vector<10x10x64xf32> to vector<8x8x64xf32>
    %7 = vector.shape_cast %6 : vector<8x8x64xf32> to vector<64x64xf32>
    %8 = vector.extract_strided_slice %5 {offsets = [0, 1, 0], sizes = [8, 8, 64], strides = [1, 1, 1]} : vector<10x10x64xf32> to vector<8x8x64xf32>
    %9 = vector.shape_cast %8 : vector<8x8x64xf32> to vector<64x64xf32>
    %10 = vector.extract_strided_slice %5 {offsets = [0, 2, 0], sizes = [8, 8, 64], strides = [1, 1, 1]} : vector<10x10x64xf32> to vector<8x8x64xf32>
    %11 = vector.shape_cast %10 : vector<8x8x64xf32> to vector<64x64xf32>
    %12 = vector.extract_strided_slice %5 {offsets = [1, 0, 0], sizes = [8, 8, 64], strides = [1, 1, 1]} : vector<10x10x64xf32> to vector<8x8x64xf32>
    %13 = vector.shape_cast %12 : vector<8x8x64xf32> to vector<64x64xf32>
    %14 = vector.extract_strided_slice %5 {offsets = [1, 1, 0], sizes = [8, 8, 64], strides = [1, 1, 1]} : vector<10x10x64xf32> to vector<8x8x64xf32>
    %15 = vector.shape_cast %14 : vector<8x8x64xf32> to vector<64x64xf32>
    %16 = vector.extract_strided_slice %5 {offsets = [1, 2, 0], sizes = [8, 8, 64], strides = [1, 1, 1]} : vector<10x10x64xf32> to vector<8x8x64xf32>
    %17 = vector.shape_cast %16 : vector<8x8x64xf32> to vector<64x64xf32>
    %18 = vector.extract_strided_slice %5 {offsets = [2, 0, 0], sizes = [8, 8, 64], strides = [1, 1, 1]} : vector<10x10x64xf32> to vector<8x8x64xf32>
    %19 = vector.shape_cast %18 : vector<8x8x64xf32> to vector<64x64xf32>
    %20 = vector.extract_strided_slice %5 {offsets = [2, 1, 0], sizes = [8, 8, 64], strides = [1, 1, 1]} : vector<10x10x64xf32> to vector<8x8x64xf32>
    %21 = vector.shape_cast %20 : vector<8x8x64xf32> to vector<64x64xf32>
    %22 = vector.extract_strided_slice %5 {offsets = [2, 2, 0], sizes = [8, 8, 64], strides = [1, 1, 1]} : vector<10x10x64xf32> to vector<8x8x64xf32>
    %23 = vector.shape_cast %22 : vector<8x8x64xf32> to vector<64x64xf32>
    %24 = tpu.concatenate %7, %9, %11, %13, %15, %17, %19, %21, %23 in 1 : vector<64x64xf32>, vector<64x64xf32>, vector<64x64xf32>, vector<64x64xf32>, vector<64x64xf32>, vector<64x64xf32>, vector<64x64xf32>, vector<64x64xf32>, vector<64x64xf32> -> vector<64x576xf32>
    %c0_4 = arith.constant 0 : index
    %c0_5 = arith.constant 0 : index
    %25 = vector.load %arg4[%c0_4, %c0_5] : memref<576x64xf32, #tpu.memory_space<vmem>>, vector<576x64xf32>
    %cst_6 = arith.constant dense<0.000000e+00> : vector<64x64xf32>
    %26 = tpu.matmul %24, %25, %cst_6 {dimension_numbers = #tpu.dot_dimension_numbers<[1], [0], [0], [1], [0, 0, 1, 1], [], []>} : vector<64x576xf32>, vector<576x64xf32>, vector<64x64xf32> -> vector<64x64xf32>
    %c0_7 = arith.constant 0 : index
    %c0_8 = arith.constant 0 : index
    %27 = vector.load %arg5[%c0_7, %c0_8] : memref<1x64xf32, #tpu.memory_space<vmem>>, vector<1x64xf32>
    %28 = vector.shape_cast %27 : vector<1x64xf32> to vector<64xf32>
    %29 = vector.shape_cast %28 : vector<64xf32> to vector<1x64xf32>
    %30 = vector.broadcast %29 : vector<1x64xf32> to vector<64x64xf32>
    %31 = arith.addf %26, %30 : vector<64x64xf32>
    %cst_9 = arith.constant 0.000000e+00 : f32
    %32 = vector.broadcast %cst_9 : f32 to vector<64x64xf32>
    %33 = arith.maximumf %31, %32 : vector<64x64xf32>
    %cst_10 = arith.constant dense<0.000000e+00> : vector<64xf32>
    %34 = vector.multi_reduction <add>, %33, %cst_10 [0] : vector<64x64xf32> to vector<64xf32>
    %35 = vector.shape_cast %34 : vector<64xf32> to vector<1x64xf32>
    %cst_11 = arith.constant 6.400000e+01 : f32
    %36 = vector.broadcast %cst_11 : f32 to vector<1x64xf32>
    %37 = arith.divf %35, %36 : vector<1x64xf32>
    %c0_12 = arith.constant 0 : index
    %c0_13 = arith.constant 0 : index
    %38 = vector.load %arg6[%c0_12, %c0_13] : memref<64x4xf32, #tpu.memory_space<vmem>>, vector<64x4xf32>
    %cst_14 = arith.constant dense<0.000000e+00> : vector<1x4xf32>
    %39 = tpu.matmul %37, %38, %cst_14 {dimension_numbers = #tpu.dot_dimension_numbers<[1], [0], [0], [1], [0, 0, 1, 1], [], []>} : vector<1x64xf32>, vector<64x4xf32>, vector<1x4xf32> -> vector<1x4xf32>
    %c0_15 = arith.constant 0 : index
    %c0_16 = arith.constant 0 : index
    %40 = vector.load %arg7[%c0_15, %c0_16] : memref<1x4xf32, #tpu.memory_space<vmem>>, vector<1x4xf32>
    %41 = vector.shape_cast %40 : vector<1x4xf32> to vector<4xf32>
    %42 = vector.shape_cast %41 : vector<4xf32> to vector<1x4xf32>
    %43 = arith.addf %39, %42 : vector<1x4xf32>
    %cst_17 = arith.constant 0.000000e+00 : f32
    %44 = vector.broadcast %cst_17 : f32 to vector<1x4xf32>
    %45 = arith.maximumf %43, %44 : vector<1x4xf32>
    %c0_18 = arith.constant 0 : index
    %c0_19 = arith.constant 0 : index
    %46 = vector.load %arg8[%c0_18, %c0_19] : memref<4x64xf32, #tpu.memory_space<vmem>>, vector<4x64xf32>
    %cst_20 = arith.constant dense<0.000000e+00> : vector<1x64xf32>
    %47 = tpu.matmul %45, %46, %cst_20 {dimension_numbers = #tpu.dot_dimension_numbers<[1], [0], [0], [1], [0, 0, 1, 1], [], []>} : vector<1x4xf32>, vector<4x64xf32>, vector<1x64xf32> -> vector<1x64xf32>
    %c0_21 = arith.constant 0 : index
    %c0_22 = arith.constant 0 : index
    %48 = vector.load %arg9[%c0_21, %c0_22] : memref<1x64xf32, #tpu.memory_space<vmem>>, vector<1x64xf32>
    %49 = vector.shape_cast %48 : vector<1x64xf32> to vector<64xf32>
    %50 = vector.shape_cast %49 : vector<64xf32> to vector<1x64xf32>
    %51 = arith.addf %47, %50 : vector<1x64xf32>
    %52 = arith.negf %51 : vector<1x64xf32>
    %53 = math.exp %52 : vector<1x64xf32>
    %cst_23 = arith.constant 1.000000e+00 : f32
    %54 = vector.broadcast %cst_23 : f32 to vector<1x64xf32>
    %55 = arith.addf %54, %53 : vector<1x64xf32>
    %56 = arith.divf %54, %55 : vector<1x64xf32>
    %c0_24 = arith.constant 0 : index
    %c0_25 = arith.constant 0 : index
    %c0_26 = arith.constant 0 : index
    %c0_27 = arith.constant 0 : index
    %57 = vector.load %arg2[%c0_24, %c0_25, %c0_26, %c0_27] : memref<1x8x8x64xf32, #tpu.memory_space<vmem>>, vector<1x8x8x64xf32>
    %58 = vector.shape_cast %57 : vector<1x8x8x64xf32> to vector<8x8x64xf32>
    %59 = vector.shape_cast %58 : vector<8x8x64xf32> to vector<64x64xf32>
    %c0_28 = arith.constant 0 : index
    %c0_29 = arith.constant 0 : index
    %c0_30 = arith.constant 0 : index
    %c0_31 = arith.constant 0 : index
    %60 = vector.load %arg3[%c0_28, %c0_29, %c0_30, %c0_31] : memref<1x8x8x64xf32, #tpu.memory_space<vmem>>, vector<1x8x8x64xf32>
    %61 = vector.shape_cast %60 : vector<1x8x8x64xf32> to vector<8x8x64xf32>
    %62 = vector.shape_cast %61 : vector<8x8x64xf32> to vector<64x64xf32>
    %63 = vector.broadcast %56 : vector<1x64xf32> to vector<64x64xf32>
    %64 = arith.mulf %63, %59 : vector<64x64xf32>
    %65 = arith.addf %64, %62 : vector<64x64xf32>
    %66 = vector.shape_cast %65 : vector<64x64xf32> to vector<8x8x64xf32>
    %c0_32 = arith.constant 0 : index
    %c0_33 = arith.constant 0 : index
    %c0_34 = arith.constant 0 : index
    %c0_35 = arith.constant 0 : index
    %67 = vector.load %arg10[%c0_32, %c0_33, %c0_34, %c0_35] : memref<1x8x8x64xf32, #tpu.memory_space<vmem>>, vector<1x8x8x64xf32>
    %68 = vector.shape_cast %67 : vector<1x8x8x64xf32> to vector<8x8x64xf32>
    %69 = vector.shape_cast %66 : vector<8x8x64xf32> to vector<1x8x8x64xf32>
    tpu.vector_store %arg10[%c0_32, %c0_33, %c0_34, %c0_35], %69 {strides = array<i32>} : memref<1x8x8x64xf32, #tpu.memory_space<vmem>>, vector<1x8x8x64xf32>,
    return
  }
  func.func @transform_0(%arg0: i32) -> (i32, i32, i32, i32) {
    %c0_i32 = arith.constant 0 : i32
    %c0_i32_0 = arith.constant 0 : i32
    %c0_i32_1 = arith.constant 0 : i32
    %c0_i32_2 = arith.constant 0 : i32
    return %arg0, %c0_i32, %c0_i32_0, %c0_i32_1 : i32, i32, i32, i32
  }
  func.func @transform_1(%arg0: i32) -> (i32, i32, i32, i32) {
    %c0_i32 = arith.constant 0 : i32
    %c0_i32_0 = arith.constant 0 : i32
    %c0_i32_1 = arith.constant 0 : i32
    %c0_i32_2 = arith.constant 0 : i32
    return %arg0, %c0_i32, %c0_i32_0, %c0_i32_1 : i32, i32, i32, i32
  }
  func.func @transform_2(%arg0: i32) -> (i32, i32, i32, i32) {
    %c0_i32 = arith.constant 0 : i32
    %c0_i32_0 = arith.constant 0 : i32
    %c0_i32_1 = arith.constant 0 : i32
    %c0_i32_2 = arith.constant 0 : i32
    return %arg0, %c0_i32, %c0_i32_0, %c0_i32_1 : i32, i32, i32, i32
  }
  func.func @transform_3(%arg0: i32) -> (i32, i32) {
    %c0_i32 = arith.constant 0 : i32
    %c0_i32_0 = arith.constant 0 : i32
    %c0_i32_1 = arith.constant 0 : i32
    return %c0_i32, %c0_i32_0 : i32, i32
  }
  func.func @transform_4(%arg0: i32) -> (i32, i32) {
    %c0_i32 = arith.constant 0 : i32
    %c0_i32_0 = arith.constant 0 : i32
    %c0_i32_1 = arith.constant 0 : i32
    return %c0_i32, %c0_i32_0 : i32, i32
  }
  func.func @transform_5(%arg0: i32) -> (i32, i32) {
    %c0_i32 = arith.constant 0 : i32
    %c0_i32_0 = arith.constant 0 : i32
    %c0_i32_1 = arith.constant 0 : i32
    return %c0_i32, %c0_i32_0 : i32, i32
  }
  func.func @transform_6(%arg0: i32) -> (i32, i32) {
    %c0_i32 = arith.constant 0 : i32
    %c0_i32_0 = arith.constant 0 : i32
    %c0_i32_1 = arith.constant 0 : i32
    return %c0_i32, %c0_i32_0 : i32, i32
  }
  func.func @transform_7(%arg0: i32) -> (i32, i32) {
    %c0_i32 = arith.constant 0 : i32
    %c0_i32_0 = arith.constant 0 : i32
    %c0_i32_1 = arith.constant 0 : i32
    return %c0_i32, %c0_i32_0 : i32, i32
  }
  func.func @transform_8(%arg0: i32) -> (i32, i32) {
    %c0_i32 = arith.constant 0 : i32
    %c0_i32_0 = arith.constant 0 : i32
    %c0_i32_1 = arith.constant 0 : i32
    return %c0_i32, %c0_i32_0 : i32, i32
  }
  func.func @transform_9(%arg0: i32) -> (i32, i32, i32, i32) {
    %c0_i32 = arith.constant 0 : i32
    %c0_i32_0 = arith.constant 0 : i32
    %c0_i32_1 = arith.constant 0 : i32
    %c0_i32_2 = arith.constant 0 : i32
    return %arg0, %c0_i32, %c0_i32_0, %c0_i32_1 : i32, i32, i32, i32
  }
}

</mosaic_0001>

<llo_original>
// kernel: sft_fcab_forward.3
$region0: #{sft_fcab_forward.3}
  #allocation0 [shape = 'u32[]', space=smem, size = 0x4, offset = 0x4, fixed_abs, tag = 'smem constant byte address 0x4 - core index']
  #allocation1 [shape = 'u32[144,128]{1,0:T(1,128)}', space=vmem, size = 0x12000, scoped, tag = 'internal scratch']
  %s0 = inlined_call_operand.vmem [shape: f32[2,8,8,64], index: 0, kind: input, shape index: {}]
  %s1 = inlined_call_operand.vmem [shape: f32[2,8,8,9], index: 1, kind: input, shape index: {}]
  %s2 = inlined_call_operand.vmem [shape: f32[657,64], index: 2, kind: input, shape index: {}]
  %s3 = inlined_call_operand.vmem [shape: f32[1,64], index: 3, kind: input, shape index: {}]
  %s4 = inlined_call_operand.vmem [shape: f32[576,128], index: 4, kind: input, shape index: {}]
  %s5 = inlined_call_operand.vmem [shape: f32[1,128], index: 5, kind: input, shape index: {}]
  %s6 = inlined_call_operand.vmem [shape: f32[2,8,8,64], index: 6, kind: output, shape index: {}]
  %s7 = sld [smem:[#allocation0]]
  $region57: #{sft_fcab_forward.3} parent=0
    _
  %s9 = ssub.s32 1, %s7
  %s10 = scalar_select 0, %s9, %s7
  loop: start=0, step=1, limit=4
  $region2: #{sft_fcab_forward.3} parent=0 // loop_pre_header
    _
  $region3: #{sft_fcab_forward.3} parent=0 // loop_header
    %s12 = sphi 0, %s16
    %p13 = scmp.ge.s32.totalorder %s12, 4
    %s22 = sphi 0, %s24
    %s25 = sphi 0, %s22
    %s26 = sphi 0, %s25
    %s42 = sphi 0, %s26
    %s48 = sphi 0, %s50
    %s51 = sphi 0, %s48
    %s52 = sphi 0, %s51
    %s68 = sphi 0, %s52
    %s72 = sphi 0, %s72
    %s74 = sphi 0, %s72
    %s75 = sphi 0, %s74
    %s89 = sphi 0, %s75
    %s93 = sphi 0, %s93
    %s95 = sphi 0, %s93
    %s96 = sphi 0, %s95
    %s110 = sphi 0, %s96
    %s114 = sphi 0, %s114
    %s116 = sphi 0, %s114
    %s117 = sphi 0, %s116
    %s131 = sphi 0, %s117
    %s135 = sphi 0, %s135
    %s137 = sphi 0, %s135
    %s138 = sphi 0, %s137
    %s152 = sphi 0, %s138
    %s158 = sphi 0, %s160
    %s161 = sphi 0, %s158
    %s162 = sphi 0, %s161
    %s178 = sphi 0, %s162
  $region4: #{sft_fcab_forward.3} parent=0 // loop_header_branch
    %15 = sbr.rel (%p13) target = $region8
  $region5: #{sft_fcab_forward.3} parent=0 // loop_body
    %s17 = ssub.s32 %s12, 1
    %s18 = ssub.s32 %s12, 2
    %s19 = sadd.s32 %s12, 1
    %s20 = ssub.s32 %s12, %s19
    %p21 = scmp.eq.s32.totalorder %s20, 0
    %s23 = sadd.s32 %s22, 1
    %s24 = scalar_select %p21, %s22, %s23
    %p27 = pneg %p21
    %p28 = scmp.eq.s32.totalorder %s12, 1
    %p29 = por %p27, %p28
    %p30 = scmp.ne.s32.totalorder %s22, %s25
    %p31 = scmp.eq.s32.totalorder %s12, 0
    %p32 = por %p30, %p31
    %p33 = scmp.ne.s32.totalorder %s22, %s25
    %p34 = scmp.eq.s32.totalorder %s17, 1
    %p35 = por %p33, %p34
    %p36 = scmp.ne.s32.totalorder %s25, %s26
    %p37 = scmp.eq.s32.totalorder %s17, 0
    %p38 = por %p36, %p37
    %p39 = scmp.ne.s32.totalorder %s25, %s26
    %p40 = scmp.eq.s32.totalorder %s18, 1
    %p41 = por %p39, %p40
    %p43 = scmp.ne.s32.totalorder %s26, %s42
    %p44 = scmp.eq.s32.totalorder %s18, 0
    %p45 = por %p43, %p44
    %s46 = ssub.s32 %s12, %s19
    %p47 = scmp.eq.s32.totalorder %s46, 0
    %s49 = sadd.s32 %s48, 1
    %s50 = scalar_select %p47, %s48, %s49
    %p53 = pneg %p47
    %p54 = scmp.eq.s32.totalorder %s12, 1
    %p55 = por %p53, %p54
    %p56 = scmp.ne.s32.totalorder %s48, %s51
    %p57 = scmp.eq.s32.totalorder %s12, 0
    %p58 = por %p56, %p57
    %p59 = scmp.ne.s32.totalorder %s48, %s51
    %p60 = scmp.eq.s32.totalorder %s17, 1
    %p61 = por %p59, %p60
    %p62 = scmp.ne.s32.totalorder %s51, %s52
    %p63 = scmp.eq.s32.totalorder %s17, 0
    %p64 = por %p62, %p63
    %p65 = scmp.ne.s32.totalorder %s51, %s52
    %p66 = scmp.eq.s32.totalorder %s18, 1
    %p67 = por %p65, %p66
    %p69 = scmp.ne.s32.totalorder %s52, %s68
    %p70 = scmp.eq.s32.totalorder %s18, 0
    %p71 = por %p69, %p70
    %s73 = sadd.s32 %s72, 1
    %p76 = scmp.eq.s32.totalorder %s12, 1
    %p77 = scmp.ne.s32.totalorder %s72, %s74
    %p78 = scmp.eq.s32.totalorder %s12, 0
    %p79 = por %p77, %p78
    %p80 = scmp.ne.s32.totalorder %s72, %s74
    %p81 = scmp.eq.s32.totalorder %s17, 1
    %p82 = por %p80, %p81
    %p83 = scmp.ne.s32.totalorder %s74, %s75
    %p84 = scmp.eq.s32.totalorder %s17, 0
    %p85 = por %p83, %p84
    %p86 = scmp.ne.s32.totalorder %s74, %s75
    %p87 = scmp.eq.s32.totalorder %s18, 1
    %p88 = por %p86, %p87
    %p90 = scmp.ne.s32.totalorder %s75, %s89
    %p91 = scmp.eq.s32.totalorder %s18, 0
    %p92 = por %p90, %p91
    %s94 = sadd.s32 %s93, 1
    %p97 = scmp.eq.s32.totalorder %s12, 1
    %p98 = scmp.ne.s32.totalorder %s93, %s95
    %p99 = scmp.eq.s32.totalorder %s12, 0
    %p100 = por %p98, %p99
    %p101 = scmp.ne.s32.totalorder %s93, %s95
    %p102 = scmp.eq.s32.totalorder %s17, 1
    %p103 = por %p101, %p102
    %p104 = scmp.ne.s32.totalorder %s95, %s96
    %p105 = scmp.eq.s32.totalorder %s17, 0
    %p106 = por %p104, %p105
    %p107 = scmp.ne.s32.totalorder %s95, %s96
    %p108 = scmp.eq.s32.totalorder %s18, 1
    %p109 = por %p107, %p108
    %p111 = scmp.ne.s32.totalorder %s96, %s110
    %p112 = scmp.eq.s32.totalorder %s18, 0
    %p113 = por %p111, %p112
    %s115 = sadd.s32 %s114, 1
    %p118 = scmp.eq.s32.totalorder %s12, 1
    %p119 = scmp.ne.s32.totalorder %s114, %s116
    %p120 = scmp.eq.s32.totalorder %s12, 0
    %p121 = por %p119, %p120
    %p122 = scmp.ne.s32.totalorder %s114, %s116
    %p123 = scmp.eq.s32.totalorder %s17, 1
    %p124 = por %p122, %p123
    %p125 = scmp.ne.s32.totalorder %s116, %s117
    %p126 = scmp.eq.s32.totalorder %s17, 0
    %p127 = por %p125, %p126
    %p128 = scmp.ne.s32.totalorder %s116, %s117
    %p129 = scmp.eq.s32.totalorder %s18, 1
    %p130 = por %p128, %p129
    %p132 = scmp.ne.s32.totalorder %s117, %s131
    %p133 = scmp.eq.s32.totalorder %s18, 0
    %p134 = por %p132, %p133
    %s136 = sadd.s32 %s135, 1
    %p139 = scmp.eq.s32.totalorder %s12, 1
    %p140 = scmp.ne.s32.totalorder %s135, %s137
    %p141 = scmp.eq.s32.totalorder %s12, 0
    %p142 = por %p140, %p141
    %p143 = scmp.ne.s32.totalorder %s135, %s137
    %p144 = scmp.eq.s32.totalorder %s17, 1
    %p145 = por %p143, %p144
    %p146 = scmp.ne.s32.totalorder %s137, %s138
    %p147 = scmp.eq.s32.totalorder %s17, 0
    %p148 = por %p146, %p147
    %p149 = scmp.ne.s32.totalorder %s137, %s138
    %p150 = scmp.eq.s32.totalorder %s18, 1
    %p151 = por %p149, %p150
    %p153 = scmp.ne.s32.totalorder %s138, %s152
    %p154 = scmp.eq.s32.totalorder %s18, 0
    %p155 = por %p153, %p154
    %s156 = ssub.s32 %s12, %s19
    %p157 = scmp.eq.s32.totalorder %s156, 0
    %s159 = sadd.s32 %s158, 1
    %s160 = scalar_select %p157, %s158, %s159
    %p163 = pneg %p157
    %p164 = scmp.eq.s32.totalorder %s12, 1
    %p165 = por %p163, %p164
    %p166 = scmp.ne.s32.totalorder %s158, %s161
    %p167 = scmp.eq.s32.totalorder %s12, 0
    %p168 = por %p166, %p167
    %p169 = scmp.ne.s32.totalorder %s158, %s161
    %p170 = scmp.eq.s32.totalorder %s17, 1
    %p171 = por %p169, %p170
    %p172 = scmp.ne.s32.totalorder %s161, %s162
    %p173 = scmp.eq.s32.totalorder %s17, 0
    %p174 = por %p172, %p173
    %p175 = scmp.ne.s32.totalorder %s161, %s162
    %p176 = scmp.eq.s32.totalorder %s18, 1
    %p177 = por %p175, %p176
    %p179 = scmp.ne.s32.totalorder %s162, %s178
    %p180 = scmp.eq.s32.totalorder %s18, 0
    %p181 = por %p179, %p180
    %p182 = scmp.le.s32.totalorder 1, %s12
    %p183 = scmp.lt.s32.totalorder %s12, 3
    %p184 = pnand %p182, %p183
    %p185 = pneg %p184
    // Predicated region
    $region9: #{sft_fcab_forward.3} parent=5 // pred_check
      _
    $region10: #{sft_fcab_forward.3} parent=5 // pred_check_branch
      %187 = sbr.rel (%p184) target = $region12
    $region11: #{sft_fcab_forward.3} parent=5 // pred_region
      %s188 = ssub.s32 %s12, 1
      // Predicated region
      $region13: #{sft_fcab_forward.3} parent=11 // pred_check
        %p189 = pneg %p85
      $region14: #{sft_fcab_forward.3} parent=11 // pred_check_branch
        %191 = sbr.rel (%p189) target = $region16
      $region15: #{sft_fcab_forward.3} parent=11 // pred_region
        _
      $region16: #{sft_fcab_forward.3} parent=11 // pred_fallthru
        _
      // Predicated region
      $region17: #{sft_fcab_forward.3} parent=11 // pred_check
        %p192 = pneg %p106
      $region18: #{sft_fcab_forward.3} parent=11 // pred_check_branch
        %194 = sbr.rel (%p192) target = $region20
      $region19: #{sft_fcab_forward.3} parent=11 // pred_region
        _
      $region20: #{sft_fcab_forward.3} parent=11 // pred_fallthru
        _
      // Predicated region
      $region21: #{sft_fcab_forward.3} parent=11 // pred_check
        %p195 = pneg %p127
      $region22: #{sft_fcab_forward.3} parent=11 // pred_check_branch
        %197 = sbr.rel (%p195) target = $region24
      $region23: #{sft_fcab_forward.3} parent=11 // pred_region
        _
      $region24: #{sft_fcab_forward.3} parent=11 // pred_fallthru
        _
      // Predicated region
      $region25: #{sft_fcab_forward.3} parent=11 // pred_check
        %p198 = pneg %p148
      $region26: #{sft_fcab_forward.3} parent=11 // pred_check_branch
        %200 = sbr.rel (%p198) target = $region28
      $region27: #{sft_fcab_forward.3} parent=11 // pred_region
        _
      $region28: #{sft_fcab_forward.3} parent=11 // pred_fallthru
        _
    $region12: #{sft_fcab_forward.3} parent=5 // pred_fallthru
      _
    %p201 = scmp.lt.s32.totalorder %s12, 2
    // Predicated region
    $region29: #{sft_fcab_forward.3} parent=5 // pred_check
      %p202 = pneg %p201
    $region30: #{sft_fcab_forward.3} parent=5 // pred_check_branch
      %204 = sbr.rel (%p202) target = $region32
    $region31: #{sft_fcab_forward.3} parent=5 // pred_region
      // Predicated region
      $region33: #{sft_fcab_forward.3} parent=31 // pred_check
        %p205 = pneg %p32
      $region34: #{sft_fcab_forward.3} parent=31 // pred_check_branch
        %207 = sbr.rel (%p205) target = $region36
      $region35: #{sft_fcab_forward.3} parent=31 // pred_region
        %p208 = scmp.lt.s32.totalorder %s12, 1
        %s209 = scalar_select %p208, %s12, 1
        %s210 = smul.addr %s209, 8
        %s211 = smul.addr %s210, 8
        %s212 = scalar_lea.vmem %s0, %s211
      $region36: #{sft_fcab_forward.3} parent=31 // pred_fallthru
        _
      // Predicated region
      $region37: #{sft_fcab_forward.3} parent=31 // pred_check
        %p213 = pneg %p58
      $region38: #{sft_fcab_forward.3} parent=31 // pred_check_branch
        %215 = sbr.rel (%p213) target = $region40
      $region39: #{sft_fcab_forward.3} parent=31 // pred_region
        %p216 = scmp.lt.s32.totalorder %s12, 1
        %s217 = scalar_select %p216, %s12, 1
        %s218 = smul.addr %s217, 8
        %s219 = smul.addr %s218, 8
        %s220 = scalar_lea.vmem %s1, %s219
      $region40: #{sft_fcab_forward.3} parent=31 // pred_fallthru
        _
    $region32: #{sft_fcab_forward.3} parent=5 // pred_fallthru
      _
    %p221 = scmp.le.s32.totalorder 1, %s12
    %p222 = scmp.lt.s32.totalorder %s12, 3
    %p223 = pnand %p221, %p222
    %p224 = pneg %p223
    // Predicated region
    $region41: #{sft_fcab_forward.3} parent=5 // pred_check
      _
    $region42: #{sft_fcab_forward.3} parent=5 // pred_check_branch
      %226 = sbr.rel (%p223) target = $region44
    $region43: #{sft_fcab_forward.3} parent=5 // pred_region
      %s227 = ssub.s32 %s12, 1
      %p228 = scmp.lt.s32.totalorder %s17, 1
      %s229 = scalar_select %p228, %s17, 1
      %s230 = smul.addr %s229, 8
      %s231 = smul.addr %s230, 8
      %s232 = scalar_lea.vmem %s0, %s231
      %p233 = pneg %p38
      %p234 = pneg %p35
      %p235 = scmp.lt.s32.totalorder %s17, 1
      %s236 = scalar_select %p235, %s17, 1
      %s237 = smul.addr %s236, 8
      %s238 = smul.addr %s237, 8
      %s239 = scalar_lea.vmem %s1, %s238
      %p240 = pneg %p64
      %p241 = pneg %p61
      %p242 = pneg %p85
      %p243 = pneg %p82
      %p244 = pneg %p106
      %p245 = pneg %p103
      %p246 = pneg %p127
      %p247 = pneg %p124
      %p248 = pneg %p148
      %p249 = pneg %p145
      %p250 = pneg %p174
      %p251 = pneg %p171
      %p252 = scmp.lt.s32.totalorder %s17, 1
      %s253 = scalar_select %p252, %s17, 1
      %s254 = smul.addr %s253, 8
      %s255 = smul.addr %s254, 8
      %s256 = scalar_lea.vmem %s6, %s255
      %p257 = scmp.lt.s32.totalorder %s17, 1
      %s258 = scalar_select %p257, %s17, 1
      %s259 = smul.addr %s258, 8
      %s260 = smul.addr %s259, 8
      %s261 = scalar_lea.vmem %s0, %s260
      %p262 = scmp.lt.s32.totalorder %s17, 1
      %s263 = scalar_select %p262, %s17, 1
      %s264 = smul.addr %s263, 8
      %s265 = smul.addr %s264, 8
      %s266 = scalar_lea.vmem %s1, %s265
      %p267 = scmp.lt.s32.totalorder %s17, 1
      %s268 = scalar_select %p267, %s17, 1
      %s269 = smul.addr %s268, 8
      %s270 = smul.addr %s269, 8
      %s271 = scalar_lea.vmem %s6, %s270
      %v272 = vld [vmem:[%s261] sm:$0xff]
      %v273 = vld [vmem:[%s261 + $0x8] sm:$0xff]
      %v274 = vld [vmem:[%s261 + $0x10] sm:$0xff]
      %v275 = vld [vmem:[%s261 + $0x18] sm:$0xff]
      %v276 = vld [vmem:[%s261 + $0x20] sm:$0xff]
      %v277 = vld [vmem:[%s261 + $0x28] sm:$0xff]
      %v278 = vld [vmem:[%s261 + $0x30] sm:$0xff]
      %v279 = vld [vmem:[%s261 + $0x38] sm:$0xff]
      %v280 = vld [vmem:[%s266] sm:$0xff]
      %v281 = vld [vmem:[%s266 + $0x8] sm:$0xff]
      %v282 = vld [vmem:[%s266 + $0x10] sm:$0xff]
      %v283 = vld [vmem:[%s266 + $0x18] sm:$0xff]
      %v284 = vld [vmem:[%s266 + $0x20] sm:$0xff]
      %v285 = vld [vmem:[%s266 + $0x28] sm:$0xff]
      %v286 = vld [vmem:[%s266 + $0x30] sm:$0xff]
      %v287 = vld [vmem:[%s266 + $0x38] sm:$0xff]
      %296 = vrot.lane.b32.xlu0 %v280, 64
      %v297 = vpop.permute.xlu0 %296
      %298 = vrot.lane.b32.xlu0 %v281, 64
      %v299 = vpop.permute.xlu0 %298
      %300 = vrot.lane.b32.xlu0 %v282, 64
      %v301 = vpop.permute.xlu0 %300
      %302 = vrot.lane.b32.xlu0 %v283, 64
      %v303 = vpop.permute.xlu0 %302
      %304 = vrot.lane.b32.xlu0 %v284, 64
      %v305 = vpop.permute.xlu0 %304
      %306 = vrot.lane.b32.xlu0 %v285, 64
      %v307 = vpop.permute.xlu0 %306
      %308 = vrot.lane.b32.xlu0 %v286, 64
      %v309 = vpop.permute.xlu0 %308
      %310 = vrot.lane.b32.xlu0 %v287, 64
      %v311 = vpop.permute.xlu0 %310
      %vm320 = vcmask 523264
      %v321 = vsel %vm320, %v272, %v297
      %v322 = vsel %vm320, %v273, %v299
      %v323 = vsel %vm320, %v274, %v301
      %v324 = vsel %vm320, %v275, %v303
      %v325 = vsel %vm320, %v276, %v305
      %v326 = vsel %vm320, %v277, %v307
      %v327 = vsel %vm320, %v278, %v309
      %v328 = vsel %vm320, %v279, %v311
      %v338 = vrot.slane 0.0, 7
      %v339 = vrot.slane %v321, 7
      %v340 = vrot.slane %v322, 7
      %v341 = vrot.slane %v323, 7
      %v342 = vrot.slane %v324, 7
      %v343 = vrot.slane %v325, 7
      %v344 = vrot.slane %v326, 7
      %v345 = vrot.slane %v327, 7
      %v346 = vrot.slane %v328, 7
      %vm356 = vcmask 1040384
      %v357 = vsel %vm356, 0.0, %v338
      %v358 = vsel %vm356, 0.0, %v339
      %v359 = vsel %vm356, 0.0, %v340
      %v360 = vsel %vm356, 0.0, %v341
      %v361 = vsel %vm356, 0.0, %v342
      %v362 = vsel %vm356, 0.0, %v343
      %v363 = vsel %vm356, 0.0, %v344
      %v364 = vsel %vm356, 0.0, %v345
      %v365 = vsel %vm356, 0.0, %v346
      %v366 = vsel %vm356, %v338, 0.0
      %v367 = vsel %vm356, %v339, 0.0
      %v368 = vsel %vm356, %v340, 0.0
      %v369 = vsel %vm356, %v341, 0.0
      %v370 = vsel %vm356, %v342, 0.0
      %v371 = vsel %vm356, %v343, 0.0
      %v372 = vsel %vm356, %v344, 0.0
      %v373 = vsel %vm356, %v345, 0.0
      %v374 = vsel %vm356, %v346, 0.0
      %vm391 = vcmask 1046528
      %v392 = vrot.slane %v357, 1
      %v393 = vrot.slane %v366, 1
      %v394 = vsel %vm391, %v392, %v393
      %v395 = vrot.slane %v358, 1
      %v396 = vrot.slane %v367, 1
      %v397 = vsel %vm391, %v395, %v396
      %v398 = vrot.slane %v359, 1
      %v399 = vrot.slane %v368, 1
      %v400 = vsel %vm391, %v398, %v399
      %v401 = vrot.slane %v360, 1
      %v402 = vrot.slane %v369, 1
      %v403 = vsel %vm391, %v401, %v402
      %v404 = vrot.slane %v361, 1
      %v405 = vrot.slane %v370, 1
      %v406 = vsel %vm391, %v404, %v405
      %v407 = vrot.slane %v362, 1
      %v408 = vrot.slane %v371, 1
      %v409 = vsel %vm391, %v407, %v408
      %v410 = vrot.slane %v363, 1
      %v411 = vrot.slane %v372, 1
      %v412 = vsel %vm391, %v410, %v411
      %v413 = vrot.slane %v364, 1
      %v414 = vrot.slane %v373, 1
      %v415 = vsel %vm391, %v413, %v414
      %vm416 = vcmask 1045504
      %v417 = vrot.slane %v357, 2
      %v418 = vrot.slane %v366, 2
      %v419 = vsel %vm416, %v417, %v418
      %v420 = vrot.slane %v358, 2
      %v421 = vrot.slane %v367, 2
      %v422 = vsel %vm416, %v420, %v421
      %v423 = vrot.slane %v359, 2
      %v424 = vrot.slane %v368, 2
      %v425 = vsel %vm416, %v423, %v424
      %v426 = vrot.slane %v360, 2
      %v427 = vrot.slane %v369, 2
      %v428 = vsel %vm416, %v426, %v427
      %v429 = vrot.slane %v361, 2
      %v430 = vrot.slane %v370, 2
      %v431 = vsel %vm416, %v429, %v430
      %v432 = vrot.slane %v362, 2
      %v433 = vrot.slane %v371, 2
      %v434 = vsel %vm416, %v432, %v433
      %v435 = vrot.slane %v363, 2
      %v436 = vrot.slane %v372, 2
      %v437 = vsel %vm416, %v435, %v436
      %v438 = vrot.slane %v364, 2
      %v439 = vrot.slane %v373, 2
      %v440 = vsel %vm416, %v438, %v439
      %v443 = vrot.slane %v365, 1
      %v444 = vrot.slane %v374, 1
      %v445 = vsel %vm391, %v443, %v444
      %v446 = vrot.slane %v365, 2
      %v447 = vrot.slane %v374, 2
      %v448 = vsel %vm416, %v446, %v447
      %449 = vrot.lane.b32.xlu0 %v394, 73
      %v450 = vpop.permute.xlu0 %449
      %451 = vrot.lane.b32.xlu0 %v397, 73
      %v452 = vpop.permute.xlu0 %451
      %453 = vrot.lane.b32.xlu0 %v400, 73
      %v454 = vpop.permute.xlu0 %453
      %455 = vrot.lane.b32.xlu0 %v403, 73
      %v456 = vpop.permute.xlu0 %455
      %457 = vrot.lane.b32.xlu0 %v406, 73
      %v458 = vpop.permute.xlu0 %457
      %459 = vrot.lane.b32.xlu0 %v409, 73
      %v460 = vpop.permute.xlu0 %459
      %461 = vrot.lane.b32.xlu0 %v412, 73
      %v462 = vpop.permute.xlu0 %461
      %463 = vrot.lane.b32.xlu0 %v415, 73
      %v464 = vpop.permute.xlu0 %463
      %473 = vrot.lane.b32.xlu0 %v419, 18
      %v474 = vpop.permute.xlu0 %473
      %475 = vrot.lane.b32.xlu0 %v422, 18
      %v476 = vpop.permute.xlu0 %475
      %477 = vrot.lane.b32.xlu0 %v425, 18
      %v478 = vpop.permute.xlu0 %477
      %479 = vrot.lane.b32.xlu0 %v428, 18
      %v480 = vpop.permute.xlu0 %479
      %481 = vrot.lane.b32.xlu0 %v431, 18
      %v482 = vpop.permute.xlu0 %481
      %483 = vrot.lane.b32.xlu0 %v434, 18
      %v484 = vpop.permute.xlu0 %483
      %485 = vrot.lane.b32.xlu0 %v437, 18
      %v486 = vpop.permute.xlu0 %485
      %487 = vrot.lane.b32.xlu0 %v440, 18
      %v488 = vpop.permute.xlu0 %487
      %497 = vrot.lane.b32.xlu0 %v358, 91
      %v498 = vpop.permute.xlu0 %497
      %499 = vrot.lane.b32.xlu0 %v359, 91
      %v500 = vpop.permute.xlu0 %499
      %501 = vrot.lane.b32.xlu0 %v360, 91
      %v502 = vpop.permute.xlu0 %501
      %503 = vrot.lane.b32.xlu0 %v361, 91
      %v504 = vpop.permute.xlu0 %503
      %505 = vrot.lane.b32.xlu0 %v362, 91
      %v506 = vpop.permute.xlu0 %505
      %507 = vrot.lane.b32.xlu0 %v363, 91
      %v508 = vpop.permute.xlu0 %507
      %509 = vrot.lane.b32.xlu0 %v364, 91
      %v510 = vpop.permute.xlu0 %509
      %511 = vrot.lane.b32.xlu0 %v365, 91
      %v512 = vpop.permute.xlu0 %511
      %521 = vrot.lane.b32.xlu0 %v397, 36
      %v522 = vpop.permute.xlu0 %521
      %523 = vrot.lane.b32.xlu0 %v400, 36
      %v524 = vpop.permute.xlu0 %523
      %525 = vrot.lane.b32.xlu0 %v403, 36
      %v526 = vpop.permute.xlu0 %525
      %527 = vrot.lane.b32.xlu0 %v406, 36
      %v528 = vpop.permute.xlu0 %527
      %529 = vrot.lane.b32.xlu0 %v409, 36
      %v530 = vpop.permute.xlu0 %529
      %531 = vrot.lane.b32.xlu0 %v412, 36
      %v532 = vpop.permute.xlu0 %531
      %533 = vrot.lane.b32.xlu0 %v415, 36
      %v534 = vpop.permute.xlu0 %533
      %535 = vrot.lane.b32.xlu0 %v445, 36
      %v536 = vpop.permute.xlu0 %535
      %545 = vrot.lane.b32.xlu0 %v422, 109
      %v546 = vpop.permute.xlu0 %545
      %547 = vrot.lane.b32.xlu0 %v425, 109
      %v548 = vpop.permute.xlu0 %547
      %549 = vrot.lane.b32.xlu0 %v428, 109
      %v550 = vpop.permute.xlu0 %549
      %551 = vrot.lane.b32.xlu0 %v431, 109
      %v552 = vpop.permute.xlu0 %551
      %553 = vrot.lane.b32.xlu0 %v434, 109
      %v554 = vpop.permute.xlu0 %553
      %555 = vrot.lane.b32.xlu0 %v437, 109
      %v556 = vpop.permute.xlu0 %555
      %557 = vrot.lane.b32.xlu0 %v440, 109
      %v558 = vpop.permute.xlu0 %557
      %559 = vrot.lane.b32.xlu0 %v448, 109
      %v560 = vpop.permute.xlu0 %559
      %569 = vrot.lane.b32.xlu0 %v359, 54
      %v570 = vpop.permute.xlu0 %569
      %571 = vrot.lane.b32.xlu0 %v360, 54
      %v572 = vpop.permute.xlu0 %571
      %573 = vrot.lane.b32.xlu0 %v361, 54
      %v574 = vpop.permute.xlu0 %573
      %575 = vrot.lane.b32.xlu0 %v362, 54
      %v576 = vpop.permute.xlu0 %575
      %577 = vrot.lane.b32.xlu0 %v363, 54
      %v578 = vpop.permute.xlu0 %577
      %579 = vrot.lane.b32.xlu0 %v364, 54
      %v580 = vpop.permute.xlu0 %579
      %581 = vrot.lane.b32.xlu0 %v365, 54
      %v582 = vpop.permute.xlu0 %581
      %583 = vrot.lane.b32.xlu0 %v357, 54
      %v584 = vpop.permute.xlu0 %583
      %593 = vrot.lane.b32.xlu0 %v400, 127
      %v594 = vpop.permute.xlu0 %593
      %595 = vrot.lane.b32.xlu0 %v403, 127
      %v596 = vpop.permute.xlu0 %595
      %597 = vrot.lane.b32.xlu0 %v406, 127
      %v598 = vpop.permute.xlu0 %597
      %599 = vrot.lane.b32.xlu0 %v409, 127
      %v600 = vpop.permute.xlu0 %599
      %601 = vrot.lane.b32.xlu0 %v412, 127
      %v602 = vpop.permute.xlu0 %601
      %603 = vrot.lane.b32.xlu0 %v415, 127
      %v604 = vpop.permute.xlu0 %603
      %605 = vrot.lane.b32.xlu0 %v445, 127
      %v606 = vpop.permute.xlu0 %605
      %607 = vrot.lane.b32.xlu0 %v394, 127
      %v608 = vpop.permute.xlu0 %607
      %617 = vrot.lane.b32.xlu0 %v425, 72
      %v618 = vpop.permute.xlu0 %617
      %619 = vrot.lane.b32.xlu0 %v428, 72
      %v620 = vpop.permute.xlu0 %619
      %621 = vrot.lane.b32.xlu0 %v431, 72
      %v622 = vpop.permute.xlu0 %621
      %623 = vrot.lane.b32.xlu0 %v434, 72
      %v624 = vpop.permute.xlu0 %623
      %625 = vrot.lane.b32.xlu0 %v437, 72
      %v626 = vpop.permute.xlu0 %625
      %627 = vrot.lane.b32.xlu0 %v440, 72
      %v628 = vpop.permute.xlu0 %627
      %629 = vrot.lane.b32.xlu0 %v448, 72
      %v630 = vpop.permute.xlu0 %629
      %631 = vrot.lane.b32.xlu0 %v419, 72
      %v632 = vpop.permute.xlu0 %631
      %vm641 = vcmask 596992
      %v642 = vsel %vm641, %v357, %v450
      %v643 = vsel %vm641, %v358, %v452
      %v644 = vsel %vm641, %v359, %v454
      %v645 = vsel %vm641, %v360, %v456
      %v646 = vsel %vm641, %v361, %v458
      %v647 = vsel %vm641, %v362, %v460
      %v648 = vsel %vm641, %v363, %v462
      %v649 = vsel %vm641, %v364, %v464
      %vm650 = vcmask 146432
      %v651 = vsel %vm650, %v450, %v474
      %v652 = vsel %vm650, %v452, %v476
      %v653 = vsel %vm650, %v454, %v478
      %v654 = vsel %vm650, %v456, %v480
      %v655 = vsel %vm650, %v458, %v482
      %v656 = vsel %vm650, %v460, %v484
      %v657 = vsel %vm650, %v462, %v486
      %v658 = vsel %vm650, %v464, %v488
      %vm659 = vcmask 744448
      %v660 = vsel %vm659, %v651, %v498
      %v661 = vsel %vm659, %v652, %v500
      %v662 = vsel %vm659, %v653, %v502
      %v663 = vsel %vm659, %v654, %v504
      %v664 = vsel %vm659, %v655, %v506
      %v665 = vsel %vm659, %v656, %v508
      %v666 = vsel %vm659, %v657, %v510
      %v667 = vsel %vm659, %v658, %v512
      %vm668 = vcmask 293888
      %v669 = vsel %vm668, %v498, %v522
      %v670 = vsel %vm668, %v500, %v524
      %v671 = vsel %vm668, %v502, %v526
      %v672 = vsel %vm668, %v504, %v528
      %v673 = vsel %vm668, %v506, %v530
      %v674 = vsel %vm668, %v508, %v532
      %v675 = vsel %vm668, %v510, %v534
      %v676 = vsel %vm668, %v512, %v536
      %vm677 = vcmask 891904
      %v678 = vsel %vm677, %v669, %v546
      %v679 = vsel %vm677, %v670, %v548
      %v680 = vsel %vm677, %v671, %v550
      %v681 = vsel %vm677, %v672, %v552
      %v682 = vsel %vm677, %v673, %v554
      %v683 = vsel %vm677, %v674, %v556
      %v684 = vsel %vm677, %v675, %v558
      %v685 = vsel %vm677, %v676, %v560
      %vm686 = vcmask 441344
      %v687 = vsel %vm686, %v546, %v570
      %v688 = vsel %vm686, %v548, %v572
      %v689 = vsel %vm686, %v550, %v574
      %v690 = vsel %vm686, %v552, %v576
      %v691 = vsel %vm686, %v554, %v578
      %v692 = vsel %vm686, %v556, %v580
      %v693 = vsel %vm686, %v558, %v582
      %v694 = vsel %vm686, %v560, %v584
      %vm695 = vcmask 1039360
      %v696 = vsel %vm695, %v687, %v594
      %v697 = vsel %vm695, %v688, %v596
      %v698 = vsel %vm695, %v689, %v598
      %v699 = vsel %vm695, %v690, %v600
      %v700 = vsel %vm695, %v691, %v602
      %v701 = vsel %vm695, %v692, %v604
      %v702 = vsel %vm695, %v693, %v606
      %v703 = vsel %vm695, %v694, %v608
      %vm704 = vcmask 588800
      %v705 = vsel %vm704, %v594, %v618
      %v706 = vsel %vm704, %v596, %v620
      %v707 = vsel %vm704, %v598, %v622
      %v708 = vsel %vm704, %v600, %v624
      %v709 = vsel %vm704, %v602, %v626
      %v710 = vsel %vm704, %v604, %v628
      %v711 = vsel %vm704, %v606, %v630
      %v712 = vsel %vm704, %v608, %v632
      %v713 = vld [vmem:[%s2] sm:$0xff]
      %v714 = vld [vmem:[%s2 + $0x8] sm:$0xff]
      %v715 = vld [vmem:[%s2 + $0x10] sm:$0xff]
      %v716 = vld [vmem:[%s2 + $0x18] sm:$0xff]
      %v717 = vld [vmem:[%s2 + $0x20] sm:$0xff]
      %v718 = vld [vmem:[%s2 + $0x28] sm:$0xff]
      %v719 = vld [vmem:[%s2 + $0x30] sm:$0xff]
      %v720 = vld [vmem:[%s2 + $0x38] sm:$0xff]
      %v721 = vld [vmem:[%s2 + $0x40] sm:$0xff]
      %v722 = vld [vmem:[%s2 + $0x48] sm:$0xff]
      %v723 = vld [vmem:[%s2 + $0x50] sm:$0xff]
      %v724 = vld [vmem:[%s2 + $0x58] sm:$0xff]
      %v725 = vld [vmem:[%s2 + $0x60] sm:$0xff]
      %v726 = vld [vmem:[%s2 + $0x68] sm:$0xff]
      %v727 = vld [vmem:[%s2 + $0x70] sm:$0xff]
      %v728 = vld [vmem:[%s2 + $0x78] sm:$0xff]
      %v729 = vld [vmem:[%s2 + $0x80] sm:$0xff]
      %v730 = vld [vmem:[%s2 + $0x88] sm:$0xff]
      %v731 = vld [vmem:[%s2 + $0x90] sm:$0xff]
      %v732 = vld [vmem:[%s2 + $0x98] sm:$0xff]
      %v733 = vld [vmem:[%s2 + $0xa0] sm:$0xff]
      %v734 = vld [vmem:[%s2 + $0xa8] sm:$0xff]
      %v735 = vld [vmem:[%s2 + $0xb0] sm:$0xff]
      %v736 = vld [vmem:[%s2 + $0xb8] sm:$0xff]
      %v737 = vld [vmem:[%s2 + $0xc0] sm:$0xff]
      %v738 = vld [vmem:[%s2 + $0xc8] sm:$0xff]
      %v739 = vld [vmem:[%s2 + $0xd0] sm:$0xff]
      %v740 = vld [vmem:[%s2 + $0xd8] sm:$0xff]
      %v741 = vld [vmem:[%s2 + $0xe0] sm:$0xff]
      %v742 = vld [vmem:[%s2 + $0xe8] sm:$0xff]
      %v743 = vld [vmem:[%s2 + $0xf0] sm:$0xff]
      %v744 = vld [vmem:[%s2 + $0xf8] sm:$0xff]
      %v745 = vld [vmem:[%s2 + $0x100] sm:$0xff]
      %v746 = vld [vmem:[%s2 + $0x108] sm:$0xff]
      %v747 = vld [vmem:[%s2 + $0x110] sm:$0xff]
      %v748 = vld [vmem:[%s2 + $0x118] sm:$0xff]
      %v749 = vld [vmem:[%s2 + $0x120] sm:$0xff]
      %v750 = vld [vmem:[%s2 + $0x128] sm:$0xff]
      %v751 = vld [vmem:[%s2 + $0x130] sm:$0xff]
      %v752 = vld [vmem:[%s2 + $0x138] sm:$0xff]
      %v753 = vld [vmem:[%s2 + $0x140] sm:$0xff]
      %v754 = vld [vmem:[%s2 + $0x148] sm:$0xff]
      %v755 = vld [vmem:[%s2 + $0x150] sm:$0xff]
      %v756 = vld [vmem:[%s2 + $0x158] sm:$0xff]
      %v757 = vld [vmem:[%s2 + $0x160] sm:$0xff]
      %v758 = vld [vmem:[%s2 + $0x168] sm:$0xff]
      %v759 = vld [vmem:[%s2 + $0x170] sm:$0xff]
      %v760 = vld [vmem:[%s2 + $0x178] sm:$0xff]
      %v761 = vld [vmem:[%s2 + $0x180] sm:$0xff]
      %v762 = vld [vmem:[%s2 + $0x188] sm:$0xff]
      %v763 = vld [vmem:[%s2 + $0x190] sm:$0xff]
      %v764 = vld [vmem:[%s2 + $0x198] sm:$0xff]
      %v765 = vld [vmem:[%s2 + $0x1a0] sm:$0xff]
      %v766 = vld [vmem:[%s2 + $0x1a8] sm:$0xff]
      %v767 = vld [vmem:[%s2 + $0x1b0] sm:$0xff]
      %v768 = vld [vmem:[%s2 + $0x1b8] sm:$0xff]
      %v769 = vld [vmem:[%s2 + $0x1c0] sm:$0xff]
      %v770 = vld [vmem:[%s2 + $0x1c8] sm:$0xff]
      %v771 = vld [vmem:[%s2 + $0x1d0] sm:$0xff]
      %v772 = vld [vmem:[%s2 + $0x1d8] sm:$0xff]
      %v773 = vld [vmem:[%s2 + $0x1e0] sm:$0xff]
      %v774 = vld [vmem:[%s2 + $0x1e8] sm:$0xff]
      %v775 = vld [vmem:[%s2 + $0x1f0] sm:$0xff]
      %v776 = vld [vmem:[%s2 + $0x1f8] sm:$0xff]
      %v777 = vld [vmem:[%s2 + $0x200] sm:$0xff]
      %v778 = vld [vmem:[%s2 + $0x208] sm:$0xff]
      %v779 = vld [vmem:[%s2 + $0x210] sm:$0xff]
      %v780 = vld [vmem:[%s2 + $0x218] sm:$0xff]
      %v781 = vld [vmem:[%s2 + $0x220] sm:$0xff]
      %v782 = vld [vmem:[%s2 + $0x228] sm:$0xff]
      %v783 = vld [vmem:[%s2 + $0x230] sm:$0xff]
      %v784 = vld [vmem:[%s2 + $0x238] sm:$0xff]
      %v785 = vld [vmem:[%s2 + $0x240] sm:$0xff]
      %v786 = vld [vmem:[%s2 + $0x248] sm:$0xff]
      %v787 = vld [vmem:[%s2 + $0x250] sm:$0xff]
      %v788 = vld [vmem:[%s2 + $0x258] sm:$0xff]
      %v789 = vld [vmem:[%s2 + $0x260] sm:$0xff]
      %v790 = vld [vmem:[%s2 + $0x268] sm:$0xff]
      %v791 = vld [vmem:[%s2 + $0x270] sm:$0xff]
      %v792 = vld [vmem:[%s2 + $0x278] sm:$0xff]
      %v793 = vld [vmem:[%s2 + $0x280] sm:$0xff]
      %v794 = vld [vmem:[%s2 + $0x288] sm:$0xff]
      %v795 = vld [vmem:[%s2 + $0x290] sm:$0x1]
      %v796 = vld [vmem:[%s3] sm:$0x1]
      %v798 = vlaneseq
      %v799 = vshrl.u32 %v798, 7
      %v800 = vsub.s32 0, %v799
      %v801 = vrot.slane %v796, %v800
      %vm803 = vcmask 138240
      %v804 = vsel %vm803, %v618, 0
      %v806 = vsel %vm803, %v620, 0
      %v808 = vsel %vm803, %v622, 0
      %v810 = vsel %vm803, %v624, 0
      %v812 = vsel %vm803, %v626, 0
      %v814 = vsel %vm803, %v628, 0
      %v816 = vsel %vm803, %v630, 0
      %v818 = vsel %vm803, %v632, 0
      %v821 = vsel %vm356, %v795, 0
      %823 = vmatprep.subr.mxu0 0.0
      %824 = vmatpush1.msra.mxu0 %v713
      %825 = vmatprep.subr.mxu0 0.0
      %826 = vmatpush1.msra.mxu0 %v714
      %827 = vmatprep.subr.mxu0 0.0
      %828 = vmatpush1.msra.mxu0 %v715
      %829 = vmatprep.subr.mxu0 0.0
      %830 = vmatpush1.msra.mxu0 %v716
      %831 = vmatprep.subr.mxu0 0.0
      %832 = vmatpush1.msra.mxu0 %v717
      %833 = vmatprep.subr.mxu0 0.0
      %834 = vmatpush1.msra.mxu0 %v718
      %835 = vmatprep.subr.mxu0 0.0
      %836 = vmatpush1.msra.mxu0 %v719
      %837 = vmatprep.subr.mxu0 0.0
      %838 = vmatpush1.msra.mxu0 %v720
      %839 = vmatprep.subr.mxu0 0.0
      %840 = vmatpush1.msra.mxu0 %v721
      %841 = vmatprep.subr.mxu0 0.0
      %842 = vmatpush1.msra.mxu0 %v722
      %843 = vmatprep.subr.mxu0 0.0
      %844 = vmatpush1.msra.mxu0 %v723
      %845 = vmatprep.subr.mxu0 0.0
      %846 = vmatpush1.msra.mxu0 %v724
      %847 = vmatprep.subr.mxu0 0.0
      %848 = vmatpush1.msra.mxu0 %v725
      %849 = vmatprep.subr.mxu0 0.0
      %850 = vmatpush1.msra.mxu0 %v726
      %851 = vmatprep.subr.mxu0 0.0
      %852 = vmatpush1.msra.mxu0 %v727
      %853 = vmatprep.subr.mxu0 0.0
      %854 = vmatpush1.msra.mxu0 %v728
      %855 = vmatprep.subr.mxu0 0.0
      %856 = vmatpush1.msra.mxu0 %v729
      %857 = vmatprep.subr.mxu0 0.0
      %858 = vmatpush1.msra.mxu0 %v730
      %859 = vmatprep.subr.mxu0 0.0
      %860 = vmatpush1.msra.mxu0 %v731
      %861 = vmatprep.subr.mxu0 0.0
      %862 = vmatpush1.msra.mxu0 %v732
      %863 = vmatprep.subr.mxu0 0.0
      %864 = vmatpush1.msra.mxu0 %v733
      %865 = vmatprep.subr.mxu0 0.0
      %866 = vmatpush1.msra.mxu0 %v734
      %867 = vmatprep.subr.mxu0 0.0
      %868 = vmatpush1.msra.mxu0 %v735
      %869 = vmatprep.subr.mxu0 0.0
      %870 = vmatpush1.msra.mxu0 %v736
      %871 = vmatprep.subr.mxu0 0.0
      %872 = vmatpush1.msra.mxu0 %v737
      %873 = vmatprep.subr.mxu0 0.0
      %874 = vmatpush1.msra.mxu0 %v738
      %875 = vmatprep.subr.mxu0 0.0
      %876 = vmatpush1.msra.mxu0 %v739
      %877 = vmatprep.subr.mxu0 0.0
      %878 = vmatpush1.msra.mxu0 %v740
      %879 = vmatprep.subr.mxu0 0.0
      %880 = vmatpush1.msra.mxu0 %v741
      %881 = vmatprep.subr.mxu0 0.0
      %882 = vmatpush1.msra.mxu0 %v742
      %883 = vmatprep.subr.mxu0 0.0
      %884 = vmatpush1.msra.mxu0 %v743
      %885 = vmatprep.subr.mxu0 0.0
      %886 = vmatpush1.msra.mxu0 %v744
      %887 = vmatprep.mubr.f32.mxu0 %v660
      %888 = vmatmul.mubr.f32.gmra.mrb[0].mxu0 %v642
      %v889 = vpop.f32.mrb[0].mxu0
      %v890 = vadd.f32 %v801, %v889
      %v891 = vpop.f32.mrb[0].mxu0
      %892 = vmatprep.mubr.f32.mxu0 %v661
      %893 = vmatmul.mubr.f32.gmra.mrb[0].mxu0 %v643
      %v894 = vpop.f32.mrb[0].mxu0
      %v895 = vadd.f32 %v801, %v894
      %v896 = vpop.f32.mrb[0].mxu0
      %897 = vmatprep.mubr.f32.mxu0 %v662
      %898 = vmatmul.mubr.f32.gmra.mrb[0].mxu0 %v644
      %v899 = vpop.f32.mrb[0].mxu0
      %v900 = vadd.f32 %v801, %v899
      %v901 = vpop.f32.mrb[0].mxu0
      %902 = vmatprep.mubr.f32.mxu0 %v663
      %903 = vmatmul.mubr.f32.gmra.mrb[0].mxu0 %v645
      %v904 = vpop.f32.mrb[0].mxu0
      %v905 = vadd.f32 %v801, %v904
      %v906 = vpop.f32.mrb[0].mxu0
      %907 = vmatprep.mubr.f32.mxu0 %v664
      %908 = vmatmul.mubr.f32.gmra.mrb[0].mxu0 %v646
      %v909 = vpop.f32.mrb[0].mxu0
      %v910 = vadd.f32 %v801, %v909
      %v911 = vpop.f32.mrb[0].mxu0
      %912 = vmatprep.mubr.f32.mxu0 %v665
      %913 = vmatmul.mubr.f32.gmra.mrb[0].mxu0 %v647
      %v914 = vpop.f32.mrb[0].mxu0
      %v915 = vadd.f32 %v801, %v914
      %v916 = vpop.f32.mrb[0].mxu0
      %917 = vmatprep.mubr.f32.mxu0 %v666
      %918 = vmatmul.mubr.f32.gmra.mrb[0].mxu0 %v648
      %v919 = vpop.f32.mrb[0].mxu0
      %v920 = vadd.f32 %v801, %v919
      %v921 = vpop.f32.mrb[0].mxu0
      %922 = vmatprep.mubr.f32.mxu0 %v667
      %923 = vmatmul.mubr.f32.gmra.mrb[0].mxu0 %v649
      %v924 = vpop.f32.mrb[0].mxu0
      %v925 = vadd.f32 %v801, %v924
      %v926 = vpop.f32.mrb[0].mxu0
      %927 = vdwg.mxu0
      %928 = vmatprep.subr.mxu0 0.0
      %929 = vmatpush1.msra.mxu0 %v745
      %930 = vmatprep.subr.mxu0 0.0
      %931 = vmatpush1.msra.mxu0 %v746
      %932 = vmatprep.subr.mxu0 0.0
      %933 = vmatpush1.msra.mxu0 %v747
      %934 = vmatprep.subr.mxu0 0.0
      %935 = vmatpush1.msra.mxu0 %v748
      %936 = vmatprep.subr.mxu0 0.0
      %937 = vmatpush1.msra.mxu0 %v749
      %938 = vmatprep.subr.mxu0 0.0
      %939 = vmatpush1.msra.mxu0 %v750
      %940 = vmatprep.subr.mxu0 0.0
      %941 = vmatpush1.msra.mxu0 %v751
      %942 = vmatprep.subr.mxu0 0.0
      %943 = vmatpush1.msra.mxu0 %v752
      %944 = vmatprep.subr.mxu0 0.0
      %945 = vmatpush1.msra.mxu0 %v753
      %946 = vmatprep.subr.mxu0 0.0
      %947 = vmatpush1.msra.mxu0 %v754
      %948 = vmatprep.subr.mxu0 0.0
      %949 = vmatpush1.msra.mxu0 %v755
      %950 = vmatprep.subr.mxu0 0.0
      %951 = vmatpush1.msra.mxu0 %v756
      %952 = vmatprep.subr.mxu0 0.0
      %953 = vmatpush1.msra.mxu0 %v757
      %954 = vmatprep.subr.mxu0 0.0
      %955 = vmatpush1.msra.mxu0 %v758
      %956 = vmatprep.subr.mxu0 0.0
      %957 = vmatpush1.msra.mxu0 %v759
      %958 = vmatprep.subr.mxu0 0.0
      %959 = vmatpush1.msra.mxu0 %v760
      %960 = vmatprep.subr.mxu0 0.0
      %961 = vmatpush1.msra.mxu0 %v761
      %962 = vmatprep.subr.mxu0 0.0
      %963 = vmatpush1.msra.mxu0 %v762
      %964 = vmatprep.subr.mxu0 0.0
      %965 = vmatpush1.msra.mxu0 %v763
      %966 = vmatprep.subr.mxu0 0.0
      %967 = vmatpush1.msra.mxu0 %v764
      %968 = vmatprep.subr.mxu0 0.0
      %969 = vmatpush1.msra.mxu0 %v765
      %970 = vmatprep.subr.mxu0 0.0
      %971 = vmatpush1.msra.mxu0 %v766
      %972 = vmatprep.subr.mxu0 0.0
      %973 = vmatpush1.msra.mxu0 %v767
      %974 = vmatprep.subr.mxu0 0.0
      %975 = vmatpush1.msra.mxu0 %v768
      %976 = vmatprep.subr.mxu0 0.0
      %977 = vmatpush1.msra.mxu0 %v769
      %978 = vmatprep.subr.mxu0 0.0
      %979 = vmatpush1.msra.mxu0 %v770
      %980 = vmatprep.subr.mxu0 0.0
      %981 = vmatpush1.msra.mxu0 %v771
      %982 = vmatprep.subr.mxu0 0.0
      %983 = vmatpush1.msra.mxu0 %v772
      %984 = vmatprep.subr.mxu0 0.0
      %985 = vmatpush1.msra.mxu0 %v773
      %986 = vmatprep.subr.mxu0 0.0
      %987 = vmatpush1.msra.mxu0 %v774
      %988 = vmatprep.subr.mxu0 0.0
      %989 = vmatpush1.msra.mxu0 %v775
      %990 = vmatprep.subr.mxu0 0.0
      %991 = vmatpush1.msra.mxu0 %v776
      %992 = vmatprep.mubr.f32.mxu0 %v696
      %993 = vmatmul.mubr.f32.gmra.mrb[0].mxu0 %v678
      %v994 = vpop.f32.mrb[0].mxu0
      %v995 = vadd.f32 %v890, %v994
      %v996 = vpop.f32.mrb[0].mxu0
      %997 = vmatprep.mubr.f32.mxu0 %v697
      %998 = vmatmul.mubr.f32.gmra.mrb[0].mxu0 %v679
      %v999 = vpop.f32.mrb[0].mxu0
      %v1000 = vadd.f32 %v895, %v999
      %v1001 = vpop.f32.mrb[0].mxu0
      %1002 = vmatprep.mubr.f32.mxu0 %v698
      %1003 = vmatmul.mubr.f32.gmra.mrb[0].mxu0 %v680
      %v1004 = vpop.f32.mrb[0].mxu0
      %v1005 = vadd.f32 %v900, %v1004
      %v1006 = vpop.f32.mrb[0].mxu0
      %1007 = vmatprep.mubr.f32.mxu0 %v699
      %1008 = vmatmul.mubr.f32.gmra.mrb[0].mxu0 %v681
      %v1009 = vpop.f32.mrb[0].mxu0
      %v1010 = vadd.f32 %v905, %v1009
      %v1011 = vpop.f32.mrb[0].mxu0
      %1012 = vmatprep.mubr.f32.mxu0 %v700
      %1013 = vmatmul.mubr.f32.gmra.mrb[0].mxu0 %v682
      %v1014 = vpop.f32.mrb[0].mxu0
      %v1015 = vadd.f32 %v910, %v1014
      %v1016 = vpop.f32.mrb[0].mxu0
      %1017 = vmatprep.mubr.f32.mxu0 %v701
      %1018 = vmatmul.mubr.f32.gmra.mrb[0].mxu0 %v683
      %v1019 = vpop.f32.mrb[0].mxu0
      %v1020 = vadd.f32 %v915, %v1019
      %v1021 = vpop.f32.mrb[0].mxu0
      %1022 = vmatprep.mubr.f32.mxu0 %v702
      %1023 = vmatmul.mubr.f32.gmra.mrb[0].mxu0 %v684
      %v1024 = vpop.f32.mrb[0].mxu0
      %v1025 = vadd.f32 %v920, %v1024
      %v1026 = vpop.f32.mrb[0].mxu0
      %1027 = vmatprep.mubr.f32.mxu0 %v703
      %1028 = vmatmul.mubr.f32.gmra.mrb[0].mxu0 %v685
      %v1029 = vpop.f32.mrb[0].mxu0
      %v1030 = vadd.f32 %v925, %v1029
      %v1031 = vpop.f32.mrb[0].mxu0
      %1032 = vdwg.mxu0
      %1033 = vmatprep.subr.mxu0 0.0
      %1034 = vmatpush1.msra.mxu0 %v777
      %1035 = vmatprep.subr.mxu0 0.0
      %1036 = vmatpush1.msra.mxu0 %v778
      %1037 = vmatprep.subr.mxu0 0.0
      %1038 = vmatpush1.msra.mxu0 %v779
      %1039 = vmatprep.subr.mxu0 0.0
      %1040 = vmatpush1.msra.mxu0 %v780
      %1041 = vmatprep.subr.mxu0 0.0
      %1042 = vmatpush1.msra.mxu0 %v781
      %1043 = vmatprep.subr.mxu0 0.0
      %1044 = vmatpush1.msra.mxu0 %v782
      %1045 = vmatprep.subr.mxu0 0.0
      %1046 = vmatpush1.msra.mxu0 %v783
      %1047 = vmatprep.subr.mxu0 0.0
      %1048 = vmatpush1.msra.mxu0 %v784
      %1049 = vmatprep.subr.mxu0 0.0
      %1050 = vmatpush1.msra.mxu0 %v785
      %1051 = vmatprep.subr.mxu0 0.0
      %1052 = vmatpush1.msra.mxu0 %v786
      %1053 = vmatprep.subr.mxu0 0.0
      %1054 = vmatpush1.msra.mxu0 %v787
      %1055 = vmatprep.subr.mxu0 0.0
      %1056 = vmatpush1.msra.mxu0 %v788
      %1057 = vmatprep.subr.mxu0 0.0
      %1058 = vmatpush1.msra.mxu0 %v789
      %1059 = vmatprep.subr.mxu0 0.0
      %1060 = vmatpush1.msra.mxu0 %v790
      %1061 = vmatprep.subr.mxu0 0.0
      %1062 = vmatpush1.msra.mxu0 %v791
      %1063 = vmatprep.subr.mxu0 0.0
      %1064 = vmatpush1.msra.mxu0 %v792
      %1065 = vmatprep.subr.mxu0 0.0
      %1066 = vmatpush1.msra.mxu0 %v793
      %1067 = vmatprep.subr.mxu0 0.0
      %1068 = vmatpush1.msra.mxu0 %v794
      %1069 = vmatprep.subr.mxu0 0.0
      %1070 = vmatpush1.msra.mxu0 %v821
      %1071 = vmatprep.subr.mxu0 0.0
      %1072 = vmatpush1.msra.mxu0 0.0
      %1073 = vmatprep.subr.mxu0 0.0
      %1074 = vmatpush1.msra.mxu0 0.0
      %1075 = vmatprep.subr.mxu0 0.0
      %1076 = vmatpush1.msra.mxu0 0.0
      %1077 = vmatprep.subr.mxu0 0.0
      %1078 = vmatpush1.msra.mxu0 0.0
      %1079 = vmatprep.subr.mxu0 0.0
      %1080 = vmatpush1.msra.mxu0 0.0
      %1081 = vmatprep.subr.mxu0 0.0
      %1082 = vmatpush1.msra.mxu0 0.0
      %1083 = vmatprep.subr.mxu0 0.0
      %1084 = vmatpush1.msra.mxu0 0.0
      %1085 = vmatprep.subr.mxu0 0.0
      %1086 = vmatpush1.msra.mxu0 0.0
      %1087 = vmatprep.subr.mxu0 0.0
      %1088 = vmatpush1.msra.mxu0 0.0
      %1089 = vmatprep.subr.mxu0 0.0
      %1090 = vmatpush1.msra.mxu0 0.0
      %1091 = vmatprep.subr.mxu0 0.0
      %1092 = vmatpush1.msra.mxu0 0.0
      %1093 = vmatprep.subr.mxu0 0.0
      %1094 = vmatpush1.msra.mxu0 0.0
      %1095 = vmatprep.subr.mxu0 0.0
      %1096 = vmatpush1.msra.mxu0 0.0
      %1097 = vmatprep.mubr.f32.mxu0 %v804
      %1098 = vmatmul.mubr.f32.gmra.mrb[0].mxu0 %v705
      %v1099 = vpop.f32.mrb[0].mxu0
      %v1100 = vadd.f32 %v995, %v1099
      %v1101 = vpop.f32.mrb[0].mxu0
      %1102 = vmatprep.mubr.f32.mxu0 %v806
      %1103 = vmatmul.mubr.f32.gmra.mrb[0].mxu0 %v706
      %v1104 = vpop.f32.mrb[0].mxu0
      %v1105 = vadd.f32 %v1000, %v1104
      %v1106 = vpop.f32.mrb[0].mxu0
      %1107 = vmatprep.mubr.f32.mxu0 %v808
      %1108 = vmatmul.mubr.f32.gmra.mrb[0].mxu0 %v707
      %v1109 = vpop.f32.mrb[0].mxu0
      %v1110 = vadd.f32 %v1005, %v1109
      %v1111 = vpop.f32.mrb[0].mxu0
      %1112 = vmatprep.mubr.f32.mxu0 %v810
      %1113 = vmatmul.mubr.f32.gmra.mrb[0].mxu0 %v708
      %v1114 = vpop.f32.mrb[0].mxu0
      %v1115 = vadd.f32 %v1010, %v1114
      %v1116 = vpop.f32.mrb[0].mxu0
      %1117 = vmatprep.mubr.f32.mxu0 %v812
      %1118 = vmatmul.mubr.f32.gmra.mrb[0].mxu0 %v709
      %v1119 = vpop.f32.mrb[0].mxu0
      %v1120 = vadd.f32 %v1015, %v1119
      %v1121 = vpop.f32.mrb[0].mxu0
      %1122 = vmatprep.mubr.f32.mxu0 %v814
      %1123 = vmatmul.mubr.f32.gmra.mrb[0].mxu0 %v710
      %v1124 = vpop.f32.mrb[0].mxu0
      %v1125 = vadd.f32 %v1020, %v1124
      %v1126 = vpop.f32.mrb[0].mxu0
      %1127 = vmatprep.mubr.f32.mxu0 %v816
      %1128 = vmatmul.mubr.f32.gmra.mrb[0].mxu0 %v711
      %v1129 = vpop.f32.mrb[0].mxu0
      %v1130 = vadd.f32 %v1025, %v1129
      %v1131 = vpop.f32.mrb[0].mxu0
      %1132 = vmatprep.mubr.f32.mxu0 %v818
      %1133 = vmatmul.mubr.f32.gmra.mrb[0].mxu0 %v712
      %v1134 = vpop.f32.mrb[0].mxu0
      %v1135 = vadd.f32 %v1030, %v1134
      %v1136 = vpop.f32.mrb[0].mxu0
      %1137 = vdwg.mxu0
      %vm1138 = vcmp.ge.f32.partialorder %v1100, 0.0
      %vm1139 = vcmp.ge.f32.partialorder %v1105, 0.0
      %vm1140 = vcmp.ge.f32.partialorder %v1110, 0.0
      %vm1141 = vcmp.ge.f32.partialorder %v1115, 0.0
      %vm1142 = vcmp.ge.f32.partialorder %v1120, 0.0
      %vm1143 = vcmp.ge.f32.partialorder %v1125, 0.0
      %vm1144 = vcmp.ge.f32.partialorder %v1130, 0.0
      %vm1145 = vcmp.ge.f32.partialorder %v1135, 0.0
      %v1146 = vmul.f32 %v1100, 0.2
      %v1147 = vmul.f32 %v1105, 0.2
      %v1148 = vmul.f32 %v1110, 0.2
      %v1149 = vmul.f32 %v1115, 0.2
      %v1150 = vmul.f32 %v1120, 0.2
      %v1151 = vmul.f32 %v1125, 0.2
      %v1152 = vmul.f32 %v1130, 0.2
      %v1153 = vmul.f32 %v1135, 0.2
      %v1154 = vsel %vm1138, %v1100, %v1146
      %v1155 = vsel %vm1139, %v1105, %v1147
      %v1156 = vsel %vm1140, %v1110, %v1148
      %v1157 = vsel %vm1141, %v1115, %v1149
      %v1158 = vsel %vm1142, %v1120, %v1150
      %v1159 = vsel %vm1143, %v1125, %v1151
      %v1160 = vsel %vm1144, %v1130, %v1152
      %v1161 = vsel %vm1145, %v1135, %v1153
      %v1170 = vrot.slane %v1154, 7
      %v1171 = vrot.slane %v1155, 7
      %v1172 = vrot.slane %v1156, 7
      %v1173 = vrot.slane %v1157, 7
      %v1174 = vrot.slane %v1158, 7
      %v1175 = vrot.slane %v1159, 7
      %v1176 = vrot.slane %v1160, 7
      %v1177 = vrot.slane %v1161, 7
      %v1186 = vsel %vm356, 0.0, %v1170
      %v1187 = vsel %vm356, 0.0, %v1171
      %v1188 = vsel %vm356, 0.0, %v1172
      %v1189 = vsel %vm356, 0.0, %v1173
      %v1190 = vsel %vm356, 0.0, %v1174
      %v1191 = vsel %vm356, 0.0, %v1175
      %v1192 = vsel %vm356, 0.0, %v1176
      %v1193 = vsel %vm356, 0.0, %v1177
      %v1194 = vsel %vm356, %v1170, 0.0
      %v1195 = vsel %vm356, %v1171, 0.0
      %v1196 = vsel %vm356, %v1172, 0.0
      %v1197 = vsel %vm356, %v1173, 0.0
      %v1198 = vsel %vm356, %v1174, 0.0
      %v1199 = vsel %vm356, %v1175, 0.0
      %v1200 = vsel %vm356, %v1176, 0.0
      %v1201 = vsel %vm356, %v1177, 0.0
      %v1216 = vrot.slane %v1186, 1
      %v1217 = vrot.slane %v1194, 1
      %v1218 = vsel %vm391, %v1216, %v1217
      %v1219 = vrot.slane %v1187, 1
      %v1220 = vrot.slane %v1195, 1
      %v1221 = vsel %vm391, %v1219, %v1220
      %v1222 = vrot.slane %v1188, 1
      %v1223 = vrot.slane %v1196, 1
      %v1224 = vsel %vm391, %v1222, %v1223
      %v1225 = vrot.slane %v1189, 1
      %v1226 = vrot.slane %v1197, 1
      %v1227 = vsel %vm391, %v1225, %v1226
      %v1228 = vrot.slane %v1190, 1
      %v1229 = vrot.slane %v1198, 1
      %v1230 = vsel %vm391, %v1228, %v1229
      %v1231 = vrot.slane %v1191, 1
      %v1232 = vrot.slane %v1199, 1
      %v1233 = vsel %vm391, %v1231, %v1232
      %v1234 = vrot.slane %v1192, 1
      %v1235 = vrot.slane %v1200, 1
      %v1236 = vsel %vm391, %v1234, %v1235
      %v1237 = vrot.slane %v1186, 2
      %v1238 = vrot.slane %v1194, 2
      %v1239 = vsel %vm416, %v1237, %v1238
      %v1240 = vrot.slane %v1187, 2
      %v1241 = vrot.slane %v1195, 2
      %v1242 = vsel %vm416, %v1240, %v1241
      %v1243 = vrot.slane %v1188, 2
      %v1244 = vrot.slane %v1196, 2
      %v1245 = vsel %vm416, %v1243, %v1244
      %v1246 = vrot.slane %v1189, 2
      %v1247 = vrot.slane %v1197, 2
      %v1248 = vsel %vm416, %v1246, %v1247
      %v1249 = vrot.slane %v1190, 2
      %v1250 = vrot.slane %v1198, 2
      %v1251 = vsel %vm416, %v1249, %v1250
      %v1252 = vrot.slane %v1191, 2
      %v1253 = vrot.slane %v1199, 2
      %v1254 = vsel %vm416, %v1252, %v1253
      %v1255 = vrot.slane %v1192, 2
      %v1256 = vrot.slane %v1200, 2
      %v1257 = vsel %vm416, %v1255, %v1256
      %v1268 = vrot.slane %v1193, 1
      %v1269 = vrot.slane %v1201, 1
      %v1270 = vsel %vm391, %v1268, %v1269
      %v1279 = vrot.slane %v1193, 2
      %v1280 = vrot.slane %v1201, 2
      %v1281 = vsel %vm416, %v1279, %v1280
      %1282 = vrot.lane.b32.xlu0 %v394, 64
      %v1283 = vpop.permute.xlu0 %1282
      %1284 = vrot.lane.b32.xlu0 %v1218, 64
      %v1285 = vpop.permute.xlu0 %1284
      %1286 = vrot.lane.b32.xlu0 %v1221, 64
      %v1287 = vpop.permute.xlu0 %1286
      %1288 = vrot.lane.b32.xlu0 %v1224, 64
      %v1289 = vpop.permute.xlu0 %1288
      %1290 = vrot.lane.b32.xlu0 %v1227, 64
      %v1291 = vpop.permute.xlu0 %1290
      %1292 = vrot.lane.b32.xlu0 %v1230, 64
      %v1293 = vpop.permute.xlu0 %1292
      %1294 = vrot.lane.b32.xlu0 %v1233, 64
      %v1295 = vpop.permute.xlu0 %1294
      %1296 = vrot.lane.b32.xlu0 %v1236, 64
      %v1297 = vpop.permute.xlu0 %1296
      %1306 = vrot.lane.b32.xlu0 %v1186, 64
      %v1307 = vpop.permute.xlu0 %1306
      %1308 = vrot.lane.b32.xlu0 %v1187, 64
      %v1309 = vpop.permute.xlu0 %1308
      %1310 = vrot.lane.b32.xlu0 %v1188, 64
      %v1311 = vpop.permute.xlu0 %1310
      %1312 = vrot.lane.b32.xlu0 %v1189, 64
      %v1313 = vpop.permute.xlu0 %1312
      %1314 = vrot.lane.b32.xlu0 %v1190, 64
      %v1315 = vpop.permute.xlu0 %1314
      %1316 = vrot.lane.b32.xlu0 %v1191, 64
      %v1317 = vpop.permute.xlu0 %1316
      %1318 = vrot.lane.b32.xlu0 %v1192, 64
      %v1319 = vpop.permute.xlu0 %1318
      %1320 = vrot.lane.b32.xlu0 %v1193, 64
      %v1321 = vpop.permute.xlu0 %1320
      %1330 = vrot.lane.b32.xlu0 %v1239, 64
      %v1331 = vpop.permute.xlu0 %1330
      %1332 = vrot.lane.b32.xlu0 %v1242, 64
      %v1333 = vpop.permute.xlu0 %1332
      %1334 = vrot.lane.b32.xlu0 %v1245, 64
      %v1335 = vpop.permute.xlu0 %1334
      %1336 = vrot.lane.b32.xlu0 %v1248, 64
      %v1337 = vpop.permute.xlu0 %1336
      %1338 = vrot.lane.b32.xlu0 %v1251, 64
      %v1339 = vpop.permute.xlu0 %1338
      %1340 = vrot.lane.b32.xlu0 %v1254, 64
      %v1341 = vpop.permute.xlu0 %1340
      %1342 = vrot.lane.b32.xlu0 %v1257, 64
      %v1343 = vpop.permute.xlu0 %1342
      %1344 = vrot.lane.b32.xlu0 %v1281, 64
      %v1345 = vpop.permute.xlu0 %1344
      %1354 = vrot.lane.b32.xlu0 %v1270, 64
      %v1355 = vpop.permute.xlu0 %1354
      %v1357 = vsel %vm320, %v357, %v1283
      %v1358 = vsel %vm320, %v1186, %v1285
      %v1359 = vsel %vm320, %v1187, %v1287
      %v1360 = vsel %vm320, %v1188, %v1289
      %v1361 = vsel %vm320, %v1189, %v1291
      %v1362 = vsel %vm320, %v1190, %v1293
      %v1363 = vsel %vm320, %v1191, %v1295
      %v1364 = vsel %vm320, %v1192, %v1297
      %v1365 = vsel %vm320, %v419, %v1307
      %v1366 = vsel %vm320, %v1239, %v1309
      %v1367 = vsel %vm320, %v1242, %v1311
      %v1368 = vsel %vm320, %v1245, %v1313
      %v1369 = vsel %vm320, %v1248, %v1315
      %v1370 = vsel %vm320, %v1251, %v1317
      %v1371 = vsel %vm320, %v1254, %v1319
      %v1372 = vsel %vm320, %v1257, %v1321
      %v1373 = vsel %vm320, %v1218, %v1331
      %v1374 = vsel %vm320, %v1221, %v1333
      %v1375 = vsel %vm320, %v1224, %v1335
      %v1376 = vsel %vm320, %v1227, %v1337
      %v1377 = vsel %vm320, %v1230, %v1339
      %v1378 = vsel %vm320, %v1233, %v1341
      %v1379 = vsel %vm320, %v1236, %v1343
      %v1380 = vsel %vm320, %v1270, %v1345
      %v1381 = vsel %vm320, %v1193, %v1355
      %v1382 = vld [vmem:[%s4] sm:$0xff]
      %v1383 = vld [vmem:[%s4 + $0x8] sm:$0xff]
      %v1384 = vld [vmem:[%s4 + $0x10] sm:$0xff]
      %v1385 = vld [vmem:[%s4 + $0x18] sm:$0xff]
      %v1386 = vld [vmem:[%s4 + $0x20] sm:$0xff]
      %v1387 = vld [vmem:[%s4 + $0x28] sm:$0xff]
      %v1388 = vld [vmem:[%s4 + $0x30] sm:$0xff]
      %v1389 = vld [vmem:[%s4 + $0x38] sm:$0xff]
      %v1390 = vld [vmem:[%s4 + $0x40] sm:$0xff]
      %v1391 = vld [vmem:[%s4 + $0x48] sm:$0xff]
      %v1392 = vld [vmem:[%s4 + $0x50] sm:$0xff]
      %v1393 = vld [vmem:[%s4 + $0x58] sm:$0xff]
      %v1394 = vld [vmem:[%s4 + $0x60] sm:$0xff]
      %v1395 = vld [vmem:[%s4 + $0x68] sm:$0xff]
      %v1396 = vld [vmem:[%s4 + $0x70] sm:$0xff]
      %v1397 = vld [vmem:[%s4 + $0x78] sm:$0xff]
      %v1398 = vld [vmem:[%s4 + $0x80] sm:$0xff]
      %v1399 = vld [vmem:[%s4 + $0x88] sm:$0xff]
      %v1400 = vld [vmem:[%s4 + $0x90] sm:$0xff]
      %v1401 = vld [vmem:[%s4 + $0x98] sm:$0xff]
      %v1402 = vld [vmem:[%s4 + $0xa0] sm:$0xff]
      %v1403 = vld [vmem:[%s4 + $0xa8] sm:$0xff]
      %v1404 = vld [vmem:[%s4 + $0xb0] sm:$0xff]
      %v1405 = vld [vmem:[%s4 + $0xb8] sm:$0xff]
      %v1406 = vld [vmem:[%s4 + $0xc0] sm:$0xff]
      %v1407 = vld [vmem:[%s4 + $0xc8] sm:$0xff]
      %v1408 = vld [vmem:[%s4 + $0xd0] sm:$0xff]
      %v1409 = vld [vmem:[%s4 + $0xd8] sm:$0xff]
      %v1410 = vld [vmem:[%s4 + $0xe0] sm:$0xff]
      %v1411 = vld [vmem:[%s4 + $0xe8] sm:$0xff]
      %v1412 = vld [vmem:[%s4 + $0xf0] sm:$0xff]
      %v1413 = vld [vmem:[%s4 + $0xf8] sm:$0xff]
      %v1414 = vld [vmem:[%s4 + $0x100] sm:$0xff]
      %v1415 = vld [vmem:[%s4 + $0x108] sm:$0xff]
      %v1416 = vld [vmem:[%s4 + $0x110] sm:$0xff]
      %v1417 = vld [vmem:[%s4 + $0x118] sm:$0xff]
      %v1418 = vld [vmem:[%s4 + $0x120] sm:$0xff]
      %v1419 = vld [vmem:[%s4 + $0x128] sm:$0xff]
      %v1420 = vld [vmem:[%s4 + $0x130] sm:$0xff]
      %v1421 = vld [vmem:[%s4 + $0x138] sm:$0xff]
      %v1422 = vld [vmem:[%s4 + $0x140] sm:$0xff]
      %v1423 = vld [vmem:[%s4 + $0x148] sm:$0xff]
      %v1424 = vld [vmem:[%s4 + $0x150] sm:$0xff]
      %v1425 = vld [vmem:[%s4 + $0x158] sm:$0xff]
      %v1426 = vld [vmem:[%s4 + $0x160] sm:$0xff]
      %v1427 = vld [vmem:[%s4 + $0x168] sm:$0xff]
      %v1428 = vld [vmem:[%s4 + $0x170] sm:$0xff]
      %v1429 = vld [vmem:[%s4 + $0x178] sm:$0xff]
      %v1430 = vld [vmem:[%s4 + $0x180] sm:$0xff]
      %v1431 = vld [vmem:[%s4 + $0x188] sm:$0xff]
      %v1432 = vld [vmem:[%s4 + $0x190] sm:$0xff]
      %v1433 = vld [vmem:[%s4 + $0x198] sm:$0xff]
      %v1434 = vld [vmem:[%s4 + $0x1a0] sm:$0xff]
      %v1435 = vld [vmem:[%s4 + $0x1a8] sm:$0xff]
      %v1436 = vld [vmem:[%s4 + $0x1b0] sm:$0xff]
      %v1437 = vld [vmem:[%s4 + $0x1b8] sm:$0xff]
      %v1438 = vld [vmem:[%s4 + $0x1c0] sm:$0xff]
      %v1439 = vld [vmem:[%s4 + $0x1c8] sm:$0xff]
      %v1440 = vld [vmem:[%s4 + $0x1d0] sm:$0xff]
      %v1441 = vld [vmem:[%s4 + $0x1d8] sm:$0xff]
      %v1442 = vld [vmem:[%s4 + $0x1e0] sm:$0xff]
      %v1443 = vld [vmem:[%s4 + $0x1e8] sm:$0xff]
      %v1444 = vld [vmem:[%s4 + $0x1f0] sm:$0xff]
      %v1445 = vld [vmem:[%s4 + $0x1f8] sm:$0xff]
      %v1446 = vld [vmem:[%s4 + $0x200] sm:$0xff]
      %v1447 = vld [vmem:[%s4 + $0x208] sm:$0xff]
      %v1448 = vld [vmem:[%s4 + $0x210] sm:$0xff]
      %v1449 = vld [vmem:[%s4 + $0x218] sm:$0xff]
      %v1450 = vld [vmem:[%s4 + $0x220] sm:$0xff]
      %v1451 = vld [vmem:[%s4 + $0x228] sm:$0xff]
      %v1452 = vld [vmem:[%s4 + $0x230] sm:$0xff]
      %v1453 = vld [vmem:[%s4 + $0x238] sm:$0xff]
      %v1454 = vld [vmem:[%s5] sm:$0x1]
      %v1456 = vlaneseq
      %v1457 = vshrl.u32 %v1456, 7
      %v1458 = vsub.s32 0, %v1457
      %v1459 = vrot.slane %v1454, %v1458
      %v1461 = vsel %vm320, %v1242, 0
      %v1463 = vsel %vm320, %v1245, 0
      %v1465 = vsel %vm320, %v1248, 0
      %v1467 = vsel %vm320, %v1251, 0
      %v1469 = vsel %vm320, %v1254, 0
      %v1471 = vsel %vm320, %v1257, 0
      %v1473 = vsel %vm320, %v1281, 0
      %v1475 = vsel %vm320, %v419, 0
      %1477 = vmatprep.subr.mxu0 0.0
      %1478 = vmatpush1.msra.mxu0 %v1382
      %1479 = vmatprep.subr.mxu0 0.0
      %1480 = vmatpush1.msra.mxu0 %v1383
      %1481 = vmatprep.subr.mxu0 0.0
      %1482 = vmatpush1.msra.mxu0 %v1384
      %1483 = vmatprep.subr.mxu0 0.0
      %1484 = vmatpush1.msra.mxu0 %v1385
      %1485 = vmatprep.subr.mxu0 0.0
      %1486 = vmatpush1.msra.mxu0 %v1386
      %1487 = vmatprep.subr.mxu0 0.0
      %1488 = vmatpush1.msra.mxu0 %v1387
      %1489 = vmatprep.subr.mxu0 0.0
      %1490 = vmatpush1.msra.mxu0 %v1388
      %1491 = vmatprep.subr.mxu0 0.0
      %1492 = vmatpush1.msra.mxu0 %v1389
      %1493 = vmatprep.subr.mxu0 0.0
      %1494 = vmatpush1.msra.mxu0 %v1390
      %1495 = vmatprep.subr.mxu0 0.0
      %1496 = vmatpush1.msra.mxu0 %v1391
      %1497 = vmatprep.subr.mxu0 0.0
      %1498 = vmatpush1.msra.mxu0 %v1392
      %1499 = vmatprep.subr.mxu0 0.0
      %1500 = vmatpush1.msra.mxu0 %v1393
      %1501 = vmatprep.subr.mxu0 0.0
      %1502 = vmatpush1.msra.mxu0 %v1394
      %1503 = vmatprep.subr.mxu0 0.0
      %1504 = vmatpush1.msra.mxu0 %v1395
      %1505 = vmatprep.subr.mxu0 0.0
      %1506 = vmatpush1.msra.mxu0 %v1396
      %1507 = vmatprep.subr.mxu0 0.0
      %1508 = vmatpush1.msra.mxu0 %v1397
      %1509 = vmatprep.subr.mxu0 0.0
      %1510 = vmatpush1.msra.mxu0 %v1398
      %1511 = vmatprep.subr.mxu0 0.0
      %1512 = vmatpush1.msra.mxu0 %v1399
      %1513 = vmatprep.subr.mxu0 0.0
      %1514 = vmatpush1.msra.mxu0 %v1400
      %1515 = vmatprep.subr.mxu0 0.0
      %1516 = vmatpush1.msra.mxu0 %v1401
      %1517 = vmatprep.subr.mxu0 0.0
      %1518 = vmatpush1.msra.mxu0 %v1402
      %1519 = vmatprep.subr.mxu0 0.0
      %1520 = vmatpush1.msra.mxu0 %v1403
      %1521 = vmatprep.subr.mxu0 0.0
      %1522 = vmatpush1.msra.mxu0 %v1404
      %1523 = vmatprep.subr.mxu0 0.0
      %1524 = vmatpush1.msra.mxu0 %v1405
      %1525 = vmatprep.subr.mxu0 0.0
      %1526 = vmatpush1.msra.mxu0 %v1406
      %1527 = vmatprep.subr.mxu0 0.0
      %1528 = vmatpush1.msra.mxu0 %v1407
      %1529 = vmatprep.subr.mxu0 0.0
      %1530 = vmatpush1.msra.mxu0 %v1408
      %1531 = vmatprep.subr.mxu0 0.0
      %1532 = vmatpush1.msra.mxu0 %v1409
      %1533 = vmatprep.subr.mxu0 0.0
      %1534 = vmatpush1.msra.mxu0 %v1410
      %1535 = vmatprep.subr.mxu0 0.0
      %1536 = vmatpush1.msra.mxu0 %v1411
      %1537 = vmatprep.subr.mxu0 0.0
      %1538 = vmatpush1.msra.mxu0 %v1412
      %1539 = vmatprep.subr.mxu0 0.0
      %1540 = vmatpush1.msra.mxu0 %v1413
      %1541 = vmatprep.mubr.f32.mxu0 %v1365
      %1542 = vmatmul.mubr.f32.gmra.mrb[0].mxu0 %v1357
      %v1543 = vpop.f32.mrb[0].mxu0
      %v1544 = vadd.f32 %v1459, %v1543
      %v1545 = vpop.f32.mrb[0].mxu0
      %1546 = vmatprep.mubr.f32.mxu0 %v1366
      %1547 = vmatmul.mubr.f32.gmra.mrb[0].mxu0 %v1358
      %v1548 = vpop.f32.mrb[0].mxu0
      %v1549 = vadd.f32 %v1459, %v1548
      %v1550 = vpop.f32.mrb[0].mxu0
      %1551 = vmatprep.mubr.f32.mxu0 %v1367
      %1552 = vmatmul.mubr.f32.gmra.mrb[0].mxu0 %v1359
      %v1553 = vpop.f32.mrb[0].mxu0
      %v1554 = vadd.f32 %v1459, %v1553
      %v1555 = vpop.f32.mrb[0].mxu0
      %1556 = vmatprep.mubr.f32.mxu0 %v1368
      %1557 = vmatmul.mubr.f32.gmra.mrb[0].mxu0 %v1360
      %v1558 = vpop.f32.mrb[0].mxu0
      %v1559 = vadd.f32 %v1459, %v1558
      %v1560 = vpop.f32.mrb[0].mxu0
      %1561 = vmatprep.mubr.f32.mxu0 %v1369
      %1562 = vmatmul.mubr.f32.gmra.mrb[0].mxu0 %v1361
      %v1563 = vpop.f32.mrb[0].mxu0
      %v1564 = vadd.f32 %v1459, %v1563
      %v1565 = vpop.f32.mrb[0].mxu0
      %1566 = vmatprep.mubr.f32.mxu0 %v1370
      %1567 = vmatmul.mubr.f32.gmra.mrb[0].mxu0 %v1362
      %v1568 = vpop.f32.mrb[0].mxu0
      %v1569 = vadd.f32 %v1459, %v1568
      %v1570 = vpop.f32.mrb[0].mxu0
      %1571 = vmatprep.mubr.f32.mxu0 %v1371
      %1572 = vmatmul.mubr.f32.gmra.mrb[0].mxu0 %v1363
      %v1573 = vpop.f32.mrb[0].mxu0
      %v1574 = vadd.f32 %v1459, %v1573
      %v1575 = vpop.f32.mrb[0].mxu0
      %1576 = vmatprep.mubr.f32.mxu0 %v1372
      %1577 = vmatmul.mubr.f32.gmra.mrb[0].mxu0 %v1364
      %v1578 = vpop.f32.mrb[0].mxu0
      %v1579 = vadd.f32 %v1459, %v1578
      %v1580 = vpop.f32.mrb[0].mxu0
      %1581 = vdwg.mxu0
      %1582 = vmatprep.subr.mxu0 0.0
      %1583 = vmatpush1.msra.mxu0 %v1414
      %1584 = vmatprep.subr.mxu0 0.0
      %1585 = vmatpush1.msra.mxu0 %v1415
      %1586 = vmatprep.subr.mxu0 0.0
      %1587 = vmatpush1.msra.mxu0 %v1416
      %1588 = vmatprep.subr.mxu0 0.0
      %1589 = vmatpush1.msra.mxu0 %v1417
      %1590 = vmatprep.subr.mxu0 0.0
      %1591 = vmatpush1.msra.mxu0 %v1418
      %1592 = vmatprep.subr.mxu0 0.0
      %1593 = vmatpush1.msra.mxu0 %v1419
      %1594 = vmatprep.subr.mxu0 0.0
      %1595 = vmatpush1.msra.mxu0 %v1420
      %1596 = vmatprep.subr.mxu0 0.0
      %1597 = vmatpush1.msra.mxu0 %v1421
      %1598 = vmatprep.subr.mxu0 0.0
      %1599 = vmatpush1.msra.mxu0 %v1422
      %1600 = vmatprep.subr.mxu0 0.0
      %1601 = vmatpush1.msra.mxu0 %v1423
      %1602 = vmatprep.subr.mxu0 0.0
      %1603 = vmatpush1.msra.mxu0 %v1424
      %1604 = vmatprep.subr.mxu0 0.0
      %1605 = vmatpush1.msra.mxu0 %v1425
      %1606 = vmatprep.subr.mxu0 0.0
      %1607 = vmatpush1.msra.mxu0 %v1426
      %1608 = vmatprep.subr.mxu0 0.0
      %1609 = vmatpush1.msra.mxu0 %v1427
      %1610 = vmatprep.subr.mxu0 0.0
      %1611 = vmatpush1.msra.mxu0 %v1428
      %1612 = vmatprep.subr.mxu0 0.0
      %1613 = vmatpush1.msra.mxu0 %v1429
      %1614 = vmatprep.subr.mxu0 0.0
      %1615 = vmatpush1.msra.mxu0 %v1430
      %1616 = vmatprep.subr.mxu0 0.0
      %1617 = vmatpush1.msra.mxu0 %v1431
      %1618 = vmatprep.subr.mxu0 0.0
      %1619 = vmatpush1.msra.mxu0 %v1432
      %1620 = vmatprep.subr.mxu0 0.0
      %1621 = vmatpush1.msra.mxu0 %v1433
      %1622 = vmatprep.subr.mxu0 0.0
      %1623 = vmatpush1.msra.mxu0 %v1434
      %1624 = vmatprep.subr.mxu0 0.0
      %1625 = vmatpush1.msra.mxu0 %v1435
      %1626 = vmatprep.subr.mxu0 0.0
      %1627 = vmatpush1.msra.mxu0 %v1436
      %1628 = vmatprep.subr.mxu0 0.0
      %1629 = vmatpush1.msra.mxu0 %v1437
      %1630 = vmatprep.subr.mxu0 0.0
      %1631 = vmatpush1.msra.mxu0 %v1438
      %1632 = vmatprep.subr.mxu0 0.0
      %1633 = vmatpush1.msra.mxu0 %v1439
      %1634 = vmatprep.subr.mxu0 0.0
      %1635 = vmatpush1.msra.mxu0 %v1440
      %1636 = vmatprep.subr.mxu0 0.0
      %1637 = vmatpush1.msra.mxu0 %v1441
      %1638 = vmatprep.subr.mxu0 0.0
      %1639 = vmatpush1.msra.mxu0 %v1442
      %1640 = vmatprep.subr.mxu0 0.0
      %1641 = vmatpush1.msra.mxu0 %v1443
      %1642 = vmatprep.subr.mxu0 0.0
      %1643 = vmatpush1.msra.mxu0 %v1444
      %1644 = vmatprep.subr.mxu0 0.0
      %1645 = vmatpush1.msra.mxu0 %v1445
      %1646 = vmatprep.mubr.f32.mxu0 %v1359
      %1647 = vmatmul.mubr.f32.gmra.mrb[0].mxu0 %v1373
      %v1648 = vpop.f32.mrb[0].mxu0
      %v1649 = vadd.f32 %v1544, %v1648
      %v1650 = vpop.f32.mrb[0].mxu0
      %1651 = vmatprep.mubr.f32.mxu0 %v1360
      %1652 = vmatmul.mubr.f32.gmra.mrb[0].mxu0 %v1374
      %v1653 = vpop.f32.mrb[0].mxu0
      %v1654 = vadd.f32 %v1549, %v1653
      %v1655 = vpop.f32.mrb[0].mxu0
      %1656 = vmatprep.mubr.f32.mxu0 %v1361
      %1657 = vmatmul.mubr.f32.gmra.mrb[0].mxu0 %v1375
      %v1658 = vpop.f32.mrb[0].mxu0
      %v1659 = vadd.f32 %v1554, %v1658
      %v1660 = vpop.f32.mrb[0].mxu0
      %1661 = vmatprep.mubr.f32.mxu0 %v1362
      %1662 = vmatmul.mubr.f32.gmra.mrb[0].mxu0 %v1376
      %v1663 = vpop.f32.mrb[0].mxu0
      %v1664 = vadd.f32 %v1559, %v1663
      %v1665 = vpop.f32.mrb[0].mxu0
      %1666 = vmatprep.mubr.f32.mxu0 %v1363
      %1667 = vmatmul.mubr.f32.gmra.mrb[0].mxu0 %v1377
      %v1668 = vpop.f32.mrb[0].mxu0
      %v1669 = vadd.f32 %v1564, %v1668
      %v1670 = vpop.f32.mrb[0].mxu0
      %1671 = vmatprep.mubr.f32.mxu0 %v1364
      %1672 = vmatmul.mubr.f32.gmra.mrb[0].mxu0 %v1378
      %v1673 = vpop.f32.mrb[0].mxu0
      %v1674 = vadd.f32 %v1569, %v1673
      %v1675 = vpop.f32.mrb[0].mxu0
      %1676 = vmatprep.mubr.f32.mxu0 %v1381
      %1677 = vmatmul.mubr.f32.gmra.mrb[0].mxu0 %v1379
      %v1678 = vpop.f32.mrb[0].mxu0
      %v1679 = vadd.f32 %v1574, %v1678
      %v1680 = vpop.f32.mrb[0].mxu0
      %1681 = vmatprep.mubr.f32.mxu0 %v1357
      %1682 = vmatmul.mubr.f32.gmra.mrb[0].mxu0 %v1380
      %v1683 = vpop.f32.mrb[0].mxu0
      %v1684 = vadd.f32 %v1579, %v1683
      %v1685 = vpop.f32.mrb[0].mxu0
      %1686 = vdwg.mxu0
      %1687 = vmatprep.subr.mxu0 0.0
      %1688 = vmatpush1.msra.mxu0 %v1446
      %1689 = vmatprep.subr.mxu0 0.0
      %1690 = vmatpush1.msra.mxu0 %v1447
      %1691 = vmatprep.subr.mxu0 0.0
      %1692 = vmatpush1.msra.mxu0 %v1448
      %1693 = vmatprep.subr.mxu0 0.0
      %1694 = vmatpush1.msra.mxu0 %v1449
      %1695 = vmatprep.subr.mxu0 0.0
      %1696 = vmatpush1.msra.mxu0 %v1450
      %1697 = vmatprep.subr.mxu0 0.0
      %1698 = vmatpush1.msra.mxu0 %v1451
      %1699 = vmatprep.subr.mxu0 0.0
      %1700 = vmatpush1.msra.mxu0 %v1452
      %1701 = vmatprep.subr.mxu0 0.0
      %1702 = vmatpush1.msra.mxu0 %v1453
      %1703 = vmatprep.subr.mxu0 0.0
      %1704 = vmatpush1.msra.mxu0 0.0
      %1705 = vmatprep.subr.mxu0 0.0
      %1706 = vmatpush1.msra.mxu0 0.0
      %1707 = vmatprep.subr.mxu0 0.0
      %1708 = vmatpush1.msra.mxu0 0.0
      %1709 = vmatprep.subr.mxu0 0.0
      %1710 = vmatpush1.msra.mxu0 0.0
      %1711 = vmatprep.subr.mxu0 0.0
      %1712 = vmatpush1.msra.mxu0 0.0
      %1713 = vmatprep.subr.mxu0 0.0
      %1714 = vmatpush1.msra.mxu0 0.0
      %1715 = vmatprep.subr.mxu0 0.0
      %1716 = vmatpush1.msra.mxu0 0.0
      %1717 = vmatprep.subr.mxu0 0.0
      %1718 = vmatpush1.msra.mxu0 0.0
      %1719 = vmatprep.subr.mxu0 0.0
      %1720 = vmatpush1.msra.mxu0 0.0
      %1721 = vmatprep.subr.mxu0 0.0
      %1722 = vmatpush1.msra.mxu0 0.0
      %1723 = vmatprep.subr.mxu0 0.0
      %1724 = vmatpush1.msra.mxu0 0.0
      %1725 = vmatprep.subr.mxu0 0.0
      %1726 = vmatpush1.msra.mxu0 0.0
      %1727 = vmatprep.subr.mxu0 0.0
      %1728 = vmatpush1.msra.mxu0 0.0
      %1729 = vmatprep.subr.mxu0 0.0
      %1730 = vmatpush1.msra.mxu0 0.0
      %1731 = vmatprep.subr.mxu0 0.0
      %1732 = vmatpush1.msra.mxu0 0.0
      %1733 = vmatprep.subr.mxu0 0.0
      %1734 = vmatpush1.msra.mxu0 0.0
      %1735 = vmatprep.subr.mxu0 0.0
      %1736 = vmatpush1.msra.mxu0 0.0
      %1737 = vmatprep.subr.mxu0 0.0
      %1738 = vmatpush1.msra.mxu0 0.0
      %1739 = vmatprep.subr.mxu0 0.0
      %1740 = vmatpush1.msra.mxu0 0.0
      %1741 = vmatprep.subr.mxu0 0.0
      %1742 = vmatpush1.msra.mxu0 0.0
      %1743 = vmatprep.subr.mxu0 0.0
      %1744 = vmatpush1.msra.mxu0 0.0
      %1745 = vmatprep.subr.mxu0 0.0
      %1746 = vmatpush1.msra.mxu0 0.0
      %1747 = vmatprep.subr.mxu0 0.0
      %1748 = vmatpush1.msra.mxu0 0.0
      %1749 = vmatprep.subr.mxu0 0.0
      %1750 = vmatpush1.msra.mxu0 0.0
      %1751 = vmatprep.mubr.f32.mxu0 0.0
      %1752 = vmatmul.mubr.f32.gmra.mrb[0].mxu0 %v1461
      %v1753 = vpop.f32.mrb[0].mxu0
      %v1754 = vadd.f32 %v1649, %v1753
      %v1755 = vpop.f32.mrb[0].mxu0
      %1756 = vmatprep.mubr.f32.mxu0 0.0
      %1757 = vmatmul.mubr.f32.gmra.mrb[0].mxu0 %v1463
      %v1758 = vpop.f32.mrb[0].mxu0
      %v1759 = vadd.f32 %v1654, %v1758
      %v1760 = vpop.f32.mrb[0].mxu0
      %1761 = vmatprep.mubr.f32.mxu0 0.0
      %1762 = vmatmul.mubr.f32.gmra.mrb[0].mxu0 %v1465
      %v1763 = vpop.f32.mrb[0].mxu0
      %v1764 = vadd.f32 %v1659, %v1763
      %v1765 = vpop.f32.mrb[0].mxu0
      %1766 = vmatprep.mubr.f32.mxu0 0.0
      %1767 = vmatmul.mubr.f32.gmra.mrb[0].mxu0 %v1467
      %v1768 = vpop.f32.mrb[0].mxu0
      %v1769 = vadd.f32 %v1664, %v1768
      %v1770 = vpop.f32.mrb[0].mxu0
      %1771 = vmatprep.mubr.f32.mxu0 0.0
      %1772 = vmatmul.mubr.f32.gmra.mrb[0].mxu0 %v1469
      %v1773 = vpop.f32.mrb[0].mxu0
      %v1774 = vadd.f32 %v1669, %v1773
      %v1775 = vpop.f32.mrb[0].mxu0
      %1776 = vmatprep.mubr.f32.mxu0 0.0
      %1777 = vmatmul.mubr.f32.gmra.mrb[0].mxu0 %v1471
      %v1778 = vpop.f32.mrb[0].mxu0
      %v1779 = vadd.f32 %v1674, %v1778
      %v1780 = vpop.f32.mrb[0].mxu0
      %1781 = vmatprep.mubr.f32.mxu0 0.0
      %1782 = vmatmul.mubr.f32.gmra.mrb[0].mxu0 %v1473
      %v1783 = vpop.f32.mrb[0].mxu0
      %v1784 = vadd.f32 %v1679, %v1783
      %v1785 = vpop.f32.mrb[0].mxu0
      %1786 = vmatprep.mubr.f32.mxu0 0.0
      %1787 = vmatmul.mubr.f32.gmra.mrb[0].mxu0 %v1475
      %v1788 = vpop.f32.mrb[0].mxu0
      %v1789 = vadd.f32 %v1684, %v1788
      %v1790 = vpop.f32.mrb[0].mxu0
      %1791 = vdwg.mxu0
      %v1792 = vxor.u32 %v1754, 2147483648
      %v1793 = vxor.u32 %v1759, 2147483648
      %v1794 = vxor.u32 %v1764, 2147483648
      %v1795 = vxor.u32 %v1769, 2147483648
      %v1796 = vxor.u32 %v1774, 2147483648
      %v1797 = vxor.u32 %v1779, 2147483648
      %v1798 = vxor.u32 %v1784, 2147483648
      %v1799 = vxor.u32 %v1789, 2147483648
      %v1800 = vmul.f32 %v1792, 1.442695
      %v1801 = vpow.pop %v1800
      %v1802 = vmul.f32 %v1793, 1.442695
      %v1803 = vpow.pop %v1802
      %v1804 = vmul.f32 %v1794, 1.442695
      %v1805 = vpow.pop %v1804
      %v1806 = vmul.f32 %v1795, 1.442695
      %v1807 = vpow.pop %v1806
      %v1808 = vmul.f32 %v1796, 1.442695
      %v1809 = vpow.pop %v1808
      %v1810 = vmul.f32 %v1797, 1.442695
      %v1811 = vpow.pop %v1810
      %v1812 = vmul.f32 %v1798, 1.442695
      %v1813 = vpow.pop %v1812
      %v1814 = vmul.f32 %v1799, 1.442695
      %v1815 = vpow.pop %v1814
      %v1816 = vadd.f32 %v1801, 1.0
      %v1817 = vadd.f32 %v1803, 1.0
      %v1818 = vadd.f32 %v1805, 1.0
      %v1819 = vadd.f32 %v1807, 1.0
      %v1820 = vadd.f32 %v1809, 1.0
      %v1821 = vadd.f32 %v1811, 1.0
      %v1822 = vadd.f32 %v1813, 1.0
      %v1823 = vadd.f32 %v1815, 1.0
      %v1824 = vrcp.pop %v1816
      %v1825 = vmul.f32 1.0, %v1824
      %v1826 = vrcp.pop %v1817
      %v1827 = vmul.f32 1.0, %v1826
      %v1828 = vrcp.pop %v1818
      %v1829 = vmul.f32 1.0, %v1828
      %v1830 = vrcp.pop %v1819
      %v1831 = vmul.f32 1.0, %v1830
      %v1832 = vrcp.pop %v1820
      %v1833 = vmul.f32 1.0, %v1832
      %v1834 = vrcp.pop %v1821
      %v1835 = vmul.f32 1.0, %v1834
      %v1836 = vrcp.pop %v1822
      %v1837 = vmul.f32 1.0, %v1836
      %v1838 = vrcp.pop %v1823
      %v1839 = vmul.f32 1.0, %v1838
      %v1840 = vmul.f32 %v272, %v1825
      %v1841 = vmul.f32 %v273, %v1827
      %v1842 = vmul.f32 %v274, %v1829
      %v1843 = vmul.f32 %v275, %v1831
      %v1844 = vmul.f32 %v276, %v1833
      %v1845 = vmul.f32 %v277, %v1835
      %v1846 = vmul.f32 %v278, %v1837
      %v1847 = vmul.f32 %v279, %v1839
      %1856 = vrot.lane.b32.xlu0 %v1754, 64
      %v1857 = vpop.permute.xlu0 %1856
      %1858 = vrot.lane.b32.xlu0 %v1759, 64
      %v1859 = vpop.permute.xlu0 %1858
      %1860 = vrot.lane.b32.xlu0 %v1764, 64
      %v1861 = vpop.permute.xlu0 %1860
      %1862 = vrot.lane.b32.xlu0 %v1769, 64
      %v1863 = vpop.permute.xlu0 %1862
      %1864 = vrot.lane.b32.xlu0 %v1774, 64
      %v1865 = vpop.permute.xlu0 %1864
      %1866 = vrot.lane.b32.xlu0 %v1779, 64
      %v1867 = vpop.permute.xlu0 %1866
      %1868 = vrot.lane.b32.xlu0 %v1784, 64
      %v1869 = vpop.permute.xlu0 %1868
      %1870 = vrot.lane.b32.xlu0 %v1789, 64
      %v1871 = vpop.permute.xlu0 %1870
      %v1880 = vadd.f32 %v1840, %v1857
      %v1881 = vadd.f32 %v1841, %v1859
      %v1882 = vadd.f32 %v1842, %v1861
      %v1883 = vadd.f32 %v1843, %v1863
      %v1884 = vadd.f32 %v1844, %v1865
      %v1885 = vadd.f32 %v1845, %v1867
      %v1886 = vadd.f32 %v1846, %v1869
      %v1887 = vadd.f32 %v1847, %v1871
      %1888 = vst.msk [vmem:[%s271] sm:$0xff] %vm320, %v1880
      %1889 = vst.msk [vmem:[%s271 + $0x8] sm:$0xff] %vm320, %v1881
      %1890 = vst.msk [vmem:[%s271 + $0x10] sm:$0xff] %vm320, %v1882
      %1891 = vst.msk [vmem:[%s271 + $0x18] sm:$0xff] %vm320, %v1883
      %1892 = vst.msk [vmem:[%s271 + $0x20] sm:$0xff] %vm320, %v1884
      %1893 = vst.msk [vmem:[%s271 + $0x28] sm:$0xff] %vm320, %v1885
      %1894 = vst.msk [vmem:[%s271 + $0x30] sm:$0xff] %vm320, %v1886
      %1895 = vst.msk [vmem:[%s271 + $0x38] sm:$0xff] %vm320, %v1887
      %p1896 = scmp.lt.s32.totalorder %s17, 1
      %s1897 = scalar_select %p1896, %s17, 1
      %s1898 = smul.addr %s1897, 8
      %s1899 = smul.addr %s1898, 8
      %s1900 = scalar_lea.vmem %s6, %s1899
      // Predicated region
      $region45: #{sft_fcab_forward.3} parent=43 // pred_check
        %p1901 = pneg %p171
      $region46: #{sft_fcab_forward.3} parent=43 // pred_check_branch
        %1903 = sbr.rel (%p1901) target = $region48
      $region47: #{sft_fcab_forward.3} parent=43 // pred_region
        _
      $region48: #{sft_fcab_forward.3} parent=43 // pred_fallthru
        _
    $region44: #{sft_fcab_forward.3} parent=5 // pred_fallthru
      _
    %p1904 = scmp.le.s32.totalorder 2, %s12
    // Predicated region
    $region49: #{sft_fcab_forward.3} parent=5 // pred_check
      %p1905 = pneg %p1904
    $region50: #{sft_fcab_forward.3} parent=5 // pred_check_branch
      %1907 = sbr.rel (%p1905) target = $region52
    $region51: #{sft_fcab_forward.3} parent=5 // pred_region
      %s1908 = ssub.s32 %s12, 2
      // Predicated region
      $region53: #{sft_fcab_forward.3} parent=51 // pred_check
        %p1909 = pneg %p177
      $region54: #{sft_fcab_forward.3} parent=51 // pred_check_branch
        %1911 = sbr.rel (%p1909) target = $region56
      $region55: #{sft_fcab_forward.3} parent=51 // pred_region
        %p1912 = scmp.lt.s32.totalorder %s18, 1
        %s1913 = scalar_select %p1912, %s18, 1
        %s1914 = smul.addr %s1913, 8
        %s1915 = smul.addr %s1914, 8
        %s1916 = scalar_lea.vmem %s6, %s1915
      $region56: #{sft_fcab_forward.3} parent=51 // pred_fallthru
        _
    $region52: #{sft_fcab_forward.3} parent=5 // pred_fallthru
      _
  $region6: #{sft_fcab_forward.3} parent=0 // loop_footer
    %s16 = sadd.s32 1, %s12
  $region7: #{sft_fcab_forward.3} parent=0 // loop_footer_branch
    %11 = sbr.rel target = $region3
  $region8: #{sft_fcab_forward.3} parent=0 // loop_exit
    _

// kernel: sft_fcab_forward.5
$region0: #{sft_fcab_forward.5}
  #allocation0 [shape = 'u32[]', space=smem, size = 0x4, offset = 0x4, fixed_abs, tag = 'smem constant byte address 0x4 - core index']
  #allocation1 [shape = 'u32[144,128]{1,0:T(1,128)}', space=vmem, size = 0x12000, scoped, tag = 'internal scratch']
  %s0 = inlined_call_operand.vmem [shape: f32[2,8,8,64], index: 0, kind: input, shape index: {}]
  %s1 = inlined_call_operand.vmem [shape: f32[2,8,8,64], index: 1, kind: input, shape index: {}]
  %s2 = inlined_call_operand.vmem [shape: f32[2,8,8,64], index: 2, kind: input, shape index: {}]
  %s3 = inlined_call_operand.vmem [shape: f32[576,64], index: 3, kind: input, shape index: {}]
  %s4 = inlined_call_operand.vmem [shape: f32[1,64], index: 4, kind: input, shape index: {}]
  %s5 = inlined_call_operand.vmem [shape: f32[64,4], index: 5, kind: input, shape index: {}]
  %s6 = inlined_call_operand.vmem [shape: f32[1,4], index: 6, kind: input, shape index: {}]
  %s7 = inlined_call_operand.vmem [shape: f32[4,64], index: 7, kind: input, shape index: {}]
  %s8 = inlined_call_operand.vmem [shape: f32[1,64], index: 8, kind: input, shape index: {}]
  %s9 = inlined_call_operand.hbm [shape: f32[2,8,8,64], index: 9, kind: output, shape index: {}]
  %s10 = sld [smem:[#allocation0]]
  $region69: #{sft_fcab_forward.5} parent=0
    _
  %s12 = ssub.s32 1, %s10
  %s13 = scalar_select 0, %s12, %s10
  $region1: #{sft_fcab_forward.5} parent=0
    #allocation2 [shape = 'u8[65536]{0}', space=vmem, size = 0x10000, scoped, tag = 'output window, operand 0']
    #allocation3 [shape = 's32[2]{0}', space=sflag, size = 0x8, scoped, tag = 'scoped memory for sft_fcab_forward.5']
    %14 = vsyncpa [#allocation3], 0
    %s15 = scalar_lea.sflag [#allocation3], 1
    %16 = vsyncpa %s15, 0
    loop: start=0, step=1, limit=4
    $region2: #{sft_fcab_forward.5} parent=1 // loop_pre_header
      _
    $region3: #{sft_fcab_forward.5} parent=1 // loop_header
      %s18 = sphi 0, %s22
      %p19 = scmp.ge.s32.totalorder %s18, 4
      %s28 = sphi 0, %s30
      %s31 = sphi 0, %s28
      %s32 = sphi 0, %s31
      %s48 = sphi 0, %s32
      %s54 = sphi 0, %s56
      %s57 = sphi 0, %s54
      %s58 = sphi 0, %s57
      %s74 = sphi 0, %s58
      %s80 = sphi 0, %s82
      %s83 = sphi 0, %s80
      %s84 = sphi 0, %s83
      %s100 = sphi 0, %s84
      %s104 = sphi 0, %s104
      %s106 = sphi 0, %s104
      %s107 = sphi 0, %s106
      %s121 = sphi 0, %s107
      %s125 = sphi 0, %s125
      %s127 = sphi 0, %s125
      %s128 = sphi 0, %s127
      %s142 = sphi 0, %s128
      %s146 = sphi 0, %s146
      %s148 = sphi 0, %s146
      %s149 = sphi 0, %s148
      %s163 = sphi 0, %s149
      %s167 = sphi 0, %s167
      %s169 = sphi 0, %s167
      %s170 = sphi 0, %s169
      %s184 = sphi 0, %s170
      %s188 = sphi 0, %s188
      %s190 = sphi 0, %s188
      %s191 = sphi 0, %s190
      %s205 = sphi 0, %s191
      %s209 = sphi 0, %s209
      %s211 = sphi 0, %s209
      %s212 = sphi 0, %s211
      %s226 = sphi 0, %s212
      %s232 = sphi 0, %s234
      %s235 = sphi 0, %s232
      %s236 = sphi 0, %s235
      %s252 = sphi 0, %s236
    $region4: #{sft_fcab_forward.5} parent=1 // loop_header_branch
      %21 = sbr.rel (%p19) target = $region8
    $region5: #{sft_fcab_forward.5} parent=1 // loop_body
      %s23 = ssub.s32 %s18, 1
      %s24 = ssub.s32 %s18, 2
      %s25 = sadd.s32 %s18, 1
      %s26 = ssub.s32 %s18, %s25
      %p27 = scmp.eq.s32.totalorder %s26, 0
      %s29 = sadd.s32 %s28, 1
      %s30 = scalar_select %p27, %s28, %s29
      %p33 = pneg %p27
      %p34 = scmp.eq.s32.totalorder %s18, 1
      %p35 = por %p33, %p34
      %p36 = scmp.ne.s32.totalorder %s28, %s31
      %p37 = scmp.eq.s32.totalorder %s18, 0
      %p38 = por %p36, %p37
      %p39 = scmp.ne.s32.totalorder %s28, %s31
      %p40 = scmp.eq.s32.totalorder %s23, 1
      %p41 = por %p39, %p40
      %p42 = scmp.ne.s32.totalorder %s31, %s32
      %p43 = scmp.eq.s32.totalorder %s23, 0
      %p44 = por %p42, %p43
      %p45 = scmp.ne.s32.totalorder %s31, %s32
      %p46 = scmp.eq.s32.totalorder %s24, 1
      %p47 = por %p45, %p46
      %p49 = scmp.ne.s32.totalorder %s32, %s48
      %p50 = scmp.eq.s32.totalorder %s24, 0
      %p51 = por %p49, %p50
      %s52 = ssub.s32 %s18, %s25
      %p53 = scmp.eq.s32.totalorder %s52, 0
      %s55 = sadd.s32 %s54, 1
      %s56 = scalar_select %p53, %s54, %s55
      %p59 = pneg %p53
      %p60 = scmp.eq.s32.totalorder %s18, 1
      %p61 = por %p59, %p60
      %p62 = scmp.ne.s32.totalorder %s54, %s57
      %p63 = scmp.eq.s32.totalorder %s18, 0
      %p64 = por %p62, %p63
      %p65 = scmp.ne.s32.totalorder %s54, %s57
      %p66 = scmp.eq.s32.totalorder %s23, 1
      %p67 = por %p65, %p66
      %p68 = scmp.ne.s32.totalorder %s57, %s58
      %p69 = scmp.eq.s32.totalorder %s23, 0
      %p70 = por %p68, %p69
      %p71 = scmp.ne.s32.totalorder %s57, %s58
      %p72 = scmp.eq.s32.totalorder %s24, 1
      %p73 = por %p71, %p72
      %p75 = scmp.ne.s32.totalorder %s58, %s74
      %p76 = scmp.eq.s32.totalorder %s24, 0
      %p77 = por %p75, %p76
      %s78 = ssub.s32 %s18, %s25
      %p79 = scmp.eq.s32.totalorder %s78, 0
      %s81 = sadd.s32 %s80, 1
      %s82 = scalar_select %p79, %s80, %s81
      %p85 = pneg %p79
      %p86 = scmp.eq.s32.totalorder %s18, 1
      %p87 = por %p85, %p86
      %p88 = scmp.ne.s32.totalorder %s80, %s83
      %p89 = scmp.eq.s32.totalorder %s18, 0
      %p90 = por %p88, %p89
      %p91 = scmp.ne.s32.totalorder %s80, %s83
      %p92 = scmp.eq.s32.totalorder %s23, 1
      %p93 = por %p91, %p92
      %p94 = scmp.ne.s32.totalorder %s83, %s84
      %p95 = scmp.eq.s32.totalorder %s23, 0
      %p96 = por %p94, %p95
      %p97 = scmp.ne.s32.totalorder %s83, %s84
      %p98 = scmp.eq.s32.totalorder %s24, 1
      %p99 = por %p97, %p98
      %p101 = scmp.ne.s32.totalorder %s84, %s100
      %p102 = scmp.eq.s32.totalorder %s24, 0
      %p103 = por %p101, %p102
      %s105 = sadd.s32 %s104, 1
      %p108 = scmp.eq.s32.totalorder %s18, 1
      %p109 = scmp.ne.s32.totalorder %s104, %s106
      %p110 = scmp.eq.s32.totalorder %s18, 0
      %p111 = por %p109, %p110
      %p112 = scmp.ne.s32.totalorder %s104, %s106
      %p113 = scmp.eq.s32.totalorder %s23, 1
      %p114 = por %p112, %p113
      %p115 = scmp.ne.s32.totalorder %s106, %s107
      %p116 = scmp.eq.s32.totalorder %s23, 0
      %p117 = por %p115, %p116
      %p118 = scmp.ne.s32.totalorder %s106, %s107
      %p119 = scmp.eq.s32.totalorder %s24, 1
      %p120 = por %p118, %p119
      %p122 = scmp.ne.s32.totalorder %s107, %s121
      %p123 = scmp.eq.s32.totalorder %s24, 0
      %p124 = por %p122, %p123
      %s126 = sadd.s32 %s125, 1
      %p129 = scmp.eq.s32.totalorder %s18, 1
      %p130 = scmp.ne.s32.totalorder %s125, %s127
      %p131 = scmp.eq.s32.totalorder %s18, 0
      %p132 = por %p130, %p131
      %p133 = scmp.ne.s32.totalorder %s125, %s127
      %p134 = scmp.eq.s32.totalorder %s23, 1
      %p135 = por %p133, %p134
      %p136 = scmp.ne.s32.totalorder %s127, %s128
      %p137 = scmp.eq.s32.totalorder %s23, 0
      %p138 = por %p136, %p137
      %p139 = scmp.ne.s32.totalorder %s127, %s128
      %p140 = scmp.eq.s32.totalorder %s24, 1
      %p141 = por %p139, %p140
      %p143 = scmp.ne.s32.totalorder %s128, %s142
      %p144 = scmp.eq.s32.totalorder %s24, 0
      %p145 = por %p143, %p144
      %s147 = sadd.s32 %s146, 1
      %p150 = scmp.eq.s32.totalorder %s18, 1
      %p151 = scmp.ne.s32.totalorder %s146, %s148
      %p152 = scmp.eq.s32.totalorder %s18, 0
      %p153 = por %p151, %p152
      %p154 = scmp.ne.s32.totalorder %s146, %s148
      %p155 = scmp.eq.s32.totalorder %s23, 1
      %p156 = por %p154, %p155
      %p157 = scmp.ne.s32.totalorder %s148, %s149
      %p158 = scmp.eq.s32.totalorder %s23, 0
      %p159 = por %p157, %p158
      %p160 = scmp.ne.s32.totalorder %s148, %s149
      %p161 = scmp.eq.s32.totalorder %s24, 1
      %p162 = por %p160, %p161
      %p164 = scmp.ne.s32.totalorder %s149, %s163
      %p165 = scmp.eq.s32.totalorder %s24, 0
      %p166 = por %p164, %p165
      %s168 = sadd.s32 %s167, 1
      %p171 = scmp.eq.s32.totalorder %s18, 1
      %p172 = scmp.ne.s32.totalorder %s167, %s169
      %p173 = scmp.eq.s32.totalorder %s18, 0
      %p174 = por %p172, %p173
      %p175 = scmp.ne.s32.totalorder %s167, %s169
      %p176 = scmp.eq.s32.totalorder %s23, 1
      %p177 = por %p175, %p176
      %p178 = scmp.ne.s32.totalorder %s169, %s170
      %p179 = scmp.eq.s32.totalorder %s23, 0
      %p180 = por %p178, %p179
      %p181 = scmp.ne.s32.totalorder %s169, %s170
      %p182 = scmp.eq.s32.totalorder %s24, 1
      %p183 = por %p181, %p182
      %p185 = scmp.ne.s32.totalorder %s170, %s184
      %p186 = scmp.eq.s32.totalorder %s24, 0
      %p187 = por %p185, %p186
      %s189 = sadd.s32 %s188, 1
      %p192 = scmp.eq.s32.totalorder %s18, 1
      %p193 = scmp.ne.s32.totalorder %s188, %s190
      %p194 = scmp.eq.s32.totalorder %s18, 0
      %p195 = por %p193, %p194
      %p196 = scmp.ne.s32.totalorder %s188, %s190
      %p197 = scmp.eq.s32.totalorder %s23, 1
      %p198 = por %p196, %p197
      %p199 = scmp.ne.s32.totalorder %s190, %s191
      %p200 = scmp.eq.s32.totalorder %s23, 0
      %p201 = por %p199, %p200
      %p202 = scmp.ne.s32.totalorder %s190, %s191
      %p203 = scmp.eq.s32.totalorder %s24, 1
      %p204 = por %p202, %p203
      %p206 = scmp.ne.s32.totalorder %s191, %s205
      %p207 = scmp.eq.s32.totalorder %s24, 0
      %p208 = por %p206, %p207
      %s210 = sadd.s32 %s209, 1
      %p213 = scmp.eq.s32.totalorder %s18, 1
      %p214 = scmp.ne.s32.totalorder %s209, %s211
      %p215 = scmp.eq.s32.totalorder %s18, 0
      %p216 = por %p214, %p215
      %p217 = scmp.ne.s32.totalorder %s209, %s211
      %p218 = scmp.eq.s32.totalorder %s23, 1
      %p219 = por %p217, %p218
      %p220 = scmp.ne.s32.totalorder %s211, %s212
      %p221 = scmp.eq.s32.totalorder %s23, 0
      %p222 = por %p220, %p221
      %p223 = scmp.ne.s32.totalorder %s211, %s212
      %p224 = scmp.eq.s32.totalorder %s24, 1
      %p225 = por %p223, %p224
      %p227 = scmp.ne.s32.totalorder %s212, %s226
      %p228 = scmp.eq.s32.totalorder %s24, 0
      %p229 = por %p227, %p228
      %s230 = ssub.s32 %s18, %s25
      %p231 = scmp.eq.s32.totalorder %s230, 0
      %s233 = sadd.s32 %s232, 1
      %s234 = scalar_select %p231, %s232, %s233
      %p237 = pneg %p231
      %p238 = scmp.eq.s32.totalorder %s18, 1
      %p239 = por %p237, %p238
      %p240 = scmp.ne.s32.totalorder %s232, %s235
      %p241 = scmp.eq.s32.totalorder %s18, 0
      %p242 = por %p240, %p241
      %p243 = scmp.ne.s32.totalorder %s232, %s235
      %p244 = scmp.eq.s32.totalorder %s23, 1
      %p245 = por %p243, %p244
      %p246 = scmp.ne.s32.totalorder %s235, %s236
      %p247 = scmp.eq.s32.totalorder %s23, 0
      %p248 = por %p246, %p247
      %p249 = scmp.ne.s32.totalorder %s235, %s236
      %p250 = scmp.eq.s32.totalorder %s24, 1
      %p251 = por %p249, %p250
      %p253 = scmp.ne.s32.totalorder %s236, %s252
      %p254 = scmp.eq.s32.totalorder %s24, 0
      %p255 = por %p253, %p254
      %p256 = scmp.le.s32.totalorder 1, %s18
      %p257 = scmp.lt.s32.totalorder %s18, 3
      %p258 = pnand %p256, %p257
      %p259 = pneg %p258
      // Predicated region
      $region9: #{sft_fcab_forward.5} parent=5 // pred_check
        _
      $region10: #{sft_fcab_forward.5} parent=5 // pred_check_branch
        %261 = sbr.rel (%p258) target = $region12
      $region11: #{sft_fcab_forward.5} parent=5 // pred_region
        %s262 = ssub.s32 %s18, 1
        // Predicated region
        $region13: #{sft_fcab_forward.5} parent=11 // pred_check
          %p263 = pneg %p117
        $region14: #{sft_fcab_forward.5} parent=11 // pred_check_branch
          %265 = sbr.rel (%p263) target = $region16
        $region15: #{sft_fcab_forward.5} parent=11 // pred_region
          _
        $region16: #{sft_fcab_forward.5} parent=11 // pred_fallthru
          _
        // Predicated region
        $region17: #{sft_fcab_forward.5} parent=11 // pred_check
          %p266 = pneg %p138
        $region18: #{sft_fcab_forward.5} parent=11 // pred_check_branch
          %268 = sbr.rel (%p266) target = $region20
        $region19: #{sft_fcab_forward.5} parent=11 // pred_region
          _
        $region20: #{sft_fcab_forward.5} parent=11 // pred_fallthru
          _
        // Predicated region
        $region21: #{sft_fcab_forward.5} parent=11 // pred_check
          %p269 = pneg %p159
        $region22: #{sft_fcab_forward.5} parent=11 // pred_check_branch
          %271 = sbr.rel (%p269) target = $region24
        $region23: #{sft_fcab_forward.5} parent=11 // pred_region
          _
        $region24: #{sft_fcab_forward.5} parent=11 // pred_fallthru
          _
        // Predicated region
        $region25: #{sft_fcab_forward.5} parent=11 // pred_check
          %p272 = pneg %p180
        $region26: #{sft_fcab_forward.5} parent=11 // pred_check_branch
          %274 = sbr.rel (%p272) target = $region28
        $region27: #{sft_fcab_forward.5} parent=11 // pred_region
          _
        $region28: #{sft_fcab_forward.5} parent=11 // pred_fallthru
          _
        // Predicated region
        $region29: #{sft_fcab_forward.5} parent=11 // pred_check
          %p275 = pneg %p201
        $region30: #{sft_fcab_forward.5} parent=11 // pred_check_branch
          %277 = sbr.rel (%p275) target = $region32
        $region31: #{sft_fcab_forward.5} parent=11 // pred_region
          _
        $region32: #{sft_fcab_forward.5} parent=11 // pred_fallthru
          _
        // Predicated region
        $region33: #{sft_fcab_forward.5} parent=11 // pred_check
          %p278 = pneg %p222
        $region34: #{sft_fcab_forward.5} parent=11 // pred_check_branch
          %280 = sbr.rel (%p278) target = $region36
        $region35: #{sft_fcab_forward.5} parent=11 // pred_region
          _
        $region36: #{sft_fcab_forward.5} parent=11 // pred_fallthru
          _
      $region12: #{sft_fcab_forward.5} parent=5 // pred_fallthru
        _
      %p281 = scmp.lt.s32.totalorder %s18, 2
      // Predicated region
      $region37: #{sft_fcab_forward.5} parent=5 // pred_check
        %p282 = pneg %p281
      $region38: #{sft_fcab_forward.5} parent=5 // pred_check_branch
        %284 = sbr.rel (%p282) target = $region40
      $region39: #{sft_fcab_forward.5} parent=5 // pred_region
        // Predicated region
        $region41: #{sft_fcab_forward.5} parent=39 // pred_check
          %p285 = pneg %p38
        $region42: #{sft_fcab_forward.5} parent=39 // pred_check_branch
          %287 = sbr.rel (%p285) target = $region44
        $region43: #{sft_fcab_forward.5} parent=39 // pred_region
          %p288 = scmp.lt.s32.totalorder %s18, 1
          %s289 = scalar_select %p288, %s18, 1
          %s290 = smul.addr %s289, 8
          %s291 = smul.addr %s290, 8
          %s292 = scalar_lea.vmem %s0, %s291
        $region44: #{sft_fcab_forward.5} parent=39 // pred_fallthru
          _
        // Predicated region
        $region45: #{sft_fcab_forward.5} parent=39 // pred_check
          %p293 = pneg %p64
        $region46: #{sft_fcab_forward.5} parent=39 // pred_check_branch
          %295 = sbr.rel (%p293) target = $region48
        $region47: #{sft_fcab_forward.5} parent=39 // pred_region
          %p296 = scmp.lt.s32.totalorder %s18, 1
          %s297 = scalar_select %p296, %s18, 1
          %s298 = smul.addr %s297, 8
          %s299 = smul.addr %s298, 8
          %s300 = scalar_lea.vmem %s1, %s299
        $region48: #{sft_fcab_forward.5} parent=39 // pred_fallthru
          _
        // Predicated region
        $region49: #{sft_fcab_forward.5} parent=39 // pred_check
          %p301 = pneg %p90
        $region50: #{sft_fcab_forward.5} parent=39 // pred_check_branch
          %303 = sbr.rel (%p301) target = $region52
        $region51: #{sft_fcab_forward.5} parent=39 // pred_region
          %p304 = scmp.lt.s32.totalorder %s18, 1
          %s305 = scalar_select %p304, %s18, 1
          %s306 = smul.addr %s305, 8
          %s307 = smul.addr %s306, 8
          %s308 = scalar_lea.vmem %s2, %s307
        $region52: #{sft_fcab_forward.5} parent=39 // pred_fallthru
          _
      $region40: #{sft_fcab_forward.5} parent=5 // pred_fallthru
        _
      %p309 = scmp.le.s32.totalorder 1, %s18
      %p310 = scmp.lt.s32.totalorder %s18, 3
      %p311 = pnand %p309, %p310
      %p312 = pneg %p311
      // Predicated region
      $region53: #{sft_fcab_forward.5} parent=5 // pred_check
        _
      $region54: #{sft_fcab_forward.5} parent=5 // pred_check_branch
        %314 = sbr.rel (%p311) target = $region56
      $region55: #{sft_fcab_forward.5} parent=5 // pred_region
        %s315 = ssub.s32 %s18, 1
        %p316 = scmp.lt.s32.totalorder %s23, 1
        %s317 = scalar_select %p316, %s23, 1
        %s318 = smul.addr %s317, 8
        %s319 = smul.addr %s318, 8
        %s320 = scalar_lea.vmem %s0, %s319
        %p321 = pneg %p44
        %p322 = pneg %p41
        %p323 = scmp.lt.s32.totalorder %s23, 1
        %s324 = scalar_select %p323, %s23, 1
        %s325 = smul.addr %s324, 8
        %s326 = smul.addr %s325, 8
        %s327 = scalar_lea.vmem %s1, %s326
        %p328 = pneg %p70
        %p329 = pneg %p67
        %p330 = scmp.lt.s32.totalorder %s23, 1
        %s331 = scalar_select %p330, %s23, 1
        %s332 = smul.addr %s331, 8
        %s333 = smul.addr %s332, 8
        %s334 = scalar_lea.vmem %s2, %s333
        %p335 = pneg %p96
        %p336 = pneg %p93
        %p337 = pneg %p117
        %p338 = pneg %p114
        %p339 = pneg %p138
        %p340 = pneg %p135
        %p341 = pneg %p159
        %p342 = pneg %p156
        %p343 = pneg %p180
        %p344 = pneg %p177
        %p345 = pneg %p201
        %p346 = pneg %p198
        %p347 = pneg %p222
        %p348 = pneg %p219
        %p349 = pneg %p248
        %p350 = pneg %p245
        %s351 = sand.u32 %s235, 1
        %s352 = scalar_lea.sflag [#allocation3], %s351
        %s353 = sand.u32 %s235, 1
        %s354 = smul.addr %s353, 64
        %s355 = scalar_lea.vmem [#allocation2], %s354
        %p356 = scmp.lt.s32.totalorder %s23, 1
        %s357 = scalar_select %p356, %s23, 1
        %s358 = smul.addr %s357, 8
        %s359 = smul.addr %s358, 8
        %s360 = scalar_lea.vmem %s0, %s359
        %p361 = scmp.lt.s32.totalorder %s23, 1
        %s362 = scalar_select %p361, %s23, 1
        %s363 = smul.addr %s362, 8
        %s364 = smul.addr %s363, 8
        %s365 = scalar_lea.vmem %s1, %s364
        %p366 = scmp.lt.s32.totalorder %s23, 1
        %s367 = scalar_select %p366, %s23, 1
        %s368 = smul.addr %s367, 8
        %s369 = smul.addr %s368, 8
        %s370 = scalar_lea.vmem %s2, %s369
        %v371 = vld [vmem:[%s360] sm:$0xff]
        %v372 = vld [vmem:[%s360 + $0x8] sm:$0xff]
        %v373 = vld [vmem:[%s360 + $0x10] sm:$0xff]
        %v374 = vld [vmem:[%s360 + $0x18] sm:$0xff]
        %v375 = vld [vmem:[%s360 + $0x20] sm:$0xff]
        %v376 = vld [vmem:[%s360 + $0x28] sm:$0xff]
        %v377 = vld [vmem:[%s360 + $0x30] sm:$0xff]
        %v378 = vld [vmem:[%s360 + $0x38] sm:$0xff]
        %v388 = vrot.slane 0.0, 7
        %v389 = vrot.slane %v371, 7
        %v390 = vrot.slane %v372, 7
        %v391 = vrot.slane %v373, 7
        %v392 = vrot.slane %v374, 7
        %v393 = vrot.slane %v375, 7
        %v394 = vrot.slane %v376, 7
        %v395 = vrot.slane %v377, 7
        %v396 = vrot.slane %v378, 7
        %vm406 = vcmask 1040384
        %v407 = vsel %vm406, 0.0, %v388
        %v408 = vsel %vm406, 0.0, %v389
        %v409 = vsel %vm406, 0.0, %v390
        %v410 = vsel %vm406, 0.0, %v391
        %v411 = vsel %vm406, 0.0, %v392
        %v412 = vsel %vm406, 0.0, %v393
        %v413 = vsel %vm406, 0.0, %v394
        %v414 = vsel %vm406, 0.0, %v395
        %v415 = vsel %vm406, 0.0, %v396
        %v416 = vsel %vm406, %v388, 0.0
        %v417 = vsel %vm406, %v389, 0.0
        %v418 = vsel %vm406, %v390, 0.0
        %v419 = vsel %vm406, %v391, 0.0
        %v420 = vsel %vm406, %v392, 0.0
        %v421 = vsel %vm406, %v393, 0.0
        %v422 = vsel %vm406, %v394, 0.0
        %v423 = vsel %vm406, %v395, 0.0
        %v424 = vsel %vm406, %v396, 0.0
        %vm441 = vcmask 1046528
        %v442 = vrot.slane %v407, 1
        %v443 = vrot.slane %v416, 1
        %v444 = vsel %vm441, %v442, %v443
        %v445 = vrot.slane %v408, 1
        %v446 = vrot.slane %v417, 1
        %v447 = vsel %vm441, %v445, %v446
        %v448 = vrot.slane %v409, 1
        %v449 = vrot.slane %v418, 1
        %v450 = vsel %vm441, %v448, %v449
        %v451 = vrot.slane %v410, 1
        %v452 = vrot.slane %v419, 1
        %v453 = vsel %vm441, %v451, %v452
        %v454 = vrot.slane %v411, 1
        %v455 = vrot.slane %v420, 1
        %v456 = vsel %vm441, %v454, %v455
        %v457 = vrot.slane %v412, 1
        %v458 = vrot.slane %v421, 1
        %v459 = vsel %vm441, %v457, %v458
        %v460 = vrot.slane %v413, 1
        %v461 = vrot.slane %v422, 1
        %v462 = vsel %vm441, %v460, %v461
        %v463 = vrot.slane %v414, 1
        %v464 = vrot.slane %v423, 1
        %v465 = vsel %vm441, %v463, %v464
        %vm466 = vcmask 1045504
        %v467 = vrot.slane %v407, 2
        %v468 = vrot.slane %v416, 2
        %v469 = vsel %vm466, %v467, %v468
        %v470 = vrot.slane %v408, 2
        %v471 = vrot.slane %v417, 2
        %v472 = vsel %vm466, %v470, %v471
        %v473 = vrot.slane %v409, 2
        %v474 = vrot.slane %v418, 2
        %v475 = vsel %vm466, %v473, %v474
        %v476 = vrot.slane %v410, 2
        %v477 = vrot.slane %v419, 2
        %v478 = vsel %vm466, %v476, %v477
        %v479 = vrot.slane %v411, 2
        %v480 = vrot.slane %v420, 2
        %v481 = vsel %vm466, %v479, %v480
        %v482 = vrot.slane %v412, 2
        %v483 = vrot.slane %v421, 2
        %v484 = vsel %vm466, %v482, %v483
        %v485 = vrot.slane %v413, 2
        %v486 = vrot.slane %v422, 2
        %v487 = vsel %vm466, %v485, %v486
        %v488 = vrot.slane %v414, 2
        %v489 = vrot.slane %v423, 2
        %v490 = vsel %vm466, %v488, %v489
        %v501 = vrot.slane %v415, 1
        %v502 = vrot.slane %v424, 1
        %v503 = vsel %vm441, %v501, %v502
        %v512 = vrot.slane %v415, 2
        %v513 = vrot.slane %v424, 2
        %v514 = vsel %vm466, %v512, %v513
        %515 = vrot.lane.b32.xlu0 %v444, 64
        %v516 = vpop.permute.xlu0 %515
        %517 = vrot.lane.b32.xlu0 %v447, 64
        %v518 = vpop.permute.xlu0 %517
        %519 = vrot.lane.b32.xlu0 %v450, 64
        %v520 = vpop.permute.xlu0 %519
        %521 = vrot.lane.b32.xlu0 %v453, 64
        %v522 = vpop.permute.xlu0 %521
        %523 = vrot.lane.b32.xlu0 %v456, 64
        %v524 = vpop.permute.xlu0 %523
        %525 = vrot.lane.b32.xlu0 %v459, 64
        %v526 = vpop.permute.xlu0 %525
        %527 = vrot.lane.b32.xlu0 %v462, 64
        %v528 = vpop.permute.xlu0 %527
        %529 = vrot.lane.b32.xlu0 %v465, 64
        %v530 = vpop.permute.xlu0 %529
        %539 = vrot.lane.b32.xlu0 %v408, 64
        %v540 = vpop.permute.xlu0 %539
        %541 = vrot.lane.b32.xlu0 %v409, 64
        %v542 = vpop.permute.xlu0 %541
        %543 = vrot.lane.b32.xlu0 %v410, 64
        %v544 = vpop.permute.xlu0 %543
        %545 = vrot.lane.b32.xlu0 %v411, 64
        %v546 = vpop.permute.xlu0 %545
        %547 = vrot.lane.b32.xlu0 %v412, 64
        %v548 = vpop.permute.xlu0 %547
        %549 = vrot.lane.b32.xlu0 %v413, 64
        %v550 = vpop.permute.xlu0 %549
        %551 = vrot.lane.b32.xlu0 %v414, 64
        %v552 = vpop.permute.xlu0 %551
        %553 = vrot.lane.b32.xlu0 %v415, 64
        %v554 = vpop.permute.xlu0 %553
        %563 = vrot.lane.b32.xlu0 %v472, 64
        %v564 = vpop.permute.xlu0 %563
        %565 = vrot.lane.b32.xlu0 %v475, 64
        %v566 = vpop.permute.xlu0 %565
        %567 = vrot.lane.b32.xlu0 %v478, 64
        %v568 = vpop.permute.xlu0 %567
        %569 = vrot.lane.b32.xlu0 %v481, 64
        %v570 = vpop.permute.xlu0 %569
        %571 = vrot.lane.b32.xlu0 %v484, 64
        %v572 = vpop.permute.xlu0 %571
        %573 = vrot.lane.b32.xlu0 %v487, 64
        %v574 = vpop.permute.xlu0 %573
        %575 = vrot.lane.b32.xlu0 %v490, 64
        %v576 = vpop.permute.xlu0 %575
        %577 = vrot.lane.b32.xlu0 %v514, 64
        %v578 = vpop.permute.xlu0 %577
        %587 = vrot.lane.b32.xlu0 %v503, 64
        %v588 = vpop.permute.xlu0 %587
        %vm590 = vcmask 523264
        %v591 = vsel %vm590, %v407, %v516
        %v592 = vsel %vm590, %v408, %v518
        %v593 = vsel %vm590, %v409, %v520
        %v594 = vsel %vm590, %v410, %v522
        %v595 = vsel %vm590, %v411, %v524
        %v596 = vsel %vm590, %v412, %v526
        %v597 = vsel %vm590, %v413, %v528
        %v598 = vsel %vm590, %v414, %v530
        %v599 = vsel %vm590, %v469, %v540
        %v600 = vsel %vm590, %v472, %v542
        %v601 = vsel %vm590, %v475, %v544
        %v602 = vsel %vm590, %v478, %v546
        %v603 = vsel %vm590, %v481, %v548
        %v604 = vsel %vm590, %v484, %v550
        %v605 = vsel %vm590, %v487, %v552
        %v606 = vsel %vm590, %v490, %v554
        %v607 = vsel %vm590, %v447, %v564
        %v608 = vsel %vm590, %v450, %v566
        %v609 = vsel %vm590, %v453, %v568
        %v610 = vsel %vm590, %v456, %v570
        %v611 = vsel %vm590, %v459, %v572
        %v612 = vsel %vm590, %v462, %v574
        %v613 = vsel %vm590, %v465, %v576
        %v614 = vsel %vm590, %v503, %v578
        %v615 = vsel %vm590, %v415, %v588
        %v616 = vld [vmem:[%s3] sm:$0xff]
        %v617 = vld [vmem:[%s3 + $0x8] sm:$0xff]
        %v618 = vld [vmem:[%s3 + $0x10] sm:$0xff]
        %v619 = vld [vmem:[%s3 + $0x18] sm:$0xff]
        %v620 = vld [vmem:[%s3 + $0x20] sm:$0xff]
        %v621 = vld [vmem:[%s3 + $0x28] sm:$0xff]
        %v622 = vld [vmem:[%s3 + $0x30] sm:$0xff]
        %v623 = vld [vmem:[%s3 + $0x38] sm:$0xff]
        %v624 = vld [vmem:[%s3 + $0x40] sm:$0xff]
        %v625 = vld [vmem:[%s3 + $0x48] sm:$0xff]
        %v626 = vld [vmem:[%s3 + $0x50] sm:$0xff]
        %v627 = vld [vmem:[%s3 + $0x58] sm:$0xff]
        %v628 = vld [vmem:[%s3 + $0x60] sm:$0xff]
        %v629 = vld [vmem:[%s3 + $0x68] sm:$0xff]
        %v630 = vld [vmem:[%s3 + $0x70] sm:$0xff]
        %v631 = vld [vmem:[%s3 + $0x78] sm:$0xff]
        %v632 = vld [vmem:[%s3 + $0x80] sm:$0xff]
        %v633 = vld [vmem:[%s3 + $0x88] sm:$0xff]
        %v634 = vld [vmem:[%s3 + $0x90] sm:$0xff]
        %v635 = vld [vmem:[%s3 + $0x98] sm:$0xff]
        %v636 = vld [vmem:[%s3 + $0xa0] sm:$0xff]
        %v637 = vld [vmem:[%s3 + $0xa8] sm:$0xff]
        %v638 = vld [vmem:[%s3 + $0xb0] sm:$0xff]
        %v639 = vld [vmem:[%s3 + $0xb8] sm:$0xff]
        %v640 = vld [vmem:[%s3 + $0xc0] sm:$0xff]
        %v641 = vld [vmem:[%s3 + $0xc8] sm:$0xff]
        %v642 = vld [vmem:[%s3 + $0xd0] sm:$0xff]
        %v643 = vld [vmem:[%s3 + $0xd8] sm:$0xff]
        %v644 = vld [vmem:[%s3 + $0xe0] sm:$0xff]
        %v645 = vld [vmem:[%s3 + $0xe8] sm:$0xff]
        %v646 = vld [vmem:[%s3 + $0xf0] sm:$0xff]
        %v647 = vld [vmem:[%s3 + $0xf8] sm:$0xff]
        %v648 = vld [vmem:[%s3 + $0x100] sm:$0xff]
        %v649 = vld [vmem:[%s3 + $0x108] sm:$0xff]
        %v650 = vld [vmem:[%s3 + $0x110] sm:$0xff]
        %v651 = vld [vmem:[%s3 + $0x118] sm:$0xff]
        %v652 = vld [vmem:[%s3 + $0x120] sm:$0xff]
        %v653 = vld [vmem:[%s3 + $0x128] sm:$0xff]
        %v654 = vld [vmem:[%s3 + $0x130] sm:$0xff]
        %v655 = vld [vmem:[%s3 + $0x138] sm:$0xff]
        %v656 = vld [vmem:[%s3 + $0x140] sm:$0xff]
        %v657 = vld [vmem:[%s3 + $0x148] sm:$0xff]
        %v658 = vld [vmem:[%s3 + $0x150] sm:$0xff]
        %v659 = vld [vmem:[%s3 + $0x158] sm:$0xff]
        %v660 = vld [vmem:[%s3 + $0x160] sm:$0xff]
        %v661 = vld [vmem:[%s3 + $0x168] sm:$0xff]
        %v662 = vld [vmem:[%s3 + $0x170] sm:$0xff]
        %v663 = vld [vmem:[%s3 + $0x178] sm:$0xff]
        %v664 = vld [vmem:[%s3 + $0x180] sm:$0xff]
        %v665 = vld [vmem:[%s3 + $0x188] sm:$0xff]
        %v666 = vld [vmem:[%s3 + $0x190] sm:$0xff]
        %v667 = vld [vmem:[%s3 + $0x198] sm:$0xff]
        %v668 = vld [vmem:[%s3 + $0x1a0] sm:$0xff]
        %v669 = vld [vmem:[%s3 + $0x1a8] sm:$0xff]
        %v670 = vld [vmem:[%s3 + $0x1b0] sm:$0xff]
        %v671 = vld [vmem:[%s3 + $0x1b8] sm:$0xff]
        %v672 = vld [vmem:[%s3 + $0x1c0] sm:$0xff]
        %v673 = vld [vmem:[%s3 + $0x1c8] sm:$0xff]
        %v674 = vld [vmem:[%s3 + $0x1d0] sm:$0xff]
        %v675 = vld [vmem:[%s3 + $0x1d8] sm:$0xff]
        %v676 = vld [vmem:[%s3 + $0x1e0] sm:$0xff]
        %v677 = vld [vmem:[%s3 + $0x1e8] sm:$0xff]
        %v678 = vld [vmem:[%s3 + $0x1f0] sm:$0xff]
        %v679 = vld [vmem:[%s3 + $0x1f8] sm:$0xff]
        %v680 = vld [vmem:[%s3 + $0x200] sm:$0xff]
        %v681 = vld [vmem:[%s3 + $0x208] sm:$0xff]
        %v682 = vld [vmem:[%s3 + $0x210] sm:$0xff]
        %v683 = vld [vmem:[%s3 + $0x218] sm:$0xff]
        %v684 = vld [vmem:[%s3 + $0x220] sm:$0xff]
        %v685 = vld [vmem:[%s3 + $0x228] sm:$0xff]
        %v686 = vld [vmem:[%s3 + $0x230] sm:$0xff]
        %v687 = vld [vmem:[%s3 + $0x238] sm:$0xff]
        %v688 = vld [vmem:[%s4] sm:$0x1]
        %v690 = vlaneseq
        %v691 = vshrl.u32 %v690, 7
        %v692 = vsub.s32 0, %v691
        %v693 = vrot.slane %v688, %v692
        %v695 = vsel %vm590, %v475, 0
        %v697 = vsel %vm590, %v478, 0
        %v699 = vsel %vm590, %v481, 0
        %v701 = vsel %vm590, %v484, 0
        %v703 = vsel %vm590, %v487, 0
        %v705 = vsel %vm590, %v490, 0
        %v707 = vsel %vm590, %v514, 0
        %v709 = vsel %vm590, %v469, 0
        %711 = vmatprep.subr.mxu0 0.0
        %712 = vmatpush1.msra.mxu0 %v616
        %713 = vmatprep.subr.mxu0 0.0
        %714 = vmatpush1.msra.mxu0 %v617
        %715 = vmatprep.subr.mxu0 0.0
        %716 = vmatpush1.msra.mxu0 %v618
        %717 = vmatprep.subr.mxu0 0.0
        %718 = vmatpush1.msra.mxu0 %v619
        %719 = vmatprep.subr.mxu0 0.0
        %720 = vmatpush1.msra.mxu0 %v620
        %721 = vmatprep.subr.mxu0 0.0
        %722 = vmatpush1.msra.mxu0 %v621
        %723 = vmatprep.subr.mxu0 0.0
        %724 = vmatpush1.msra.mxu0 %v622
        %725 = vmatprep.subr.mxu0 0.0
        %726 = vmatpush1.msra.mxu0 %v623
        %727 = vmatprep.subr.mxu0 0.0
        %728 = vmatpush1.msra.mxu0 %v624
        %729 = vmatprep.subr.mxu0 0.0
        %730 = vmatpush1.msra.mxu0 %v625
        %731 = vmatprep.subr.mxu0 0.0
        %732 = vmatpush1.msra.mxu0 %v626
        %733 = vmatprep.subr.mxu0 0.0
        %734 = vmatpush1.msra.mxu0 %v627
        %735 = vmatprep.subr.mxu0 0.0
        %736 = vmatpush1.msra.mxu0 %v628
        %737 = vmatprep.subr.mxu0 0.0
        %738 = vmatpush1.msra.mxu0 %v629
        %739 = vmatprep.subr.mxu0 0.0
        %740 = vmatpush1.msra.mxu0 %v630
        %741 = vmatprep.subr.mxu0 0.0
        %742 = vmatpush1.msra.mxu0 %v631
        %743 = vmatprep.subr.mxu0 0.0
        %744 = vmatpush1.msra.mxu0 %v632
        %745 = vmatprep.subr.mxu0 0.0
        %746 = vmatpush1.msra.mxu0 %v633
        %747 = vmatprep.subr.mxu0 0.0
        %748 = vmatpush1.msra.mxu0 %v634
        %749 = vmatprep.subr.mxu0 0.0
        %750 = vmatpush1.msra.mxu0 %v635
        %751 = vmatprep.subr.mxu0 0.0
        %752 = vmatpush1.msra.mxu0 %v636
        %753 = vmatprep.subr.mxu0 0.0
        %754 = vmatpush1.msra.mxu0 %v637
        %755 = vmatprep.subr.mxu0 0.0
        %756 = vmatpush1.msra.mxu0 %v638
        %757 = vmatprep.subr.mxu0 0.0
        %758 = vmatpush1.msra.mxu0 %v639
        %759 = vmatprep.subr.mxu0 0.0
        %760 = vmatpush1.msra.mxu0 %v640
        %761 = vmatprep.subr.mxu0 0.0
        %762 = vmatpush1.msra.mxu0 %v641
        %763 = vmatprep.subr.mxu0 0.0
        %764 = vmatpush1.msra.mxu0 %v642
        %765 = vmatprep.subr.mxu0 0.0
        %766 = vmatpush1.msra.mxu0 %v643
        %767 = vmatprep.subr.mxu0 0.0
        %768 = vmatpush1.msra.mxu0 %v644
        %769 = vmatprep.subr.mxu0 0.0
        %770 = vmatpush1.msra.mxu0 %v645
        %771 = vmatprep.subr.mxu0 0.0
        %772 = vmatpush1.msra.mxu0 %v646
        %773 = vmatprep.subr.mxu0 0.0
        %774 = vmatpush1.msra.mxu0 %v647
        %775 = vmatprep.mubr.f32.mxu0 %v599
        %776 = vmatmul.mubr.f32.gmra.mrb[0].mxu0 %v591
        %v777 = vpop.f32.mrb[0].mxu0
        %v778 = vadd.f32 %v693, %v777
        %v779 = vpop.f32.mrb[0].mxu0
        %780 = vmatprep.mubr.f32.mxu0 %v600
        %781 = vmatmul.mubr.f32.gmra.mrb[0].mxu0 %v592
        %v782 = vpop.f32.mrb[0].mxu0
        %v783 = vadd.f32 %v693, %v782
        %v784 = vpop.f32.mrb[0].mxu0
        %785 = vmatprep.mubr.f32.mxu0 %v601
        %786 = vmatmul.mubr.f32.gmra.mrb[0].mxu0 %v593
        %v787 = vpop.f32.mrb[0].mxu0
        %v788 = vadd.f32 %v693, %v787
        %v789 = vpop.f32.mrb[0].mxu0
        %790 = vmatprep.mubr.f32.mxu0 %v602
        %791 = vmatmul.mubr.f32.gmra.mrb[0].mxu0 %v594
        %v792 = vpop.f32.mrb[0].mxu0
        %v793 = vadd.f32 %v693, %v792
        %v794 = vpop.f32.mrb[0].mxu0
        %795 = vmatprep.mubr.f32.mxu0 %v603
        %796 = vmatmul.mubr.f32.gmra.mrb[0].mxu0 %v595
        %v797 = vpop.f32.mrb[0].mxu0
        %v798 = vadd.f32 %v693, %v797
        %v799 = vpop.f32.mrb[0].mxu0
        %800 = vmatprep.mubr.f32.mxu0 %v604
        %801 = vmatmul.mubr.f32.gmra.mrb[0].mxu0 %v596
        %v802 = vpop.f32.mrb[0].mxu0
        %v803 = vadd.f32 %v693, %v802
        %v804 = vpop.f32.mrb[0].mxu0
        %805 = vmatprep.mubr.f32.mxu0 %v605
        %806 = vmatmul.mubr.f32.gmra.mrb[0].mxu0 %v597
        %v807 = vpop.f32.mrb[0].mxu0
        %v808 = vadd.f32 %v693, %v807
        %v809 = vpop.f32.mrb[0].mxu0
        %810 = vmatprep.mubr.f32.mxu0 %v606
        %811 = vmatmul.mubr.f32.gmra.mrb[0].mxu0 %v598
        %v812 = vpop.f32.mrb[0].mxu0
        %v813 = vadd.f32 %v693, %v812
        %v814 = vpop.f32.mrb[0].mxu0
        %815 = vdwg.mxu0
        %816 = vmatprep.subr.mxu0 0.0
        %817 = vmatpush1.msra.mxu0 %v648
        %818 = vmatprep.subr.mxu0 0.0
        %819 = vmatpush1.msra.mxu0 %v649
        %820 = vmatprep.subr.mxu0 0.0
        %821 = vmatpush1.msra.mxu0 %v650
        %822 = vmatprep.subr.mxu0 0.0
        %823 = vmatpush1.msra.mxu0 %v651
        %824 = vmatprep.subr.mxu0 0.0
        %825 = vmatpush1.msra.mxu0 %v652
        %826 = vmatprep.subr.mxu0 0.0
        %827 = vmatpush1.msra.mxu0 %v653
        %828 = vmatprep.subr.mxu0 0.0
        %829 = vmatpush1.msra.mxu0 %v654
        %830 = vmatprep.subr.mxu0 0.0
        %831 = vmatpush1.msra.mxu0 %v655
        %832 = vmatprep.subr.mxu0 0.0
        %833 = vmatpush1.msra.mxu0 %v656
        %834 = vmatprep.subr.mxu0 0.0
        %835 = vmatpush1.msra.mxu0 %v657
        %836 = vmatprep.subr.mxu0 0.0
        %837 = vmatpush1.msra.mxu0 %v658
        %838 = vmatprep.subr.mxu0 0.0
        %839 = vmatpush1.msra.mxu0 %v659
        %840 = vmatprep.subr.mxu0 0.0
        %841 = vmatpush1.msra.mxu0 %v660
        %842 = vmatprep.subr.mxu0 0.0
        %843 = vmatpush1.msra.mxu0 %v661
        %844 = vmatprep.subr.mxu0 0.0
        %845 = vmatpush1.msra.mxu0 %v662
        %846 = vmatprep.subr.mxu0 0.0
        %847 = vmatpush1.msra.mxu0 %v663
        %848 = vmatprep.subr.mxu0 0.0
        %849 = vmatpush1.msra.mxu0 %v664
        %850 = vmatprep.subr.mxu0 0.0
        %851 = vmatpush1.msra.mxu0 %v665
        %852 = vmatprep.subr.mxu0 0.0
        %853 = vmatpush1.msra.mxu0 %v666
        %854 = vmatprep.subr.mxu0 0.0
        %855 = vmatpush1.msra.mxu0 %v667
        %856 = vmatprep.subr.mxu0 0.0
        %857 = vmatpush1.msra.mxu0 %v668
        %858 = vmatprep.subr.mxu0 0.0
        %859 = vmatpush1.msra.mxu0 %v669
        %860 = vmatprep.subr.mxu0 0.0
        %861 = vmatpush1.msra.mxu0 %v670
        %862 = vmatprep.subr.mxu0 0.0
        %863 = vmatpush1.msra.mxu0 %v671
        %864 = vmatprep.subr.mxu0 0.0
        %865 = vmatpush1.msra.mxu0 %v672
        %866 = vmatprep.subr.mxu0 0.0
        %867 = vmatpush1.msra.mxu0 %v673
        %868 = vmatprep.subr.mxu0 0.0
        %869 = vmatpush1.msra.mxu0 %v674
        %870 = vmatprep.subr.mxu0 0.0
        %871 = vmatpush1.msra.mxu0 %v675
        %872 = vmatprep.subr.mxu0 0.0
        %873 = vmatpush1.msra.mxu0 %v676
        %874 = vmatprep.subr.mxu0 0.0
        %875 = vmatpush1.msra.mxu0 %v677
        %876 = vmatprep.subr.mxu0 0.0
        %877 = vmatpush1.msra.mxu0 %v678
        %878 = vmatprep.subr.mxu0 0.0
        %879 = vmatpush1.msra.mxu0 %v679
        %880 = vmatprep.mubr.f32.mxu0 %v593
        %881 = vmatmul.mubr.f32.gmra.mrb[0].mxu0 %v607
        %v882 = vpop.f32.mrb[0].mxu0
        %v883 = vadd.f32 %v778, %v882
        %v884 = vpop.f32.mrb[0].mxu0
        %885 = vmatprep.mubr.f32.mxu0 %v594
        %886 = vmatmul.mubr.f32.gmra.mrb[0].mxu0 %v608
        %v887 = vpop.f32.mrb[0].mxu0
        %v888 = vadd.f32 %v783, %v887
        %v889 = vpop.f32.mrb[0].mxu0
        %890 = vmatprep.mubr.f32.mxu0 %v595
        %891 = vmatmul.mubr.f32.gmra.mrb[0].mxu0 %v609
        %v892 = vpop.f32.mrb[0].mxu0
        %v893 = vadd.f32 %v788, %v892
        %v894 = vpop.f32.mrb[0].mxu0
        %895 = vmatprep.mubr.f32.mxu0 %v596
        %896 = vmatmul.mubr.f32.gmra.mrb[0].mxu0 %v610
        %v897 = vpop.f32.mrb[0].mxu0
        %v898 = vadd.f32 %v793, %v897
        %v899 = vpop.f32.mrb[0].mxu0
        %900 = vmatprep.mubr.f32.mxu0 %v597
        %901 = vmatmul.mubr.f32.gmra.mrb[0].mxu0 %v611
        %v902 = vpop.f32.mrb[0].mxu0
        %v903 = vadd.f32 %v798, %v902
        %v904 = vpop.f32.mrb[0].mxu0
        %905 = vmatprep.mubr.f32.mxu0 %v598
        %906 = vmatmul.mubr.f32.gmra.mrb[0].mxu0 %v612
        %v907 = vpop.f32.mrb[0].mxu0
        %v908 = vadd.f32 %v803, %v907
        %v909 = vpop.f32.mrb[0].mxu0
        %910 = vmatprep.mubr.f32.mxu0 %v615
        %911 = vmatmul.mubr.f32.gmra.mrb[0].mxu0 %v613
        %v912 = vpop.f32.mrb[0].mxu0
        %v913 = vadd.f32 %v808, %v912
        %v914 = vpop.f32.mrb[0].mxu0
        %915 = vmatprep.mubr.f32.mxu0 %v591
        %916 = vmatmul.mubr.f32.gmra.mrb[0].mxu0 %v614
        %v917 = vpop.f32.mrb[0].mxu0
        %v918 = vadd.f32 %v813, %v917
        %v919 = vpop.f32.mrb[0].mxu0
        %920 = vdwg.mxu0
        %921 = vmatprep.subr.mxu0 0.0
        %922 = vmatpush1.msra.mxu0 %v680
        %923 = vmatprep.subr.mxu0 0.0
        %924 = vmatpush1.msra.mxu0 %v681
        %925 = vmatprep.subr.mxu0 0.0
        %926 = vmatpush1.msra.mxu0 %v682
        %927 = vmatprep.subr.mxu0 0.0
        %928 = vmatpush1.msra.mxu0 %v683
        %929 = vmatprep.subr.mxu0 0.0
        %930 = vmatpush1.msra.mxu0 %v684
        %931 = vmatprep.subr.mxu0 0.0
        %932 = vmatpush1.msra.mxu0 %v685
        %933 = vmatprep.subr.mxu0 0.0
        %934 = vmatpush1.msra.mxu0 %v686
        %935 = vmatprep.subr.mxu0 0.0
        %936 = vmatpush1.msra.mxu0 %v687
        %937 = vmatprep.subr.mxu0 0.0
        %938 = vmatpush1.msra.mxu0 0.0
        %939 = vmatprep.subr.mxu0 0.0
        %940 = vmatpush1.msra.mxu0 0.0
        %941 = vmatprep.subr.mxu0 0.0
        %942 = vmatpush1.msra.mxu0 0.0
        %943 = vmatprep.subr.mxu0 0.0
        %944 = vmatpush1.msra.mxu0 0.0
        %945 = vmatprep.subr.mxu0 0.0
        %946 = vmatpush1.msra.mxu0 0.0
        %947 = vmatprep.subr.mxu0 0.0
        %948 = vmatpush1.msra.mxu0 0.0
        %949 = vmatprep.subr.mxu0 0.0
        %950 = vmatpush1.msra.mxu0 0.0
        %951 = vmatprep.subr.mxu0 0.0
        %952 = vmatpush1.msra.mxu0 0.0
        %953 = vmatprep.subr.mxu0 0.0
        %954 = vmatpush1.msra.mxu0 0.0
        %955 = vmatprep.subr.mxu0 0.0
        %956 = vmatpush1.msra.mxu0 0.0
        %957 = vmatprep.subr.mxu0 0.0
        %958 = vmatpush1.msra.mxu0 0.0
        %959 = vmatprep.subr.mxu0 0.0
        %960 = vmatpush1.msra.mxu0 0.0
        %961 = vmatprep.subr.mxu0 0.0
        %962 = vmatpush1.msra.mxu0 0.0
        %963 = vmatprep.subr.mxu0 0.0
        %964 = vmatpush1.msra.mxu0 0.0
        %965 = vmatprep.subr.mxu0 0.0
        %966 = vmatpush1.msra.mxu0 0.0
        %967 = vmatprep.subr.mxu0 0.0
        %968 = vmatpush1.msra.mxu0 0.0
        %969 = vmatprep.subr.mxu0 0.0
        %970 = vmatpush1.msra.mxu0 0.0
        %971 = vmatprep.subr.mxu0 0.0
        %972 = vmatpush1.msra.mxu0 0.0
        %973 = vmatprep.subr.mxu0 0.0
        %974 = vmatpush1.msra.mxu0 0.0
        %975 = vmatprep.subr.mxu0 0.0
        %976 = vmatpush1.msra.mxu0 0.0
        %977 = vmatprep.subr.mxu0 0.0
        %978 = vmatpush1.msra.mxu0 0.0
        %979 = vmatprep.subr.mxu0 0.0
        %980 = vmatpush1.msra.mxu0 0.0
        %981 = vmatprep.subr.mxu0 0.0
        %982 = vmatpush1.msra.mxu0 0.0
        %983 = vmatprep.subr.mxu0 0.0
        %984 = vmatpush1.msra.mxu0 0.0
        %985 = vmatprep.mubr.f32.mxu0 0.0
        %986 = vmatmul.mubr.f32.gmra.mrb[0].mxu0 %v695
        %v987 = vpop.f32.mrb[0].mxu0
        %v988 = vadd.f32 %v883, %v987
        %v989 = vpop.f32.mrb[0].mxu0
        %990 = vmatprep.mubr.f32.mxu0 0.0
        %991 = vmatmul.mubr.f32.gmra.mrb[0].mxu0 %v697
        %v992 = vpop.f32.mrb[0].mxu0
        %v993 = vadd.f32 %v888, %v992
        %v994 = vpop.f32.mrb[0].mxu0
        %995 = vmatprep.mubr.f32.mxu0 0.0
        %996 = vmatmul.mubr.f32.gmra.mrb[0].mxu0 %v699
        %v997 = vpop.f32.mrb[0].mxu0
        %v998 = vadd.f32 %v893, %v997
        %v999 = vpop.f32.mrb[0].mxu0
        %1000 = vmatprep.mubr.f32.mxu0 0.0
        %1001 = vmatmul.mubr.f32.gmra.mrb[0].mxu0 %v701
        %v1002 = vpop.f32.mrb[0].mxu0
        %v1003 = vadd.f32 %v898, %v1002
        %v1004 = vpop.f32.mrb[0].mxu0
        %1005 = vmatprep.mubr.f32.mxu0 0.0
        %1006 = vmatmul.mubr.f32.gmra.mrb[0].mxu0 %v703
        %v1007 = vpop.f32.mrb[0].mxu0
        %v1008 = vadd.f32 %v903, %v1007
        %v1009 = vpop.f32.mrb[0].mxu0
        %1010 = vmatprep.mubr.f32.mxu0 0.0
        %1011 = vmatmul.mubr.f32.gmra.mrb[0].mxu0 %v705
        %v1012 = vpop.f32.mrb[0].mxu0
        %v1013 = vadd.f32 %v908, %v1012
        %v1014 = vpop.f32.mrb[0].mxu0
        %1015 = vmatprep.mubr.f32.mxu0 0.0
        %1016 = vmatmul.mubr.f32.gmra.mrb[0].mxu0 %v707
        %v1017 = vpop.f32.mrb[0].mxu0
        %v1018 = vadd.f32 %v913, %v1017
        %v1019 = vpop.f32.mrb[0].mxu0
        %1020 = vmatprep.mubr.f32.mxu0 0.0
        %1021 = vmatmul.mubr.f32.gmra.mrb[0].mxu0 %v709
        %v1022 = vpop.f32.mrb[0].mxu0
        %v1023 = vadd.f32 %v918, %v1022
        %v1024 = vpop.f32.mrb[0].mxu0
        %1025 = vdwg.mxu0
        %v1026 = vmax.f32 %v988, 0.0
        %v1027 = vmax.f32 %v993, 0.0
        %v1028 = vmax.f32 %v998, 0.0
        %v1029 = vmax.f32 %v1003, 0.0
        %v1030 = vmax.f32 %v1008, 0.0
        %v1031 = vmax.f32 %v1013, 0.0
        %v1032 = vmax.f32 %v1018, 0.0
        %v1033 = vmax.f32 %v1023, 0.0
        %v1034 = vsel %vm590, %v1026, 0.0
        %v1035 = vsel %vm590, %v1027, 0.0
        %v1036 = vadd.f32 %v1034, %v1035
        %v1037 = vsel %vm590, %v1028, 0.0
        %v1038 = vadd.f32 %v1036, %v1037
        %v1039 = vsel %vm590, %v1029, 0.0
        %v1040 = vadd.f32 %v1038, %v1039
        %v1041 = vsel %vm590, %v1030, 0.0
        %v1042 = vadd.f32 %v1040, %v1041
        %v1043 = vsel %vm590, %v1031, 0.0
        %v1044 = vadd.f32 %v1042, %v1043
        %v1045 = vsel %vm590, %v1032, 0.0
        %v1046 = vadd.f32 %v1044, %v1045
        %v1047 = vsel %vm590, %v1033, 0.0
        %v1048 = vadd.f32 %v1046, %v1047
        %v1049 = vrot.slane %v1048, 4
        %v1050 = vadd.f32 %v1048, %v1049
        %v1051 = vrot.slane %v1050, 2
        %v1052 = vadd.f32 %v1050, %v1051
        %v1053 = vrot.slane %v1052, 1
        %v1054 = vadd.f32 %v1052, %v1053
        %v1055 = vrcp.pop 64.0
        %v1056 = vmul.f32 %v1054, %v1055
        %v1057 = vld [vmem:[%s5] sm:$0xff]
        %v1058 = vld [vmem:[%s5 + $0x8] sm:$0xff]
        %v1059 = vld [vmem:[%s5 + $0x10] sm:$0xff]
        %v1060 = vld [vmem:[%s5 + $0x18] sm:$0xff]
        %v1061 = vld [vmem:[%s5 + $0x20] sm:$0xff]
        %v1062 = vld [vmem:[%s5 + $0x28] sm:$0xff]
        %v1063 = vld [vmem:[%s5 + $0x30] sm:$0xff]
        %v1064 = vld [vmem:[%s5 + $0x38] sm:$0xff]
        %v1065 = vld [vmem:[%s6] sm:$0x1]
        %v1067 = vsel %vm590, %v1056, 0
        %1069 = vmatprep.subr.mxu0 0.0
        %1070 = vmatpush1.msra.mxu0 %v1057
        %1071 = vmatprep.subr.mxu0 0.0
        %1072 = vmatpush1.msra.mxu0 %v1058
        %1073 = vmatprep.subr.mxu0 0.0
        %1074 = vmatpush1.msra.mxu0 %v1059
        %1075 = vmatprep.subr.mxu0 0.0
        %1076 = vmatpush1.msra.mxu0 %v1060
        %1077 = vmatprep.subr.mxu0 0.0
        %1078 = vmatpush1.msra.mxu0 %v1061
        %1079 = vmatprep.subr.mxu0 0.0
        %1080 = vmatpush1.msra.mxu0 %v1062
        %1081 = vmatprep.subr.mxu0 0.0
        %1082 = vmatpush1.msra.mxu0 %v1063
        %1083 = vmatprep.subr.mxu0 0.0
        %1084 = vmatpush1.msra.mxu0 %v1064
        %1085 = vmatprep.subr.mxu0 0.0
        %1086 = vmatpush1.msra.mxu0 0.0
        %1087 = vmatprep.subr.mxu0 0.0
        %1088 = vmatpush1.msra.mxu0 0.0
        %1089 = vmatprep.subr.mxu0 0.0
        %1090 = vmatpush1.msra.mxu0 0.0
        %1091 = vmatprep.subr.mxu0 0.0
        %1092 = vmatpush1.msra.mxu0 0.0
        %1093 = vmatprep.subr.mxu0 0.0
        %1094 = vmatpush1.msra.mxu0 0.0
        %1095 = vmatprep.subr.mxu0 0.0
        %1096 = vmatpush1.msra.mxu0 0.0
        %1097 = vmatprep.subr.mxu0 0.0
        %1098 = vmatpush1.msra.mxu0 0.0
        %1099 = vmatprep.subr.mxu0 0.0
        %1100 = vmatpush1.msra.mxu0 0.0
        %1101 = vmatprep.subr.mxu0 0.0
        %1102 = vmatpush1.msra.mxu0 0.0
        %1103 = vmatprep.subr.mxu0 0.0
        %1104 = vmatpush1.msra.mxu0 0.0
        %1105 = vmatprep.subr.mxu0 0.0
        %1106 = vmatpush1.msra.mxu0 0.0
        %1107 = vmatprep.subr.mxu0 0.0
        %1108 = vmatpush1.msra.mxu0 0.0
        %1109 = vmatprep.subr.mxu0 0.0
        %1110 = vmatpush1.msra.mxu0 0.0
        %1111 = vmatprep.subr.mxu0 0.0
        %1112 = vmatpush1.msra.mxu0 0.0
        %1113 = vmatprep.subr.mxu0 0.0
        %1114 = vmatpush1.msra.mxu0 0.0
        %1115 = vmatprep.subr.mxu0 0.0
        %1116 = vmatpush1.msra.mxu0 0.0
        %1117 = vmatprep.subr.mxu0 0.0
        %1118 = vmatpush1.msra.mxu0 0.0
        %1119 = vmatprep.subr.mxu0 0.0
        %1120 = vmatpush1.msra.mxu0 0.0
        %1121 = vmatprep.subr.mxu0 0.0
        %1122 = vmatpush1.msra.mxu0 0.0
        %1123 = vmatprep.subr.mxu0 0.0
        %1124 = vmatpush1.msra.mxu0 0.0
        %1125 = vmatprep.subr.mxu0 0.0
        %1126 = vmatpush1.msra.mxu0 0.0
        %1127 = vmatprep.subr.mxu0 0.0
        %1128 = vmatpush1.msra.mxu0 0.0
        %1129 = vmatprep.subr.mxu0 0.0
        %1130 = vmatpush1.msra.mxu0 0.0
        %1131 = vmatprep.subr.mxu0 0.0
        %1132 = vmatpush1.msra.mxu0 0.0
        %1133 = vmatprep.mubr.f32.mxu0 0.0
        %1134 = vmatmul.mubr.f32.gmra.mrb[0].mxu0 %v1067
        %v1135 = vpop.f32.mrb[0].mxu0
        %v1136 = vadd.f32 %v1065, %v1135
        %v1137 = vpop.f32.mrb[0].mxu0
        %1138 = vdwg.mxu0
        %v1139 = vmax.f32 %v1136, 0.0
        %v1140 = vld [vmem:[%s7] sm:$0xf]
        %v1141 = vld [vmem:[%s8] sm:$0x1]
        %vm1142 = vcmask 31744
        %v1144 = vsel %vm1142, %v1139, 0
        %vm1146 = vcmask 1043456
        %v1148 = vsel %vm1146, %v1140, 0
        %1150 = vmatprep.subr.mxu0 0.0
        %1151 = vmatpush1.msra.mxu0 %v1148
        %1152 = vmatprep.subr.mxu0 0.0
        %1153 = vmatpush1.msra.mxu0 0.0
        %1154 = vmatprep.subr.mxu0 0.0
        %1155 = vmatpush1.msra.mxu0 0.0
        %1156 = vmatprep.subr.mxu0 0.0
        %1157 = vmatpush1.msra.mxu0 0.0
        %1158 = vmatprep.subr.mxu0 0.0
        %1159 = vmatpush1.msra.mxu0 0.0
        %1160 = vmatprep.subr.mxu0 0.0
        %1161 = vmatpush1.msra.mxu0 0.0
        %1162 = vmatprep.subr.mxu0 0.0
        %1163 = vmatpush1.msra.mxu0 0.0
        %1164 = vmatprep.subr.mxu0 0.0
        %1165 = vmatpush1.msra.mxu0 0.0
        %1166 = vmatprep.subr.mxu0 0.0
        %1167 = vmatpush1.msra.mxu0 0.0
        %1168 = vmatprep.subr.mxu0 0.0
        %1169 = vmatpush1.msra.mxu0 0.0
        %1170 = vmatprep.subr.mxu0 0.0
        %1171 = vmatpush1.msra.mxu0 0.0
        %1172 = vmatprep.subr.mxu0 0.0
        %1173 = vmatpush1.msra.mxu0 0.0
        %1174 = vmatprep.subr.mxu0 0.0
        %1175 = vmatpush1.msra.mxu0 0.0
        %1176 = vmatprep.subr.mxu0 0.0
        %1177 = vmatpush1.msra.mxu0 0.0
        %1178 = vmatprep.subr.mxu0 0.0
        %1179 = vmatpush1.msra.mxu0 0.0
        %1180 = vmatprep.subr.mxu0 0.0
        %1181 = vmatpush1.msra.mxu0 0.0
        %1182 = vmatprep.subr.mxu0 0.0
        %1183 = vmatpush1.msra.mxu0 0.0
        %1184 = vmatprep.subr.mxu0 0.0
        %1185 = vmatpush1.msra.mxu0 0.0
        %1186 = vmatprep.subr.mxu0 0.0
        %1187 = vmatpush1.msra.mxu0 0.0
        %1188 = vmatprep.subr.mxu0 0.0
        %1189 = vmatpush1.msra.mxu0 0.0
        %1190 = vmatprep.subr.mxu0 0.0
        %1191 = vmatpush1.msra.mxu0 0.0
        %1192 = vmatprep.subr.mxu0 0.0
        %1193 = vmatpush1.msra.mxu0 0.0
        %1194 = vmatprep.subr.mxu0 0.0
        %1195 = vmatpush1.msra.mxu0 0.0
        %1196 = vmatprep.subr.mxu0 0.0
        %1197 = vmatpush1.msra.mxu0 0.0
        %1198 = vmatprep.subr.mxu0 0.0
        %1199 = vmatpush1.msra.mxu0 0.0
        %1200 = vmatprep.subr.mxu0 0.0
        %1201 = vmatpush1.msra.mxu0 0.0
        %1202 = vmatprep.subr.mxu0 0.0
        %1203 = vmatpush1.msra.mxu0 0.0
        %1204 = vmatprep.subr.mxu0 0.0
        %1205 = vmatpush1.msra.mxu0 0.0
        %1206 = vmatprep.subr.mxu0 0.0
        %1207 = vmatpush1.msra.mxu0 0.0
        %1208 = vmatprep.subr.mxu0 0.0
        %1209 = vmatpush1.msra.mxu0 0.0
        %1210 = vmatprep.subr.mxu0 0.0
        %1211 = vmatpush1.msra.mxu0 0.0
        %1212 = vmatprep.subr.mxu0 0.0
        %1213 = vmatpush1.msra.mxu0 0.0
        %1214 = vmatprep.mubr.f32.mxu0 0.0
        %1215 = vmatmul.mubr.f32.gmra.mrb[0].mxu0 %v1144
        %v1216 = vpop.f32.mrb[0].mxu0
        %v1217 = vadd.f32 %v1141, %v1216
        %v1218 = vpop.f32.mrb[0].mxu0
        %1219 = vdwg.mxu0
        %v1220 = vxor.u32 %v1217, 2147483648
        %v1221 = vmul.f32 %v1220, 1.442695
        %v1222 = vpow.pop %v1221
        %v1223 = vadd.f32 %v1222, 1.0
        %v1224 = vrcp.pop %v1223
        %v1225 = vmul.f32 1.0, %v1224
        %v1226 = vld [vmem:[%s365] sm:$0xff]
        %v1227 = vld [vmem:[%s365 + $0x8] sm:$0xff]
        %v1228 = vld [vmem:[%s365 + $0x10] sm:$0xff]
        %v1229 = vld [vmem:[%s365 + $0x18] sm:$0xff]
        %v1230 = vld [vmem:[%s365 + $0x20] sm:$0xff]
        %v1231 = vld [vmem:[%s365 + $0x28] sm:$0xff]
        %v1232 = vld [vmem:[%s365 + $0x30] sm:$0xff]
        %v1233 = vld [vmem:[%s365 + $0x38] sm:$0xff]
        %v1234 = vld [vmem:[%s370] sm:$0xff]
        %v1235 = vld [vmem:[%s370 + $0x8] sm:$0xff]
        %v1236 = vld [vmem:[%s370 + $0x10] sm:$0xff]
        %v1237 = vld [vmem:[%s370 + $0x18] sm:$0xff]
        %v1238 = vld [vmem:[%s370 + $0x20] sm:$0xff]
        %v1239 = vld [vmem:[%s370 + $0x28] sm:$0xff]
        %v1240 = vld [vmem:[%s370 + $0x30] sm:$0xff]
        %v1241 = vld [vmem:[%s370 + $0x38] sm:$0xff]
        %v1242 = vlaneseq
        %v1243 = vshrl.u32 %v1242, 7
        %v1244 = vsub.s32 0, %v1243
        %v1245 = vrot.slane %v1225, %v1244
        %v1246 = vmul.f32 %v1245, %v1226
        %v1247 = vmul.f32 %v1245, %v1227
        %v1248 = vmul.f32 %v1245, %v1228
        %v1249 = vmul.f32 %v1245, %v1229
        %v1250 = vmul.f32 %v1245, %v1230
        %v1251 = vmul.f32 %v1245, %v1231
        %v1252 = vmul.f32 %v1245, %v1232
        %v1253 = vmul.f32 %v1245, %v1233
        %v1254 = vadd.f32 %v1246, %v1234
        %v1255 = vadd.f32 %v1247, %v1235
        %v1256 = vadd.f32 %v1248, %v1236
        %v1257 = vadd.f32 %v1249, %v1237
        %v1258 = vadd.f32 %v1250, %v1238
        %v1259 = vadd.f32 %v1251, %v1239
        %v1260 = vadd.f32 %v1252, %v1240
        %v1261 = vadd.f32 %v1253, %v1241
        %1262 = vst.msk [vmem:[%s355] sm:$0xff] %vm590, %v1254
        %1263 = vst.msk [vmem:[%s355 + $0x8] sm:$0xff] %vm590, %v1255
        %1264 = vst.msk [vmem:[%s355 + $0x10] sm:$0xff] %vm590, %v1256
        %1265 = vst.msk [vmem:[%s355 + $0x18] sm:$0xff] %vm590, %v1257
        %1266 = vst.msk [vmem:[%s355 + $0x20] sm:$0xff] %vm590, %v1258
        %1267 = vst.msk [vmem:[%s355 + $0x28] sm:$0xff] %vm590, %v1259
        %1268 = vst.msk [vmem:[%s355 + $0x30] sm:$0xff] %vm590, %v1260
        %1269 = vst.msk [vmem:[%s355 + $0x38] sm:$0xff] %vm590, %v1261
        %s1270 = sand.u32 %s235, 1
        %s1271 = scalar_lea.sflag [#allocation3], %s1270
        %s1272 = sand.u32 %s235, 1
        %s1273 = smul.addr %s1272, 64
        %s1274 = scalar_lea.vmem [#allocation2], %s1273
        // Predicated region
        $region57: #{sft_fcab_forward.5} parent=55 // pred_check
          %p1275 = pneg %p245
        $region58: #{sft_fcab_forward.5} parent=55 // pred_check_branch
          %1277 = sbr.rel (%p1275) target = $region60
        $region59: #{sft_fcab_forward.5} parent=55 // pred_region
          %s1279 = ssub.s32 1024, 1024
          %1280 = vsyncadd %s1271, %s1279
          %s1281 = smul.addr %s23, 8
          %s1282 = smul.addr %s1281, 128
          %s1283 = scalar_lea.hbm %s9, %s1282
          %s1284 = sshll.u32 %s1274, 4
          %s1285 = int_to_ptr.vmem [resolvable:$true] %s1284
          %1290 = dma.vmem_to_hbm [thread:$0]  %s1285, 1024, %s1283, %s1271, 128, 128, 8
        $region60: #{sft_fcab_forward.5} parent=55 // pred_fallthru
          _
      $region56: #{sft_fcab_forward.5} parent=5 // pred_fallthru
        _
      %p1291 = scmp.le.s32.totalorder 2, %s18
      // Predicated region
      $region61: #{sft_fcab_forward.5} parent=5 // pred_check
        %p1292 = pneg %p1291
      $region62: #{sft_fcab_forward.5} parent=5 // pred_check_branch
        %1294 = sbr.rel (%p1292) target = $region64
      $region63: #{sft_fcab_forward.5} parent=5 // pred_region
        %s1295 = ssub.s32 %s18, 2
        // Predicated region
        $region65: #{sft_fcab_forward.5} parent=63 // pred_check
          %p1296 = pneg %p251
        $region66: #{sft_fcab_forward.5} parent=63 // pred_check_branch
          %1298 = sbr.rel (%p1296) target = $region68
        $region67: #{sft_fcab_forward.5} parent=63 // pred_region
          %s1299 = sand.u32 %s236, 1
          %s1300 = scalar_lea.sflag [#allocation3], %s1299
          %s1301 = sand.u32 %s236, 1
          %s1302 = smul.addr %s1301, 64
          %s1303 = scalar_lea.vmem [#allocation2], %s1302
          %1304 = dma.done %s1300, 1024
        $region68: #{sft_fcab_forward.5} parent=63 // pred_fallthru
          _
      $region64: #{sft_fcab_forward.5} parent=5 // pred_fallthru
        _
    $region6: #{sft_fcab_forward.5} parent=1 // loop_footer
      %s22 = sadd.s32 1, %s18
    $region7: #{sft_fcab_forward.5} parent=1 // loop_footer_branch
      %17 = sbr.rel target = $region3
    $region8: #{sft_fcab_forward.5} parent=1 // loop_exit
      _
    %1305 = vsyncpa [#allocation3], 1
    %s1306 = scalar_lea.sflag [#allocation3], 1
    %1307 = vsyncpa %s1306, 1

// kernel: sft_fcab_forward.4
$region0: #{sft_fcab_forward.4}
  #allocation0 [shape = 'u32[]', space=smem, size = 0x4, offset = 0x4, fixed_abs, tag = 'smem constant byte address 0x4 - core index']
  #allocation1 [shape = 'u32[144,128]{1,0:T(1,128)}', space=vmem, size = 0x12000, scoped, tag = 'internal scratch']
  %s0 = inlined_call_operand.vmem [shape: f32[2,64,8,8], index: 0, kind: input, shape index: {}]
  %s1 = inlined_call_operand.vmem [shape: f32[8,16], index: 1, kind: input, shape index: {}, may-alias: {1,2}]
  %s2 = inlined_call_operand.vmem [shape: f32[8,16], index: 2, kind: input, shape index: {}, may-alias: {1,2}]
  %s3 = inlined_call_operand.vmem [shape: f32[2,64,8,8], index: 3, kind: output, shape index: {}]
  %s4 = sld [smem:[#allocation0]]
  $region45: #{sft_fcab_forward.4} parent=0
    _
  %s6 = ssub.s32 1, %s4
  %s7 = scalar_select 0, %s6, %s4
  loop: start=0, step=1, limit=4
  $region2: #{sft_fcab_forward.4} parent=0 // loop_pre_header
    _
  $region3: #{sft_fcab_forward.4} parent=0 // loop_header
    %s9 = sphi 0, %s13
    %p10 = scmp.ge.s32.totalorder %s9, 4
    %s19 = sphi 0, %s21
    %s22 = sphi 0, %s19
    %s23 = sphi 0, %s22
    %s39 = sphi 0, %s23
    %s43 = sphi 0, %s43
    %s45 = sphi 0, %s43
    %s46 = sphi 0, %s45
    %s60 = sphi 0, %s46
    %s64 = sphi 0, %s64
    %s66 = sphi 0, %s64
    %s67 = sphi 0, %s66
    %s81 = sphi 0, %s67
    %s87 = sphi 0, %s89
    %s90 = sphi 0, %s87
    %s91 = sphi 0, %s90
    %s107 = sphi 0, %s91
  $region4: #{sft_fcab_forward.4} parent=0 // loop_header_branch
    %12 = sbr.rel (%p10) target = $region8
  $region5: #{sft_fcab_forward.4} parent=0 // loop_body
    %s14 = ssub.s32 %s9, 1
    %s15 = ssub.s32 %s9, 2
    %s16 = sadd.s32 %s9, 1
    %s17 = ssub.s32 %s9, %s16
    %p18 = scmp.eq.s32.totalorder %s17, 0
    %s20 = sadd.s32 %s19, 1
    %s21 = scalar_select %p18, %s19, %s20
    %p24 = pneg %p18
    %p25 = scmp.eq.s32.totalorder %s9, 1
    %p26 = por %p24, %p25
    %p27 = scmp.ne.s32.totalorder %s19, %s22
    %p28 = scmp.eq.s32.totalorder %s9, 0
    %p29 = por %p27, %p28
    %p30 = scmp.ne.s32.totalorder %s19, %s22
    %p31 = scmp.eq.s32.totalorder %s14, 1
    %p32 = por %p30, %p31
    %p33 = scmp.ne.s32.totalorder %s22, %s23
    %p34 = scmp.eq.s32.totalorder %s14, 0
    %p35 = por %p33, %p34
    %p36 = scmp.ne.s32.totalorder %s22, %s23
    %p37 = scmp.eq.s32.totalorder %s15, 1
    %p38 = por %p36, %p37
    %p40 = scmp.ne.s32.totalorder %s23, %s39
    %p41 = scmp.eq.s32.totalorder %s15, 0
    %p42 = por %p40, %p41
    %s44 = sadd.s32 %s43, 1
    %p47 = scmp.eq.s32.totalorder %s9, 1
    %p48 = scmp.ne.s32.totalorder %s43, %s45
    %p49 = scmp.eq.s32.totalorder %s9, 0
    %p50 = por %p48, %p49
    %p51 = scmp.ne.s32.totalorder %s43, %s45
    %p52 = scmp.eq.s32.totalorder %s14, 1
    %p53 = por %p51, %p52
    %p54 = scmp.ne.s32.totalorder %s45, %s46
    %p55 = scmp.eq.s32.totalorder %s14, 0
    %p56 = por %p54, %p55
    %p57 = scmp.ne.s32.totalorder %s45, %s46
    %p58 = scmp.eq.s32.totalorder %s15, 1
    %p59 = por %p57, %p58
    %p61 = scmp.ne.s32.totalorder %s46, %s60
    %p62 = scmp.eq.s32.totalorder %s15, 0
    %p63 = por %p61, %p62
    %s65 = sadd.s32 %s64, 1
    %p68 = scmp.eq.s32.totalorder %s9, 1
    %p69 = scmp.ne.s32.totalorder %s64, %s66
    %p70 = scmp.eq.s32.totalorder %s9, 0
    %p71 = por %p69, %p70
    %p72 = scmp.ne.s32.totalorder %s64, %s66
    %p73 = scmp.eq.s32.totalorder %s14, 1
    %p74 = por %p72, %p73
    %p75 = scmp.ne.s32.totalorder %s66, %s67
    %p76 = scmp.eq.s32.totalorder %s14, 0
    %p77 = por %p75, %p76
    %p78 = scmp.ne.s32.totalorder %s66, %s67
    %p79 = scmp.eq.s32.totalorder %s15, 1
    %p80 = por %p78, %p79
    %p82 = scmp.ne.s32.totalorder %s67, %s81
    %p83 = scmp.eq.s32.totalorder %s15, 0
    %p84 = por %p82, %p83
    %s85 = ssub.s32 %s9, %s16
    %p86 = scmp.eq.s32.totalorder %s85, 0
    %s88 = sadd.s32 %s87, 1
    %s89 = scalar_select %p86, %s87, %s88
    %p92 = pneg %p86
    %p93 = scmp.eq.s32.totalorder %s9, 1
    %p94 = por %p92, %p93
    %p95 = scmp.ne.s32.totalorder %s87, %s90
    %p96 = scmp.eq.s32.totalorder %s9, 0
    %p97 = por %p95, %p96
    %p98 = scmp.ne.s32.totalorder %s87, %s90
    %p99 = scmp.eq.s32.totalorder %s14, 1
    %p100 = por %p98, %p99
    %p101 = scmp.ne.s32.totalorder %s90, %s91
    %p102 = scmp.eq.s32.totalorder %s14, 0
    %p103 = por %p101, %p102
    %p104 = scmp.ne.s32.totalorder %s90, %s91
    %p105 = scmp.eq.s32.totalorder %s15, 1
    %p106 = por %p104, %p105
    %p108 = scmp.ne.s32.totalorder %s91, %s107
    %p109 = scmp.eq.s32.totalorder %s15, 0
    %p110 = por %p108, %p109
    %p111 = scmp.le.s32.totalorder 1, %s9
    %p112 = scmp.lt.s32.totalorder %s9, 3
    %p113 = pnand %p111, %p112
    %p114 = pneg %p113
    // Predicated region
    $region9: #{sft_fcab_forward.4} parent=5 // pred_check
      _
    $region10: #{sft_fcab_forward.4} parent=5 // pred_check_branch
      %116 = sbr.rel (%p113) target = $region12
    $region11: #{sft_fcab_forward.4} parent=5 // pred_region
      %s117 = ssub.s32 %s9, 1
      // Predicated region
      $region13: #{sft_fcab_forward.4} parent=11 // pred_check
        %p118 = pneg %p56
      $region14: #{sft_fcab_forward.4} parent=11 // pred_check_branch
        %120 = sbr.rel (%p118) target = $region16
      $region15: #{sft_fcab_forward.4} parent=11 // pred_region
        _
      $region16: #{sft_fcab_forward.4} parent=11 // pred_fallthru
        _
      // Predicated region
      $region17: #{sft_fcab_forward.4} parent=11 // pred_check
        %p121 = pneg %p77
      $region18: #{sft_fcab_forward.4} parent=11 // pred_check_branch
        %123 = sbr.rel (%p121) target = $region20
      $region19: #{sft_fcab_forward.4} parent=11 // pred_region
        _
      $region20: #{sft_fcab_forward.4} parent=11 // pred_fallthru
        _
    $region12: #{sft_fcab_forward.4} parent=5 // pred_fallthru
      _
    %p124 = scmp.lt.s32.totalorder %s9, 2
    // Predicated region
    $region21: #{sft_fcab_forward.4} parent=5 // pred_check
      %p125 = pneg %p124
    $region22: #{sft_fcab_forward.4} parent=5 // pred_check_branch
      %127 = sbr.rel (%p125) target = $region24
    $region23: #{sft_fcab_forward.4} parent=5 // pred_region
      // Predicated region
      $region25: #{sft_fcab_forward.4} parent=23 // pred_check
        %p128 = pneg %p29
      $region26: #{sft_fcab_forward.4} parent=23 // pred_check_branch
        %130 = sbr.rel (%p128) target = $region28
      $region27: #{sft_fcab_forward.4} parent=23 // pred_region
        %p131 = scmp.lt.s32.totalorder %s9, 1
        %s132 = scalar_select %p131, %s9, 1
        %s133 = smul.addr %s132, 64
        %s134 = smul.addr %s133, 8
        %s135 = scalar_lea.vmem %s0, %s134
      $region28: #{sft_fcab_forward.4} parent=23 // pred_fallthru
        _
    $region24: #{sft_fcab_forward.4} parent=5 // pred_fallthru
      _
    %p136 = scmp.le.s32.totalorder 1, %s9
    %p137 = scmp.lt.s32.totalorder %s9, 3
    %p138 = pnand %p136, %p137
    %p139 = pneg %p138
    // Predicated region
    $region29: #{sft_fcab_forward.4} parent=5 // pred_check
      _
    $region30: #{sft_fcab_forward.4} parent=5 // pred_check_branch
      %141 = sbr.rel (%p138) target = $region32
    $region31: #{sft_fcab_forward.4} parent=5 // pred_region
      %s142 = ssub.s32 %s9, 1
      %p143 = scmp.lt.s32.totalorder %s14, 1
      %s144 = scalar_select %p143, %s14, 1
      %s145 = smul.addr %s144, 64
      %s146 = smul.addr %s145, 8
      %s147 = scalar_lea.vmem %s0, %s146
      %p148 = pneg %p35
      %p149 = pneg %p32
      %p150 = pneg %p56
      %p151 = pneg %p53
      %p152 = pneg %p77
      %p153 = pneg %p74
      %p154 = pneg %p103
      %p155 = pneg %p100
      %p156 = scmp.lt.s32.totalorder %s14, 1
      %s157 = scalar_select %p156, %s14, 1
      %s158 = smul.addr %s157, 64
      %s159 = smul.addr %s158, 8
      %s160 = scalar_lea.vmem %s3, %s159
      %p161 = scmp.lt.s32.totalorder %s14, 1
      %s162 = scalar_select %p161, %s14, 1
      %s163 = smul.addr %s162, 64
      %s164 = smul.addr %s163, 8
      %s165 = scalar_lea.vmem %s0, %s164
      %p166 = scmp.lt.s32.totalorder %s14, 1
      %s167 = scalar_select %p166, %s14, 1
      %s168 = smul.addr %s167, 64
      %s169 = smul.addr %s168, 8
      %s170 = scalar_lea.vmem %s3, %s169
      %v171 = vld [vmem:[%s165] sm:$0xff]
      %v172 = vld [vmem:[%s165 + $0x8] sm:$0xff]
      %v173 = vld [vmem:[%s165 + $0x10] sm:$0xff]
      %v174 = vld [vmem:[%s165 + $0x18] sm:$0xff]
      %v175 = vld [vmem:[%s165 + $0x20] sm:$0xff]
      %v176 = vld [vmem:[%s165 + $0x28] sm:$0xff]
      %v177 = vld [vmem:[%s165 + $0x30] sm:$0xff]
      %v178 = vld [vmem:[%s165 + $0x38] sm:$0xff]
      %v179 = vld [vmem:[%s165 + $0x40] sm:$0xff]
      %v180 = vld [vmem:[%s165 + $0x48] sm:$0xff]
      %v181 = vld [vmem:[%s165 + $0x50] sm:$0xff]
      %v182 = vld [vmem:[%s165 + $0x58] sm:$0xff]
      %v183 = vld [vmem:[%s165 + $0x60] sm:$0xff]
      %v184 = vld [vmem:[%s165 + $0x68] sm:$0xff]
      %v185 = vld [vmem:[%s165 + $0x70] sm:$0xff]
      %v186 = vld [vmem:[%s165 + $0x78] sm:$0xff]
      %v187 = vld [vmem:[%s165 + $0x80] sm:$0xff]
      %v188 = vld [vmem:[%s165 + $0x88] sm:$0xff]
      %v189 = vld [vmem:[%s165 + $0x90] sm:$0xff]
      %v190 = vld [vmem:[%s165 + $0x98] sm:$0xff]
      %v191 = vld [vmem:[%s165 + $0xa0] sm:$0xff]
      %v192 = vld [vmem:[%s165 + $0xa8] sm:$0xff]
      %v193 = vld [vmem:[%s165 + $0xb0] sm:$0xff]
      %v194 = vld [vmem:[%s165 + $0xb8] sm:$0xff]
      %v195 = vld [vmem:[%s165 + $0xc0] sm:$0xff]
      %v196 = vld [vmem:[%s165 + $0xc8] sm:$0xff]
      %v197 = vld [vmem:[%s165 + $0xd0] sm:$0xff]
      %v198 = vld [vmem:[%s165 + $0xd8] sm:$0xff]
      %v199 = vld [vmem:[%s165 + $0xe0] sm:$0xff]
      %v200 = vld [vmem:[%s165 + $0xe8] sm:$0xff]
      %v201 = vld [vmem:[%s165 + $0xf0] sm:$0xff]
      %v202 = vld [vmem:[%s165 + $0xf8] sm:$0xff]
      %v203 = vld [vmem:[%s165 + $0x100] sm:$0xff]
      %v204 = vld [vmem:[%s165 + $0x108] sm:$0xff]
      %v205 = vld [vmem:[%s165 + $0x110] sm:$0xff]
      %v206 = vld [vmem:[%s165 + $0x118] sm:$0xff]
      %v207 = vld [vmem:[%s165 + $0x120] sm:$0xff]
      %v208 = vld [vmem:[%s165 + $0x128] sm:$0xff]
      %v209 = vld [vmem:[%s165 + $0x130] sm:$0xff]
      %v210 = vld [vmem:[%s165 + $0x138] sm:$0xff]
      %v211 = vld [vmem:[%s165 + $0x140] sm:$0xff]
      %v212 = vld [vmem:[%s165 + $0x148] sm:$0xff]
      %v213 = vld [vmem:[%s165 + $0x150] sm:$0xff]
      %v214 = vld [vmem:[%s165 + $0x158] sm:$0xff]
      %v215 = vld [vmem:[%s165 + $0x160] sm:$0xff]
      %v216 = vld [vmem:[%s165 + $0x168] sm:$0xff]
      %v217 = vld [vmem:[%s165 + $0x170] sm:$0xff]
      %v218 = vld [vmem:[%s165 + $0x178] sm:$0xff]
      %v219 = vld [vmem:[%s165 + $0x180] sm:$0xff]
      %v220 = vld [vmem:[%s165 + $0x188] sm:$0xff]
      %v221 = vld [vmem:[%s165 + $0x190] sm:$0xff]
      %v222 = vld [vmem:[%s165 + $0x198] sm:$0xff]
      %v223 = vld [vmem:[%s165 + $0x1a0] sm:$0xff]
      %v224 = vld [vmem:[%s165 + $0x1a8] sm:$0xff]
      %v225 = vld [vmem:[%s165 + $0x1b0] sm:$0xff]
      %v226 = vld [vmem:[%s165 + $0x1b8] sm:$0xff]
      %v227 = vld [vmem:[%s165 + $0x1c0] sm:$0xff]
      %v228 = vld [vmem:[%s165 + $0x1c8] sm:$0xff]
      %v229 = vld [vmem:[%s165 + $0x1d0] sm:$0xff]
      %v230 = vld [vmem:[%s165 + $0x1d8] sm:$0xff]
      %v231 = vld [vmem:[%s165 + $0x1e0] sm:$0xff]
      %v232 = vld [vmem:[%s165 + $0x1e8] sm:$0xff]
      %v233 = vld [vmem:[%s165 + $0x1f0] sm:$0xff]
      %v234 = vld [vmem:[%s165 + $0x1f8] sm:$0xff]
      %v235 = vld [vmem:[%s1] sm:$0xff]
      %vm236 = vcmask 64512
      %v238 = vsel %vm236, %v171, 0
      %v241 = vsel %vm236, %v172, 0
      %v244 = vsel %vm236, %v173, 0
      %v247 = vsel %vm236, %v174, 0
      %v250 = vsel %vm236, %v175, 0
      %v253 = vsel %vm236, %v176, 0
      %v256 = vsel %vm236, %v177, 0
      %v259 = vsel %vm236, %v178, 0
      %v262 = vsel %vm236, %v179, 0
      %v265 = vsel %vm236, %v180, 0
      %v268 = vsel %vm236, %v181, 0
      %v271 = vsel %vm236, %v182, 0
      %v274 = vsel %vm236, %v183, 0
      %v277 = vsel %vm236, %v184, 0
      %v280 = vsel %vm236, %v185, 0
      %v283 = vsel %vm236, %v186, 0
      %v286 = vsel %vm236, %v187, 0
      %v289 = vsel %vm236, %v188, 0
      %v292 = vsel %vm236, %v189, 0
      %v295 = vsel %vm236, %v190, 0
      %v298 = vsel %vm236, %v191, 0
      %v301 = vsel %vm236, %v192, 0
      %v304 = vsel %vm236, %v193, 0
      %v307 = vsel %vm236, %v194, 0
      %v310 = vsel %vm236, %v195, 0
      %v313 = vsel %vm236, %v196, 0
      %v316 = vsel %vm236, %v197, 0
      %v319 = vsel %vm236, %v198, 0
      %v322 = vsel %vm236, %v199, 0
      %v325 = vsel %vm236, %v200, 0
      %v328 = vsel %vm236, %v201, 0
      %v331 = vsel %vm236, %v202, 0
      %v334 = vsel %vm236, %v203, 0
      %v337 = vsel %vm236, %v204, 0
      %v340 = vsel %vm236, %v205, 0
      %v343 = vsel %vm236, %v206, 0
      %v346 = vsel %vm236, %v207, 0
      %v349 = vsel %vm236, %v208, 0
      %v352 = vsel %vm236, %v209, 0
      %v355 = vsel %vm236, %v210, 0
      %v358 = vsel %vm236, %v211, 0
      %v361 = vsel %vm236, %v212, 0
      %v364 = vsel %vm236, %v213, 0
      %v367 = vsel %vm236, %v214, 0
      %v370 = vsel %vm236, %v215, 0
      %v373 = vsel %vm236, %v216, 0
      %v376 = vsel %vm236, %v217, 0
      %v379 = vsel %vm236, %v218, 0
      %v382 = vsel %vm236, %v219, 0
      %v385 = vsel %vm236, %v220, 0
      %v388 = vsel %vm236, %v221, 0
      %v391 = vsel %vm236, %v222, 0
      %v394 = vsel %vm236, %v223, 0
      %v397 = vsel %vm236, %v224, 0
      %v400 = vsel %vm236, %v225, 0
      %v403 = vsel %vm236, %v226, 0
      %v406 = vsel %vm236, %v227, 0
      %v409 = vsel %vm236, %v228, 0
      %v412 = vsel %vm236, %v229, 0
      %v415 = vsel %vm236, %v230, 0
      %v418 = vsel %vm236, %v231, 0
      %v421 = vsel %vm236, %v232, 0
      %v424 = vsel %vm236, %v233, 0
      %v427 = vsel %vm236, %v234, 0
      %429 = vmatprep.subr.mxu0 0.0
      %430 = vmatpush1.msra.mxu0 %v235
      %431 = vmatprep.subr.mxu0 0.0
      %432 = vmatpush1.msra.mxu0 0.0
      %433 = vmatprep.subr.mxu0 0.0
      %434 = vmatpush1.msra.mxu0 0.0
      %435 = vmatprep.subr.mxu0 0.0
      %436 = vmatpush1.msra.mxu0 0.0
      %437 = vmatprep.subr.mxu0 0.0
      %438 = vmatpush1.msra.mxu0 0.0
      %439 = vmatprep.subr.mxu0 0.0
      %440 = vmatpush1.msra.mxu0 0.0
      %441 = vmatprep.subr.mxu0 0.0
      %442 = vmatpush1.msra.mxu0 0.0
      %443 = vmatprep.subr.mxu0 0.0
      %444 = vmatpush1.msra.mxu0 0.0
      %445 = vmatprep.subr.mxu0 0.0
      %446 = vmatpush1.msra.mxu0 0.0
      %447 = vmatprep.subr.mxu0 0.0
      %448 = vmatpush1.msra.mxu0 0.0
      %449 = vmatprep.subr.mxu0 0.0
      %450 = vmatpush1.msra.mxu0 0.0
      %451 = vmatprep.subr.mxu0 0.0
      %452 = vmatpush1.msra.mxu0 0.0
      %453 = vmatprep.subr.mxu0 0.0
      %454 = vmatpush1.msra.mxu0 0.0
      %455 = vmatprep.subr.mxu0 0.0
      %456 = vmatpush1.msra.mxu0 0.0
      %457 = vmatprep.subr.mxu0 0.0
      %458 = vmatpush1.msra.mxu0 0.0
      %459 = vmatprep.subr.mxu0 0.0
      %460 = vmatpush1.msra.mxu0 0.0
      %461 = vmatprep.subr.mxu0 0.0
      %462 = vmatpush1.msra.mxu0 0.0
      %463 = vmatprep.subr.mxu0 0.0
      %464 = vmatpush1.msra.mxu0 0.0
      %465 = vmatprep.subr.mxu0 0.0
      %466 = vmatpush1.msra.mxu0 0.0
      %467 = vmatprep.subr.mxu0 0.0
      %468 = vmatpush1.msra.mxu0 0.0
      %469 = vmatprep.subr.mxu0 0.0
      %470 = vmatpush1.msra.mxu0 0.0
      %471 = vmatprep.subr.mxu0 0.0
      %472 = vmatpush1.msra.mxu0 0.0
      %473 = vmatprep.subr.mxu0 0.0
      %474 = vmatpush1.msra.mxu0 0.0
      %475 = vmatprep.subr.mxu0 0.0
      %476 = vmatpush1.msra.mxu0 0.0
      %477 = vmatprep.subr.mxu0 0.0
      %478 = vmatpush1.msra.mxu0 0.0
      %479 = vmatprep.subr.mxu0 0.0
      %480 = vmatpush1.msra.mxu0 0.0
      %481 = vmatprep.subr.mxu0 0.0
      %482 = vmatpush1.msra.mxu0 0.0
      %483 = vmatprep.subr.mxu0 0.0
      %484 = vmatpush1.msra.mxu0 0.0
      %485 = vmatprep.subr.mxu0 0.0
      %486 = vmatpush1.msra.mxu0 0.0
      %487 = vmatprep.subr.mxu0 0.0
      %488 = vmatpush1.msra.mxu0 0.0
      %489 = vmatprep.subr.mxu0 0.0
      %490 = vmatpush1.msra.mxu0 0.0
      %491 = vmatprep.subr.mxu0 0.0
      %492 = vmatpush1.msra.mxu0 0.0
      %493 = vmatprep.mubr.f32.mxu0 0.0
      %494 = vmatmul.mubr.f32.gmra.mrb[0].mxu0 %v238
      %v495 = vpop.f32.mrb[0].mxu0
      %v496 = vadd.f32 0.0, %v495
      %v497 = vpop.f32.mrb[0].mxu0
      %498 = vmatprep.mubr.f32.mxu0 0.0
      %499 = vmatmul.mubr.f32.gmra.mrb[0].mxu0 %v241
      %v500 = vpop.f32.mrb[0].mxu0
      %v501 = vadd.f32 0.0, %v500
      %v502 = vpop.f32.mrb[0].mxu0
      %503 = vmatprep.mubr.f32.mxu0 0.0
      %504 = vmatmul.mubr.f32.gmra.mrb[0].mxu0 %v244
      %v505 = vpop.f32.mrb[0].mxu0
      %v506 = vadd.f32 0.0, %v505
      %v507 = vpop.f32.mrb[0].mxu0
      %508 = vmatprep.mubr.f32.mxu0 0.0
      %509 = vmatmul.mubr.f32.gmra.mrb[0].mxu0 %v247
      %v510 = vpop.f32.mrb[0].mxu0
      %v511 = vadd.f32 0.0, %v510
      %v512 = vpop.f32.mrb[0].mxu0
      %513 = vmatprep.mubr.f32.mxu0 0.0
      %514 = vmatmul.mubr.f32.gmra.mrb[0].mxu0 %v250
      %v515 = vpop.f32.mrb[0].mxu0
      %v516 = vadd.f32 0.0, %v515
      %v517 = vpop.f32.mrb[0].mxu0
      %518 = vmatprep.mubr.f32.mxu0 0.0
      %519 = vmatmul.mubr.f32.gmra.mrb[0].mxu0 %v253
      %v520 = vpop.f32.mrb[0].mxu0
      %v521 = vadd.f32 0.0, %v520
      %v522 = vpop.f32.mrb[0].mxu0
      %523 = vmatprep.mubr.f32.mxu0 0.0
      %524 = vmatmul.mubr.f32.gmra.mrb[0].mxu0 %v256
      %v525 = vpop.f32.mrb[0].mxu0
      %v526 = vadd.f32 0.0, %v525
      %v527 = vpop.f32.mrb[0].mxu0
      %528 = vmatprep.mubr.f32.mxu0 0.0
      %529 = vmatmul.mubr.f32.gmra.mrb[0].mxu0 %v259
      %v530 = vpop.f32.mrb[0].mxu0
      %v531 = vadd.f32 0.0, %v530
      %v532 = vpop.f32.mrb[0].mxu0
      %533 = vmatprep.mubr.f32.mxu0 0.0
      %534 = vmatmul.mubr.f32.gmra.mrb[0].mxu0 %v262
      %v535 = vpop.f32.mrb[0].mxu0
      %v536 = vadd.f32 0.0, %v535
      %v537 = vpop.f32.mrb[0].mxu0
      %538 = vmatprep.mubr.f32.mxu0 0.0
      %539 = vmatmul.mubr.f32.gmra.mrb[0].mxu0 %v265
      %v540 = vpop.f32.mrb[0].mxu0
      %v541 = vadd.f32 0.0, %v540
      %v542 = vpop.f32.mrb[0].mxu0
      %543 = vmatprep.mubr.f32.mxu0 0.0
      %544 = vmatmul.mubr.f32.gmra.mrb[0].mxu0 %v268
      %v545 = vpop.f32.mrb[0].mxu0
      %v546 = vadd.f32 0.0, %v545
      %v547 = vpop.f32.mrb[0].mxu0
      %548 = vmatprep.mubr.f32.mxu0 0.0
      %549 = vmatmul.mubr.f32.gmra.mrb[0].mxu0 %v271
      %v550 = vpop.f32.mrb[0].mxu0
      %v551 = vadd.f32 0.0, %v550
      %v552 = vpop.f32.mrb[0].mxu0
      %553 = vmatprep.mubr.f32.mxu0 0.0
      %554 = vmatmul.mubr.f32.gmra.mrb[0].mxu0 %v274
      %v555 = vpop.f32.mrb[0].mxu0
      %v556 = vadd.f32 0.0, %v555
      %v557 = vpop.f32.mrb[0].mxu0
      %558 = vmatprep.mubr.f32.mxu0 0.0
      %559 = vmatmul.mubr.f32.gmra.mrb[0].mxu0 %v277
      %v560 = vpop.f32.mrb[0].mxu0
      %v561 = vadd.f32 0.0, %v560
      %v562 = vpop.f32.mrb[0].mxu0
      %563 = vmatprep.mubr.f32.mxu0 0.0
      %564 = vmatmul.mubr.f32.gmra.mrb[0].mxu0 %v280
      %v565 = vpop.f32.mrb[0].mxu0
      %v566 = vadd.f32 0.0, %v565
      %v567 = vpop.f32.mrb[0].mxu0
      %568 = vmatprep.mubr.f32.mxu0 0.0
      %569 = vmatmul.mubr.f32.gmra.mrb[0].mxu0 %v283
      %v570 = vpop.f32.mrb[0].mxu0
      %v571 = vadd.f32 0.0, %v570
      %v572 = vpop.f32.mrb[0].mxu0
      %573 = vmatprep.mubr.f32.mxu0 0.0
      %574 = vmatmul.mubr.f32.gmra.mrb[0].mxu0 %v286
      %v575 = vpop.f32.mrb[0].mxu0
      %v576 = vadd.f32 0.0, %v575
      %v577 = vpop.f32.mrb[0].mxu0
      %578 = vmatprep.mubr.f32.mxu0 0.0
      %579 = vmatmul.mubr.f32.gmra.mrb[0].mxu0 %v289
      %v580 = vpop.f32.mrb[0].mxu0
      %v581 = vadd.f32 0.0, %v580
      %v582 = vpop.f32.mrb[0].mxu0
      %583 = vmatprep.mubr.f32.mxu0 0.0
      %584 = vmatmul.mubr.f32.gmra.mrb[0].mxu0 %v292
      %v585 = vpop.f32.mrb[0].mxu0
      %v586 = vadd.f32 0.0, %v585
      %v587 = vpop.f32.mrb[0].mxu0
      %588 = vmatprep.mubr.f32.mxu0 0.0
      %589 = vmatmul.mubr.f32.gmra.mrb[0].mxu0 %v295
      %v590 = vpop.f32.mrb[0].mxu0
      %v591 = vadd.f32 0.0, %v590
      %v592 = vpop.f32.mrb[0].mxu0
      %593 = vmatprep.mubr.f32.mxu0 0.0
      %594 = vmatmul.mubr.f32.gmra.mrb[0].mxu0 %v298
      %v595 = vpop.f32.mrb[0].mxu0
      %v596 = vadd.f32 0.0, %v595
      %v597 = vpop.f32.mrb[0].mxu0
      %598 = vmatprep.mubr.f32.mxu0 0.0
      %599 = vmatmul.mubr.f32.gmra.mrb[0].mxu0 %v301
      %v600 = vpop.f32.mrb[0].mxu0
      %v601 = vadd.f32 0.0, %v600
      %v602 = vpop.f32.mrb[0].mxu0
      %603 = vmatprep.mubr.f32.mxu0 0.0
      %604 = vmatmul.mubr.f32.gmra.mrb[0].mxu0 %v304
      %v605 = vpop.f32.mrb[0].mxu0
      %v606 = vadd.f32 0.0, %v605
      %v607 = vpop.f32.mrb[0].mxu0
      %608 = vmatprep.mubr.f32.mxu0 0.0
      %609 = vmatmul.mubr.f32.gmra.mrb[0].mxu0 %v307
      %v610 = vpop.f32.mrb[0].mxu0
      %v611 = vadd.f32 0.0, %v610
      %v612 = vpop.f32.mrb[0].mxu0
      %613 = vmatprep.mubr.f32.mxu0 0.0
      %614 = vmatmul.mubr.f32.gmra.mrb[0].mxu0 %v310
      %v615 = vpop.f32.mrb[0].mxu0
      %v616 = vadd.f32 0.0, %v615
      %v617 = vpop.f32.mrb[0].mxu0
      %618 = vmatprep.mubr.f32.mxu0 0.0
      %619 = vmatmul.mubr.f32.gmra.mrb[0].mxu0 %v313
      %v620 = vpop.f32.mrb[0].mxu0
      %v621 = vadd.f32 0.0, %v620
      %v622 = vpop.f32.mrb[0].mxu0
      %623 = vmatprep.mubr.f32.mxu0 0.0
      %624 = vmatmul.mubr.f32.gmra.mrb[0].mxu0 %v316
      %v625 = vpop.f32.mrb[0].mxu0
      %v626 = vadd.f32 0.0, %v625
      %v627 = vpop.f32.mrb[0].mxu0
      %628 = vmatprep.mubr.f32.mxu0 0.0
      %629 = vmatmul.mubr.f32.gmra.mrb[0].mxu0 %v319
      %v630 = vpop.f32.mrb[0].mxu0
      %v631 = vadd.f32 0.0, %v630
      %v632 = vpop.f32.mrb[0].mxu0
      %633 = vmatprep.mubr.f32.mxu0 0.0
      %634 = vmatmul.mubr.f32.gmra.mrb[0].mxu0 %v322
      %v635 = vpop.f32.mrb[0].mxu0
      %v636 = vadd.f32 0.0, %v635
      %v637 = vpop.f32.mrb[0].mxu0
      %638 = vmatprep.mubr.f32.mxu0 0.0
      %639 = vmatmul.mubr.f32.gmra.mrb[0].mxu0 %v325
      %v640 = vpop.f32.mrb[0].mxu0
      %v641 = vadd.f32 0.0, %v640
      %v642 = vpop.f32.mrb[0].mxu0
      %643 = vmatprep.mubr.f32.mxu0 0.0
      %644 = vmatmul.mubr.f32.gmra.mrb[0].mxu0 %v328
      %v645 = vpop.f32.mrb[0].mxu0
      %v646 = vadd.f32 0.0, %v645
      %v647 = vpop.f32.mrb[0].mxu0
      %648 = vmatprep.mubr.f32.mxu0 0.0
      %649 = vmatmul.mubr.f32.gmra.mrb[0].mxu0 %v331
      %v650 = vpop.f32.mrb[0].mxu0
      %v651 = vadd.f32 0.0, %v650
      %v652 = vpop.f32.mrb[0].mxu0
      %653 = vmatprep.mubr.f32.mxu0 0.0
      %654 = vmatmul.mubr.f32.gmra.mrb[0].mxu0 %v334
      %v655 = vpop.f32.mrb[0].mxu0
      %v656 = vadd.f32 0.0, %v655
      %v657 = vpop.f32.mrb[0].mxu0
      %658 = vmatprep.mubr.f32.mxu0 0.0
      %659 = vmatmul.mubr.f32.gmra.mrb[0].mxu0 %v337
      %v660 = vpop.f32.mrb[0].mxu0
      %v661 = vadd.f32 0.0, %v660
      %v662 = vpop.f32.mrb[0].mxu0
      %663 = vmatprep.mubr.f32.mxu0 0.0
      %664 = vmatmul.mubr.f32.gmra.mrb[0].mxu0 %v340
      %v665 = vpop.f32.mrb[0].mxu0
      %v666 = vadd.f32 0.0, %v665
      %v667 = vpop.f32.mrb[0].mxu0
      %668 = vmatprep.mubr.f32.mxu0 0.0
      %669 = vmatmul.mubr.f32.gmra.mrb[0].mxu0 %v343
      %v670 = vpop.f32.mrb[0].mxu0
      %v671 = vadd.f32 0.0, %v670
      %v672 = vpop.f32.mrb[0].mxu0
      %673 = vmatprep.mubr.f32.mxu0 0.0
      %674 = vmatmul.mubr.f32.gmra.mrb[0].mxu0 %v346
      %v675 = vpop.f32.mrb[0].mxu0
      %v676 = vadd.f32 0.0, %v675
      %v677 = vpop.f32.mrb[0].mxu0
      %678 = vmatprep.mubr.f32.mxu0 0.0
      %679 = vmatmul.mubr.f32.gmra.mrb[0].mxu0 %v349
      %v680 = vpop.f32.mrb[0].mxu0
      %v681 = vadd.f32 0.0, %v680
      %v682 = vpop.f32.mrb[0].mxu0
      %683 = vmatprep.mubr.f32.mxu0 0.0
      %684 = vmatmul.mubr.f32.gmra.mrb[0].mxu0 %v352
      %v685 = vpop.f32.mrb[0].mxu0
      %v686 = vadd.f32 0.0, %v685
      %v687 = vpop.f32.mrb[0].mxu0
      %688 = vmatprep.mubr.f32.mxu0 0.0
      %689 = vmatmul.mubr.f32.gmra.mrb[0].mxu0 %v355
      %v690 = vpop.f32.mrb[0].mxu0
      %v691 = vadd.f32 0.0, %v690
      %v692 = vpop.f32.mrb[0].mxu0
      %693 = vmatprep.mubr.f32.mxu0 0.0
      %694 = vmatmul.mubr.f32.gmra.mrb[0].mxu0 %v358
      %v695 = vpop.f32.mrb[0].mxu0
      %v696 = vadd.f32 0.0, %v695
      %v697 = vpop.f32.mrb[0].mxu0
      %698 = vmatprep.mubr.f32.mxu0 0.0
      %699 = vmatmul.mubr.f32.gmra.mrb[0].mxu0 %v361
      %v700 = vpop.f32.mrb[0].mxu0
      %v701 = vadd.f32 0.0, %v700
      %v702 = vpop.f32.mrb[0].mxu0
      %703 = vmatprep.mubr.f32.mxu0 0.0
      %704 = vmatmul.mubr.f32.gmra.mrb[0].mxu0 %v364
      %v705 = vpop.f32.mrb[0].mxu0
      %v706 = vadd.f32 0.0, %v705
      %v707 = vpop.f32.mrb[0].mxu0
      %708 = vmatprep.mubr.f32.mxu0 0.0
      %709 = vmatmul.mubr.f32.gmra.mrb[0].mxu0 %v367
      %v710 = vpop.f32.mrb[0].mxu0
      %v711 = vadd.f32 0.0, %v710
      %v712 = vpop.f32.mrb[0].mxu0
      %713 = vmatprep.mubr.f32.mxu0 0.0
      %714 = vmatmul.mubr.f32.gmra.mrb[0].mxu0 %v370
      %v715 = vpop.f32.mrb[0].mxu0
      %v716 = vadd.f32 0.0, %v715
      %v717 = vpop.f32.mrb[0].mxu0
      %718 = vmatprep.mubr.f32.mxu0 0.0
      %719 = vmatmul.mubr.f32.gmra.mrb[0].mxu0 %v373
      %v720 = vpop.f32.mrb[0].mxu0
      %v721 = vadd.f32 0.0, %v720
      %v722 = vpop.f32.mrb[0].mxu0
      %723 = vmatprep.mubr.f32.mxu0 0.0
      %724 = vmatmul.mubr.f32.gmra.mrb[0].mxu0 %v376
      %v725 = vpop.f32.mrb[0].mxu0
      %v726 = vadd.f32 0.0, %v725
      %v727 = vpop.f32.mrb[0].mxu0
      %728 = vmatprep.mubr.f32.mxu0 0.0
      %729 = vmatmul.mubr.f32.gmra.mrb[0].mxu0 %v379
      %v730 = vpop.f32.mrb[0].mxu0
      %v731 = vadd.f32 0.0, %v730
      %v732 = vpop.f32.mrb[0].mxu0
      %733 = vmatprep.mubr.f32.mxu0 0.0
      %734 = vmatmul.mubr.f32.gmra.mrb[0].mxu0 %v382
      %v735 = vpop.f32.mrb[0].mxu0
      %v736 = vadd.f32 0.0, %v735
      %v737 = vpop.f32.mrb[0].mxu0
      %738 = vmatprep.mubr.f32.mxu0 0.0
      %739 = vmatmul.mubr.f32.gmra.mrb[0].mxu0 %v385
      %v740 = vpop.f32.mrb[0].mxu0
      %v741 = vadd.f32 0.0, %v740
      %v742 = vpop.f32.mrb[0].mxu0
      %743 = vmatprep.mubr.f32.mxu0 0.0
      %744 = vmatmul.mubr.f32.gmra.mrb[0].mxu0 %v388
      %v745 = vpop.f32.mrb[0].mxu0
      %v746 = vadd.f32 0.0, %v745
      %v747 = vpop.f32.mrb[0].mxu0
      %748 = vmatprep.mubr.f32.mxu0 0.0
      %749 = vmatmul.mubr.f32.gmra.mrb[0].mxu0 %v391
      %v750 = vpop.f32.mrb[0].mxu0
      %v751 = vadd.f32 0.0, %v750
      %v752 = vpop.f32.mrb[0].mxu0
      %753 = vmatprep.mubr.f32.mxu0 0.0
      %754 = vmatmul.mubr.f32.gmra.mrb[0].mxu0 %v394
      %v755 = vpop.f32.mrb[0].mxu0
      %v756 = vadd.f32 0.0, %v755
      %v757 = vpop.f32.mrb[0].mxu0
      %758 = vmatprep.mubr.f32.mxu0 0.0
      %759 = vmatmul.mubr.f32.gmra.mrb[0].mxu0 %v397
      %v760 = vpop.f32.mrb[0].mxu0
      %v761 = vadd.f32 0.0, %v760
      %v762 = vpop.f32.mrb[0].mxu0
      %763 = vmatprep.mubr.f32.mxu0 0.0
      %764 = vmatmul.mubr.f32.gmra.mrb[0].mxu0 %v400
      %v765 = vpop.f32.mrb[0].mxu0
      %v766 = vadd.f32 0.0, %v765
      %v767 = vpop.f32.mrb[0].mxu0
      %768 = vmatprep.mubr.f32.mxu0 0.0
      %769 = vmatmul.mubr.f32.gmra.mrb[0].mxu0 %v403
      %v770 = vpop.f32.mrb[0].mxu0
      %v771 = vadd.f32 0.0, %v770
      %v772 = vpop.f32.mrb[0].mxu0
      %773 = vmatprep.mubr.f32.mxu0 0.0
      %774 = vmatmul.mubr.f32.gmra.mrb[0].mxu0 %v406
      %v775 = vpop.f32.mrb[0].mxu0
      %v776 = vadd.f32 0.0, %v775
      %v777 = vpop.f32.mrb[0].mxu0
      %778 = vmatprep.mubr.f32.mxu0 0.0
      %779 = vmatmul.mubr.f32.gmra.mrb[0].mxu0 %v409
      %v780 = vpop.f32.mrb[0].mxu0
      %v781 = vadd.f32 0.0, %v780
      %v782 = vpop.f32.mrb[0].mxu0
      %783 = vmatprep.mubr.f32.mxu0 0.0
      %784 = vmatmul.mubr.f32.gmra.mrb[0].mxu0 %v412
      %v785 = vpop.f32.mrb[0].mxu0
      %v786 = vadd.f32 0.0, %v785
      %v787 = vpop.f32.mrb[0].mxu0
      %788 = vmatprep.mubr.f32.mxu0 0.0
      %789 = vmatmul.mubr.f32.gmra.mrb[0].mxu0 %v415
      %v790 = vpop.f32.mrb[0].mxu0
      %v791 = vadd.f32 0.0, %v790
      %v792 = vpop.f32.mrb[0].mxu0
      %793 = vmatprep.mubr.f32.mxu0 0.0
      %794 = vmatmul.mubr.f32.gmra.mrb[0].mxu0 %v418
      %v795 = vpop.f32.mrb[0].mxu0
      %v796 = vadd.f32 0.0, %v795
      %v797 = vpop.f32.mrb[0].mxu0
      %798 = vmatprep.mubr.f32.mxu0 0.0
      %799 = vmatmul.mubr.f32.gmra.mrb[0].mxu0 %v421
      %v800 = vpop.f32.mrb[0].mxu0
      %v801 = vadd.f32 0.0, %v800
      %v802 = vpop.f32.mrb[0].mxu0
      %803 = vmatprep.mubr.f32.mxu0 0.0
      %804 = vmatmul.mubr.f32.gmra.mrb[0].mxu0 %v424
      %v805 = vpop.f32.mrb[0].mxu0
      %v806 = vadd.f32 0.0, %v805
      %v807 = vpop.f32.mrb[0].mxu0
      %808 = vmatprep.mubr.f32.mxu0 0.0
      %809 = vmatmul.mubr.f32.gmra.mrb[0].mxu0 %v427
      %v810 = vpop.f32.mrb[0].mxu0
      %v811 = vadd.f32 0.0, %v810
      %v812 = vpop.f32.mrb[0].mxu0
      %813 = vdwg.mxu0
      %814 = vxpose.xlu0.b32.start [1/16] %v496, 128
      %815 = vxpose.xlu0.b32.cont [2/16] 0.0, 128
      %816 = vxpose.xlu0.b32.cont [3/16] 0.0, 128
      %817 = vxpose.xlu0.b32.cont [4/16] 0.0, 128
      %818 = vxpose.xlu0.b32.cont [5/16] 0.0, 128
      %819 = vxpose.xlu0.b32.cont [6/16] 0.0, 128
      %820 = vxpose.xlu0.b32.cont [7/16] 0.0, 128
      %821 = vxpose.xlu0.b32.cont [8/16] 0.0, 128
      %822 = vxpose.xlu0.b32.cont [9/16] 0.0, 128
      %823 = vxpose.xlu0.b32.cont [10/16] 0.0, 128
      %824 = vxpose.xlu0.b32.cont [11/16] 0.0, 128
      %825 = vxpose.xlu0.b32.cont [12/16] 0.0, 128
      %826 = vxpose.xlu0.b32.cont [13/16] 0.0, 128
      %827 = vxpose.xlu0.b32.cont [14/16] 0.0, 128
      %828 = vxpose.xlu0.b32.cont [15/16] 0.0, 128
      %829 = vxpose.xlu0.b32.end [16/16] 0.0, 128
      %v830 = vpop.trf.xlu0
      %v831 = vpop.trf.xlu0
      %v832 = vpop.trf.xlu0
      %v833 = vpop.trf.xlu0
      %v834 = vpop.trf.xlu0
      %v835 = vpop.trf.xlu0
      %v836 = vpop.trf.xlu0
      %v837 = vpop.trf.xlu0
      %v838 = vpop.trf.xlu0
      %v839 = vpop.trf.xlu0
      %v840 = vpop.trf.xlu0
      %v841 = vpop.trf.xlu0
      %v842 = vpop.trf.xlu0
      %v843 = vpop.trf.xlu0
      %v844 = vpop.trf.xlu0
      %v845 = vpop.trf.xlu0
      %846 = vxpose.xlu0.b32.start [1/16] %v501, 128
      %847 = vxpose.xlu0.b32.cont [2/16] 0.0, 128
      %848 = vxpose.xlu0.b32.cont [3/16] 0.0, 128
      %849 = vxpose.xlu0.b32.cont [4/16] 0.0, 128
      %850 = vxpose.xlu0.b32.cont [5/16] 0.0, 128
      %851 = vxpose.xlu0.b32.cont [6/16] 0.0, 128
      %852 = vxpose.xlu0.b32.cont [7/16] 0.0, 128
      %853 = vxpose.xlu0.b32.cont [8/16] 0.0, 128
      %854 = vxpose.xlu0.b32.cont [9/16] 0.0, 128
      %855 = vxpose.xlu0.b32.cont [10/16] 0.0, 128
      %856 = vxpose.xlu0.b32.cont [11/16] 0.0, 128
      %857 = vxpose.xlu0.b32.cont [12/16] 0.0, 128
      %858 = vxpose.xlu0.b32.cont [13/16] 0.0, 128
      %859 = vxpose.xlu0.b32.cont [14/16] 0.0, 128
      %860 = vxpose.xlu0.b32.cont [15/16] 0.0, 128
      %861 = vxpose.xlu0.b32.end [16/16] 0.0, 128
      %v862 = vpop.trf.xlu0
      %v863 = vpop.trf.xlu0
      %v864 = vpop.trf.xlu0
      %v865 = vpop.trf.xlu0
      %v866 = vpop.trf.xlu0
      %v867 = vpop.trf.xlu0
      %v868 = vpop.trf.xlu0
      %v869 = vpop.trf.xlu0
      %v870 = vpop.trf.xlu0
      %v871 = vpop.trf.xlu0
      %v872 = vpop.trf.xlu0
      %v873 = vpop.trf.xlu0
      %v874 = vpop.trf.xlu0
      %v875 = vpop.trf.xlu0
      %v876 = vpop.trf.xlu0
      %v877 = vpop.trf.xlu0
      %878 = vxpose.xlu0.b32.start [1/16] %v506, 128
      %879 = vxpose.xlu0.b32.cont [2/16] 0.0, 128
      %880 = vxpose.xlu0.b32.cont [3/16] 0.0, 128
      %881 = vxpose.xlu0.b32.cont [4/16] 0.0, 128
      %882 = vxpose.xlu0.b32.cont [5/16] 0.0, 128
      %883 = vxpose.xlu0.b32.cont [6/16] 0.0, 128
      %884 = vxpose.xlu0.b32.cont [7/16] 0.0, 128
      %885 = vxpose.xlu0.b32.cont [8/16] 0.0, 128
      %886 = vxpose.xlu0.b32.cont [9/16] 0.0, 128
      %887 = vxpose.xlu0.b32.cont [10/16] 0.0, 128
      %888 = vxpose.xlu0.b32.cont [11/16] 0.0, 128
      %889 = vxpose.xlu0.b32.cont [12/16] 0.0, 128
      %890 = vxpose.xlu0.b32.cont [13/16] 0.0, 128
      %891 = vxpose.xlu0.b32.cont [14/16] 0.0, 128
      %892 = vxpose.xlu0.b32.cont [15/16] 0.0, 128
      %893 = vxpose.xlu0.b32.end [16/16] 0.0, 128
      %v894 = vpop.trf.xlu0
      %v895 = vpop.trf.xlu0
      %v896 = vpop.trf.xlu0
      %v897 = vpop.trf.xlu0
      %v898 = vpop.trf.xlu0
      %v899 = vpop.trf.xlu0
      %v900 = vpop.trf.xlu0
      %v901 = vpop.trf.xlu0
      %v902 = vpop.trf.xlu0
      %v903 = vpop.trf.xlu0
      %v904 = vpop.trf.xlu0
      %v905 = vpop.trf.xlu0
      %v906 = vpop.trf.xlu0
      %v907 = vpop.trf.xlu0
      %v908 = vpop.trf.xlu0
      %v909 = vpop.trf.xlu0
      %910 = vxpose.xlu0.b32.start [1/16] %v511, 128
      %911 = vxpose.xlu0.b32.cont [2/16] 0.0, 128
      %912 = vxpose.xlu0.b32.cont [3/16] 0.0, 128
      %913 = vxpose.xlu0.b32.cont [4/16] 0.0, 128
      %914 = vxpose.xlu0.b32.cont [5/16] 0.0, 128
      %915 = vxpose.xlu0.b32.cont [6/16] 0.0, 128
      %916 = vxpose.xlu0.b32.cont [7/16] 0.0, 128
      %917 = vxpose.xlu0.b32.cont [8/16] 0.0, 128
      %918 = vxpose.xlu0.b32.cont [9/16] 0.0, 128
      %919 = vxpose.xlu0.b32.cont [10/16] 0.0, 128
      %920 = vxpose.xlu0.b32.cont [11/16] 0.0, 128
      %921 = vxpose.xlu0.b32.cont [12/16] 0.0, 128
      %922 = vxpose.xlu0.b32.cont [13/16] 0.0, 128
      %923 = vxpose.xlu0.b32.cont [14/16] 0.0, 128
      %924 = vxpose.xlu0.b32.cont [15/16] 0.0, 128
      %925 = vxpose.xlu0.b32.end [16/16] 0.0, 128
      %v926 = vpop.trf.xlu0
      %v927 = vpop.trf.xlu0
      %v928 = vpop.trf.xlu0
      %v929 = vpop.trf.xlu0
      %v930 = vpop.trf.xlu0
      %v931 = vpop.trf.xlu0
      %v932 = vpop.trf.xlu0
      %v933 = vpop.trf.xlu0
      %v934 = vpop.trf.xlu0
      %v935 = vpop.trf.xlu0
      %v936 = vpop.trf.xlu0
      %v937 = vpop.trf.xlu0
      %v938 = vpop.trf.xlu0
      %v939 = vpop.trf.xlu0
      %v940 = vpop.trf.xlu0
      %v941 = vpop.trf.xlu0
      %942 = vxpose.xlu0.b32.start [1/16] %v516, 128
      %943 = vxpose.xlu0.b32.cont [2/16] 0.0, 128
      %944 = vxpose.xlu0.b32.cont [3/16] 0.0, 128
      %945 = vxpose.xlu0.b32.cont [4/16] 0.0, 128
      %946 = vxpose.xlu0.b32.cont [5/16] 0.0, 128
      %947 = vxpose.xlu0.b32.cont [6/16] 0.0, 128
      %948 = vxpose.xlu0.b32.cont [7/16] 0.0, 128
      %949 = vxpose.xlu0.b32.cont [8/16] 0.0, 128
      %950 = vxpose.xlu0.b32.cont [9/16] 0.0, 128
      %951 = vxpose.xlu0.b32.cont [10/16] 0.0, 128
      %952 = vxpose.xlu0.b32.cont [11/16] 0.0, 128
      %953 = vxpose.xlu0.b32.cont [12/16] 0.0, 128
      %954 = vxpose.xlu0.b32.cont [13/16] 0.0, 128
      %955 = vxpose.xlu0.b32.cont [14/16] 0.0, 128
      %956 = vxpose.xlu0.b32.cont [15/16] 0.0, 128
      %957 = vxpose.xlu0.b32.end [16/16] 0.0, 128
      %v958 = vpop.trf.xlu0
      %v959 = vpop.trf.xlu0
      %v960 = vpop.trf.xlu0
      %v961 = vpop.trf.xlu0
      %v962 = vpop.trf.xlu0
      %v963 = vpop.trf.xlu0
      %v964 = vpop.trf.xlu0
      %v965 = vpop.trf.xlu0
      %v966 = vpop.trf.xlu0
      %v967 = vpop.trf.xlu0
      %v968 = vpop.trf.xlu0
      %v969 = vpop.trf.xlu0
      %v970 = vpop.trf.xlu0
      %v971 = vpop.trf.xlu0
      %v972 = vpop.trf.xlu0
      %v973 = vpop.trf.xlu0
      %974 = vxpose.xlu0.b32.start [1/16] %v521, 128
      %975 = vxpose.xlu0.b32.cont [2/16] 0.0, 128
      %976 = vxpose.xlu0.b32.cont [3/16] 0.0, 128
      %977 = vxpose.xlu0.b32.cont [4/16] 0.0, 128
      %978 = vxpose.xlu0.b32.cont [5/16] 0.0, 128
      %979 = vxpose.xlu0.b32.cont [6/16] 0.0, 128
      %980 = vxpose.xlu0.b32.cont [7/16] 0.0, 128
      %981 = vxpose.xlu0.b32.cont [8/16] 0.0, 128
      %982 = vxpose.xlu0.b32.cont [9/16] 0.0, 128
      %983 = vxpose.xlu0.b32.cont [10/16] 0.0, 128
      %984 = vxpose.xlu0.b32.cont [11/16] 0.0, 128
      %985 = vxpose.xlu0.b32.cont [12/16] 0.0, 128
      %986 = vxpose.xlu0.b32.cont [13/16] 0.0, 128
      %987 = vxpose.xlu0.b32.cont [14/16] 0.0, 128
      %988 = vxpose.xlu0.b32.cont [15/16] 0.0, 128
      %989 = vxpose.xlu0.b32.end [16/16] 0.0, 128
      %v990 = vpop.trf.xlu0
      %v991 = vpop.trf.xlu0
      %v992 = vpop.trf.xlu0
      %v993 = vpop.trf.xlu0
      %v994 = vpop.trf.xlu0
      %v995 = vpop.trf.xlu0
      %v996 = vpop.trf.xlu0
      %v997 = vpop.trf.xlu0
      %v998 = vpop.trf.xlu0
      %v999 = vpop.trf.xlu0
      %v1000 = vpop.trf.xlu0
      %v1001 = vpop.trf.xlu0
      %v1002 = vpop.trf.xlu0
      %v1003 = vpop.trf.xlu0
      %v1004 = vpop.trf.xlu0
      %v1005 = vpop.trf.xlu0
      %1006 = vxpose.xlu0.b32.start [1/16] %v526, 128
      %1007 = vxpose.xlu0.b32.cont [2/16] 0.0, 128
      %1008 = vxpose.xlu0.b32.cont [3/16] 0.0, 128
      %1009 = vxpose.xlu0.b32.cont [4/16] 0.0, 128
      %1010 = vxpose.xlu0.b32.cont [5/16] 0.0, 128
      %1011 = vxpose.xlu0.b32.cont [6/16] 0.0, 128
      %1012 = vxpose.xlu0.b32.cont [7/16] 0.0, 128
      %1013 = vxpose.xlu0.b32.cont [8/16] 0.0, 128
      %1014 = vxpose.xlu0.b32.cont [9/16] 0.0, 128
      %1015 = vxpose.xlu0.b32.cont [10/16] 0.0, 128
      %1016 = vxpose.xlu0.b32.cont [11/16] 0.0, 128
      %1017 = vxpose.xlu0.b32.cont [12/16] 0.0, 128
      %1018 = vxpose.xlu0.b32.cont [13/16] 0.0, 128
      %1019 = vxpose.xlu0.b32.cont [14/16] 0.0, 128
      %1020 = vxpose.xlu0.b32.cont [15/16] 0.0, 128
      %1021 = vxpose.xlu0.b32.end [16/16] 0.0, 128
      %v1022 = vpop.trf.xlu0
      %v1023 = vpop.trf.xlu0
      %v1024 = vpop.trf.xlu0
      %v1025 = vpop.trf.xlu0
      %v1026 = vpop.trf.xlu0
      %v1027 = vpop.trf.xlu0
      %v1028 = vpop.trf.xlu0
      %v1029 = vpop.trf.xlu0
      %v1030 = vpop.trf.xlu0
      %v1031 = vpop.trf.xlu0
      %v1032 = vpop.trf.xlu0
      %v1033 = vpop.trf.xlu0
      %v1034 = vpop.trf.xlu0
      %v1035 = vpop.trf.xlu0
      %v1036 = vpop.trf.xlu0
      %v1037 = vpop.trf.xlu0
      %1038 = vxpose.xlu0.b32.start [1/16] %v531, 128
      %1039 = vxpose.xlu0.b32.cont [2/16] 0.0, 128
      %1040 = vxpose.xlu0.b32.cont [3/16] 0.0, 128
      %1041 = vxpose.xlu0.b32.cont [4/16] 0.0, 128
      %1042 = vxpose.xlu0.b32.cont [5/16] 0.0, 128
      %1043 = vxpose.xlu0.b32.cont [6/16] 0.0, 128
      %1044 = vxpose.xlu0.b32.cont [7/16] 0.0, 128
      %1045 = vxpose.xlu0.b32.cont [8/16] 0.0, 128
      %1046 = vxpose.xlu0.b32.cont [9/16] 0.0, 128
      %1047 = vxpose.xlu0.b32.cont [10/16] 0.0, 128
      %1048 = vxpose.xlu0.b32.cont [11/16] 0.0, 128
      %1049 = vxpose.xlu0.b32.cont [12/16] 0.0, 128
      %1050 = vxpose.xlu0.b32.cont [13/16] 0.0, 128
      %1051 = vxpose.xlu0.b32.cont [14/16] 0.0, 128
      %1052 = vxpose.xlu0.b32.cont [15/16] 0.0, 128
      %1053 = vxpose.xlu0.b32.end [16/16] 0.0, 128
      %v1054 = vpop.trf.xlu0
      %v1055 = vpop.trf.xlu0
      %v1056 = vpop.trf.xlu0
      %v1057 = vpop.trf.xlu0
      %v1058 = vpop.trf.xlu0
      %v1059 = vpop.trf.xlu0
      %v1060 = vpop.trf.xlu0
      %v1061 = vpop.trf.xlu0
      %v1062 = vpop.trf.xlu0
      %v1063 = vpop.trf.xlu0
      %v1064 = vpop.trf.xlu0
      %v1065 = vpop.trf.xlu0
      %v1066 = vpop.trf.xlu0
      %v1067 = vpop.trf.xlu0
      %v1068 = vpop.trf.xlu0
      %v1069 = vpop.trf.xlu0
      %1070 = vxpose.xlu0.b32.start [1/16] %v536, 128
      %1071 = vxpose.xlu0.b32.cont [2/16] 0.0, 128
      %1072 = vxpose.xlu0.b32.cont [3/16] 0.0, 128
      %1073 = vxpose.xlu0.b32.cont [4/16] 0.0, 128
      %1074 = vxpose.xlu0.b32.cont [5/16] 0.0, 128
      %1075 = vxpose.xlu0.b32.cont [6/16] 0.0, 128
      %1076 = vxpose.xlu0.b32.cont [7/16] 0.0, 128
      %1077 = vxpose.xlu0.b32.cont [8/16] 0.0, 128
      %1078 = vxpose.xlu0.b32.cont [9/16] 0.0, 128
      %1079 = vxpose.xlu0.b32.cont [10/16] 0.0, 128
      %1080 = vxpose.xlu0.b32.cont [11/16] 0.0, 128
      %1081 = vxpose.xlu0.b32.cont [12/16] 0.0, 128
      %1082 = vxpose.xlu0.b32.cont [13/16] 0.0, 128
      %1083 = vxpose.xlu0.b32.cont [14/16] 0.0, 128
      %1084 = vxpose.xlu0.b32.cont [15/16] 0.0, 128
      %1085 = vxpose.xlu0.b32.end [16/16] 0.0, 128
      %v1086 = vpop.trf.xlu0
      %v1087 = vpop.trf.xlu0
      %v1088 = vpop.trf.xlu0
      %v1089 = vpop.trf.xlu0
      %v1090 = vpop.trf.xlu0
      %v1091 = vpop.trf.xlu0
      %v1092 = vpop.trf.xlu0
      %v1093 = vpop.trf.xlu0
      %v1094 = vpop.trf.xlu0
      %v1095 = vpop.trf.xlu0
      %v1096 = vpop.trf.xlu0
      %v1097 = vpop.trf.xlu0
      %v1098 = vpop.trf.xlu0
      %v1099 = vpop.trf.xlu0
      %v1100 = vpop.trf.xlu0
      %v1101 = vpop.trf.xlu0
      %1102 = vxpose.xlu0.b32.start [1/16] %v541, 128
      %1103 = vxpose.xlu0.b32.cont [2/16] 0.0, 128
      %1104 = vxpose.xlu0.b32.cont [3/16] 0.0, 128
      %1105 = vxpose.xlu0.b32.cont [4/16] 0.0, 128
      %1106 = vxpose.xlu0.b32.cont [5/16] 0.0, 128
      %1107 = vxpose.xlu0.b32.cont [6/16] 0.0, 128
      %1108 = vxpose.xlu0.b32.cont [7/16] 0.0, 128
      %1109 = vxpose.xlu0.b32.cont [8/16] 0.0, 128
      %1110 = vxpose.xlu0.b32.cont [9/16] 0.0, 128
      %1111 = vxpose.xlu0.b32.cont [10/16] 0.0, 128
      %1112 = vxpose.xlu0.b32.cont [11/16] 0.0, 128
      %1113 = vxpose.xlu0.b32.cont [12/16] 0.0, 128
      %1114 = vxpose.xlu0.b32.cont [13/16] 0.0, 128
      %1115 = vxpose.xlu0.b32.cont [14/16] 0.0, 128
      %1116 = vxpose.xlu0.b32.cont [15/16] 0.0, 128
      %1117 = vxpose.xlu0.b32.end [16/16] 0.0, 128
      %v1118 = vpop.trf.xlu0
      %v1119 = vpop.trf.xlu0
      %v1120 = vpop.trf.xlu0
      %v1121 = vpop.trf.xlu0
      %v1122 = vpop.trf.xlu0
      %v1123 = vpop.trf.xlu0
      %v1124 = vpop.trf.xlu0
      %v1125 = vpop.trf.xlu0
      %v1126 = vpop.trf.xlu0
      %v1127 = vpop.trf.xlu0
      %v1128 = vpop.trf.xlu0
      %v1129 = vpop.trf.xlu0
      %v1130 = vpop.trf.xlu0
      %v1131 = vpop.trf.xlu0
      %v1132 = vpop.trf.xlu0
      %v1133 = vpop.trf.xlu0
      %1134 = vxpose.xlu0.b32.start [1/16] %v546, 128
      %1135 = vxpose.xlu0.b32.cont [2/16] 0.0, 128
      %1136 = vxpose.xlu0.b32.cont [3/16] 0.0, 128
      %1137 = vxpose.xlu0.b32.cont [4/16] 0.0, 128
      %1138 = vxpose.xlu0.b32.cont [5/16] 0.0, 128
      %1139 = vxpose.xlu0.b32.cont [6/16] 0.0, 128
      %1140 = vxpose.xlu0.b32.cont [7/16] 0.0, 128
      %1141 = vxpose.xlu0.b32.cont [8/16] 0.0, 128
      %1142 = vxpose.xlu0.b32.cont [9/16] 0.0, 128
      %1143 = vxpose.xlu0.b32.cont [10/16] 0.0, 128
      %1144 = vxpose.xlu0.b32.cont [11/16] 0.0, 128
      %1145 = vxpose.xlu0.b32.cont [12/16] 0.0, 128
      %1146 = vxpose.xlu0.b32.cont [13/16] 0.0, 128
      %1147 = vxpose.xlu0.b32.cont [14/16] 0.0, 128
      %1148 = vxpose.xlu0.b32.cont [15/16] 0.0, 128
      %1149 = vxpose.xlu0.b32.end [16/16] 0.0, 128
      %v1150 = vpop.trf.xlu0
      %v1151 = vpop.trf.xlu0
      %v1152 = vpop.trf.xlu0
      %v1153 = vpop.trf.xlu0
      %v1154 = vpop.trf.xlu0
      %v1155 = vpop.trf.xlu0
      %v1156 = vpop.trf.xlu0
      %v1157 = vpop.trf.xlu0
      %v1158 = vpop.trf.xlu0
      %v1159 = vpop.trf.xlu0
      %v1160 = vpop.trf.xlu0
      %v1161 = vpop.trf.xlu0
      %v1162 = vpop.trf.xlu0
      %v1163 = vpop.trf.xlu0
      %v1164 = vpop.trf.xlu0
      %v1165 = vpop.trf.xlu0
      %1166 = vxpose.xlu0.b32.start [1/16] %v551, 128
      %1167 = vxpose.xlu0.b32.cont [2/16] 0.0, 128
      %1168 = vxpose.xlu0.b32.cont [3/16] 0.0, 128
      %1169 = vxpose.xlu0.b32.cont [4/16] 0.0, 128
      %1170 = vxpose.xlu0.b32.cont [5/16] 0.0, 128
      %1171 = vxpose.xlu0.b32.cont [6/16] 0.0, 128
      %1172 = vxpose.xlu0.b32.cont [7/16] 0.0, 128
      %1173 = vxpose.xlu0.b32.cont [8/16] 0.0, 128
      %1174 = vxpose.xlu0.b32.cont [9/16] 0.0, 128
      %1175 = vxpose.xlu0.b32.cont [10/16] 0.0, 128
      %1176 = vxpose.xlu0.b32.cont [11/16] 0.0, 128
      %1177 = vxpose.xlu0.b32.cont [12/16] 0.0, 128
      %1178 = vxpose.xlu0.b32.cont [13/16] 0.0, 128
      %1179 = vxpose.xlu0.b32.cont [14/16] 0.0, 128
      %1180 = vxpose.xlu0.b32.cont [15/16] 0.0, 128
      %1181 = vxpose.xlu0.b32.end [16/16] 0.0, 128
      %v1182 = vpop.trf.xlu0
      %v1183 = vpop.trf.xlu0
      %v1184 = vpop.trf.xlu0
      %v1185 = vpop.trf.xlu0
      %v1186 = vpop.trf.xlu0
      %v1187 = vpop.trf.xlu0
      %v1188 = vpop.trf.xlu0
      %v1189 = vpop.trf.xlu0
      %v1190 = vpop.trf.xlu0
      %v1191 = vpop.trf.xlu0
      %v1192 = vpop.trf.xlu0
      %v1193 = vpop.trf.xlu0
      %v1194 = vpop.trf.xlu0
      %v1195 = vpop.trf.xlu0
      %v1196 = vpop.trf.xlu0
      %v1197 = vpop.trf.xlu0
      %1198 = vxpose.xlu0.b32.start [1/16] %v556, 128
      %1199 = vxpose.xlu0.b32.cont [2/16] 0.0, 128
      %1200 = vxpose.xlu0.b32.cont [3/16] 0.0, 128
      %1201 = vxpose.xlu0.b32.cont [4/16] 0.0, 128
      %1202 = vxpose.xlu0.b32.cont [5/16] 0.0, 128
      %1203 = vxpose.xlu0.b32.cont [6/16] 0.0, 128
      %1204 = vxpose.xlu0.b32.cont [7/16] 0.0, 128
      %1205 = vxpose.xlu0.b32.cont [8/16] 0.0, 128
      %1206 = vxpose.xlu0.b32.cont [9/16] 0.0, 128
      %1207 = vxpose.xlu0.b32.cont [10/16] 0.0, 128
      %1208 = vxpose.xlu0.b32.cont [11/16] 0.0, 128
      %1209 = vxpose.xlu0.b32.cont [12/16] 0.0, 128
      %1210 = vxpose.xlu0.b32.cont [13/16] 0.0, 128
      %1211 = vxpose.xlu0.b32.cont [14/16] 0.0, 128
      %1212 = vxpose.xlu0.b32.cont [15/16] 0.0, 128
      %1213 = vxpose.xlu0.b32.end [16/16] 0.0, 128
      %v1214 = vpop.trf.xlu0
      %v1215 = vpop.trf.xlu0
      %v1216 = vpop.trf.xlu0
      %v1217 = vpop.trf.xlu0
      %v1218 = vpop.trf.xlu0
      %v1219 = vpop.trf.xlu0
      %v1220 = vpop.trf.xlu0
      %v1221 = vpop.trf.xlu0
      %v1222 = vpop.trf.xlu0
      %v1223 = vpop.trf.xlu0
      %v1224 = vpop.trf.xlu0
      %v1225 = vpop.trf.xlu0
      %v1226 = vpop.trf.xlu0
      %v1227 = vpop.trf.xlu0
      %v1228 = vpop.trf.xlu0
      %v1229 = vpop.trf.xlu0
      %1230 = vxpose.xlu0.b32.start [1/16] %v561, 128
      %1231 = vxpose.xlu0.b32.cont [2/16] 0.0, 128
      %1232 = vxpose.xlu0.b32.cont [3/16] 0.0, 128
      %1233 = vxpose.xlu0.b32.cont [4/16] 0.0, 128
      %1234 = vxpose.xlu0.b32.cont [5/16] 0.0, 128
      %1235 = vxpose.xlu0.b32.cont [6/16] 0.0, 128
      %1236 = vxpose.xlu0.b32.cont [7/16] 0.0, 128
      %1237 = vxpose.xlu0.b32.cont [8/16] 0.0, 128
      %1238 = vxpose.xlu0.b32.cont [9/16] 0.0, 128
      %1239 = vxpose.xlu0.b32.cont [10/16] 0.0, 128
      %1240 = vxpose.xlu0.b32.cont [11/16] 0.0, 128
      %1241 = vxpose.xlu0.b32.cont [12/16] 0.0, 128
      %1242 = vxpose.xlu0.b32.cont [13/16] 0.0, 128
      %1243 = vxpose.xlu0.b32.cont [14/16] 0.0, 128
      %1244 = vxpose.xlu0.b32.cont [15/16] 0.0, 128
      %1245 = vxpose.xlu0.b32.end [16/16] 0.0, 128
      %v1246 = vpop.trf.xlu0
      %v1247 = vpop.trf.xlu0
      %v1248 = vpop.trf.xlu0
      %v1249 = vpop.trf.xlu0
      %v1250 = vpop.trf.xlu0
      %v1251 = vpop.trf.xlu0
      %v1252 = vpop.trf.xlu0
      %v1253 = vpop.trf.xlu0
      %v1254 = vpop.trf.xlu0
      %v1255 = vpop.trf.xlu0
      %v1256 = vpop.trf.xlu0
      %v1257 = vpop.trf.xlu0
      %v1258 = vpop.trf.xlu0
      %v1259 = vpop.trf.xlu0
      %v1260 = vpop.trf.xlu0
      %v1261 = vpop.trf.xlu0
      %1262 = vxpose.xlu0.b32.start [1/16] %v566, 128
      %1263 = vxpose.xlu0.b32.cont [2/16] 0.0, 128
      %1264 = vxpose.xlu0.b32.cont [3/16] 0.0, 128
      %1265 = vxpose.xlu0.b32.cont [4/16] 0.0, 128
      %1266 = vxpose.xlu0.b32.cont [5/16] 0.0, 128
      %1267 = vxpose.xlu0.b32.cont [6/16] 0.0, 128
      %1268 = vxpose.xlu0.b32.cont [7/16] 0.0, 128
      %1269 = vxpose.xlu0.b32.cont [8/16] 0.0, 128
      %1270 = vxpose.xlu0.b32.cont [9/16] 0.0, 128
      %1271 = vxpose.xlu0.b32.cont [10/16] 0.0, 128
      %1272 = vxpose.xlu0.b32.cont [11/16] 0.0, 128
      %1273 = vxpose.xlu0.b32.cont [12/16] 0.0, 128
      %1274 = vxpose.xlu0.b32.cont [13/16] 0.0, 128
      %1275 = vxpose.xlu0.b32.cont [14/16] 0.0, 128
      %1276 = vxpose.xlu0.b32.cont [15/16] 0.0, 128
      %1277 = vxpose.xlu0.b32.end [16/16] 0.0, 128
      %v1278 = vpop.trf.xlu0
      %v1279 = vpop.trf.xlu0
      %v1280 = vpop.trf.xlu0
      %v1281 = vpop.trf.xlu0
      %v1282 = vpop.trf.xlu0
      %v1283 = vpop.trf.xlu0
      %v1284 = vpop.trf.xlu0
      %v1285 = vpop.trf.xlu0
      %v1286 = vpop.trf.xlu0
      %v1287 = vpop.trf.xlu0
      %v1288 = vpop.trf.xlu0
      %v1289 = vpop.trf.xlu0
      %v1290 = vpop.trf.xlu0
      %v1291 = vpop.trf.xlu0
      %v1292 = vpop.trf.xlu0
      %v1293 = vpop.trf.xlu0
      %1294 = vxpose.xlu0.b32.start [1/16] %v571, 128
      %1295 = vxpose.xlu0.b32.cont [2/16] 0.0, 128
      %1296 = vxpose.xlu0.b32.cont [3/16] 0.0, 128
      %1297 = vxpose.xlu0.b32.cont [4/16] 0.0, 128
      %1298 = vxpose.xlu0.b32.cont [5/16] 0.0, 128
      %1299 = vxpose.xlu0.b32.cont [6/16] 0.0, 128
      %1300 = vxpose.xlu0.b32.cont [7/16] 0.0, 128
      %1301 = vxpose.xlu0.b32.cont [8/16] 0.0, 128
      %1302 = vxpose.xlu0.b32.cont [9/16] 0.0, 128
      %1303 = vxpose.xlu0.b32.cont [10/16] 0.0, 128
      %1304 = vxpose.xlu0.b32.cont [11/16] 0.0, 128
      %1305 = vxpose.xlu0.b32.cont [12/16] 0.0, 128
      %1306 = vxpose.xlu0.b32.cont [13/16] 0.0, 128
      %1307 = vxpose.xlu0.b32.cont [14/16] 0.0, 128
      %1308 = vxpose.xlu0.b32.cont [15/16] 0.0, 128
      %1309 = vxpose.xlu0.b32.end [16/16] 0.0, 128
      %v1310 = vpop.trf.xlu0
      %v1311 = vpop.trf.xlu0
      %v1312 = vpop.trf.xlu0
      %v1313 = vpop.trf.xlu0
      %v1314 = vpop.trf.xlu0
      %v1315 = vpop.trf.xlu0
      %v1316 = vpop.trf.xlu0
      %v1317 = vpop.trf.xlu0
      %v1318 = vpop.trf.xlu0
      %v1319 = vpop.trf.xlu0
      %v1320 = vpop.trf.xlu0
      %v1321 = vpop.trf.xlu0
      %v1322 = vpop.trf.xlu0
      %v1323 = vpop.trf.xlu0
      %v1324 = vpop.trf.xlu0
      %v1325 = vpop.trf.xlu0
      %1326 = vxpose.xlu0.b32.start [1/16] %v576, 128
      %1327 = vxpose.xlu0.b32.cont [2/16] 0.0, 128
      %1328 = vxpose.xlu0.b32.cont [3/16] 0.0, 128
      %1329 = vxpose.xlu0.b32.cont [4/16] 0.0, 128
      %1330 = vxpose.xlu0.b32.cont [5/16] 0.0, 128
      %1331 = vxpose.xlu0.b32.cont [6/16] 0.0, 128
      %1332 = vxpose.xlu0.b32.cont [7/16] 0.0, 128
      %1333 = vxpose.xlu0.b32.cont [8/16] 0.0, 128
      %1334 = vxpose.xlu0.b32.cont [9/16] 0.0, 128
      %1335 = vxpose.xlu0.b32.cont [10/16] 0.0, 128
      %1336 = vxpose.xlu0.b32.cont [11/16] 0.0, 128
      %1337 = vxpose.xlu0.b32.cont [12/16] 0.0, 128
      %1338 = vxpose.xlu0.b32.cont [13/16] 0.0, 128
      %1339 = vxpose.xlu0.b32.cont [14/16] 0.0, 128
      %1340 = vxpose.xlu0.b32.cont [15/16] 0.0, 128
      %1341 = vxpose.xlu0.b32.end [16/16] 0.0, 128
      %v1342 = vpop.trf.xlu0
      %v1343 = vpop.trf.xlu0
      %v1344 = vpop.trf.xlu0
      %v1345 = vpop.trf.xlu0
      %v1346 = vpop.trf.xlu0
      %v1347 = vpop.trf.xlu0
      %v1348 = vpop.trf.xlu0
      %v1349 = vpop.trf.xlu0
      %v1350 = vpop.trf.xlu0
      %v1351 = vpop.trf.xlu0
      %v1352 = vpop.trf.xlu0
      %v1353 = vpop.trf.xlu0
      %v1354 = vpop.trf.xlu0
      %v1355 = vpop.trf.xlu0
      %v1356 = vpop.trf.xlu0
      %v1357 = vpop.trf.xlu0
      %1358 = vxpose.xlu0.b32.start [1/16] %v581, 128
      %1359 = vxpose.xlu0.b32.cont [2/16] 0.0, 128
      %1360 = vxpose.xlu0.b32.cont [3/16] 0.0, 128
      %1361 = vxpose.xlu0.b32.cont [4/16] 0.0, 128
      %1362 = vxpose.xlu0.b32.cont [5/16] 0.0, 128
      %1363 = vxpose.xlu0.b32.cont [6/16] 0.0, 128
      %1364 = vxpose.xlu0.b32.cont [7/16] 0.0, 128
      %1365 = vxpose.xlu0.b32.cont [8/16] 0.0, 128
      %1366 = vxpose.xlu0.b32.cont [9/16] 0.0, 128
      %1367 = vxpose.xlu0.b32.cont [10/16] 0.0, 128
      %1368 = vxpose.xlu0.b32.cont [11/16] 0.0, 128
      %1369 = vxpose.xlu0.b32.cont [12/16] 0.0, 128
      %1370 = vxpose.xlu0.b32.cont [13/16] 0.0, 128
      %1371 = vxpose.xlu0.b32.cont [14/16] 0.0, 128
      %1372 = vxpose.xlu0.b32.cont [15/16] 0.0, 128
      %1373 = vxpose.xlu0.b32.end [16/16] 0.0, 128
      %v1374 = vpop.trf.xlu0
      %v1375 = vpop.trf.xlu0
      %v1376 = vpop.trf.xlu0
      %v1377 = vpop.trf.xlu0
      %v1378 = vpop.trf.xlu0
      %v1379 = vpop.trf.xlu0
      %v1380 = vpop.trf.xlu0
      %v1381 = vpop.trf.xlu0
      %v1382 = vpop.trf.xlu0
      %v1383 = vpop.trf.xlu0
      %v1384 = vpop.trf.xlu0
      %v1385 = vpop.trf.xlu0
      %v1386 = vpop.trf.xlu0
      %v1387 = vpop.trf.xlu0
      %v1388 = vpop.trf.xlu0
      %v1389 = vpop.trf.xlu0
      %1390 = vxpose.xlu0.b32.start [1/16] %v586, 128
      %1391 = vxpose.xlu0.b32.cont [2/16] 0.0, 128
      %1392 = vxpose.xlu0.b32.cont [3/16] 0.0, 128
      %1393 = vxpose.xlu0.b32.cont [4/16] 0.0, 128
      %1394 = vxpose.xlu0.b32.cont [5/16] 0.0, 128
      %1395 = vxpose.xlu0.b32.cont [6/16] 0.0, 128
      %1396 = vxpose.xlu0.b32.cont [7/16] 0.0, 128
      %1397 = vxpose.xlu0.b32.cont [8/16] 0.0, 128
      %1398 = vxpose.xlu0.b32.cont [9/16] 0.0, 128
      %1399 = vxpose.xlu0.b32.cont [10/16] 0.0, 128
      %1400 = vxpose.xlu0.b32.cont [11/16] 0.0, 128
      %1401 = vxpose.xlu0.b32.cont [12/16] 0.0, 128
      %1402 = vxpose.xlu0.b32.cont [13/16] 0.0, 128
      %1403 = vxpose.xlu0.b32.cont [14/16] 0.0, 128
      %1404 = vxpose.xlu0.b32.cont [15/16] 0.0, 128
      %1405 = vxpose.xlu0.b32.end [16/16] 0.0, 128
      %v1406 = vpop.trf.xlu0
      %v1407 = vpop.trf.xlu0
      %v1408 = vpop.trf.xlu0
      %v1409 = vpop.trf.xlu0
      %v1410 = vpop.trf.xlu0
      %v1411 = vpop.trf.xlu0
      %v1412 = vpop.trf.xlu0
      %v1413 = vpop.trf.xlu0
      %v1414 = vpop.trf.xlu0
      %v1415 = vpop.trf.xlu0
      %v1416 = vpop.trf.xlu0
      %v1417 = vpop.trf.xlu0
      %v1418 = vpop.trf.xlu0
      %v1419 = vpop.trf.xlu0
      %v1420 = vpop.trf.xlu0
      %v1421 = vpop.trf.xlu0
      %1422 = vxpose.xlu0.b32.start [1/16] %v591, 128
      %1423 = vxpose.xlu0.b32.cont [2/16] 0.0, 128
      %1424 = vxpose.xlu0.b32.cont [3/16] 0.0, 128
      %1425 = vxpose.xlu0.b32.cont [4/16] 0.0, 128
      %1426 = vxpose.xlu0.b32.cont [5/16] 0.0, 128
      %1427 = vxpose.xlu0.b32.cont [6/16] 0.0, 128
      %1428 = vxpose.xlu0.b32.cont [7/16] 0.0, 128
      %1429 = vxpose.xlu0.b32.cont [8/16] 0.0, 128
      %1430 = vxpose.xlu0.b32.cont [9/16] 0.0, 128
      %1431 = vxpose.xlu0.b32.cont [10/16] 0.0, 128
      %1432 = vxpose.xlu0.b32.cont [11/16] 0.0, 128
      %1433 = vxpose.xlu0.b32.cont [12/16] 0.0, 128
      %1434 = vxpose.xlu0.b32.cont [13/16] 0.0, 128
      %1435 = vxpose.xlu0.b32.cont [14/16] 0.0, 128
      %1436 = vxpose.xlu0.b32.cont [15/16] 0.0, 128
      %1437 = vxpose.xlu0.b32.end [16/16] 0.0, 128
      %v1438 = vpop.trf.xlu0
      %v1439 = vpop.trf.xlu0
      %v1440 = vpop.trf.xlu0
      %v1441 = vpop.trf.xlu0
      %v1442 = vpop.trf.xlu0
      %v1443 = vpop.trf.xlu0
      %v1444 = vpop.trf.xlu0
      %v1445 = vpop.trf.xlu0
      %v1446 = vpop.trf.xlu0
      %v1447 = vpop.trf.xlu0
      %v1448 = vpop.trf.xlu0
      %v1449 = vpop.trf.xlu0
      %v1450 = vpop.trf.xlu0
      %v1451 = vpop.trf.xlu0
      %v1452 = vpop.trf.xlu0
      %v1453 = vpop.trf.xlu0
      %1454 = vxpose.xlu0.b32.start [1/16] %v596, 128
      %1455 = vxpose.xlu0.b32.cont [2/16] 0.0, 128
      %1456 = vxpose.xlu0.b32.cont [3/16] 0.0, 128
      %1457 = vxpose.xlu0.b32.cont [4/16] 0.0, 128
      %1458 = vxpose.xlu0.b32.cont [5/16] 0.0, 128
      %1459 = vxpose.xlu0.b32.cont [6/16] 0.0, 128
      %1460 = vxpose.xlu0.b32.cont [7/16] 0.0, 128
      %1461 = vxpose.xlu0.b32.cont [8/16] 0.0, 128
      %1462 = vxpose.xlu0.b32.cont [9/16] 0.0, 128
      %1463 = vxpose.xlu0.b32.cont [10/16] 0.0, 128
      %1464 = vxpose.xlu0.b32.cont [11/16] 0.0, 128
      %1465 = vxpose.xlu0.b32.cont [12/16] 0.0, 128
      %1466 = vxpose.xlu0.b32.cont [13/16] 0.0, 128
      %1467 = vxpose.xlu0.b32.cont [14/16] 0.0, 128
      %1468 = vxpose.xlu0.b32.cont [15/16] 0.0, 128
      %1469 = vxpose.xlu0.b32.end [16/16] 0.0, 128
      %v1470 = vpop.trf.xlu0
      %v1471 = vpop.trf.xlu0
      %v1472 = vpop.trf.xlu0
      %v1473 = vpop.trf.xlu0
      %v1474 = vpop.trf.xlu0
      %v1475 = vpop.trf.xlu0
      %v1476 = vpop.trf.xlu0
      %v1477 = vpop.trf.xlu0
      %v1478 = vpop.trf.xlu0
      %v1479 = vpop.trf.xlu0
      %v1480 = vpop.trf.xlu0
      %v1481 = vpop.trf.xlu0
      %v1482 = vpop.trf.xlu0
      %v1483 = vpop.trf.xlu0
      %v1484 = vpop.trf.xlu0
      %v1485 = vpop.trf.xlu0
      %1486 = vxpose.xlu0.b32.start [1/16] %v601, 128
      %1487 = vxpose.xlu0.b32.cont [2/16] 0.0, 128
      %1488 = vxpose.xlu0.b32.cont [3/16] 0.0, 128
      %1489 = vxpose.xlu0.b32.cont [4/16] 0.0, 128
      %1490 = vxpose.xlu0.b32.cont [5/16] 0.0, 128
      %1491 = vxpose.xlu0.b32.cont [6/16] 0.0, 128
      %1492 = vxpose.xlu0.b32.cont [7/16] 0.0, 128
      %1493 = vxpose.xlu0.b32.cont [8/16] 0.0, 128
      %1494 = vxpose.xlu0.b32.cont [9/16] 0.0, 128
      %1495 = vxpose.xlu0.b32.cont [10/16] 0.0, 128
      %1496 = vxpose.xlu0.b32.cont [11/16] 0.0, 128
      %1497 = vxpose.xlu0.b32.cont [12/16] 0.0, 128
      %1498 = vxpose.xlu0.b32.cont [13/16] 0.0, 128
      %1499 = vxpose.xlu0.b32.cont [14/16] 0.0, 128
      %1500 = vxpose.xlu0.b32.cont [15/16] 0.0, 128
      %1501 = vxpose.xlu0.b32.end [16/16] 0.0, 128
      %v1502 = vpop.trf.xlu0
      %v1503 = vpop.trf.xlu0
      %v1504 = vpop.trf.xlu0
      %v1505 = vpop.trf.xlu0
      %v1506 = vpop.trf.xlu0
      %v1507 = vpop.trf.xlu0
      %v1508 = vpop.trf.xlu0
      %v1509 = vpop.trf.xlu0
      %v1510 = vpop.trf.xlu0
      %v1511 = vpop.trf.xlu0
      %v1512 = vpop.trf.xlu0
      %v1513 = vpop.trf.xlu0
      %v1514 = vpop.trf.xlu0
      %v1515 = vpop.trf.xlu0
      %v1516 = vpop.trf.xlu0
      %v1517 = vpop.trf.xlu0
      %1518 = vxpose.xlu0.b32.start [1/16] %v606, 128
      %1519 = vxpose.xlu0.b32.cont [2/16] 0.0, 128
      %1520 = vxpose.xlu0.b32.cont [3/16] 0.0, 128
      %1521 = vxpose.xlu0.b32.cont [4/16] 0.0, 128
      %1522 = vxpose.xlu0.b32.cont [5/16] 0.0, 128
      %1523 = vxpose.xlu0.b32.cont [6/16] 0.0, 128
      %1524 = vxpose.xlu0.b32.cont [7/16] 0.0, 128
      %1525 = vxpose.xlu0.b32.cont [8/16] 0.0, 128
      %1526 = vxpose.xlu0.b32.cont [9/16] 0.0, 128
      %1527 = vxpose.xlu0.b32.cont [10/16] 0.0, 128
      %1528 = vxpose.xlu0.b32.cont [11/16] 0.0, 128
      %1529 = vxpose.xlu0.b32.cont [12/16] 0.0, 128
      %1530 = vxpose.xlu0.b32.cont [13/16] 0.0, 128
      %1531 = vxpose.xlu0.b32.cont [14/16] 0.0, 128
      %1532 = vxpose.xlu0.b32.cont [15/16] 0.0, 128
      %1533 = vxpose.xlu0.b32.end [16/16] 0.0, 128
      %v1534 = vpop.trf.xlu0
      %v1535 = vpop.trf.xlu0
      %v1536 = vpop.trf.xlu0
      %v1537 = vpop.trf.xlu0
      %v1538 = vpop.trf.xlu0
      %v1539 = vpop.trf.xlu0
      %v1540 = vpop.trf.xlu0
      %v1541 = vpop.trf.xlu0
      %v1542 = vpop.trf.xlu0
      %v1543 = vpop.trf.xlu0
      %v1544 = vpop.trf.xlu0
      %v1545 = vpop.trf.xlu0
      %v1546 = vpop.trf.xlu0
      %v1547 = vpop.trf.xlu0
      %v1548 = vpop.trf.xlu0
      %v1549 = vpop.trf.xlu0
      %1550 = vxpose.xlu0.b32.start [1/16] %v611, 128
      %1551 = vxpose.xlu0.b32.cont [2/16] 0.0, 128
      %1552 = vxpose.xlu0.b32.cont [3/16] 0.0, 128
      %1553 = vxpose.xlu0.b32.cont [4/16] 0.0, 128
      %1554 = vxpose.xlu0.b32.cont [5/16] 0.0, 128
      %1555 = vxpose.xlu0.b32.cont [6/16] 0.0, 128
      %1556 = vxpose.xlu0.b32.cont [7/16] 0.0, 128
      %1557 = vxpose.xlu0.b32.cont [8/16] 0.0, 128
      %1558 = vxpose.xlu0.b32.cont [9/16] 0.0, 128
      %1559 = vxpose.xlu0.b32.cont [10/16] 0.0, 128
      %1560 = vxpose.xlu0.b32.cont [11/16] 0.0, 128
      %1561 = vxpose.xlu0.b32.cont [12/16] 0.0, 128
      %1562 = vxpose.xlu0.b32.cont [13/16] 0.0, 128
      %1563 = vxpose.xlu0.b32.cont [14/16] 0.0, 128
      %1564 = vxpose.xlu0.b32.cont [15/16] 0.0, 128
      %1565 = vxpose.xlu0.b32.end [16/16] 0.0, 128
      %v1566 = vpop.trf.xlu0
      %v1567 = vpop.trf.xlu0
      %v1568 = vpop.trf.xlu0
      %v1569 = vpop.trf.xlu0
      %v1570 = vpop.trf.xlu0
      %v1571 = vpop.trf.xlu0
      %v1572 = vpop.trf.xlu0
      %v1573 = vpop.trf.xlu0
      %v1574 = vpop.trf.xlu0
      %v1575 = vpop.trf.xlu0
      %v1576 = vpop.trf.xlu0
      %v1577 = vpop.trf.xlu0
      %v1578 = vpop.trf.xlu0
      %v1579 = vpop.trf.xlu0
      %v1580 = vpop.trf.xlu0
      %v1581 = vpop.trf.xlu0
      %1582 = vxpose.xlu0.b32.start [1/16] %v616, 128
      %1583 = vxpose.xlu0.b32.cont [2/16] 0.0, 128
      %1584 = vxpose.xlu0.b32.cont [3/16] 0.0, 128
      %1585 = vxpose.xlu0.b32.cont [4/16] 0.0, 128
      %1586 = vxpose.xlu0.b32.cont [5/16] 0.0, 128
      %1587 = vxpose.xlu0.b32.cont [6/16] 0.0, 128
      %1588 = vxpose.xlu0.b32.cont [7/16] 0.0, 128
      %1589 = vxpose.xlu0.b32.cont [8/16] 0.0, 128
      %1590 = vxpose.xlu0.b32.cont [9/16] 0.0, 128
      %1591 = vxpose.xlu0.b32.cont [10/16] 0.0, 128
      %1592 = vxpose.xlu0.b32.cont [11/16] 0.0, 128
      %1593 = vxpose.xlu0.b32.cont [12/16] 0.0, 128
      %1594 = vxpose.xlu0.b32.cont [13/16] 0.0, 128
      %1595 = vxpose.xlu0.b32.cont [14/16] 0.0, 128
      %1596 = vxpose.xlu0.b32.cont [15/16] 0.0, 128
      %1597 = vxpose.xlu0.b32.end [16/16] 0.0, 128
      %v1598 = vpop.trf.xlu0
      %v1599 = vpop.trf.xlu0
      %v1600 = vpop.trf.xlu0
      %v1601 = vpop.trf.xlu0
      %v1602 = vpop.trf.xlu0
      %v1603 = vpop.trf.xlu0
      %v1604 = vpop.trf.xlu0
      %v1605 = vpop.trf.xlu0
      %v1606 = vpop.trf.xlu0
      %v1607 = vpop.trf.xlu0
      %v1608 = vpop.trf.xlu0
      %v1609 = vpop.trf.xlu0
      %v1610 = vpop.trf.xlu0
      %v1611 = vpop.trf.xlu0
      %v1612 = vpop.trf.xlu0
      %v1613 = vpop.trf.xlu0
      %1614 = vxpose.xlu0.b32.start [1/16] %v621, 128
      %1615 = vxpose.xlu0.b32.cont [2/16] 0.0, 128
      %1616 = vxpose.xlu0.b32.cont [3/16] 0.0, 128
      %1617 = vxpose.xlu0.b32.cont [4/16] 0.0, 128
      %1618 = vxpose.xlu0.b32.cont [5/16] 0.0, 128
      %1619 = vxpose.xlu0.b32.cont [6/16] 0.0, 128
      %1620 = vxpose.xlu0.b32.cont [7/16] 0.0, 128
      %1621 = vxpose.xlu0.b32.cont [8/16] 0.0, 128
      %1622 = vxpose.xlu0.b32.cont [9/16] 0.0, 128
      %1623 = vxpose.xlu0.b32.cont [10/16] 0.0, 128
      %1624 = vxpose.xlu0.b32.cont [11/16] 0.0, 128
      %1625 = vxpose.xlu0.b32.cont [12/16] 0.0, 128
      %1626 = vxpose.xlu0.b32.cont [13/16] 0.0, 128
      %1627 = vxpose.xlu0.b32.cont [14/16] 0.0, 128
      %1628 = vxpose.xlu0.b32.cont [15/16] 0.0, 128
      %1629 = vxpose.xlu0.b32.end [16/16] 0.0, 128
      %v1630 = vpop.trf.xlu0
      %v1631 = vpop.trf.xlu0
      %v1632 = vpop.trf.xlu0
      %v1633 = vpop.trf.xlu0
      %v1634 = vpop.trf.xlu0
      %v1635 = vpop.trf.xlu0
      %v1636 = vpop.trf.xlu0
      %v1637 = vpop.trf.xlu0
      %v1638 = vpop.trf.xlu0
      %v1639 = vpop.trf.xlu0
      %v1640 = vpop.trf.xlu0
      %v1641 = vpop.trf.xlu0
      %v1642 = vpop.trf.xlu0
      %v1643 = vpop.trf.xlu0
      %v1644 = vpop.trf.xlu0
      %v1645 = vpop.trf.xlu0
      %1646 = vxpose.xlu0.b32.start [1/16] %v626, 128
      %1647 = vxpose.xlu0.b32.cont [2/16] 0.0, 128
      %1648 = vxpose.xlu0.b32.cont [3/16] 0.0, 128
      %1649 = vxpose.xlu0.b32.cont [4/16] 0.0, 128
      %1650 = vxpose.xlu0.b32.cont [5/16] 0.0, 128
      %1651 = vxpose.xlu0.b32.cont [6/16] 0.0, 128
      %1652 = vxpose.xlu0.b32.cont [7/16] 0.0, 128
      %1653 = vxpose.xlu0.b32.cont [8/16] 0.0, 128
      %1654 = vxpose.xlu0.b32.cont [9/16] 0.0, 128
      %1655 = vxpose.xlu0.b32.cont [10/16] 0.0, 128
      %1656 = vxpose.xlu0.b32.cont [11/16] 0.0, 128
      %1657 = vxpose.xlu0.b32.cont [12/16] 0.0, 128
      %1658 = vxpose.xlu0.b32.cont [13/16] 0.0, 128
      %1659 = vxpose.xlu0.b32.cont [14/16] 0.0, 128
      %1660 = vxpose.xlu0.b32.cont [15/16] 0.0, 128
      %1661 = vxpose.xlu0.b32.end [16/16] 0.0, 128
      %v1662 = vpop.trf.xlu0
      %v1663 = vpop.trf.xlu0
      %v1664 = vpop.trf.xlu0
      %v1665 = vpop.trf.xlu0
      %v1666 = vpop.trf.xlu0
      %v1667 = vpop.trf.xlu0
      %v1668 = vpop.trf.xlu0
      %v1669 = vpop.trf.xlu0
      %v1670 = vpop.trf.xlu0
      %v1671 = vpop.trf.xlu0
      %v1672 = vpop.trf.xlu0
      %v1673 = vpop.trf.xlu0
      %v1674 = vpop.trf.xlu0
      %v1675 = vpop.trf.xlu0
      %v1676 = vpop.trf.xlu0
      %v1677 = vpop.trf.xlu0
      %1678 = vxpose.xlu0.b32.start [1/16] %v631, 128
      %1679 = vxpose.xlu0.b32.cont [2/16] 0.0, 128
      %1680 = vxpose.xlu0.b32.cont [3/16] 0.0, 128
      %1681 = vxpose.xlu0.b32.cont [4/16] 0.0, 128
      %1682 = vxpose.xlu0.b32.cont [5/16] 0.0, 128
      %1683 = vxpose.xlu0.b32.cont [6/16] 0.0, 128
      %1684 = vxpose.xlu0.b32.cont [7/16] 0.0, 128
      %1685 = vxpose.xlu0.b32.cont [8/16] 0.0, 128
      %1686 = vxpose.xlu0.b32.cont [9/16] 0.0, 128
      %1687 = vxpose.xlu0.b32.cont [10/16] 0.0, 128
      %1688 = vxpose.xlu0.b32.cont [11/16] 0.0, 128
      %1689 = vxpose.xlu0.b32.cont [12/16] 0.0, 128
      %1690 = vxpose.xlu0.b32.cont [13/16] 0.0, 128
      %1691 = vxpose.xlu0.b32.cont [14/16] 0.0, 128
      %1692 = vxpose.xlu0.b32.cont [15/16] 0.0, 128
      %1693 = vxpose.xlu0.b32.end [16/16] 0.0, 128
      %v1694 = vpop.trf.xlu0
      %v1695 = vpop.trf.xlu0
      %v1696 = vpop.trf.xlu0
      %v1697 = vpop.trf.xlu0
      %v1698 = vpop.trf.xlu0
      %v1699 = vpop.trf.xlu0
      %v1700 = vpop.trf.xlu0
      %v1701 = vpop.trf.xlu0
      %v1702 = vpop.trf.xlu0
      %v1703 = vpop.trf.xlu0
      %v1704 = vpop.trf.xlu0
      %v1705 = vpop.trf.xlu0
      %v1706 = vpop.trf.xlu0
      %v1707 = vpop.trf.xlu0
      %v1708 = vpop.trf.xlu0
      %v1709 = vpop.trf.xlu0
      %1710 = vxpose.xlu0.b32.start [1/16] %v636, 128
      %1711 = vxpose.xlu0.b32.cont [2/16] 0.0, 128
      %1712 = vxpose.xlu0.b32.cont [3/16] 0.0, 128
      %1713 = vxpose.xlu0.b32.cont [4/16] 0.0, 128
      %1714 = vxpose.xlu0.b32.cont [5/16] 0.0, 128
      %1715 = vxpose.xlu0.b32.cont [6/16] 0.0, 128
      %1716 = vxpose.xlu0.b32.cont [7/16] 0.0, 128
      %1717 = vxpose.xlu0.b32.cont [8/16] 0.0, 128
      %1718 = vxpose.xlu0.b32.cont [9/16] 0.0, 128
      %1719 = vxpose.xlu0.b32.cont [10/16] 0.0, 128
      %1720 = vxpose.xlu0.b32.cont [11/16] 0.0, 128
      %1721 = vxpose.xlu0.b32.cont [12/16] 0.0, 128
      %1722 = vxpose.xlu0.b32.cont [13/16] 0.0, 128
      %1723 = vxpose.xlu0.b32.cont [14/16] 0.0, 128
      %1724 = vxpose.xlu0.b32.cont [15/16] 0.0, 128
      %1725 = vxpose.xlu0.b32.end [16/16] 0.0, 128
      %v1726 = vpop.trf.xlu0
      %v1727 = vpop.trf.xlu0
      %v1728 = vpop.trf.xlu0
      %v1729 = vpop.trf.xlu0
      %v1730 = vpop.trf.xlu0
      %v1731 = vpop.trf.xlu0
      %v1732 = vpop.trf.xlu0
      %v1733 = vpop.trf.xlu0
      %v1734 = vpop.trf.xlu0
      %v1735 = vpop.trf.xlu0
      %v1736 = vpop.trf.xlu0
      %v1737 = vpop.trf.xlu0
      %v1738 = vpop.trf.xlu0
      %v1739 = vpop.trf.xlu0
      %v1740 = vpop.trf.xlu0
      %v1741 = vpop.trf.xlu0
      %1742 = vxpose.xlu0.b32.start [1/16] %v641, 128
      %1743 = vxpose.xlu0.b32.cont [2/16] 0.0, 128
      %1744 = vxpose.xlu0.b32.cont [3/16] 0.0, 128
      %1745 = vxpose.xlu0.b32.cont [4/16] 0.0, 128
      %1746 = vxpose.xlu0.b32.cont [5/16] 0.0, 128
      %1747 = vxpose.xlu0.b32.cont [6/16] 0.0, 128
      %1748 = vxpose.xlu0.b32.cont [7/16] 0.0, 128
      %1749 = vxpose.xlu0.b32.cont [8/16] 0.0, 128
      %1750 = vxpose.xlu0.b32.cont [9/16] 0.0, 128
      %1751 = vxpose.xlu0.b32.cont [10/16] 0.0, 128
      %1752 = vxpose.xlu0.b32.cont [11/16] 0.0, 128
      %1753 = vxpose.xlu0.b32.cont [12/16] 0.0, 128
      %1754 = vxpose.xlu0.b32.cont [13/16] 0.0, 128
      %1755 = vxpose.xlu0.b32.cont [14/16] 0.0, 128
      %1756 = vxpose.xlu0.b32.cont [15/16] 0.0, 128
      %1757 = vxpose.xlu0.b32.end [16/16] 0.0, 128
      %v1758 = vpop.trf.xlu0
      %v1759 = vpop.trf.xlu0
      %v1760 = vpop.trf.xlu0
      %v1761 = vpop.trf.xlu0
      %v1762 = vpop.trf.xlu0
      %v1763 = vpop.trf.xlu0
      %v1764 = vpop.trf.xlu0
      %v1765 = vpop.trf.xlu0
      %v1766 = vpop.trf.xlu0
      %v1767 = vpop.trf.xlu0
      %v1768 = vpop.trf.xlu0
      %v1769 = vpop.trf.xlu0
      %v1770 = vpop.trf.xlu0
      %v1771 = vpop.trf.xlu0
      %v1772 = vpop.trf.xlu0
      %v1773 = vpop.trf.xlu0
      %1774 = vxpose.xlu0.b32.start [1/16] %v646, 128
      %1775 = vxpose.xlu0.b32.cont [2/16] 0.0, 128
      %1776 = vxpose.xlu0.b32.cont [3/16] 0.0, 128
      %1777 = vxpose.xlu0.b32.cont [4/16] 0.0, 128
      %1778 = vxpose.xlu0.b32.cont [5/16] 0.0, 128
      %1779 = vxpose.xlu0.b32.cont [6/16] 0.0, 128
      %1780 = vxpose.xlu0.b32.cont [7/16] 0.0, 128
      %1781 = vxpose.xlu0.b32.cont [8/16] 0.0, 128
      %1782 = vxpose.xlu0.b32.cont [9/16] 0.0, 128
      %1783 = vxpose.xlu0.b32.cont [10/16] 0.0, 128
      %1784 = vxpose.xlu0.b32.cont [11/16] 0.0, 128
      %1785 = vxpose.xlu0.b32.cont [12/16] 0.0, 128
      %1786 = vxpose.xlu0.b32.cont [13/16] 0.0, 128
      %1787 = vxpose.xlu0.b32.cont [14/16] 0.0, 128
      %1788 = vxpose.xlu0.b32.cont [15/16] 0.0, 128
      %1789 = vxpose.xlu0.b32.end [16/16] 0.0, 128
      %v1790 = vpop.trf.xlu0
      %v1791 = vpop.trf.xlu0
      %v1792 = vpop.trf.xlu0
      %v1793 = vpop.trf.xlu0
      %v1794 = vpop.trf.xlu0
      %v1795 = vpop.trf.xlu0
      %v1796 = vpop.trf.xlu0
      %v1797 = vpop.trf.xlu0
      %v1798 = vpop.trf.xlu0
      %v1799 = vpop.trf.xlu0
      %v1800 = vpop.trf.xlu0
      %v1801 = vpop.trf.xlu0
      %v1802 = vpop.trf.xlu0
      %v1803 = vpop.trf.xlu0
      %v1804 = vpop.trf.xlu0
      %v1805 = vpop.trf.xlu0
      %1806 = vxpose.xlu0.b32.start [1/16] %v651, 128
      %1807 = vxpose.xlu0.b32.cont [2/16] 0.0, 128
      %1808 = vxpose.xlu0.b32.cont [3/16] 0.0, 128
      %1809 = vxpose.xlu0.b32.cont [4/16] 0.0, 128
      %1810 = vxpose.xlu0.b32.cont [5/16] 0.0, 128
      %1811 = vxpose.xlu0.b32.cont [6/16] 0.0, 128
      %1812 = vxpose.xlu0.b32.cont [7/16] 0.0, 128
      %1813 = vxpose.xlu0.b32.cont [8/16] 0.0, 128
      %1814 = vxpose.xlu0.b32.cont [9/16] 0.0, 128
      %1815 = vxpose.xlu0.b32.cont [10/16] 0.0, 128
      %1816 = vxpose.xlu0.b32.cont [11/16] 0.0, 128
      %1817 = vxpose.xlu0.b32.cont [12/16] 0.0, 128
      %1818 = vxpose.xlu0.b32.cont [13/16] 0.0, 128
      %1819 = vxpose.xlu0.b32.cont [14/16] 0.0, 128
      %1820 = vxpose.xlu0.b32.cont [15/16] 0.0, 128
      %1821 = vxpose.xlu0.b32.end [16/16] 0.0, 128
      %v1822 = vpop.trf.xlu0
      %v1823 = vpop.trf.xlu0
      %v1824 = vpop.trf.xlu0
      %v1825 = vpop.trf.xlu0
      %v1826 = vpop.trf.xlu0
      %v1827 = vpop.trf.xlu0
      %v1828 = vpop.trf.xlu0
      %v1829 = vpop.trf.xlu0
      %v1830 = vpop.trf.xlu0
      %v1831 = vpop.trf.xlu0
      %v1832 = vpop.trf.xlu0
      %v1833 = vpop.trf.xlu0
      %v1834 = vpop.trf.xlu0
      %v1835 = vpop.trf.xlu0
      %v1836 = vpop.trf.xlu0
      %v1837 = vpop.trf.xlu0
      %1838 = vxpose.xlu0.b32.start [1/16] %v656, 128
      %1839 = vxpose.xlu0.b32.cont [2/16] 0.0, 128
      %1840 = vxpose.xlu0.b32.cont [3/16] 0.0, 128
      %1841 = vxpose.xlu0.b32.cont [4/16] 0.0, 128
      %1842 = vxpose.xlu0.b32.cont [5/16] 0.0, 128
      %1843 = vxpose.xlu0.b32.cont [6/16] 0.0, 128
      %1844 = vxpose.xlu0.b32.cont [7/16] 0.0, 128
      %1845 = vxpose.xlu0.b32.cont [8/16] 0.0, 128
      %1846 = vxpose.xlu0.b32.cont [9/16] 0.0, 128
      %1847 = vxpose.xlu0.b32.cont [10/16] 0.0, 128
      %1848 = vxpose.xlu0.b32.cont [11/16] 0.0, 128
      %1849 = vxpose.xlu0.b32.cont [12/16] 0.0, 128
      %1850 = vxpose.xlu0.b32.cont [13/16] 0.0, 128
      %1851 = vxpose.xlu0.b32.cont [14/16] 0.0, 128
      %1852 = vxpose.xlu0.b32.cont [15/16] 0.0, 128
      %1853 = vxpose.xlu0.b32.end [16/16] 0.0, 128
      %v1854 = vpop.trf.xlu0
      %v1855 = vpop.trf.xlu0
      %v1856 = vpop.trf.xlu0
      %v1857 = vpop.trf.xlu0
      %v1858 = vpop.trf.xlu0
      %v1859 = vpop.trf.xlu0
      %v1860 = vpop.trf.xlu0
      %v1861 = vpop.trf.xlu0
      %v1862 = vpop.trf.xlu0
      %v1863 = vpop.trf.xlu0
      %v1864 = vpop.trf.xlu0
      %v1865 = vpop.trf.xlu0
      %v1866 = vpop.trf.xlu0
      %v1867 = vpop.trf.xlu0
      %v1868 = vpop.trf.xlu0
      %v1869 = vpop.trf.xlu0
      %1870 = vxpose.xlu0.b32.start [1/16] %v661, 128
      %1871 = vxpose.xlu0.b32.cont [2/16] 0.0, 128
      %1872 = vxpose.xlu0.b32.cont [3/16] 0.0, 128
      %1873 = vxpose.xlu0.b32.cont [4/16] 0.0, 128
      %1874 = vxpose.xlu0.b32.cont [5/16] 0.0, 128
      %1875 = vxpose.xlu0.b32.cont [6/16] 0.0, 128
      %1876 = vxpose.xlu0.b32.cont [7/16] 0.0, 128
      %1877 = vxpose.xlu0.b32.cont [8/16] 0.0, 128
      %1878 = vxpose.xlu0.b32.cont [9/16] 0.0, 128
      %1879 = vxpose.xlu0.b32.cont [10/16] 0.0, 128
      %1880 = vxpose.xlu0.b32.cont [11/16] 0.0, 128
      %1881 = vxpose.xlu0.b32.cont [12/16] 0.0, 128
      %1882 = vxpose.xlu0.b32.cont [13/16] 0.0, 128
      %1883 = vxpose.xlu0.b32.cont [14/16] 0.0, 128
      %1884 = vxpose.xlu0.b32.cont [15/16] 0.0, 128
      %1885 = vxpose.xlu0.b32.end [16/16] 0.0, 128
      %v1886 = vpop.trf.xlu0
      %v1887 = vpop.trf.xlu0
      %v1888 = vpop.trf.xlu0
      %v1889 = vpop.trf.xlu0
      %v1890 = vpop.trf.xlu0
      %v1891 = vpop.trf.xlu0
      %v1892 = vpop.trf.xlu0
      %v1893 = vpop.trf.xlu0
      %v1894 = vpop.trf.xlu0
      %v1895 = vpop.trf.xlu0
      %v1896 = vpop.trf.xlu0
      %v1897 = vpop.trf.xlu0
      %v1898 = vpop.trf.xlu0
      %v1899 = vpop.trf.xlu0
      %v1900 = vpop.trf.xlu0
      %v1901 = vpop.trf.xlu0
      %1902 = vxpose.xlu0.b32.start [1/16] %v666, 128
      %1903 = vxpose.xlu0.b32.cont [2/16] 0.0, 128
      %1904 = vxpose.xlu0.b32.cont [3/16] 0.0, 128
      %1905 = vxpose.xlu0.b32.cont [4/16] 0.0, 128
      %1906 = vxpose.xlu0.b32.cont [5/16] 0.0, 128
      %1907 = vxpose.xlu0.b32.cont [6/16] 0.0, 128
      %1908 = vxpose.xlu0.b32.cont [7/16] 0.0, 128
      %1909 = vxpose.xlu0.b32.cont [8/16] 0.0, 128
      %1910 = vxpose.xlu0.b32.cont [9/16] 0.0, 128
      %1911 = vxpose.xlu0.b32.cont [10/16] 0.0, 128
      %1912 = vxpose.xlu0.b32.cont [11/16] 0.0, 128
      %1913 = vxpose.xlu0.b32.cont [12/16] 0.0, 128
      %1914 = vxpose.xlu0.b32.cont [13/16] 0.0, 128
      %1915 = vxpose.xlu0.b32.cont [14/16] 0.0, 128
      %1916 = vxpose.xlu0.b32.cont [15/16] 0.0, 128
      %1917 = vxpose.xlu0.b32.end [16/16] 0.0, 128
      %v1918 = vpop.trf.xlu0
      %v1919 = vpop.trf.xlu0
      %v1920 = vpop.trf.xlu0
      %v1921 = vpop.trf.xlu0
      %v1922 = vpop.trf.xlu0
      %v1923 = vpop.trf.xlu0
      %v1924 = vpop.trf.xlu0
      %v1925 = vpop.trf.xlu0
      %v1926 = vpop.trf.xlu0
      %v1927 = vpop.trf.xlu0
      %v1928 = vpop.trf.xlu0
      %v1929 = vpop.trf.xlu0
      %v1930 = vpop.trf.xlu0
      %v1931 = vpop.trf.xlu0
      %v1932 = vpop.trf.xlu0
      %v1933 = vpop.trf.xlu0
      %1934 = vxpose.xlu0.b32.start [1/16] %v671, 128
      %1935 = vxpose.xlu0.b32.cont [2/16] 0.0, 128
      %1936 = vxpose.xlu0.b32.cont [3/16] 0.0, 128
      %1937 = vxpose.xlu0.b32.cont [4/16] 0.0, 128
      %1938 = vxpose.xlu0.b32.cont [5/16] 0.0, 128
      %1939 = vxpose.xlu0.b32.cont [6/16] 0.0, 128
      %1940 = vxpose.xlu0.b32.cont [7/16] 0.0, 128
      %1941 = vxpose.xlu0.b32.cont [8/16] 0.0, 128
      %1942 = vxpose.xlu0.b32.cont [9/16] 0.0, 128
      %1943 = vxpose.xlu0.b32.cont [10/16] 0.0, 128
      %1944 = vxpose.xlu0.b32.cont [11/16] 0.0, 128
      %1945 = vxpose.xlu0.b32.cont [12/16] 0.0, 128
      %1946 = vxpose.xlu0.b32.cont [13/16] 0.0, 128
      %1947 = vxpose.xlu0.b32.cont [14/16] 0.0, 128
      %1948 = vxpose.xlu0.b32.cont [15/16] 0.0, 128
      %1949 = vxpose.xlu0.b32.end [16/16] 0.0, 128
      %v1950 = vpop.trf.xlu0
      %v1951 = vpop.trf.xlu0
      %v1952 = vpop.trf.xlu0
      %v1953 = vpop.trf.xlu0
      %v1954 = vpop.trf.xlu0
      %v1955 = vpop.trf.xlu0
      %v1956 = vpop.trf.xlu0
      %v1957 = vpop.trf.xlu0
      %v1958 = vpop.trf.xlu0
      %v1959 = vpop.trf.xlu0
      %v1960 = vpop.trf.xlu0
      %v1961 = vpop.trf.xlu0
      %v1962 = vpop.trf.xlu0
      %v1963 = vpop.trf.xlu0
      %v1964 = vpop.trf.xlu0
      %v1965 = vpop.trf.xlu0
      %1966 = vxpose.xlu0.b32.start [1/16] %v676, 128
      %1967 = vxpose.xlu0.b32.cont [2/16] 0.0, 128
      %1968 = vxpose.xlu0.b32.cont [3/16] 0.0, 128
      %1969 = vxpose.xlu0.b32.cont [4/16] 0.0, 128
      %1970 = vxpose.xlu0.b32.cont [5/16] 0.0, 128
      %1971 = vxpose.xlu0.b32.cont [6/16] 0.0, 128
      %1972 = vxpose.xlu0.b32.cont [7/16] 0.0, 128
      %1973 = vxpose.xlu0.b32.cont [8/16] 0.0, 128
      %1974 = vxpose.xlu0.b32.cont [9/16] 0.0, 128
      %1975 = vxpose.xlu0.b32.cont [10/16] 0.0, 128
      %1976 = vxpose.xlu0.b32.cont [11/16] 0.0, 128
      %1977 = vxpose.xlu0.b32.cont [12/16] 0.0, 128
      %1978 = vxpose.xlu0.b32.cont [13/16] 0.0, 128
      %1979 = vxpose.xlu0.b32.cont [14/16] 0.0, 128
      %1980 = vxpose.xlu0.b32.cont [15/16] 0.0, 128
      %1981 = vxpose.xlu0.b32.end [16/16] 0.0, 128
      %v1982 = vpop.trf.xlu0
      %v1983 = vpop.trf.xlu0
      %v1984 = vpop.trf.xlu0
      %v1985 = vpop.trf.xlu0
      %v1986 = vpop.trf.xlu0
      %v1987 = vpop.trf.xlu0
      %v1988 = vpop.trf.xlu0
      %v1989 = vpop.trf.xlu0
      %v1990 = vpop.trf.xlu0
      %v1991 = vpop.trf.xlu0
      %v1992 = vpop.trf.xlu0
      %v1993 = vpop.trf.xlu0
      %v1994 = vpop.trf.xlu0
      %v1995 = vpop.trf.xlu0
      %v1996 = vpop.trf.xlu0
      %v1997 = vpop.trf.xlu0
      %1998 = vxpose.xlu0.b32.start [1/16] %v681, 128
      %1999 = vxpose.xlu0.b32.cont [2/16] 0.0, 128
      %2000 = vxpose.xlu0.b32.cont [3/16] 0.0, 128
      %2001 = vxpose.xlu0.b32.cont [4/16] 0.0, 128
      %2002 = vxpose.xlu0.b32.cont [5/16] 0.0, 128
      %2003 = vxpose.xlu0.b32.cont [6/16] 0.0, 128
      %2004 = vxpose.xlu0.b32.cont [7/16] 0.0, 128
      %2005 = vxpose.xlu0.b32.cont [8/16] 0.0, 128
      %2006 = vxpose.xlu0.b32.cont [9/16] 0.0, 128
      %2007 = vxpose.xlu0.b32.cont [10/16] 0.0, 128
      %2008 = vxpose.xlu0.b32.cont [11/16] 0.0, 128
      %2009 = vxpose.xlu0.b32.cont [12/16] 0.0, 128
      %2010 = vxpose.xlu0.b32.cont [13/16] 0.0, 128
      %2011 = vxpose.xlu0.b32.cont [14/16] 0.0, 128
      %2012 = vxpose.xlu0.b32.cont [15/16] 0.0, 128
      %2013 = vxpose.xlu0.b32.end [16/16] 0.0, 128
      %v2014 = vpop.trf.xlu0
      %v2015 = vpop.trf.xlu0
      %v2016 = vpop.trf.xlu0
      %v2017 = vpop.trf.xlu0
      %v2018 = vpop.trf.xlu0
      %v2019 = vpop.trf.xlu0
      %v2020 = vpop.trf.xlu0
      %v2021 = vpop.trf.xlu0
      %v2022 = vpop.trf.xlu0
      %v2023 = vpop.trf.xlu0
      %v2024 = vpop.trf.xlu0
      %v2025 = vpop.trf.xlu0
      %v2026 = vpop.trf.xlu0
      %v2027 = vpop.trf.xlu0
      %v2028 = vpop.trf.xlu0
      %v2029 = vpop.trf.xlu0
      %2030 = vxpose.xlu0.b32.start [1/16] %v686, 128
      %2031 = vxpose.xlu0.b32.cont [2/16] 0.0, 128
      %2032 = vxpose.xlu0.b32.cont [3/16] 0.0, 128
      %2033 = vxpose.xlu0.b32.cont [4/16] 0.0, 128
      %2034 = vxpose.xlu0.b32.cont [5/16] 0.0, 128
      %2035 = vxpose.xlu0.b32.cont [6/16] 0.0, 128
      %2036 = vxpose.xlu0.b32.cont [7/16] 0.0, 128
      %2037 = vxpose.xlu0.b32.cont [8/16] 0.0, 128
      %2038 = vxpose.xlu0.b32.cont [9/16] 0.0, 128
      %2039 = vxpose.xlu0.b32.cont [10/16] 0.0, 128
      %2040 = vxpose.xlu0.b32.cont [11/16] 0.0, 128
      %2041 = vxpose.xlu0.b32.cont [12/16] 0.0, 128
      %2042 = vxpose.xlu0.b32.cont [13/16] 0.0, 128
      %2043 = vxpose.xlu0.b32.cont [14/16] 0.0, 128
      %2044 = vxpose.xlu0.b32.cont [15/16] 0.0, 128
      %2045 = vxpose.xlu0.b32.end [16/16] 0.0, 128
      %v2046 = vpop.trf.xlu0
      %v2047 = vpop.trf.xlu0
      %v2048 = vpop.trf.xlu0
      %v2049 = vpop.trf.xlu0
      %v2050 = vpop.trf.xlu0
      %v2051 = vpop.trf.xlu0
      %v2052 = vpop.trf.xlu0
      %v2053 = vpop.trf.xlu0
      %v2054 = vpop.trf.xlu0
      %v2055 = vpop.trf.xlu0
      %v2056 = vpop.trf.xlu0
      %v2057 = vpop.trf.xlu0
      %v2058 = vpop.trf.xlu0
      %v2059 = vpop.trf.xlu0
      %v2060 = vpop.trf.xlu0
      %v2061 = vpop.trf.xlu0
      %2062 = vxpose.xlu0.b32.start [1/16] %v691, 128
      %2063 = vxpose.xlu0.b32.cont [2/16] 0.0, 128
      %2064 = vxpose.xlu0.b32.cont [3/16] 0.0, 128
      %2065 = vxpose.xlu0.b32.cont [4/16] 0.0, 128
      %2066 = vxpose.xlu0.b32.cont [5/16] 0.0, 128
      %2067 = vxpose.xlu0.b32.cont [6/16] 0.0, 128
      %2068 = vxpose.xlu0.b32.cont [7/16] 0.0, 128
      %2069 = vxpose.xlu0.b32.cont [8/16] 0.0, 128
      %2070 = vxpose.xlu0.b32.cont [9/16] 0.0, 128
      %2071 = vxpose.xlu0.b32.cont [10/16] 0.0, 128
      %2072 = vxpose.xlu0.b32.cont [11/16] 0.0, 128
      %2073 = vxpose.xlu0.b32.cont [12/16] 0.0, 128
      %2074 = vxpose.xlu0.b32.cont [13/16] 0.0, 128
      %2075 = vxpose.xlu0.b32.cont [14/16] 0.0, 128
      %2076 = vxpose.xlu0.b32.cont [15/16] 0.0, 128
      %2077 = vxpose.xlu0.b32.end [16/16] 0.0, 128
      %v2078 = vpop.trf.xlu0
      %v2079 = vpop.trf.xlu0
      %v2080 = vpop.trf.xlu0
      %v2081 = vpop.trf.xlu0
      %v2082 = vpop.trf.xlu0
      %v2083 = vpop.trf.xlu0
      %v2084 = vpop.trf.xlu0
      %v2085 = vpop.trf.xlu0
      %v2086 = vpop.trf.xlu0
      %v2087 = vpop.trf.xlu0
      %v2088 = vpop.trf.xlu0
      %v2089 = vpop.trf.xlu0
      %v2090 = vpop.trf.xlu0
      %v2091 = vpop.trf.xlu0
      %v2092 = vpop.trf.xlu0
      %v2093 = vpop.trf.xlu0
      %2094 = vxpose.xlu0.b32.start [1/16] %v696, 128
      %2095 = vxpose.xlu0.b32.cont [2/16] 0.0, 128
      %2096 = vxpose.xlu0.b32.cont [3/16] 0.0, 128
      %2097 = vxpose.xlu0.b32.cont [4/16] 0.0, 128
      %2098 = vxpose.xlu0.b32.cont [5/16] 0.0, 128
      %2099 = vxpose.xlu0.b32.cont [6/16] 0.0, 128
      %2100 = vxpose.xlu0.b32.cont [7/16] 0.0, 128
      %2101 = vxpose.xlu0.b32.cont [8/16] 0.0, 128
      %2102 = vxpose.xlu0.b32.cont [9/16] 0.0, 128
      %2103 = vxpose.xlu0.b32.cont [10/16] 0.0, 128
      %2104 = vxpose.xlu0.b32.cont [11/16] 0.0, 128
      %2105 = vxpose.xlu0.b32.cont [12/16] 0.0, 128
      %2106 = vxpose.xlu0.b32.cont [13/16] 0.0, 128
      %2107 = vxpose.xlu0.b32.cont [14/16] 0.0, 128
      %2108 = vxpose.xlu0.b32.cont [15/16] 0.0, 128
      %2109 = vxpose.xlu0.b32.end [16/16] 0.0, 128
      %v2110 = vpop.trf.xlu0
      %v2111 = vpop.trf.xlu0
      %v2112 = vpop.trf.xlu0
      %v2113 = vpop.trf.xlu0
      %v2114 = vpop.trf.xlu0
      %v2115 = vpop.trf.xlu0
      %v2116 = vpop.trf.xlu0
      %v2117 = vpop.trf.xlu0
      %v2118 = vpop.trf.xlu0
      %v2119 = vpop.trf.xlu0
      %v2120 = vpop.trf.xlu0
      %v2121 = vpop.trf.xlu0
      %v2122 = vpop.trf.xlu0
      %v2123 = vpop.trf.xlu0
      %v2124 = vpop.trf.xlu0
      %v2125 = vpop.trf.xlu0
      %2126 = vxpose.xlu0.b32.start [1/16] %v701, 128
      %2127 = vxpose.xlu0.b32.cont [2/16] 0.0, 128
      %2128 = vxpose.xlu0.b32.cont [3/16] 0.0, 128
      %2129 = vxpose.xlu0.b32.cont [4/16] 0.0, 128
      %2130 = vxpose.xlu0.b32.cont [5/16] 0.0, 128
      %2131 = vxpose.xlu0.b32.cont [6/16] 0.0, 128
      %2132 = vxpose.xlu0.b32.cont [7/16] 0.0, 128
      %2133 = vxpose.xlu0.b32.cont [8/16] 0.0, 128
      %2134 = vxpose.xlu0.b32.cont [9/16] 0.0, 128
      %2135 = vxpose.xlu0.b32.cont [10/16] 0.0, 128
      %2136 = vxpose.xlu0.b32.cont [11/16] 0.0, 128
      %2137 = vxpose.xlu0.b32.cont [12/16] 0.0, 128
      %2138 = vxpose.xlu0.b32.cont [13/16] 0.0, 128
      %2139 = vxpose.xlu0.b32.cont [14/16] 0.0, 128
      %2140 = vxpose.xlu0.b32.cont [15/16] 0.0, 128
      %2141 = vxpose.xlu0.b32.end [16/16] 0.0, 128
      %v2142 = vpop.trf.xlu0
      %v2143 = vpop.trf.xlu0
      %v2144 = vpop.trf.xlu0
      %v2145 = vpop.trf.xlu0
      %v2146 = vpop.trf.xlu0
      %v2147 = vpop.trf.xlu0
      %v2148 = vpop.trf.xlu0
      %v2149 = vpop.trf.xlu0
      %v2150 = vpop.trf.xlu0
      %v2151 = vpop.trf.xlu0
      %v2152 = vpop.trf.xlu0
      %v2153 = vpop.trf.xlu0
      %v2154 = vpop.trf.xlu0
      %v2155 = vpop.trf.xlu0
      %v2156 = vpop.trf.xlu0
      %v2157 = vpop.trf.xlu0
      %2158 = vxpose.xlu0.b32.start [1/16] %v706, 128
      %2159 = vxpose.xlu0.b32.cont [2/16] 0.0, 128
      %2160 = vxpose.xlu0.b32.cont [3/16] 0.0, 128
      %2161 = vxpose.xlu0.b32.cont [4/16] 0.0, 128
      %2162 = vxpose.xlu0.b32.cont [5/16] 0.0, 128
      %2163 = vxpose.xlu0.b32.cont [6/16] 0.0, 128
      %2164 = vxpose.xlu0.b32.cont [7/16] 0.0, 128
      %2165 = vxpose.xlu0.b32.cont [8/16] 0.0, 128
      %2166 = vxpose.xlu0.b32.cont [9/16] 0.0, 128
      %2167 = vxpose.xlu0.b32.cont [10/16] 0.0, 128
      %2168 = vxpose.xlu0.b32.cont [11/16] 0.0, 128
      %2169 = vxpose.xlu0.b32.cont [12/16] 0.0, 128
      %2170 = vxpose.xlu0.b32.cont [13/16] 0.0, 128
      %2171 = vxpose.xlu0.b32.cont [14/16] 0.0, 128
      %2172 = vxpose.xlu0.b32.cont [15/16] 0.0, 128
      %2173 = vxpose.xlu0.b32.end [16/16] 0.0, 128
      %v2174 = vpop.trf.xlu0
      %v2175 = vpop.trf.xlu0
      %v2176 = vpop.trf.xlu0
      %v2177 = vpop.trf.xlu0
      %v2178 = vpop.trf.xlu0
      %v2179 = vpop.trf.xlu0
      %v2180 = vpop.trf.xlu0
      %v2181 = vpop.trf.xlu0
      %v2182 = vpop.trf.xlu0
      %v2183 = vpop.trf.xlu0
      %v2184 = vpop.trf.xlu0
      %v2185 = vpop.trf.xlu0
      %v2186 = vpop.trf.xlu0
      %v2187 = vpop.trf.xlu0
      %v2188 = vpop.trf.xlu0
      %v2189 = vpop.trf.xlu0
      %2190 = vxpose.xlu0.b32.start [1/16] %v711, 128
      %2191 = vxpose.xlu0.b32.cont [2/16] 0.0, 128
      %2192 = vxpose.xlu0.b32.cont [3/16] 0.0, 128
      %2193 = vxpose.xlu0.b32.cont [4/16] 0.0, 128
      %2194 = vxpose.xlu0.b32.cont [5/16] 0.0, 128
      %2195 = vxpose.xlu0.b32.cont [6/16] 0.0, 128
      %2196 = vxpose.xlu0.b32.cont [7/16] 0.0, 128
      %2197 = vxpose.xlu0.b32.cont [8/16] 0.0, 128
      %2198 = vxpose.xlu0.b32.cont [9/16] 0.0, 128
      %2199 = vxpose.xlu0.b32.cont [10/16] 0.0, 128
      %2200 = vxpose.xlu0.b32.cont [11/16] 0.0, 128
      %2201 = vxpose.xlu0.b32.cont [12/16] 0.0, 128
      %2202 = vxpose.xlu0.b32.cont [13/16] 0.0, 128
      %2203 = vxpose.xlu0.b32.cont [14/16] 0.0, 128
      %2204 = vxpose.xlu0.b32.cont [15/16] 0.0, 128
      %2205 = vxpose.xlu0.b32.end [16/16] 0.0, 128
      %v2206 = vpop.trf.xlu0
      %v2207 = vpop.trf.xlu0
      %v2208 = vpop.trf.xlu0
      %v2209 = vpop.trf.xlu0
      %v2210 = vpop.trf.xlu0
      %v2211 = vpop.trf.xlu0
      %v2212 = vpop.trf.xlu0
      %v2213 = vpop.trf.xlu0
      %v2214 = vpop.trf.xlu0
      %v2215 = vpop.trf.xlu0
      %v2216 = vpop.trf.xlu0
      %v2217 = vpop.trf.xlu0
      %v2218 = vpop.trf.xlu0
      %v2219 = vpop.trf.xlu0
      %v2220 = vpop.trf.xlu0
      %v2221 = vpop.trf.xlu0
      %2222 = vxpose.xlu0.b32.start [1/16] %v716, 128
      %2223 = vxpose.xlu0.b32.cont [2/16] 0.0, 128
      %2224 = vxpose.xlu0.b32.cont [3/16] 0.0, 128
      %2225 = vxpose.xlu0.b32.cont [4/16] 0.0, 128
      %2226 = vxpose.xlu0.b32.cont [5/16] 0.0, 128
      %2227 = vxpose.xlu0.b32.cont [6/16] 0.0, 128
      %2228 = vxpose.xlu0.b32.cont [7/16] 0.0, 128
      %2229 = vxpose.xlu0.b32.cont [8/16] 0.0, 128
      %2230 = vxpose.xlu0.b32.cont [9/16] 0.0, 128
      %2231 = vxpose.xlu0.b32.cont [10/16] 0.0, 128
      %2232 = vxpose.xlu0.b32.cont [11/16] 0.0, 128
      %2233 = vxpose.xlu0.b32.cont [12/16] 0.0, 128
      %2234 = vxpose.xlu0.b32.cont [13/16] 0.0, 128
      %2235 = vxpose.xlu0.b32.cont [14/16] 0.0, 128
      %2236 = vxpose.xlu0.b32.cont [15/16] 0.0, 128
      %2237 = vxpose.xlu0.b32.end [16/16] 0.0, 128
      %v2238 = vpop.trf.xlu0
      %v2239 = vpop.trf.xlu0
      %v2240 = vpop.trf.xlu0
      %v2241 = vpop.trf.xlu0
      %v2242 = vpop.trf.xlu0
      %v2243 = vpop.trf.xlu0
      %v2244 = vpop.trf.xlu0
      %v2245 = vpop.trf.xlu0
      %v2246 = vpop.trf.xlu0
      %v2247 = vpop.trf.xlu0
      %v2248 = vpop.trf.xlu0
      %v2249 = vpop.trf.xlu0
      %v2250 = vpop.trf.xlu0
      %v2251 = vpop.trf.xlu0
      %v2252 = vpop.trf.xlu0
      %v2253 = vpop.trf.xlu0
      %2254 = vxpose.xlu0.b32.start [1/16] %v721, 128
      %2255 = vxpose.xlu0.b32.cont [2/16] 0.0, 128
      %2256 = vxpose.xlu0.b32.cont [3/16] 0.0, 128
      %2257 = vxpose.xlu0.b32.cont [4/16] 0.0, 128
      %2258 = vxpose.xlu0.b32.cont [5/16] 0.0, 128
      %2259 = vxpose.xlu0.b32.cont [6/16] 0.0, 128
      %2260 = vxpose.xlu0.b32.cont [7/16] 0.0, 128
      %2261 = vxpose.xlu0.b32.cont [8/16] 0.0, 128
      %2262 = vxpose.xlu0.b32.cont [9/16] 0.0, 128
      %2263 = vxpose.xlu0.b32.cont [10/16] 0.0, 128
      %2264 = vxpose.xlu0.b32.cont [11/16] 0.0, 128
      %2265 = vxpose.xlu0.b32.cont [12/16] 0.0, 128
      %2266 = vxpose.xlu0.b32.cont [13/16] 0.0, 128
      %2267 = vxpose.xlu0.b32.cont [14/16] 0.0, 128
      %2268 = vxpose.xlu0.b32.cont [15/16] 0.0, 128
      %2269 = vxpose.xlu0.b32.end [16/16] 0.0, 128
      %v2270 = vpop.trf.xlu0
      %v2271 = vpop.trf.xlu0
      %v2272 = vpop.trf.xlu0
      %v2273 = vpop.trf.xlu0
      %v2274 = vpop.trf.xlu0
      %v2275 = vpop.trf.xlu0
      %v2276 = vpop.trf.xlu0
      %v2277 = vpop.trf.xlu0
      %v2278 = vpop.trf.xlu0
      %v2279 = vpop.trf.xlu0
      %v2280 = vpop.trf.xlu0
      %v2281 = vpop.trf.xlu0
      %v2282 = vpop.trf.xlu0
      %v2283 = vpop.trf.xlu0
      %v2284 = vpop.trf.xlu0
      %v2285 = vpop.trf.xlu0
      %2286 = vxpose.xlu0.b32.start [1/16] %v726, 128
      %2287 = vxpose.xlu0.b32.cont [2/16] 0.0, 128
      %2288 = vxpose.xlu0.b32.cont [3/16] 0.0, 128
      %2289 = vxpose.xlu0.b32.cont [4/16] 0.0, 128
      %2290 = vxpose.xlu0.b32.cont [5/16] 0.0, 128
      %2291 = vxpose.xlu0.b32.cont [6/16] 0.0, 128
      %2292 = vxpose.xlu0.b32.cont [7/16] 0.0, 128
      %2293 = vxpose.xlu0.b32.cont [8/16] 0.0, 128
      %2294 = vxpose.xlu0.b32.cont [9/16] 0.0, 128
      %2295 = vxpose.xlu0.b32.cont [10/16] 0.0, 128
      %2296 = vxpose.xlu0.b32.cont [11/16] 0.0, 128
      %2297 = vxpose.xlu0.b32.cont [12/16] 0.0, 128
      %2298 = vxpose.xlu0.b32.cont [13/16] 0.0, 128
      %2299 = vxpose.xlu0.b32.cont [14/16] 0.0, 128
      %2300 = vxpose.xlu0.b32.cont [15/16] 0.0, 128
      %2301 = vxpose.xlu0.b32.end [16/16] 0.0, 128
      %v2302 = vpop.trf.xlu0
      %v2303 = vpop.trf.xlu0
      %v2304 = vpop.trf.xlu0
      %v2305 = vpop.trf.xlu0
      %v2306 = vpop.trf.xlu0
      %v2307 = vpop.trf.xlu0
      %v2308 = vpop.trf.xlu0
      %v2309 = vpop.trf.xlu0
      %v2310 = vpop.trf.xlu0
      %v2311 = vpop.trf.xlu0
      %v2312 = vpop.trf.xlu0
      %v2313 = vpop.trf.xlu0
      %v2314 = vpop.trf.xlu0
      %v2315 = vpop.trf.xlu0
      %v2316 = vpop.trf.xlu0
      %v2317 = vpop.trf.xlu0
      %2318 = vxpose.xlu0.b32.start [1/16] %v731, 128
      %2319 = vxpose.xlu0.b32.cont [2/16] 0.0, 128
      %2320 = vxpose.xlu0.b32.cont [3/16] 0.0, 128
      %2321 = vxpose.xlu0.b32.cont [4/16] 0.0, 128
      %2322 = vxpose.xlu0.b32.cont [5/16] 0.0, 128
      %2323 = vxpose.xlu0.b32.cont [6/16] 0.0, 128
      %2324 = vxpose.xlu0.b32.cont [7/16] 0.0, 128
      %2325 = vxpose.xlu0.b32.cont [8/16] 0.0, 128
      %2326 = vxpose.xlu0.b32.cont [9/16] 0.0, 128
      %2327 = vxpose.xlu0.b32.cont [10/16] 0.0, 128
      %2328 = vxpose.xlu0.b32.cont [11/16] 0.0, 128
      %2329 = vxpose.xlu0.b32.cont [12/16] 0.0, 128
      %2330 = vxpose.xlu0.b32.cont [13/16] 0.0, 128
      %2331 = vxpose.xlu0.b32.cont [14/16] 0.0, 128
      %2332 = vxpose.xlu0.b32.cont [15/16] 0.0, 128
      %2333 = vxpose.xlu0.b32.end [16/16] 0.0, 128
      %v2334 = vpop.trf.xlu0
      %v2335 = vpop.trf.xlu0
      %v2336 = vpop.trf.xlu0
      %v2337 = vpop.trf.xlu0
      %v2338 = vpop.trf.xlu0
      %v2339 = vpop.trf.xlu0
      %v2340 = vpop.trf.xlu0
      %v2341 = vpop.trf.xlu0
      %v2342 = vpop.trf.xlu0
      %v2343 = vpop.trf.xlu0
      %v2344 = vpop.trf.xlu0
      %v2345 = vpop.trf.xlu0
      %v2346 = vpop.trf.xlu0
      %v2347 = vpop.trf.xlu0
      %v2348 = vpop.trf.xlu0
      %v2349 = vpop.trf.xlu0
      %2350 = vxpose.xlu0.b32.start [1/16] %v736, 128
      %2351 = vxpose.xlu0.b32.cont [2/16] 0.0, 128
      %2352 = vxpose.xlu0.b32.cont [3/16] 0.0, 128
      %2353 = vxpose.xlu0.b32.cont [4/16] 0.0, 128
      %2354 = vxpose.xlu0.b32.cont [5/16] 0.0, 128
      %2355 = vxpose.xlu0.b32.cont [6/16] 0.0, 128
      %2356 = vxpose.xlu0.b32.cont [7/16] 0.0, 128
      %2357 = vxpose.xlu0.b32.cont [8/16] 0.0, 128
      %2358 = vxpose.xlu0.b32.cont [9/16] 0.0, 128
      %2359 = vxpose.xlu0.b32.cont [10/16] 0.0, 128
      %2360 = vxpose.xlu0.b32.cont [11/16] 0.0, 128
      %2361 = vxpose.xlu0.b32.cont [12/16] 0.0, 128
      %2362 = vxpose.xlu0.b32.cont [13/16] 0.0, 128
      %2363 = vxpose.xlu0.b32.cont [14/16] 0.0, 128
      %2364 = vxpose.xlu0.b32.cont [15/16] 0.0, 128
      %2365 = vxpose.xlu0.b32.end [16/16] 0.0, 128
      %v2366 = vpop.trf.xlu0
      %v2367 = vpop.trf.xlu0
      %v2368 = vpop.trf.xlu0
      %v2369 = vpop.trf.xlu0
      %v2370 = vpop.trf.xlu0
      %v2371 = vpop.trf.xlu0
      %v2372 = vpop.trf.xlu0
      %v2373 = vpop.trf.xlu0
      %v2374 = vpop.trf.xlu0
      %v2375 = vpop.trf.xlu0
      %v2376 = vpop.trf.xlu0
      %v2377 = vpop.trf.xlu0
      %v2378 = vpop.trf.xlu0
      %v2379 = vpop.trf.xlu0
      %v2380 = vpop.trf.xlu0
      %v2381 = vpop.trf.xlu0
      %2382 = vxpose.xlu0.b32.start [1/16] %v741, 128
      %2383 = vxpose.xlu0.b32.cont [2/16] 0.0, 128
      %2384 = vxpose.xlu0.b32.cont [3/16] 0.0, 128
      %2385 = vxpose.xlu0.b32.cont [4/16] 0.0, 128
      %2386 = vxpose.xlu0.b32.cont [5/16] 0.0, 128
      %2387 = vxpose.xlu0.b32.cont [6/16] 0.0, 128
      %2388 = vxpose.xlu0.b32.cont [7/16] 0.0, 128
      %2389 = vxpose.xlu0.b32.cont [8/16] 0.0, 128
      %2390 = vxpose.xlu0.b32.cont [9/16] 0.0, 128
      %2391 = vxpose.xlu0.b32.cont [10/16] 0.0, 128
      %2392 = vxpose.xlu0.b32.cont [11/16] 0.0, 128
      %2393 = vxpose.xlu0.b32.cont [12/16] 0.0, 128
      %2394 = vxpose.xlu0.b32.cont [13/16] 0.0, 128
      %2395 = vxpose.xlu0.b32.cont [14/16] 0.0, 128
      %2396 = vxpose.xlu0.b32.cont [15/16] 0.0, 128
      %2397 = vxpose.xlu0.b32.end [16/16] 0.0, 128
      %v2398 = vpop.trf.xlu0
      %v2399 = vpop.trf.xlu0
      %v2400 = vpop.trf.xlu0
      %v2401 = vpop.trf.xlu0
      %v2402 = vpop.trf.xlu0
      %v2403 = vpop.trf.xlu0
      %v2404 = vpop.trf.xlu0
      %v2405 = vpop.trf.xlu0
      %v2406 = vpop.trf.xlu0
      %v2407 = vpop.trf.xlu0
      %v2408 = vpop.trf.xlu0
      %v2409 = vpop.trf.xlu0
      %v2410 = vpop.trf.xlu0
      %v2411 = vpop.trf.xlu0
      %v2412 = vpop.trf.xlu0
      %v2413 = vpop.trf.xlu0
      %2414 = vxpose.xlu0.b32.start [1/16] %v746, 128
      %2415 = vxpose.xlu0.b32.cont [2/16] 0.0, 128
      %2416 = vxpose.xlu0.b32.cont [3/16] 0.0, 128
      %2417 = vxpose.xlu0.b32.cont [4/16] 0.0, 128
      %2418 = vxpose.xlu0.b32.cont [5/16] 0.0, 128
      %2419 = vxpose.xlu0.b32.cont [6/16] 0.0, 128
      %2420 = vxpose.xlu0.b32.cont [7/16] 0.0, 128
      %2421 = vxpose.xlu0.b32.cont [8/16] 0.0, 128
      %2422 = vxpose.xlu0.b32.cont [9/16] 0.0, 128
      %2423 = vxpose.xlu0.b32.cont [10/16] 0.0, 128
      %2424 = vxpose.xlu0.b32.cont [11/16] 0.0, 128
      %2425 = vxpose.xlu0.b32.cont [12/16] 0.0, 128
      %2426 = vxpose.xlu0.b32.cont [13/16] 0.0, 128
      %2427 = vxpose.xlu0.b32.cont [14/16] 0.0, 128
      %2428 = vxpose.xlu0.b32.cont [15/16] 0.0, 128
      %2429 = vxpose.xlu0.b32.end [16/16] 0.0, 128
      %v2430 = vpop.trf.xlu0
      %v2431 = vpop.trf.xlu0
      %v2432 = vpop.trf.xlu0
      %v2433 = vpop.trf.xlu0
      %v2434 = vpop.trf.xlu0
      %v2435 = vpop.trf.xlu0
      %v2436 = vpop.trf.xlu0
      %v2437 = vpop.trf.xlu0
      %v2438 = vpop.trf.xlu0
      %v2439 = vpop.trf.xlu0
      %v2440 = vpop.trf.xlu0
      %v2441 = vpop.trf.xlu0
      %v2442 = vpop.trf.xlu0
      %v2443 = vpop.trf.xlu0
      %v2444 = vpop.trf.xlu0
      %v2445 = vpop.trf.xlu0
      %2446 = vxpose.xlu0.b32.start [1/16] %v751, 128
      %2447 = vxpose.xlu0.b32.cont [2/16] 0.0, 128
      %2448 = vxpose.xlu0.b32.cont [3/16] 0.0, 128
      %2449 = vxpose.xlu0.b32.cont [4/16] 0.0, 128
      %2450 = vxpose.xlu0.b32.cont [5/16] 0.0, 128
      %2451 = vxpose.xlu0.b32.cont [6/16] 0.0, 128
      %2452 = vxpose.xlu0.b32.cont [7/16] 0.0, 128
      %2453 = vxpose.xlu0.b32.cont [8/16] 0.0, 128
      %2454 = vxpose.xlu0.b32.cont [9/16] 0.0, 128
      %2455 = vxpose.xlu0.b32.cont [10/16] 0.0, 128
      %2456 = vxpose.xlu0.b32.cont [11/16] 0.0, 128
      %2457 = vxpose.xlu0.b32.cont [12/16] 0.0, 128
      %2458 = vxpose.xlu0.b32.cont [13/16] 0.0, 128
      %2459 = vxpose.xlu0.b32.cont [14/16] 0.0, 128
      %2460 = vxpose.xlu0.b32.cont [15/16] 0.0, 128
      %2461 = vxpose.xlu0.b32.end [16/16] 0.0, 128
      %v2462 = vpop.trf.xlu0
      %v2463 = vpop.trf.xlu0
      %v2464 = vpop.trf.xlu0
      %v2465 = vpop.trf.xlu0
      %v2466 = vpop.trf.xlu0
      %v2467 = vpop.trf.xlu0
      %v2468 = vpop.trf.xlu0
      %v2469 = vpop.trf.xlu0
      %v2470 = vpop.trf.xlu0
      %v2471 = vpop.trf.xlu0
      %v2472 = vpop.trf.xlu0
      %v2473 = vpop.trf.xlu0
      %v2474 = vpop.trf.xlu0
      %v2475 = vpop.trf.xlu0
      %v2476 = vpop.trf.xlu0
      %v2477 = vpop.trf.xlu0
      %2478 = vxpose.xlu0.b32.start [1/16] %v756, 128
      %2479 = vxpose.xlu0.b32.cont [2/16] 0.0, 128
      %2480 = vxpose.xlu0.b32.cont [3/16] 0.0, 128
      %2481 = vxpose.xlu0.b32.cont [4/16] 0.0, 128
      %2482 = vxpose.xlu0.b32.cont [5/16] 0.0, 128
      %2483 = vxpose.xlu0.b32.cont [6/16] 0.0, 128
      %2484 = vxpose.xlu0.b32.cont [7/16] 0.0, 128
      %2485 = vxpose.xlu0.b32.cont [8/16] 0.0, 128
      %2486 = vxpose.xlu0.b32.cont [9/16] 0.0, 128
      %2487 = vxpose.xlu0.b32.cont [10/16] 0.0, 128
      %2488 = vxpose.xlu0.b32.cont [11/16] 0.0, 128
      %2489 = vxpose.xlu0.b32.cont [12/16] 0.0, 128
      %2490 = vxpose.xlu0.b32.cont [13/16] 0.0, 128
      %2491 = vxpose.xlu0.b32.cont [14/16] 0.0, 128
      %2492 = vxpose.xlu0.b32.cont [15/16] 0.0, 128
      %2493 = vxpose.xlu0.b32.end [16/16] 0.0, 128
      %v2494 = vpop.trf.xlu0
      %v2495 = vpop.trf.xlu0
      %v2496 = vpop.trf.xlu0
      %v2497 = vpop.trf.xlu0
      %v2498 = vpop.trf.xlu0
      %v2499 = vpop.trf.xlu0
      %v2500 = vpop.trf.xlu0
      %v2501 = vpop.trf.xlu0
      %v2502 = vpop.trf.xlu0
      %v2503 = vpop.trf.xlu0
      %v2504 = vpop.trf.xlu0
      %v2505 = vpop.trf.xlu0
      %v2506 = vpop.trf.xlu0
      %v2507 = vpop.trf.xlu0
      %v2508 = vpop.trf.xlu0
      %v2509 = vpop.trf.xlu0
      %2510 = vxpose.xlu0.b32.start [1/16] %v761, 128
      %2511 = vxpose.xlu0.b32.cont [2/16] 0.0, 128
      %2512 = vxpose.xlu0.b32.cont [3/16] 0.0, 128
      %2513 = vxpose.xlu0.b32.cont [4/16] 0.0, 128
      %2514 = vxpose.xlu0.b32.cont [5/16] 0.0, 128
      %2515 = vxpose.xlu0.b32.cont [6/16] 0.0, 128
      %2516 = vxpose.xlu0.b32.cont [7/16] 0.0, 128
      %2517 = vxpose.xlu0.b32.cont [8/16] 0.0, 128
      %2518 = vxpose.xlu0.b32.cont [9/16] 0.0, 128
      %2519 = vxpose.xlu0.b32.cont [10/16] 0.0, 128
      %2520 = vxpose.xlu0.b32.cont [11/16] 0.0, 128
      %2521 = vxpose.xlu0.b32.cont [12/16] 0.0, 128
      %2522 = vxpose.xlu0.b32.cont [13/16] 0.0, 128
      %2523 = vxpose.xlu0.b32.cont [14/16] 0.0, 128
      %2524 = vxpose.xlu0.b32.cont [15/16] 0.0, 128
      %2525 = vxpose.xlu0.b32.end [16/16] 0.0, 128
      %v2526 = vpop.trf.xlu0
      %v2527 = vpop.trf.xlu0
      %v2528 = vpop.trf.xlu0
      %v2529 = vpop.trf.xlu0
      %v2530 = vpop.trf.xlu0
      %v2531 = vpop.trf.xlu0
      %v2532 = vpop.trf.xlu0
      %v2533 = vpop.trf.xlu0
      %v2534 = vpop.trf.xlu0
      %v2535 = vpop.trf.xlu0
      %v2536 = vpop.trf.xlu0
      %v2537 = vpop.trf.xlu0
      %v2538 = vpop.trf.xlu0
      %v2539 = vpop.trf.xlu0
      %v2540 = vpop.trf.xlu0
      %v2541 = vpop.trf.xlu0
      %2542 = vxpose.xlu0.b32.start [1/16] %v766, 128
      %2543 = vxpose.xlu0.b32.cont [2/16] 0.0, 128
      %2544 = vxpose.xlu0.b32.cont [3/16] 0.0, 128
      %2545 = vxpose.xlu0.b32.cont [4/16] 0.0, 128
      %2546 = vxpose.xlu0.b32.cont [5/16] 0.0, 128
      %2547 = vxpose.xlu0.b32.cont [6/16] 0.0, 128
      %2548 = vxpose.xlu0.b32.cont [7/16] 0.0, 128
      %2549 = vxpose.xlu0.b32.cont [8/16] 0.0, 128
      %2550 = vxpose.xlu0.b32.cont [9/16] 0.0, 128
      %2551 = vxpose.xlu0.b32.cont [10/16] 0.0, 128
      %2552 = vxpose.xlu0.b32.cont [11/16] 0.0, 128
      %2553 = vxpose.xlu0.b32.cont [12/16] 0.0, 128
      %2554 = vxpose.xlu0.b32.cont [13/16] 0.0, 128
      %2555 = vxpose.xlu0.b32.cont [14/16] 0.0, 128
      %2556 = vxpose.xlu0.b32.cont [15/16] 0.0, 128
      %2557 = vxpose.xlu0.b32.end [16/16] 0.0, 128
      %v2558 = vpop.trf.xlu0
      %v2559 = vpop.trf.xlu0
      %v2560 = vpop.trf.xlu0
      %v2561 = vpop.trf.xlu0
      %v2562 = vpop.trf.xlu0
      %v2563 = vpop.trf.xlu0
      %v2564 = vpop.trf.xlu0
      %v2565 = vpop.trf.xlu0
      %v2566 = vpop.trf.xlu0
      %v2567 = vpop.trf.xlu0
      %v2568 = vpop.trf.xlu0
      %v2569 = vpop.trf.xlu0
      %v2570 = vpop.trf.xlu0
      %v2571 = vpop.trf.xlu0
      %v2572 = vpop.trf.xlu0
      %v2573 = vpop.trf.xlu0
      %2574 = vxpose.xlu0.b32.start [1/16] %v771, 128
      %2575 = vxpose.xlu0.b32.cont [2/16] 0.0, 128
      %2576 = vxpose.xlu0.b32.cont [3/16] 0.0, 128
      %2577 = vxpose.xlu0.b32.cont [4/16] 0.0, 128
      %2578 = vxpose.xlu0.b32.cont [5/16] 0.0, 128
      %2579 = vxpose.xlu0.b32.cont [6/16] 0.0, 128
      %2580 = vxpose.xlu0.b32.cont [7/16] 0.0, 128
      %2581 = vxpose.xlu0.b32.cont [8/16] 0.0, 128
      %2582 = vxpose.xlu0.b32.cont [9/16] 0.0, 128
      %2583 = vxpose.xlu0.b32.cont [10/16] 0.0, 128
      %2584 = vxpose.xlu0.b32.cont [11/16] 0.0, 128
      %2585 = vxpose.xlu0.b32.cont [12/16] 0.0, 128
      %2586 = vxpose.xlu0.b32.cont [13/16] 0.0, 128
      %2587 = vxpose.xlu0.b32.cont [14/16] 0.0, 128
      %2588 = vxpose.xlu0.b32.cont [15/16] 0.0, 128
      %2589 = vxpose.xlu0.b32.end [16/16] 0.0, 128
      %v2590 = vpop.trf.xlu0
      %v2591 = vpop.trf.xlu0
      %v2592 = vpop.trf.xlu0
      %v2593 = vpop.trf.xlu0
      %v2594 = vpop.trf.xlu0
      %v2595 = vpop.trf.xlu0
      %v2596 = vpop.trf.xlu0
      %v2597 = vpop.trf.xlu0
      %v2598 = vpop.trf.xlu0
      %v2599 = vpop.trf.xlu0
      %v2600 = vpop.trf.xlu0
      %v2601 = vpop.trf.xlu0
      %v2602 = vpop.trf.xlu0
      %v2603 = vpop.trf.xlu0
      %v2604 = vpop.trf.xlu0
      %v2605 = vpop.trf.xlu0
      %2606 = vxpose.xlu0.b32.start [1/16] %v776, 128
      %2607 = vxpose.xlu0.b32.cont [2/16] 0.0, 128
      %2608 = vxpose.xlu0.b32.cont [3/16] 0.0, 128
      %2609 = vxpose.xlu0.b32.cont [4/16] 0.0, 128
      %2610 = vxpose.xlu0.b32.cont [5/16] 0.0, 128
      %2611 = vxpose.xlu0.b32.cont [6/16] 0.0, 128
      %2612 = vxpose.xlu0.b32.cont [7/16] 0.0, 128
      %2613 = vxpose.xlu0.b32.cont [8/16] 0.0, 128
      %2614 = vxpose.xlu0.b32.cont [9/16] 0.0, 128
      %2615 = vxpose.xlu0.b32.cont [10/16] 0.0, 128
      %2616 = vxpose.xlu0.b32.cont [11/16] 0.0, 128
      %2617 = vxpose.xlu0.b32.cont [12/16] 0.0, 128
      %2618 = vxpose.xlu0.b32.cont [13/16] 0.0, 128
      %2619 = vxpose.xlu0.b32.cont [14/16] 0.0, 128
      %2620 = vxpose.xlu0.b32.cont [15/16] 0.0, 128
      %2621 = vxpose.xlu0.b32.end [16/16] 0.0, 128
      %v2622 = vpop.trf.xlu0
      %v2623 = vpop.trf.xlu0
      %v2624 = vpop.trf.xlu0
      %v2625 = vpop.trf.xlu0
      %v2626 = vpop.trf.xlu0
      %v2627 = vpop.trf.xlu0
      %v2628 = vpop.trf.xlu0
      %v2629 = vpop.trf.xlu0
      %v2630 = vpop.trf.xlu0
      %v2631 = vpop.trf.xlu0
      %v2632 = vpop.trf.xlu0
      %v2633 = vpop.trf.xlu0
      %v2634 = vpop.trf.xlu0
      %v2635 = vpop.trf.xlu0
      %v2636 = vpop.trf.xlu0
      %v2637 = vpop.trf.xlu0
      %2638 = vxpose.xlu0.b32.start [1/16] %v781, 128
      %2639 = vxpose.xlu0.b32.cont [2/16] 0.0, 128
      %2640 = vxpose.xlu0.b32.cont [3/16] 0.0, 128
      %2641 = vxpose.xlu0.b32.cont [4/16] 0.0, 128
      %2642 = vxpose.xlu0.b32.cont [5/16] 0.0, 128
      %2643 = vxpose.xlu0.b32.cont [6/16] 0.0, 128
      %2644 = vxpose.xlu0.b32.cont [7/16] 0.0, 128
      %2645 = vxpose.xlu0.b32.cont [8/16] 0.0, 128
      %2646 = vxpose.xlu0.b32.cont [9/16] 0.0, 128
      %2647 = vxpose.xlu0.b32.cont [10/16] 0.0, 128
      %2648 = vxpose.xlu0.b32.cont [11/16] 0.0, 128
      %2649 = vxpose.xlu0.b32.cont [12/16] 0.0, 128
      %2650 = vxpose.xlu0.b32.cont [13/16] 0.0, 128
      %2651 = vxpose.xlu0.b32.cont [14/16] 0.0, 128
      %2652 = vxpose.xlu0.b32.cont [15/16] 0.0, 128
      %2653 = vxpose.xlu0.b32.end [16/16] 0.0, 128
      %v2654 = vpop.trf.xlu0
      %v2655 = vpop.trf.xlu0
      %v2656 = vpop.trf.xlu0
      %v2657 = vpop.trf.xlu0
      %v2658 = vpop.trf.xlu0
      %v2659 = vpop.trf.xlu0
      %v2660 = vpop.trf.xlu0
      %v2661 = vpop.trf.xlu0
      %v2662 = vpop.trf.xlu0
      %v2663 = vpop.trf.xlu0
      %v2664 = vpop.trf.xlu0
      %v2665 = vpop.trf.xlu0
      %v2666 = vpop.trf.xlu0
      %v2667 = vpop.trf.xlu0
      %v2668 = vpop.trf.xlu0
      %v2669 = vpop.trf.xlu0
      %2670 = vxpose.xlu0.b32.start [1/16] %v786, 128
      %2671 = vxpose.xlu0.b32.cont [2/16] 0.0, 128
      %2672 = vxpose.xlu0.b32.cont [3/16] 0.0, 128
      %2673 = vxpose.xlu0.b32.cont [4/16] 0.0, 128
      %2674 = vxpose.xlu0.b32.cont [5/16] 0.0, 128
      %2675 = vxpose.xlu0.b32.cont [6/16] 0.0, 128
      %2676 = vxpose.xlu0.b32.cont [7/16] 0.0, 128
      %2677 = vxpose.xlu0.b32.cont [8/16] 0.0, 128
      %2678 = vxpose.xlu0.b32.cont [9/16] 0.0, 128
      %2679 = vxpose.xlu0.b32.cont [10/16] 0.0, 128
      %2680 = vxpose.xlu0.b32.cont [11/16] 0.0, 128
      %2681 = vxpose.xlu0.b32.cont [12/16] 0.0, 128
      %2682 = vxpose.xlu0.b32.cont [13/16] 0.0, 128
      %2683 = vxpose.xlu0.b32.cont [14/16] 0.0, 128
      %2684 = vxpose.xlu0.b32.cont [15/16] 0.0, 128
      %2685 = vxpose.xlu0.b32.end [16/16] 0.0, 128
      %v2686 = vpop.trf.xlu0
      %v2687 = vpop.trf.xlu0
      %v2688 = vpop.trf.xlu0
      %v2689 = vpop.trf.xlu0
      %v2690 = vpop.trf.xlu0
      %v2691 = vpop.trf.xlu0
      %v2692 = vpop.trf.xlu0
      %v2693 = vpop.trf.xlu0
      %v2694 = vpop.trf.xlu0
      %v2695 = vpop.trf.xlu0
      %v2696 = vpop.trf.xlu0
      %v2697 = vpop.trf.xlu0
      %v2698 = vpop.trf.xlu0
      %v2699 = vpop.trf.xlu0
      %v2700 = vpop.trf.xlu0
      %v2701 = vpop.trf.xlu0
      %2702 = vxpose.xlu0.b32.start [1/16] %v791, 128
      %2703 = vxpose.xlu0.b32.cont [2/16] 0.0, 128
      %2704 = vxpose.xlu0.b32.cont [3/16] 0.0, 128
      %2705 = vxpose.xlu0.b32.cont [4/16] 0.0, 128
      %2706 = vxpose.xlu0.b32.cont [5/16] 0.0, 128
      %2707 = vxpose.xlu0.b32.cont [6/16] 0.0, 128
      %2708 = vxpose.xlu0.b32.cont [7/16] 0.0, 128
      %2709 = vxpose.xlu0.b32.cont [8/16] 0.0, 128
      %2710 = vxpose.xlu0.b32.cont [9/16] 0.0, 128
      %2711 = vxpose.xlu0.b32.cont [10/16] 0.0, 128
      %2712 = vxpose.xlu0.b32.cont [11/16] 0.0, 128
      %2713 = vxpose.xlu0.b32.cont [12/16] 0.0, 128
      %2714 = vxpose.xlu0.b32.cont [13/16] 0.0, 128
      %2715 = vxpose.xlu0.b32.cont [14/16] 0.0, 128
      %2716 = vxpose.xlu0.b32.cont [15/16] 0.0, 128
      %2717 = vxpose.xlu0.b32.end [16/16] 0.0, 128
      %v2718 = vpop.trf.xlu0
      %v2719 = vpop.trf.xlu0
      %v2720 = vpop.trf.xlu0
      %v2721 = vpop.trf.xlu0
      %v2722 = vpop.trf.xlu0
      %v2723 = vpop.trf.xlu0
      %v2724 = vpop.trf.xlu0
      %v2725 = vpop.trf.xlu0
      %v2726 = vpop.trf.xlu0
      %v2727 = vpop.trf.xlu0
      %v2728 = vpop.trf.xlu0
      %v2729 = vpop.trf.xlu0
      %v2730 = vpop.trf.xlu0
      %v2731 = vpop.trf.xlu0
      %v2732 = vpop.trf.xlu0
      %v2733 = vpop.trf.xlu0
      %2734 = vxpose.xlu0.b32.start [1/16] %v796, 128
      %2735 = vxpose.xlu0.b32.cont [2/16] 0.0, 128
      %2736 = vxpose.xlu0.b32.cont [3/16] 0.0, 128
      %2737 = vxpose.xlu0.b32.cont [4/16] 0.0, 128
      %2738 = vxpose.xlu0.b32.cont [5/16] 0.0, 128
      %2739 = vxpose.xlu0.b32.cont [6/16] 0.0, 128
      %2740 = vxpose.xlu0.b32.cont [7/16] 0.0, 128
      %2741 = vxpose.xlu0.b32.cont [8/16] 0.0, 128
      %2742 = vxpose.xlu0.b32.cont [9/16] 0.0, 128
      %2743 = vxpose.xlu0.b32.cont [10/16] 0.0, 128
      %2744 = vxpose.xlu0.b32.cont [11/16] 0.0, 128
      %2745 = vxpose.xlu0.b32.cont [12/16] 0.0, 128
      %2746 = vxpose.xlu0.b32.cont [13/16] 0.0, 128
      %2747 = vxpose.xlu0.b32.cont [14/16] 0.0, 128
      %2748 = vxpose.xlu0.b32.cont [15/16] 0.0, 128
      %2749 = vxpose.xlu0.b32.end [16/16] 0.0, 128
      %v2750 = vpop.trf.xlu0
      %v2751 = vpop.trf.xlu0
      %v2752 = vpop.trf.xlu0
      %v2753 = vpop.trf.xlu0
      %v2754 = vpop.trf.xlu0
      %v2755 = vpop.trf.xlu0
      %v2756 = vpop.trf.xlu0
      %v2757 = vpop.trf.xlu0
      %v2758 = vpop.trf.xlu0
      %v2759 = vpop.trf.xlu0
      %v2760 = vpop.trf.xlu0
      %v2761 = vpop.trf.xlu0
      %v2762 = vpop.trf.xlu0
      %v2763 = vpop.trf.xlu0
      %v2764 = vpop.trf.xlu0
      %v2765 = vpop.trf.xlu0
      %2766 = vxpose.xlu0.b32.start [1/16] %v801, 128
      %2767 = vxpose.xlu0.b32.cont [2/16] 0.0, 128
      %2768 = vxpose.xlu0.b32.cont [3/16] 0.0, 128
      %2769 = vxpose.xlu0.b32.cont [4/16] 0.0, 128
      %2770 = vxpose.xlu0.b32.cont [5/16] 0.0, 128
      %2771 = vxpose.xlu0.b32.cont [6/16] 0.0, 128
      %2772 = vxpose.xlu0.b32.cont [7/16] 0.0, 128
      %2773 = vxpose.xlu0.b32.cont [8/16] 0.0, 128
      %2774 = vxpose.xlu0.b32.cont [9/16] 0.0, 128
      %2775 = vxpose.xlu0.b32.cont [10/16] 0.0, 128
      %2776 = vxpose.xlu0.b32.cont [11/16] 0.0, 128
      %2777 = vxpose.xlu0.b32.cont [12/16] 0.0, 128
      %2778 = vxpose.xlu0.b32.cont [13/16] 0.0, 128
      %2779 = vxpose.xlu0.b32.cont [14/16] 0.0, 128
      %2780 = vxpose.xlu0.b32.cont [15/16] 0.0, 128
      %2781 = vxpose.xlu0.b32.end [16/16] 0.0, 128
      %v2782 = vpop.trf.xlu0
      %v2783 = vpop.trf.xlu0
      %v2784 = vpop.trf.xlu0
      %v2785 = vpop.trf.xlu0
      %v2786 = vpop.trf.xlu0
      %v2787 = vpop.trf.xlu0
      %v2788 = vpop.trf.xlu0
      %v2789 = vpop.trf.xlu0
      %v2790 = vpop.trf.xlu0
      %v2791 = vpop.trf.xlu0
      %v2792 = vpop.trf.xlu0
      %v2793 = vpop.trf.xlu0
      %v2794 = vpop.trf.xlu0
      %v2795 = vpop.trf.xlu0
      %v2796 = vpop.trf.xlu0
      %v2797 = vpop.trf.xlu0
      %2798 = vxpose.xlu0.b32.start [1/16] %v806, 128
      %2799 = vxpose.xlu0.b32.cont [2/16] 0.0, 128
      %2800 = vxpose.xlu0.b32.cont [3/16] 0.0, 128
      %2801 = vxpose.xlu0.b32.cont [4/16] 0.0, 128
      %2802 = vxpose.xlu0.b32.cont [5/16] 0.0, 128
      %2803 = vxpose.xlu0.b32.cont [6/16] 0.0, 128
      %2804 = vxpose.xlu0.b32.cont [7/16] 0.0, 128
      %2805 = vxpose.xlu0.b32.cont [8/16] 0.0, 128
      %2806 = vxpose.xlu0.b32.cont [9/16] 0.0, 128
      %2807 = vxpose.xlu0.b32.cont [10/16] 0.0, 128
      %2808 = vxpose.xlu0.b32.cont [11/16] 0.0, 128
      %2809 = vxpose.xlu0.b32.cont [12/16] 0.0, 128
      %2810 = vxpose.xlu0.b32.cont [13/16] 0.0, 128
      %2811 = vxpose.xlu0.b32.cont [14/16] 0.0, 128
      %2812 = vxpose.xlu0.b32.cont [15/16] 0.0, 128
      %2813 = vxpose.xlu0.b32.end [16/16] 0.0, 128
      %v2814 = vpop.trf.xlu0
      %v2815 = vpop.trf.xlu0
      %v2816 = vpop.trf.xlu0
      %v2817 = vpop.trf.xlu0
      %v2818 = vpop.trf.xlu0
      %v2819 = vpop.trf.xlu0
      %v2820 = vpop.trf.xlu0
      %v2821 = vpop.trf.xlu0
      %v2822 = vpop.trf.xlu0
      %v2823 = vpop.trf.xlu0
      %v2824 = vpop.trf.xlu0
      %v2825 = vpop.trf.xlu0
      %v2826 = vpop.trf.xlu0
      %v2827 = vpop.trf.xlu0
      %v2828 = vpop.trf.xlu0
      %v2829 = vpop.trf.xlu0
      %2830 = vxpose.xlu0.b32.start [1/16] %v811, 128
      %2831 = vxpose.xlu0.b32.cont [2/16] 0.0, 128
      %2832 = vxpose.xlu0.b32.cont [3/16] 0.0, 128
      %2833 = vxpose.xlu0.b32.cont [4/16] 0.0, 128
      %2834 = vxpose.xlu0.b32.cont [5/16] 0.0, 128
      %2835 = vxpose.xlu0.b32.cont [6/16] 0.0, 128
      %2836 = vxpose.xlu0.b32.cont [7/16] 0.0, 128
      %2837 = vxpose.xlu0.b32.cont [8/16] 0.0, 128
      %2838 = vxpose.xlu0.b32.cont [9/16] 0.0, 128
      %2839 = vxpose.xlu0.b32.cont [10/16] 0.0, 128
      %2840 = vxpose.xlu0.b32.cont [11/16] 0.0, 128
      %2841 = vxpose.xlu0.b32.cont [12/16] 0.0, 128
      %2842 = vxpose.xlu0.b32.cont [13/16] 0.0, 128
      %2843 = vxpose.xlu0.b32.cont [14/16] 0.0, 128
      %2844 = vxpose.xlu0.b32.cont [15/16] 0.0, 128
      %2845 = vxpose.xlu0.b32.end [16/16] 0.0, 128
      %v2846 = vpop.trf.xlu0
      %v2847 = vpop.trf.xlu0
      %v2848 = vpop.trf.xlu0
      %v2849 = vpop.trf.xlu0
      %v2850 = vpop.trf.xlu0
      %v2851 = vpop.trf.xlu0
      %v2852 = vpop.trf.xlu0
      %v2853 = vpop.trf.xlu0
      %v2854 = vpop.trf.xlu0
      %v2855 = vpop.trf.xlu0
      %v2856 = vpop.trf.xlu0
      %v2857 = vpop.trf.xlu0
      %v2858 = vpop.trf.xlu0
      %v2859 = vpop.trf.xlu0
      %v2860 = vpop.trf.xlu0
      %v2861 = vpop.trf.xlu0
      %v2862 = vld [vmem:[%s2] sm:$0xff]
      %v2864 = vsel %vm236, %v830, 0
      %v2867 = vsel %vm236, %v831, 0
      %v2870 = vsel %vm236, %v862, 0
      %v2873 = vsel %vm236, %v863, 0
      %v2876 = vsel %vm236, %v894, 0
      %v2879 = vsel %vm236, %v895, 0
      %v2882 = vsel %vm236, %v926, 0
      %v2885 = vsel %vm236, %v927, 0
      %v2888 = vsel %vm236, %v958, 0
      %v2891 = vsel %vm236, %v959, 0
      %v2894 = vsel %vm236, %v990, 0
      %v2897 = vsel %vm236, %v991, 0
      %v2900 = vsel %vm236, %v1022, 0
      %v2903 = vsel %vm236, %v1023, 0
      %v2906 = vsel %vm236, %v1054, 0
      %v2909 = vsel %vm236, %v1055, 0
      %v2912 = vsel %vm236, %v1086, 0
      %v2915 = vsel %vm236, %v1087, 0
      %v2918 = vsel %vm236, %v1118, 0
      %v2921 = vsel %vm236, %v1119, 0
      %v2924 = vsel %vm236, %v1150, 0
      %v2927 = vsel %vm236, %v1151, 0
      %v2930 = vsel %vm236, %v1182, 0
      %v2933 = vsel %vm236, %v1183, 0
      %v2936 = vsel %vm236, %v1214, 0
      %v2939 = vsel %vm236, %v1215, 0
      %v2942 = vsel %vm236, %v1246, 0
      %v2945 = vsel %vm236, %v1247, 0
      %v2948 = vsel %vm236, %v1278, 0
      %v2951 = vsel %vm236, %v1279, 0
      %v2954 = vsel %vm236, %v1310, 0
      %v2957 = vsel %vm236, %v1311, 0
      %v2960 = vsel %vm236, %v1342, 0
      %v2963 = vsel %vm236, %v1343, 0
      %v2966 = vsel %vm236, %v1374, 0
      %v2969 = vsel %vm236, %v1375, 0
      %v2972 = vsel %vm236, %v1406, 0
      %v2975 = vsel %vm236, %v1407, 0
      %v2978 = vsel %vm236, %v1438, 0
      %v2981 = vsel %vm236, %v1439, 0
      %v2984 = vsel %vm236, %v1470, 0
      %v2987 = vsel %vm236, %v1471, 0
      %v2990 = vsel %vm236, %v1502, 0
      %v2993 = vsel %vm236, %v1503, 0
      %v2996 = vsel %vm236, %v1534, 0
      %v2999 = vsel %vm236, %v1535, 0
      %v3002 = vsel %vm236, %v1566, 0
      %v3005 = vsel %vm236, %v1567, 0
      %v3008 = vsel %vm236, %v1598, 0
      %v3011 = vsel %vm236, %v1599, 0
      %v3014 = vsel %vm236, %v1630, 0
      %v3017 = vsel %vm236, %v1631, 0
      %v3020 = vsel %vm236, %v1662, 0
      %v3023 = vsel %vm236, %v1663, 0
      %v3026 = vsel %vm236, %v1694, 0
      %v3029 = vsel %vm236, %v1695, 0
      %v3032 = vsel %vm236, %v1726, 0
      %v3035 = vsel %vm236, %v1727, 0
      %v3038 = vsel %vm236, %v1758, 0
      %v3041 = vsel %vm236, %v1759, 0
      %v3044 = vsel %vm236, %v1790, 0
      %v3047 = vsel %vm236, %v1791, 0
      %v3050 = vsel %vm236, %v1822, 0
      %v3053 = vsel %vm236, %v1823, 0
      %v3056 = vsel %vm236, %v1854, 0
      %v3059 = vsel %vm236, %v1855, 0
      %v3062 = vsel %vm236, %v1886, 0
      %v3065 = vsel %vm236, %v1887, 0
      %v3068 = vsel %vm236, %v1918, 0
      %v3071 = vsel %vm236, %v1919, 0
      %v3074 = vsel %vm236, %v1950, 0
      %v3077 = vsel %vm236, %v1951, 0
      %v3080 = vsel %vm236, %v1982, 0
      %v3083 = vsel %vm236, %v1983, 0
      %v3086 = vsel %vm236, %v2014, 0
      %v3089 = vsel %vm236, %v2015, 0
      %v3092 = vsel %vm236, %v2046, 0
      %v3095 = vsel %vm236, %v2047, 0
      %v3098 = vsel %vm236, %v2078, 0
      %v3101 = vsel %vm236, %v2079, 0
      %v3104 = vsel %vm236, %v2110, 0
      %v3107 = vsel %vm236, %v2111, 0
      %v3110 = vsel %vm236, %v2142, 0
      %v3113 = vsel %vm236, %v2143, 0
      %v3116 = vsel %vm236, %v2174, 0
      %v3119 = vsel %vm236, %v2175, 0
      %v3122 = vsel %vm236, %v2206, 0
      %v3125 = vsel %vm236, %v2207, 0
      %v3128 = vsel %vm236, %v2238, 0
      %v3131 = vsel %vm236, %v2239, 0
      %v3134 = vsel %vm236, %v2270, 0
      %v3137 = vsel %vm236, %v2271, 0
      %v3140 = vsel %vm236, %v2302, 0
      %v3143 = vsel %vm236, %v2303, 0
      %v3146 = vsel %vm236, %v2334, 0
      %v3149 = vsel %vm236, %v2335, 0
      %v3152 = vsel %vm236, %v2366, 0
      %v3155 = vsel %vm236, %v2367, 0
      %v3158 = vsel %vm236, %v2398, 0
      %v3161 = vsel %vm236, %v2399, 0
      %v3164 = vsel %vm236, %v2430, 0
      %v3167 = vsel %vm236, %v2431, 0
      %v3170 = vsel %vm236, %v2462, 0
      %v3173 = vsel %vm236, %v2463, 0
      %v3176 = vsel %vm236, %v2494, 0
      %v3179 = vsel %vm236, %v2495, 0
      %v3182 = vsel %vm236, %v2526, 0
      %v3185 = vsel %vm236, %v2527, 0
      %v3188 = vsel %vm236, %v2558, 0
      %v3191 = vsel %vm236, %v2559, 0
      %v3194 = vsel %vm236, %v2590, 0
      %v3197 = vsel %vm236, %v2591, 0
      %v3200 = vsel %vm236, %v2622, 0
      %v3203 = vsel %vm236, %v2623, 0
      %v3206 = vsel %vm236, %v2654, 0
      %v3209 = vsel %vm236, %v2655, 0
      %v3212 = vsel %vm236, %v2686, 0
      %v3215 = vsel %vm236, %v2687, 0
      %v3218 = vsel %vm236, %v2718, 0
      %v3221 = vsel %vm236, %v2719, 0
      %v3224 = vsel %vm236, %v2750, 0
      %v3227 = vsel %vm236, %v2751, 0
      %v3230 = vsel %vm236, %v2782, 0
      %v3233 = vsel %vm236, %v2783, 0
      %v3236 = vsel %vm236, %v2814, 0
      %v3239 = vsel %vm236, %v2815, 0
      %v3242 = vsel %vm236, %v2846, 0
      %v3245 = vsel %vm236, %v2847, 0
      %3247 = vmatprep.subr.mxu0 0.0
      %3248 = vmatpush1.msra.mxu0 %v2862
      %3249 = vmatprep.subr.mxu0 0.0
      %3250 = vmatpush1.msra.mxu0 0.0
      %3251 = vmatprep.subr.mxu0 0.0
      %3252 = vmatpush1.msra.mxu0 0.0
      %3253 = vmatprep.subr.mxu0 0.0
      %3254 = vmatpush1.msra.mxu0 0.0
      %3255 = vmatprep.subr.mxu0 0.0
      %3256 = vmatpush1.msra.mxu0 0.0
      %3257 = vmatprep.subr.mxu0 0.0
      %3258 = vmatpush1.msra.mxu0 0.0
      %3259 = vmatprep.subr.mxu0 0.0
      %3260 = vmatpush1.msra.mxu0 0.0
      %3261 = vmatprep.subr.mxu0 0.0
      %3262 = vmatpush1.msra.mxu0 0.0
      %3263 = vmatprep.subr.mxu0 0.0
      %3264 = vmatpush1.msra.mxu0 0.0
      %3265 = vmatprep.subr.mxu0 0.0
      %3266 = vmatpush1.msra.mxu0 0.0
      %3267 = vmatprep.subr.mxu0 0.0
      %3268 = vmatpush1.msra.mxu0 0.0
      %3269 = vmatprep.subr.mxu0 0.0
      %3270 = vmatpush1.msra.mxu0 0.0
      %3271 = vmatprep.subr.mxu0 0.0
      %3272 = vmatpush1.msra.mxu0 0.0
      %3273 = vmatprep.subr.mxu0 0.0
      %3274 = vmatpush1.msra.mxu0 0.0
      %3275 = vmatprep.subr.mxu0 0.0
      %3276 = vmatpush1.msra.mxu0 0.0
      %3277 = vmatprep.subr.mxu0 0.0
      %3278 = vmatpush1.msra.mxu0 0.0
      %3279 = vmatprep.subr.mxu0 0.0
      %3280 = vmatpush1.msra.mxu0 0.0
      %3281 = vmatprep.subr.mxu0 0.0
      %3282 = vmatpush1.msra.mxu0 0.0
      %3283 = vmatprep.subr.mxu0 0.0
      %3284 = vmatpush1.msra.mxu0 0.0
      %3285 = vmatprep.subr.mxu0 0.0
      %3286 = vmatpush1.msra.mxu0 0.0
      %3287 = vmatprep.subr.mxu0 0.0
      %3288 = vmatpush1.msra.mxu0 0.0
      %3289 = vmatprep.subr.mxu0 0.0
      %3290 = vmatpush1.msra.mxu0 0.0
      %3291 = vmatprep.subr.mxu0 0.0
      %3292 = vmatpush1.msra.mxu0 0.0
      %3293 = vmatprep.subr.mxu0 0.0
      %3294 = vmatpush1.msra.mxu0 0.0
      %3295 = vmatprep.subr.mxu0 0.0
      %3296 = vmatpush1.msra.mxu0 0.0
      %3297 = vmatprep.subr.mxu0 0.0
      %3298 = vmatpush1.msra.mxu0 0.0
      %3299 = vmatprep.subr.mxu0 0.0
      %3300 = vmatpush1.msra.mxu0 0.0
      %3301 = vmatprep.subr.mxu0 0.0
      %3302 = vmatpush1.msra.mxu0 0.0
      %3303 = vmatprep.subr.mxu0 0.0
      %3304 = vmatpush1.msra.mxu0 0.0
      %3305 = vmatprep.subr.mxu0 0.0
      %3306 = vmatpush1.msra.mxu0 0.0
      %3307 = vmatprep.subr.mxu0 0.0
      %3308 = vmatpush1.msra.mxu0 0.0
      %3309 = vmatprep.subr.mxu0 0.0
      %3310 = vmatpush1.msra.mxu0 0.0
      %3311 = vmatprep.mubr.f32.mxu0 0.0
      %3312 = vmatmul.mubr.f32.gmra.mrb[0].mxu0 %v2864
      %v3313 = vpop.f32.mrb[0].mxu0
      %v3314 = vadd.f32 0.0, %v3313
      %v3315 = vpop.f32.mrb[0].mxu0
      %3316 = vmatprep.mubr.f32.mxu0 0.0
      %3317 = vmatmul.mubr.f32.gmra.mrb[0].mxu0 %v2867
      %v3318 = vpop.f32.mrb[0].mxu0
      %v3319 = vadd.f32 0.0, %v3318
      %v3320 = vpop.f32.mrb[0].mxu0
      %3321 = vmatprep.mubr.f32.mxu0 0.0
      %3322 = vmatmul.mubr.f32.gmra.mrb[0].mxu0 %v2870
      %v3323 = vpop.f32.mrb[0].mxu0
      %v3324 = vadd.f32 0.0, %v3323
      %v3325 = vpop.f32.mrb[0].mxu0
      %3326 = vmatprep.mubr.f32.mxu0 0.0
      %3327 = vmatmul.mubr.f32.gmra.mrb[0].mxu0 %v2873
      %v3328 = vpop.f32.mrb[0].mxu0
      %v3329 = vadd.f32 0.0, %v3328
      %v3330 = vpop.f32.mrb[0].mxu0
      %3331 = vmatprep.mubr.f32.mxu0 0.0
      %3332 = vmatmul.mubr.f32.gmra.mrb[0].mxu0 %v2876
      %v3333 = vpop.f32.mrb[0].mxu0
      %v3334 = vadd.f32 0.0, %v3333
      %v3335 = vpop.f32.mrb[0].mxu0
      %3336 = vmatprep.mubr.f32.mxu0 0.0
      %3337 = vmatmul.mubr.f32.gmra.mrb[0].mxu0 %v2879
      %v3338 = vpop.f32.mrb[0].mxu0
      %v3339 = vadd.f32 0.0, %v3338
      %v3340 = vpop.f32.mrb[0].mxu0
      %3341 = vmatprep.mubr.f32.mxu0 0.0
      %3342 = vmatmul.mubr.f32.gmra.mrb[0].mxu0 %v2882
      %v3343 = vpop.f32.mrb[0].mxu0
      %v3344 = vadd.f32 0.0, %v3343
      %v3345 = vpop.f32.mrb[0].mxu0
      %3346 = vmatprep.mubr.f32.mxu0 0.0
      %3347 = vmatmul.mubr.f32.gmra.mrb[0].mxu0 %v2885
      %v3348 = vpop.f32.mrb[0].mxu0
      %v3349 = vadd.f32 0.0, %v3348
      %v3350 = vpop.f32.mrb[0].mxu0
      %3351 = vmatprep.mubr.f32.mxu0 0.0
      %3352 = vmatmul.mubr.f32.gmra.mrb[0].mxu0 %v2888
      %v3353 = vpop.f32.mrb[0].mxu0
      %v3354 = vadd.f32 0.0, %v3353
      %v3355 = vpop.f32.mrb[0].mxu0
      %3356 = vmatprep.mubr.f32.mxu0 0.0
      %3357 = vmatmul.mubr.f32.gmra.mrb[0].mxu0 %v2891
      %v3358 = vpop.f32.mrb[0].mxu0
      %v3359 = vadd.f32 0.0, %v3358
      %v3360 = vpop.f32.mrb[0].mxu0
      %3361 = vmatprep.mubr.f32.mxu0 0.0
      %3362 = vmatmul.mubr.f32.gmra.mrb[0].mxu0 %v2894
      %v3363 = vpop.f32.mrb[0].mxu0
      %v3364 = vadd.f32 0.0, %v3363
      %v3365 = vpop.f32.mrb[0].mxu0
      %3366 = vmatprep.mubr.f32.mxu0 0.0
      %3367 = vmatmul.mubr.f32.gmra.mrb[0].mxu0 %v2897
      %v3368 = vpop.f32.mrb[0].mxu0
      %v3369 = vadd.f32 0.0, %v3368
      %v3370 = vpop.f32.mrb[0].mxu0
      %3371 = vmatprep.mubr.f32.mxu0 0.0
      %3372 = vmatmul.mubr.f32.gmra.mrb[0].mxu0 %v2900
      %v3373 = vpop.f32.mrb[0].mxu0
      %v3374 = vadd.f32 0.0, %v3373
      %v3375 = vpop.f32.mrb[0].mxu0
      %3376 = vmatprep.mubr.f32.mxu0 0.0
      %3377 = vmatmul.mubr.f32.gmra.mrb[0].mxu0 %v2903
      %v3378 = vpop.f32.mrb[0].mxu0
      %v3379 = vadd.f32 0.0, %v3378
      %v3380 = vpop.f32.mrb[0].mxu0
      %3381 = vmatprep.mubr.f32.mxu0 0.0
      %3382 = vmatmul.mubr.f32.gmra.mrb[0].mxu0 %v2906
      %v3383 = vpop.f32.mrb[0].mxu0
      %v3384 = vadd.f32 0.0, %v3383
      %v3385 = vpop.f32.mrb[0].mxu0
      %3386 = vmatprep.mubr.f32.mxu0 0.0
      %3387 = vmatmul.mubr.f32.gmra.mrb[0].mxu0 %v2909
      %v3388 = vpop.f32.mrb[0].mxu0
      %v3389 = vadd.f32 0.0, %v3388
      %v3390 = vpop.f32.mrb[0].mxu0
      %3391 = vmatprep.mubr.f32.mxu0 0.0
      %3392 = vmatmul.mubr.f32.gmra.mrb[0].mxu0 %v2912
      %v3393 = vpop.f32.mrb[0].mxu0
      %v3394 = vadd.f32 0.0, %v3393
      %v3395 = vpop.f32.mrb[0].mxu0
      %3396 = vmatprep.mubr.f32.mxu0 0.0
      %3397 = vmatmul.mubr.f32.gmra.mrb[0].mxu0 %v2915
      %v3398 = vpop.f32.mrb[0].mxu0
      %v3399 = vadd.f32 0.0, %v3398
      %v3400 = vpop.f32.mrb[0].mxu0
      %3401 = vmatprep.mubr.f32.mxu0 0.0
      %3402 = vmatmul.mubr.f32.gmra.mrb[0].mxu0 %v2918
      %v3403 = vpop.f32.mrb[0].mxu0
      %v3404 = vadd.f32 0.0, %v3403
      %v3405 = vpop.f32.mrb[0].mxu0
      %3406 = vmatprep.mubr.f32.mxu0 0.0
      %3407 = vmatmul.mubr.f32.gmra.mrb[0].mxu0 %v2921
      %v3408 = vpop.f32.mrb[0].mxu0
      %v3409 = vadd.f32 0.0, %v3408
      %v3410 = vpop.f32.mrb[0].mxu0
      %3411 = vmatprep.mubr.f32.mxu0 0.0
      %3412 = vmatmul.mubr.f32.gmra.mrb[0].mxu0 %v2924
      %v3413 = vpop.f32.mrb[0].mxu0
      %v3414 = vadd.f32 0.0, %v3413
      %v3415 = vpop.f32.mrb[0].mxu0
      %3416 = vmatprep.mubr.f32.mxu0 0.0
      %3417 = vmatmul.mubr.f32.gmra.mrb[0].mxu0 %v2927
      %v3418 = vpop.f32.mrb[0].mxu0
      %v3419 = vadd.f32 0.0, %v3418
      %v3420 = vpop.f32.mrb[0].mxu0
      %3421 = vmatprep.mubr.f32.mxu0 0.0
      %3422 = vmatmul.mubr.f32.gmra.mrb[0].mxu0 %v2930
      %v3423 = vpop.f32.mrb[0].mxu0
      %v3424 = vadd.f32 0.0, %v3423
      %v3425 = vpop.f32.mrb[0].mxu0
      %3426 = vmatprep.mubr.f32.mxu0 0.0
      %3427 = vmatmul.mubr.f32.gmra.mrb[0].mxu0 %v2933
      %v3428 = vpop.f32.mrb[0].mxu0
      %v3429 = vadd.f32 0.0, %v3428
      %v3430 = vpop.f32.mrb[0].mxu0
      %3431 = vmatprep.mubr.f32.mxu0 0.0
      %3432 = vmatmul.mubr.f32.gmra.mrb[0].mxu0 %v2936
      %v3433 = vpop.f32.mrb[0].mxu0
      %v3434 = vadd.f32 0.0, %v3433
      %v3435 = vpop.f32.mrb[0].mxu0
      %3436 = vmatprep.mubr.f32.mxu0 0.0
      %3437 = vmatmul.mubr.f32.gmra.mrb[0].mxu0 %v2939
      %v3438 = vpop.f32.mrb[0].mxu0
      %v3439 = vadd.f32 0.0, %v3438
      %v3440 = vpop.f32.mrb[0].mxu0
      %3441 = vmatprep.mubr.f32.mxu0 0.0
      %3442 = vmatmul.mubr.f32.gmra.mrb[0].mxu0 %v2942
      %v3443 = vpop.f32.mrb[0].mxu0
      %v3444 = vadd.f32 0.0, %v3443
      %v3445 = vpop.f32.mrb[0].mxu0
      %3446 = vmatprep.mubr.f32.mxu0 0.0
      %3447 = vmatmul.mubr.f32.gmra.mrb[0].mxu0 %v2945
      %v3448 = vpop.f32.mrb[0].mxu0
      %v3449 = vadd.f32 0.0, %v3448
      %v3450 = vpop.f32.mrb[0].mxu0
      %3451 = vmatprep.mubr.f32.mxu0 0.0
      %3452 = vmatmul.mubr.f32.gmra.mrb[0].mxu0 %v2948
      %v3453 = vpop.f32.mrb[0].mxu0
      %v3454 = vadd.f32 0.0, %v3453
      %v3455 = vpop.f32.mrb[0].mxu0
      %3456 = vmatprep.mubr.f32.mxu0 0.0
      %3457 = vmatmul.mubr.f32.gmra.mrb[0].mxu0 %v2951
      %v3458 = vpop.f32.mrb[0].mxu0
      %v3459 = vadd.f32 0.0, %v3458
      %v3460 = vpop.f32.mrb[0].mxu0
      %3461 = vmatprep.mubr.f32.mxu0 0.0
      %3462 = vmatmul.mubr.f32.gmra.mrb[0].mxu0 %v2954
      %v3463 = vpop.f32.mrb[0].mxu0
      %v3464 = vadd.f32 0.0, %v3463
      %v3465 = vpop.f32.mrb[0].mxu0
      %3466 = vmatprep.mubr.f32.mxu0 0.0
      %3467 = vmatmul.mubr.f32.gmra.mrb[0].mxu0 %v2957
      %v3468 = vpop.f32.mrb[0].mxu0
      %v3469 = vadd.f32 0.0, %v3468
      %v3470 = vpop.f32.mrb[0].mxu0
      %3471 = vmatprep.mubr.f32.mxu0 0.0
      %3472 = vmatmul.mubr.f32.gmra.mrb[0].mxu0 %v2960
      %v3473 = vpop.f32.mrb[0].mxu0
      %v3474 = vadd.f32 0.0, %v3473
      %v3475 = vpop.f32.mrb[0].mxu0
      %3476 = vmatprep.mubr.f32.mxu0 0.0
      %3477 = vmatmul.mubr.f32.gmra.mrb[0].mxu0 %v2963
      %v3478 = vpop.f32.mrb[0].mxu0
      %v3479 = vadd.f32 0.0, %v3478
      %v3480 = vpop.f32.mrb[0].mxu0
      %3481 = vmatprep.mubr.f32.mxu0 0.0
      %3482 = vmatmul.mubr.f32.gmra.mrb[0].mxu0 %v2966
      %v3483 = vpop.f32.mrb[0].mxu0
      %v3484 = vadd.f32 0.0, %v3483
      %v3485 = vpop.f32.mrb[0].mxu0
      %3486 = vmatprep.mubr.f32.mxu0 0.0
      %3487 = vmatmul.mubr.f32.gmra.mrb[0].mxu0 %v2969
      %v3488 = vpop.f32.mrb[0].mxu0
      %v3489 = vadd.f32 0.0, %v3488
      %v3490 = vpop.f32.mrb[0].mxu0
      %3491 = vmatprep.mubr.f32.mxu0 0.0
      %3492 = vmatmul.mubr.f32.gmra.mrb[0].mxu0 %v2972
      %v3493 = vpop.f32.mrb[0].mxu0
      %v3494 = vadd.f32 0.0, %v3493
      %v3495 = vpop.f32.mrb[0].mxu0
      %3496 = vmatprep.mubr.f32.mxu0 0.0
      %3497 = vmatmul.mubr.f32.gmra.mrb[0].mxu0 %v2975
      %v3498 = vpop.f32.mrb[0].mxu0
      %v3499 = vadd.f32 0.0, %v3498
      %v3500 = vpop.f32.mrb[0].mxu0
      %3501 = vmatprep.mubr.f32.mxu0 0.0
      %3502 = vmatmul.mubr.f32.gmra.mrb[0].mxu0 %v2978
      %v3503 = vpop.f32.mrb[0].mxu0
      %v3504 = vadd.f32 0.0, %v3503
      %v3505 = vpop.f32.mrb[0].mxu0
      %3506 = vmatprep.mubr.f32.mxu0 0.0
      %3507 = vmatmul.mubr.f32.gmra.mrb[0].mxu0 %v2981
      %v3508 = vpop.f32.mrb[0].mxu0
      %v3509 = vadd.f32 0.0, %v3508
      %v3510 = vpop.f32.mrb[0].mxu0
      %3511 = vmatprep.mubr.f32.mxu0 0.0
      %3512 = vmatmul.mubr.f32.gmra.mrb[0].mxu0 %v2984
      %v3513 = vpop.f32.mrb[0].mxu0
      %v3514 = vadd.f32 0.0, %v3513
      %v3515 = vpop.f32.mrb[0].mxu0
      %3516 = vmatprep.mubr.f32.mxu0 0.0
      %3517 = vmatmul.mubr.f32.gmra.mrb[0].mxu0 %v2987
      %v3518 = vpop.f32.mrb[0].mxu0
      %v3519 = vadd.f32 0.0, %v3518
      %v3520 = vpop.f32.mrb[0].mxu0
      %3521 = vmatprep.mubr.f32.mxu0 0.0
      %3522 = vmatmul.mubr.f32.gmra.mrb[0].mxu0 %v2990
      %v3523 = vpop.f32.mrb[0].mxu0
      %v3524 = vadd.f32 0.0, %v3523
      %v3525 = vpop.f32.mrb[0].mxu0
      %3526 = vmatprep.mubr.f32.mxu0 0.0
      %3527 = vmatmul.mubr.f32.gmra.mrb[0].mxu0 %v2993
      %v3528 = vpop.f32.mrb[0].mxu0
      %v3529 = vadd.f32 0.0, %v3528
      %v3530 = vpop.f32.mrb[0].mxu0
      %3531 = vmatprep.mubr.f32.mxu0 0.0
      %3532 = vmatmul.mubr.f32.gmra.mrb[0].mxu0 %v2996
      %v3533 = vpop.f32.mrb[0].mxu0
      %v3534 = vadd.f32 0.0, %v3533
      %v3535 = vpop.f32.mrb[0].mxu0
      %3536 = vmatprep.mubr.f32.mxu0 0.0
      %3537 = vmatmul.mubr.f32.gmra.mrb[0].mxu0 %v2999
      %v3538 = vpop.f32.mrb[0].mxu0
      %v3539 = vadd.f32 0.0, %v3538
      %v3540 = vpop.f32.mrb[0].mxu0
      %3541 = vmatprep.mubr.f32.mxu0 0.0
      %3542 = vmatmul.mubr.f32.gmra.mrb[0].mxu0 %v3002
      %v3543 = vpop.f32.mrb[0].mxu0
      %v3544 = vadd.f32 0.0, %v3543
      %v3545 = vpop.f32.mrb[0].mxu0
      %3546 = vmatprep.mubr.f32.mxu0 0.0
      %3547 = vmatmul.mubr.f32.gmra.mrb[0].mxu0 %v3005
      %v3548 = vpop.f32.mrb[0].mxu0
      %v3549 = vadd.f32 0.0, %v3548
      %v3550 = vpop.f32.mrb[0].mxu0
      %3551 = vmatprep.mubr.f32.mxu0 0.0
      %3552 = vmatmul.mubr.f32.gmra.mrb[0].mxu0 %v3008
      %v3553 = vpop.f32.mrb[0].mxu0
      %v3554 = vadd.f32 0.0, %v3553
      %v3555 = vpop.f32.mrb[0].mxu0
      %3556 = vmatprep.mubr.f32.mxu0 0.0
      %3557 = vmatmul.mubr.f32.gmra.mrb[0].mxu0 %v3011
      %v3558 = vpop.f32.mrb[0].mxu0
      %v3559 = vadd.f32 0.0, %v3558
      %v3560 = vpop.f32.mrb[0].mxu0
      %3561 = vmatprep.mubr.f32.mxu0 0.0
      %3562 = vmatmul.mubr.f32.gmra.mrb[0].mxu0 %v3014
      %v3563 = vpop.f32.mrb[0].mxu0
      %v3564 = vadd.f32 0.0, %v3563
      %v3565 = vpop.f32.mrb[0].mxu0
      %3566 = vmatprep.mubr.f32.mxu0 0.0
      %3567 = vmatmul.mubr.f32.gmra.mrb[0].mxu0 %v3017
      %v3568 = vpop.f32.mrb[0].mxu0
      %v3569 = vadd.f32 0.0, %v3568
      %v3570 = vpop.f32.mrb[0].mxu0
      %3571 = vmatprep.mubr.f32.mxu0 0.0
      %3572 = vmatmul.mubr.f32.gmra.mrb[0].mxu0 %v3020
      %v3573 = vpop.f32.mrb[0].mxu0
      %v3574 = vadd.f32 0.0, %v3573
      %v3575 = vpop.f32.mrb[0].mxu0
      %3576 = vmatprep.mubr.f32.mxu0 0.0
      %3577 = vmatmul.mubr.f32.gmra.mrb[0].mxu0 %v3023
      %v3578 = vpop.f32.mrb[0].mxu0
      %v3579 = vadd.f32 0.0, %v3578
      %v3580 = vpop.f32.mrb[0].mxu0
      %3581 = vmatprep.mubr.f32.mxu0 0.0
      %3582 = vmatmul.mubr.f32.gmra.mrb[0].mxu0 %v3026
      %v3583 = vpop.f32.mrb[0].mxu0
      %v3584 = vadd.f32 0.0, %v3583
      %v3585 = vpop.f32.mrb[0].mxu0
      %3586 = vmatprep.mubr.f32.mxu0 0.0
      %3587 = vmatmul.mubr.f32.gmra.mrb[0].mxu0 %v3029
      %v3588 = vpop.f32.mrb[0].mxu0
      %v3589 = vadd.f32 0.0, %v3588
      %v3590 = vpop.f32.mrb[0].mxu0
      %3591 = vmatprep.mubr.f32.mxu0 0.0
      %3592 = vmatmul.mubr.f32.gmra.mrb[0].mxu0 %v3032
      %v3593 = vpop.f32.mrb[0].mxu0
      %v3594 = vadd.f32 0.0, %v3593
      %v3595 = vpop.f32.mrb[0].mxu0
      %3596 = vmatprep.mubr.f32.mxu0 0.0
      %3597 = vmatmul.mubr.f32.gmra.mrb[0].mxu0 %v3035
      %v3598 = vpop.f32.mrb[0].mxu0
      %v3599 = vadd.f32 0.0, %v3598
      %v3600 = vpop.f32.mrb[0].mxu0
      %3601 = vmatprep.mubr.f32.mxu0 0.0
      %3602 = vmatmul.mubr.f32.gmra.mrb[0].mxu0 %v3038
      %v3603 = vpop.f32.mrb[0].mxu0
      %v3604 = vadd.f32 0.0, %v3603
      %v3605 = vpop.f32.mrb[0].mxu0
      %3606 = vmatprep.mubr.f32.mxu0 0.0
      %3607 = vmatmul.mubr.f32.gmra.mrb[0].mxu0 %v3041
      %v3608 = vpop.f32.mrb[0].mxu0
      %v3609 = vadd.f32 0.0, %v3608
      %v3610 = vpop.f32.mrb[0].mxu0
      %3611 = vmatprep.mubr.f32.mxu0 0.0
      %3612 = vmatmul.mubr.f32.gmra.mrb[0].mxu0 %v3044
      %v3613 = vpop.f32.mrb[0].mxu0
      %v3614 = vadd.f32 0.0, %v3613
      %v3615 = vpop.f32.mrb[0].mxu0
      %3616 = vmatprep.mubr.f32.mxu0 0.0
      %3617 = vmatmul.mubr.f32.gmra.mrb[0].mxu0 %v3047
      %v3618 = vpop.f32.mrb[0].mxu0
      %v3619 = vadd.f32 0.0, %v3618
      %v3620 = vpop.f32.mrb[0].mxu0
      %3621 = vmatprep.mubr.f32.mxu0 0.0
      %3622 = vmatmul.mubr.f32.gmra.mrb[0].mxu0 %v3050
      %v3623 = vpop.f32.mrb[0].mxu0
      %v3624 = vadd.f32 0.0, %v3623
      %v3625 = vpop.f32.mrb[0].mxu0
      %3626 = vmatprep.mubr.f32.mxu0 0.0
      %3627 = vmatmul.mubr.f32.gmra.mrb[0].mxu0 %v3053
      %v3628 = vpop.f32.mrb[0].mxu0
      %v3629 = vadd.f32 0.0, %v3628
      %v3630 = vpop.f32.mrb[0].mxu0
      %3631 = vmatprep.mubr.f32.mxu0 0.0
      %3632 = vmatmul.mubr.f32.gmra.mrb[0].mxu0 %v3056
      %v3633 = vpop.f32.mrb[0].mxu0
      %v3634 = vadd.f32 0.0, %v3633
      %v3635 = vpop.f32.mrb[0].mxu0
      %3636 = vmatprep.mubr.f32.mxu0 0.0
      %3637 = vmatmul.mubr.f32.gmra.mrb[0].mxu0 %v3059
      %v3638 = vpop.f32.mrb[0].mxu0
      %v3639 = vadd.f32 0.0, %v3638
      %v3640 = vpop.f32.mrb[0].mxu0
      %3641 = vmatprep.mubr.f32.mxu0 0.0
      %3642 = vmatmul.mubr.f32.gmra.mrb[0].mxu0 %v3062
      %v3643 = vpop.f32.mrb[0].mxu0
      %v3644 = vadd.f32 0.0, %v3643
      %v3645 = vpop.f32.mrb[0].mxu0
      %3646 = vmatprep.mubr.f32.mxu0 0.0
      %3647 = vmatmul.mubr.f32.gmra.mrb[0].mxu0 %v3065
      %v3648 = vpop.f32.mrb[0].mxu0
      %v3649 = vadd.f32 0.0, %v3648
      %v3650 = vpop.f32.mrb[0].mxu0
      %3651 = vmatprep.mubr.f32.mxu0 0.0
      %3652 = vmatmul.mubr.f32.gmra.mrb[0].mxu0 %v3068
      %v3653 = vpop.f32.mrb[0].mxu0
      %v3654 = vadd.f32 0.0, %v3653
      %v3655 = vpop.f32.mrb[0].mxu0
      %3656 = vmatprep.mubr.f32.mxu0 0.0
      %3657 = vmatmul.mubr.f32.gmra.mrb[0].mxu0 %v3071
      %v3658 = vpop.f32.mrb[0].mxu0
      %v3659 = vadd.f32 0.0, %v3658
      %v3660 = vpop.f32.mrb[0].mxu0
      %3661 = vmatprep.mubr.f32.mxu0 0.0
      %3662 = vmatmul.mubr.f32.gmra.mrb[0].mxu0 %v3074
      %v3663 = vpop.f32.mrb[0].mxu0
      %v3664 = vadd.f32 0.0, %v3663
      %v3665 = vpop.f32.mrb[0].mxu0
      %3666 = vmatprep.mubr.f32.mxu0 0.0
      %3667 = vmatmul.mubr.f32.gmra.mrb[0].mxu0 %v3077
      %v3668 = vpop.f32.mrb[0].mxu0
      %v3669 = vadd.f32 0.0, %v3668
      %v3670 = vpop.f32.mrb[0].mxu0
      %3671 = vmatprep.mubr.f32.mxu0 0.0
      %3672 = vmatmul.mubr.f32.gmra.mrb[0].mxu0 %v3080
      %v3673 = vpop.f32.mrb[0].mxu0
      %v3674 = vadd.f32 0.0, %v3673
      %v3675 = vpop.f32.mrb[0].mxu0
      %3676 = vmatprep.mubr.f32.mxu0 0.0
      %3677 = vmatmul.mubr.f32.gmra.mrb[0].mxu0 %v3083
      %v3678 = vpop.f32.mrb[0].mxu0
      %v3679 = vadd.f32 0.0, %v3678
      %v3680 = vpop.f32.mrb[0].mxu0
      %3681 = vmatprep.mubr.f32.mxu0 0.0
      %3682 = vmatmul.mubr.f32.gmra.mrb[0].mxu0 %v3086
      %v3683 = vpop.f32.mrb[0].mxu0
      %v3684 = vadd.f32 0.0, %v3683
      %v3685 = vpop.f32.mrb[0].mxu0
      %3686 = vmatprep.mubr.f32.mxu0 0.0
      %3687 = vmatmul.mubr.f32.gmra.mrb[0].mxu0 %v3089
      %v3688 = vpop.f32.mrb[0].mxu0
      %v3689 = vadd.f32 0.0, %v3688
      %v3690 = vpop.f32.mrb[0].mxu0
      %3691 = vmatprep.mubr.f32.mxu0 0.0
      %3692 = vmatmul.mubr.f32.gmra.mrb[0].mxu0 %v3092
      %v3693 = vpop.f32.mrb[0].mxu0
      %v3694 = vadd.f32 0.0, %v3693
      %v3695 = vpop.f32.mrb[0].mxu0
      %3696 = vmatprep.mubr.f32.mxu0 0.0
      %3697 = vmatmul.mubr.f32.gmra.mrb[0].mxu0 %v3095
      %v3698 = vpop.f32.mrb[0].mxu0
      %v3699 = vadd.f32 0.0, %v3698
      %v3700 = vpop.f32.mrb[0].mxu0
      %3701 = vmatprep.mubr.f32.mxu0 0.0
      %3702 = vmatmul.mubr.f32.gmra.mrb[0].mxu0 %v3098
      %v3703 = vpop.f32.mrb[0].mxu0
      %v3704 = vadd.f32 0.0, %v3703
      %v3705 = vpop.f32.mrb[0].mxu0
      %3706 = vmatprep.mubr.f32.mxu0 0.0
      %3707 = vmatmul.mubr.f32.gmra.mrb[0].mxu0 %v3101
      %v3708 = vpop.f32.mrb[0].mxu0
      %v3709 = vadd.f32 0.0, %v3708
      %v3710 = vpop.f32.mrb[0].mxu0
      %3711 = vmatprep.mubr.f32.mxu0 0.0
      %3712 = vmatmul.mubr.f32.gmra.mrb[0].mxu0 %v3104
      %v3713 = vpop.f32.mrb[0].mxu0
      %v3714 = vadd.f32 0.0, %v3713
      %v3715 = vpop.f32.mrb[0].mxu0
      %3716 = vmatprep.mubr.f32.mxu0 0.0
      %3717 = vmatmul.mubr.f32.gmra.mrb[0].mxu0 %v3107
      %v3718 = vpop.f32.mrb[0].mxu0
      %v3719 = vadd.f32 0.0, %v3718
      %v3720 = vpop.f32.mrb[0].mxu0
      %3721 = vmatprep.mubr.f32.mxu0 0.0
      %3722 = vmatmul.mubr.f32.gmra.mrb[0].mxu0 %v3110
      %v3723 = vpop.f32.mrb[0].mxu0
      %v3724 = vadd.f32 0.0, %v3723
      %v3725 = vpop.f32.mrb[0].mxu0
      %3726 = vmatprep.mubr.f32.mxu0 0.0
      %3727 = vmatmul.mubr.f32.gmra.mrb[0].mxu0 %v3113
      %v3728 = vpop.f32.mrb[0].mxu0
      %v3729 = vadd.f32 0.0, %v3728
      %v3730 = vpop.f32.mrb[0].mxu0
      %3731 = vmatprep.mubr.f32.mxu0 0.0
      %3732 = vmatmul.mubr.f32.gmra.mrb[0].mxu0 %v3116
      %v3733 = vpop.f32.mrb[0].mxu0
      %v3734 = vadd.f32 0.0, %v3733
      %v3735 = vpop.f32.mrb[0].mxu0
      %3736 = vmatprep.mubr.f32.mxu0 0.0
      %3737 = vmatmul.mubr.f32.gmra.mrb[0].mxu0 %v3119
      %v3738 = vpop.f32.mrb[0].mxu0
      %v3739 = vadd.f32 0.0, %v3738
      %v3740 = vpop.f32.mrb[0].mxu0
      %3741 = vmatprep.mubr.f32.mxu0 0.0
      %3742 = vmatmul.mubr.f32.gmra.mrb[0].mxu0 %v3122
      %v3743 = vpop.f32.mrb[0].mxu0
      %v3744 = vadd.f32 0.0, %v3743
      %v3745 = vpop.f32.mrb[0].mxu0
      %3746 = vmatprep.mubr.f32.mxu0 0.0
      %3747 = vmatmul.mubr.f32.gmra.mrb[0].mxu0 %v3125
      %v3748 = vpop.f32.mrb[0].mxu0
      %v3749 = vadd.f32 0.0, %v3748
      %v3750 = vpop.f32.mrb[0].mxu0
      %3751 = vmatprep.mubr.f32.mxu0 0.0
      %3752 = vmatmul.mubr.f32.gmra.mrb[0].mxu0 %v3128
      %v3753 = vpop.f32.mrb[0].mxu0
      %v3754 = vadd.f32 0.0, %v3753
      %v3755 = vpop.f32.mrb[0].mxu0
      %3756 = vmatprep.mubr.f32.mxu0 0.0
      %3757 = vmatmul.mubr.f32.gmra.mrb[0].mxu0 %v3131
      %v3758 = vpop.f32.mrb[0].mxu0
      %v3759 = vadd.f32 0.0, %v3758
      %v3760 = vpop.f32.mrb[0].mxu0
      %3761 = vmatprep.mubr.f32.mxu0 0.0
      %3762 = vmatmul.mubr.f32.gmra.mrb[0].mxu0 %v3134
      %v3763 = vpop.f32.mrb[0].mxu0
      %v3764 = vadd.f32 0.0, %v3763
      %v3765 = vpop.f32.mrb[0].mxu0
      %3766 = vmatprep.mubr.f32.mxu0 0.0
      %3767 = vmatmul.mubr.f32.gmra.mrb[0].mxu0 %v3137
      %v3768 = vpop.f32.mrb[0].mxu0
      %v3769 = vadd.f32 0.0, %v3768
      %v3770 = vpop.f32.mrb[0].mxu0
      %3771 = vmatprep.mubr.f32.mxu0 0.0
      %3772 = vmatmul.mubr.f32.gmra.mrb[0].mxu0 %v3140
      %v3773 = vpop.f32.mrb[0].mxu0
      %v3774 = vadd.f32 0.0, %v3773
      %v3775 = vpop.f32.mrb[0].mxu0
      %3776 = vmatprep.mubr.f32.mxu0 0.0
      %3777 = vmatmul.mubr.f32.gmra.mrb[0].mxu0 %v3143
      %v3778 = vpop.f32.mrb[0].mxu0
      %v3779 = vadd.f32 0.0, %v3778
      %v3780 = vpop.f32.mrb[0].mxu0
      %3781 = vmatprep.mubr.f32.mxu0 0.0
      %3782 = vmatmul.mubr.f32.gmra.mrb[0].mxu0 %v3146
      %v3783 = vpop.f32.mrb[0].mxu0
      %v3784 = vadd.f32 0.0, %v3783
      %v3785 = vpop.f32.mrb[0].mxu0
      %3786 = vmatprep.mubr.f32.mxu0 0.0
      %3787 = vmatmul.mubr.f32.gmra.mrb[0].mxu0 %v3149
      %v3788 = vpop.f32.mrb[0].mxu0
      %v3789 = vadd.f32 0.0, %v3788
      %v3790 = vpop.f32.mrb[0].mxu0
      %3791 = vmatprep.mubr.f32.mxu0 0.0
      %3792 = vmatmul.mubr.f32.gmra.mrb[0].mxu0 %v3152
      %v3793 = vpop.f32.mrb[0].mxu0
      %v3794 = vadd.f32 0.0, %v3793
      %v3795 = vpop.f32.mrb[0].mxu0
      %3796 = vmatprep.mubr.f32.mxu0 0.0
      %3797 = vmatmul.mubr.f32.gmra.mrb[0].mxu0 %v3155
      %v3798 = vpop.f32.mrb[0].mxu0
      %v3799 = vadd.f32 0.0, %v3798
      %v3800 = vpop.f32.mrb[0].mxu0
      %3801 = vmatprep.mubr.f32.mxu0 0.0
      %3802 = vmatmul.mubr.f32.gmra.mrb[0].mxu0 %v3158
      %v3803 = vpop.f32.mrb[0].mxu0
      %v3804 = vadd.f32 0.0, %v3803
      %v3805 = vpop.f32.mrb[0].mxu0
      %3806 = vmatprep.mubr.f32.mxu0 0.0
      %3807 = vmatmul.mubr.f32.gmra.mrb[0].mxu0 %v3161
      %v3808 = vpop.f32.mrb[0].mxu0
      %v3809 = vadd.f32 0.0, %v3808
      %v3810 = vpop.f32.mrb[0].mxu0
      %3811 = vmatprep.mubr.f32.mxu0 0.0
      %3812 = vmatmul.mubr.f32.gmra.mrb[0].mxu0 %v3164
      %v3813 = vpop.f32.mrb[0].mxu0
      %v3814 = vadd.f32 0.0, %v3813
      %v3815 = vpop.f32.mrb[0].mxu0
      %3816 = vmatprep.mubr.f32.mxu0 0.0
      %3817 = vmatmul.mubr.f32.gmra.mrb[0].mxu0 %v3167
      %v3818 = vpop.f32.mrb[0].mxu0
      %v3819 = vadd.f32 0.0, %v3818
      %v3820 = vpop.f32.mrb[0].mxu0
      %3821 = vmatprep.mubr.f32.mxu0 0.0
      %3822 = vmatmul.mubr.f32.gmra.mrb[0].mxu0 %v3170
      %v3823 = vpop.f32.mrb[0].mxu0
      %v3824 = vadd.f32 0.0, %v3823
      %v3825 = vpop.f32.mrb[0].mxu0
      %3826 = vmatprep.mubr.f32.mxu0 0.0
      %3827 = vmatmul.mubr.f32.gmra.mrb[0].mxu0 %v3173
      %v3828 = vpop.f32.mrb[0].mxu0
      %v3829 = vadd.f32 0.0, %v3828
      %v3830 = vpop.f32.mrb[0].mxu0
      %3831 = vmatprep.mubr.f32.mxu0 0.0
      %3832 = vmatmul.mubr.f32.gmra.mrb[0].mxu0 %v3176
      %v3833 = vpop.f32.mrb[0].mxu0
      %v3834 = vadd.f32 0.0, %v3833
      %v3835 = vpop.f32.mrb[0].mxu0
      %3836 = vmatprep.mubr.f32.mxu0 0.0
      %3837 = vmatmul.mubr.f32.gmra.mrb[0].mxu0 %v3179
      %v3838 = vpop.f32.mrb[0].mxu0
      %v3839 = vadd.f32 0.0, %v3838
      %v3840 = vpop.f32.mrb[0].mxu0
      %3841 = vmatprep.mubr.f32.mxu0 0.0
      %3842 = vmatmul.mubr.f32.gmra.mrb[0].mxu0 %v3182
      %v3843 = vpop.f32.mrb[0].mxu0
      %v3844 = vadd.f32 0.0, %v3843
      %v3845 = vpop.f32.mrb[0].mxu0
      %3846 = vmatprep.mubr.f32.mxu0 0.0
      %3847 = vmatmul.mubr.f32.gmra.mrb[0].mxu0 %v3185
      %v3848 = vpop.f32.mrb[0].mxu0
      %v3849 = vadd.f32 0.0, %v3848
      %v3850 = vpop.f32.mrb[0].mxu0
      %3851 = vmatprep.mubr.f32.mxu0 0.0
      %3852 = vmatmul.mubr.f32.gmra.mrb[0].mxu0 %v3188
      %v3853 = vpop.f32.mrb[0].mxu0
      %v3854 = vadd.f32 0.0, %v3853
      %v3855 = vpop.f32.mrb[0].mxu0
      %3856 = vmatprep.mubr.f32.mxu0 0.0
      %3857 = vmatmul.mubr.f32.gmra.mrb[0].mxu0 %v3191
      %v3858 = vpop.f32.mrb[0].mxu0
      %v3859 = vadd.f32 0.0, %v3858
      %v3860 = vpop.f32.mrb[0].mxu0
      %3861 = vmatprep.mubr.f32.mxu0 0.0
      %3862 = vmatmul.mubr.f32.gmra.mrb[0].mxu0 %v3194
      %v3863 = vpop.f32.mrb[0].mxu0
      %v3864 = vadd.f32 0.0, %v3863
      %v3865 = vpop.f32.mrb[0].mxu0
      %3866 = vmatprep.mubr.f32.mxu0 0.0
      %3867 = vmatmul.mubr.f32.gmra.mrb[0].mxu0 %v3197
      %v3868 = vpop.f32.mrb[0].mxu0
      %v3869 = vadd.f32 0.0, %v3868
      %v3870 = vpop.f32.mrb[0].mxu0
      %3871 = vmatprep.mubr.f32.mxu0 0.0
      %3872 = vmatmul.mubr.f32.gmra.mrb[0].mxu0 %v3200
      %v3873 = vpop.f32.mrb[0].mxu0
      %v3874 = vadd.f32 0.0, %v3873
      %v3875 = vpop.f32.mrb[0].mxu0
      %3876 = vmatprep.mubr.f32.mxu0 0.0
      %3877 = vmatmul.mubr.f32.gmra.mrb[0].mxu0 %v3203
      %v3878 = vpop.f32.mrb[0].mxu0
      %v3879 = vadd.f32 0.0, %v3878
      %v3880 = vpop.f32.mrb[0].mxu0
      %3881 = vmatprep.mubr.f32.mxu0 0.0
      %3882 = vmatmul.mubr.f32.gmra.mrb[0].mxu0 %v3206
      %v3883 = vpop.f32.mrb[0].mxu0
      %v3884 = vadd.f32 0.0, %v3883
      %v3885 = vpop.f32.mrb[0].mxu0
      %3886 = vmatprep.mubr.f32.mxu0 0.0
      %3887 = vmatmul.mubr.f32.gmra.mrb[0].mxu0 %v3209
      %v3888 = vpop.f32.mrb[0].mxu0
      %v3889 = vadd.f32 0.0, %v3888
      %v3890 = vpop.f32.mrb[0].mxu0
      %3891 = vmatprep.mubr.f32.mxu0 0.0
      %3892 = vmatmul.mubr.f32.gmra.mrb[0].mxu0 %v3212
      %v3893 = vpop.f32.mrb[0].mxu0
      %v3894 = vadd.f32 0.0, %v3893
      %v3895 = vpop.f32.mrb[0].mxu0
      %3896 = vmatprep.mubr.f32.mxu0 0.0
      %3897 = vmatmul.mubr.f32.gmra.mrb[0].mxu0 %v3215
      %v3898 = vpop.f32.mrb[0].mxu0
      %v3899 = vadd.f32 0.0, %v3898
      %v3900 = vpop.f32.mrb[0].mxu0
      %3901 = vmatprep.mubr.f32.mxu0 0.0
      %3902 = vmatmul.mubr.f32.gmra.mrb[0].mxu0 %v3218
      %v3903 = vpop.f32.mrb[0].mxu0
      %v3904 = vadd.f32 0.0, %v3903
      %v3905 = vpop.f32.mrb[0].mxu0
      %3906 = vmatprep.mubr.f32.mxu0 0.0
      %3907 = vmatmul.mubr.f32.gmra.mrb[0].mxu0 %v3221
      %v3908 = vpop.f32.mrb[0].mxu0
      %v3909 = vadd.f32 0.0, %v3908
      %v3910 = vpop.f32.mrb[0].mxu0
      %3911 = vmatprep.mubr.f32.mxu0 0.0
      %3912 = vmatmul.mubr.f32.gmra.mrb[0].mxu0 %v3224
      %v3913 = vpop.f32.mrb[0].mxu0
      %v3914 = vadd.f32 0.0, %v3913
      %v3915 = vpop.f32.mrb[0].mxu0
      %3916 = vmatprep.mubr.f32.mxu0 0.0
      %3917 = vmatmul.mubr.f32.gmra.mrb[0].mxu0 %v3227
      %v3918 = vpop.f32.mrb[0].mxu0
      %v3919 = vadd.f32 0.0, %v3918
      %v3920 = vpop.f32.mrb[0].mxu0
      %3921 = vmatprep.mubr.f32.mxu0 0.0
      %3922 = vmatmul.mubr.f32.gmra.mrb[0].mxu0 %v3230
      %v3923 = vpop.f32.mrb[0].mxu0
      %v3924 = vadd.f32 0.0, %v3923
      %v3925 = vpop.f32.mrb[0].mxu0
      %3926 = vmatprep.mubr.f32.mxu0 0.0
      %3927 = vmatmul.mubr.f32.gmra.mrb[0].mxu0 %v3233
      %v3928 = vpop.f32.mrb[0].mxu0
      %v3929 = vadd.f32 0.0, %v3928
      %v3930 = vpop.f32.mrb[0].mxu0
      %3931 = vmatprep.mubr.f32.mxu0 0.0
      %3932 = vmatmul.mubr.f32.gmra.mrb[0].mxu0 %v3236
      %v3933 = vpop.f32.mrb[0].mxu0
      %v3934 = vadd.f32 0.0, %v3933
      %v3935 = vpop.f32.mrb[0].mxu0
      %3936 = vmatprep.mubr.f32.mxu0 0.0
      %3937 = vmatmul.mubr.f32.gmra.mrb[0].mxu0 %v3239
      %v3938 = vpop.f32.mrb[0].mxu0
      %v3939 = vadd.f32 0.0, %v3938
      %v3940 = vpop.f32.mrb[0].mxu0
      %3941 = vmatprep.mubr.f32.mxu0 0.0
      %3942 = vmatmul.mubr.f32.gmra.mrb[0].mxu0 %v3242
      %v3943 = vpop.f32.mrb[0].mxu0
      %v3944 = vadd.f32 0.0, %v3943
      %v3945 = vpop.f32.mrb[0].mxu0
      %3946 = vmatprep.mubr.f32.mxu0 0.0
      %3947 = vmatmul.mubr.f32.gmra.mrb[0].mxu0 %v3245
      %v3948 = vpop.f32.mrb[0].mxu0
      %v3949 = vadd.f32 0.0, %v3948
      %v3950 = vpop.f32.mrb[0].mxu0
      %3951 = vdwg.mxu0
      %4016 = vrot.lane.b32.xlu0 %v3319, 120
      %v4017 = vpop.permute.xlu0 %4016
      %4018 = vrot.lane.b32.xlu0 %v3329, 120
      %v4019 = vpop.permute.xlu0 %4018
      %4020 = vrot.lane.b32.xlu0 %v3339, 120
      %v4021 = vpop.permute.xlu0 %4020
      %4022 = vrot.lane.b32.xlu0 %v3349, 120
      %v4023 = vpop.permute.xlu0 %4022
      %4024 = vrot.lane.b32.xlu0 %v3359, 120
      %v4025 = vpop.permute.xlu0 %4024
      %4026 = vrot.lane.b32.xlu0 %v3369, 120
      %v4027 = vpop.permute.xlu0 %4026
      %4028 = vrot.lane.b32.xlu0 %v3379, 120
      %v4029 = vpop.permute.xlu0 %4028
      %4030 = vrot.lane.b32.xlu0 %v3389, 120
      %v4031 = vpop.permute.xlu0 %4030
      %4032 = vrot.lane.b32.xlu0 %v3399, 120
      %v4033 = vpop.permute.xlu0 %4032
      %4034 = vrot.lane.b32.xlu0 %v3409, 120
      %v4035 = vpop.permute.xlu0 %4034
      %4036 = vrot.lane.b32.xlu0 %v3419, 120
      %v4037 = vpop.permute.xlu0 %4036
      %4038 = vrot.lane.b32.xlu0 %v3429, 120
      %v4039 = vpop.permute.xlu0 %4038
      %4040 = vrot.lane.b32.xlu0 %v3439, 120
      %v4041 = vpop.permute.xlu0 %4040
      %4042 = vrot.lane.b32.xlu0 %v3449, 120
      %v4043 = vpop.permute.xlu0 %4042
      %4044 = vrot.lane.b32.xlu0 %v3459, 120
      %v4045 = vpop.permute.xlu0 %4044
      %4046 = vrot.lane.b32.xlu0 %v3469, 120
      %v4047 = vpop.permute.xlu0 %4046
      %4048 = vrot.lane.b32.xlu0 %v3479, 120
      %v4049 = vpop.permute.xlu0 %4048
      %4050 = vrot.lane.b32.xlu0 %v3489, 120
      %v4051 = vpop.permute.xlu0 %4050
      %4052 = vrot.lane.b32.xlu0 %v3499, 120
      %v4053 = vpop.permute.xlu0 %4052
      %4054 = vrot.lane.b32.xlu0 %v3509, 120
      %v4055 = vpop.permute.xlu0 %4054
      %4056 = vrot.lane.b32.xlu0 %v3519, 120
      %v4057 = vpop.permute.xlu0 %4056
      %4058 = vrot.lane.b32.xlu0 %v3529, 120
      %v4059 = vpop.permute.xlu0 %4058
      %4060 = vrot.lane.b32.xlu0 %v3539, 120
      %v4061 = vpop.permute.xlu0 %4060
      %4062 = vrot.lane.b32.xlu0 %v3549, 120
      %v4063 = vpop.permute.xlu0 %4062
      %4064 = vrot.lane.b32.xlu0 %v3559, 120
      %v4065 = vpop.permute.xlu0 %4064
      %4066 = vrot.lane.b32.xlu0 %v3569, 120
      %v4067 = vpop.permute.xlu0 %4066
      %4068 = vrot.lane.b32.xlu0 %v3579, 120
      %v4069 = vpop.permute.xlu0 %4068
      %4070 = vrot.lane.b32.xlu0 %v3589, 120
      %v4071 = vpop.permute.xlu0 %4070
      %4072 = vrot.lane.b32.xlu0 %v3599, 120
      %v4073 = vpop.permute.xlu0 %4072
      %4074 = vrot.lane.b32.xlu0 %v3609, 120
      %v4075 = vpop.permute.xlu0 %4074
      %4076 = vrot.lane.b32.xlu0 %v3619, 120
      %v4077 = vpop.permute.xlu0 %4076
      %4078 = vrot.lane.b32.xlu0 %v3629, 120
      %v4079 = vpop.permute.xlu0 %4078
      %4080 = vrot.lane.b32.xlu0 %v3639, 120
      %v4081 = vpop.permute.xlu0 %4080
      %4082 = vrot.lane.b32.xlu0 %v3649, 120
      %v4083 = vpop.permute.xlu0 %4082
      %4084 = vrot.lane.b32.xlu0 %v3659, 120
      %v4085 = vpop.permute.xlu0 %4084
      %4086 = vrot.lane.b32.xlu0 %v3669, 120
      %v4087 = vpop.permute.xlu0 %4086
      %4088 = vrot.lane.b32.xlu0 %v3679, 120
      %v4089 = vpop.permute.xlu0 %4088
      %4090 = vrot.lane.b32.xlu0 %v3689, 120
      %v4091 = vpop.permute.xlu0 %4090
      %4092 = vrot.lane.b32.xlu0 %v3699, 120
      %v4093 = vpop.permute.xlu0 %4092
      %4094 = vrot.lane.b32.xlu0 %v3709, 120
      %v4095 = vpop.permute.xlu0 %4094
      %4096 = vrot.lane.b32.xlu0 %v3719, 120
      %v4097 = vpop.permute.xlu0 %4096
      %4098 = vrot.lane.b32.xlu0 %v3729, 120
      %v4099 = vpop.permute.xlu0 %4098
      %4100 = vrot.lane.b32.xlu0 %v3739, 120
      %v4101 = vpop.permute.xlu0 %4100
      %4102 = vrot.lane.b32.xlu0 %v3749, 120
      %v4103 = vpop.permute.xlu0 %4102
      %4104 = vrot.lane.b32.xlu0 %v3759, 120
      %v4105 = vpop.permute.xlu0 %4104
      %4106 = vrot.lane.b32.xlu0 %v3769, 120
      %v4107 = vpop.permute.xlu0 %4106
      %4108 = vrot.lane.b32.xlu0 %v3779, 120
      %v4109 = vpop.permute.xlu0 %4108
      %4110 = vrot.lane.b32.xlu0 %v3789, 120
      %v4111 = vpop.permute.xlu0 %4110
      %4112 = vrot.lane.b32.xlu0 %v3799, 120
      %v4113 = vpop.permute.xlu0 %4112
      %4114 = vrot.lane.b32.xlu0 %v3809, 120
      %v4115 = vpop.permute.xlu0 %4114
      %4116 = vrot.lane.b32.xlu0 %v3819, 120
      %v4117 = vpop.permute.xlu0 %4116
      %4118 = vrot.lane.b32.xlu0 %v3829, 120
      %v4119 = vpop.permute.xlu0 %4118
      %4120 = vrot.lane.b32.xlu0 %v3839, 120
      %v4121 = vpop.permute.xlu0 %4120
      %4122 = vrot.lane.b32.xlu0 %v3849, 120
      %v4123 = vpop.permute.xlu0 %4122
      %4124 = vrot.lane.b32.xlu0 %v3859, 120
      %v4125 = vpop.permute.xlu0 %4124
      %4126 = vrot.lane.b32.xlu0 %v3869, 120
      %v4127 = vpop.permute.xlu0 %4126
      %4128 = vrot.lane.b32.xlu0 %v3879, 120
      %v4129 = vpop.permute.xlu0 %4128
      %4130 = vrot.lane.b32.xlu0 %v3889, 120
      %v4131 = vpop.permute.xlu0 %4130
      %4132 = vrot.lane.b32.xlu0 %v3899, 120
      %v4133 = vpop.permute.xlu0 %4132
      %4134 = vrot.lane.b32.xlu0 %v3909, 120
      %v4135 = vpop.permute.xlu0 %4134
      %4136 = vrot.lane.b32.xlu0 %v3919, 120
      %v4137 = vpop.permute.xlu0 %4136
      %4138 = vrot.lane.b32.xlu0 %v3929, 120
      %v4139 = vpop.permute.xlu0 %4138
      %4140 = vrot.lane.b32.xlu0 %v3939, 120
      %v4141 = vpop.permute.xlu0 %4140
      %4142 = vrot.lane.b32.xlu0 %v3949, 120
      %v4143 = vpop.permute.xlu0 %4142
      %v4208 = vsub.f32 %v3314, %v4017
      %v4209 = vsub.f32 %v3324, %v4019
      %v4210 = vsub.f32 %v3334, %v4021
      %v4211 = vsub.f32 %v3344, %v4023
      %v4212 = vsub.f32 %v3354, %v4025
      %v4213 = vsub.f32 %v3364, %v4027
      %v4214 = vsub.f32 %v3374, %v4029
      %v4215 = vsub.f32 %v3384, %v4031
      %v4216 = vsub.f32 %v3394, %v4033
      %v4217 = vsub.f32 %v3404, %v4035
      %v4218 = vsub.f32 %v3414, %v4037
      %v4219 = vsub.f32 %v3424, %v4039
      %v4220 = vsub.f32 %v3434, %v4041
      %v4221 = vsub.f32 %v3444, %v4043
      %v4222 = vsub.f32 %v3454, %v4045
      %v4223 = vsub.f32 %v3464, %v4047
      %v4224 = vsub.f32 %v3474, %v4049
      %v4225 = vsub.f32 %v3484, %v4051
      %v4226 = vsub.f32 %v3494, %v4053
      %v4227 = vsub.f32 %v3504, %v4055
      %v4228 = vsub.f32 %v3514, %v4057
      %v4229 = vsub.f32 %v3524, %v4059
      %v4230 = vsub.f32 %v3534, %v4061
      %v4231 = vsub.f32 %v3544, %v4063
      %v4232 = vsub.f32 %v3554, %v4065
      %v4233 = vsub.f32 %v3564, %v4067
      %v4234 = vsub.f32 %v3574, %v4069
      %v4235 = vsub.f32 %v3584, %v4071
      %v4236 = vsub.f32 %v3594, %v4073
      %v4237 = vsub.f32 %v3604, %v4075
      %v4238 = vsub.f32 %v3614, %v4077
      %v4239 = vsub.f32 %v3624, %v4079
      %v4240 = vsub.f32 %v3634, %v4081
      %v4241 = vsub.f32 %v3644, %v4083
      %v4242 = vsub.f32 %v3654, %v4085
      %v4243 = vsub.f32 %v3664, %v4087
      %v4244 = vsub.f32 %v3674, %v4089
      %v4245 = vsub.f32 %v3684, %v4091
      %v4246 = vsub.f32 %v3694, %v4093
      %v4247 = vsub.f32 %v3704, %v4095
      %v4248 = vsub.f32 %v3714, %v4097
      %v4249 = vsub.f32 %v3724, %v4099
      %v4250 = vsub.f32 %v3734, %v4101
      %v4251 = vsub.f32 %v3744, %v4103
      %v4252 = vsub.f32 %v3754, %v4105
      %v4253 = vsub.f32 %v3764, %v4107
      %v4254 = vsub.f32 %v3774, %v4109
      %v4255 = vsub.f32 %v3784, %v4111
      %v4256 = vsub.f32 %v3794, %v4113
      %v4257 = vsub.f32 %v3804, %v4115
      %v4258 = vsub.f32 %v3814, %v4117
      %v4259 = vsub.f32 %v3824, %v4119
      %v4260 = vsub.f32 %v3834, %v4121
      %v4261 = vsub.f32 %v3844, %v4123
      %v4262 = vsub.f32 %v3854, %v4125
      %v4263 = vsub.f32 %v3864, %v4127
      %v4264 = vsub.f32 %v3874, %v4129
      %v4265 = vsub.f32 %v3884, %v4131
      %v4266 = vsub.f32 %v3894, %v4133
      %v4267 = vsub.f32 %v3904, %v4135
      %v4268 = vsub.f32 %v3914, %v4137
      %v4269 = vsub.f32 %v3924, %v4139
      %v4270 = vsub.f32 %v3934, %v4141
      %v4271 = vsub.f32 %v3944, %v4143
      %4272 = vrot.lane.b32.xlu0 %v3319, 8
      %v4273 = vpop.permute.xlu0 %4272
      %4274 = vrot.lane.b32.xlu0 %v3329, 8
      %v4275 = vpop.permute.xlu0 %4274
      %4276 = vrot.lane.b32.xlu0 %v3339, 8
      %v4277 = vpop.permute.xlu0 %4276
      %4278 = vrot.lane.b32.xlu0 %v3349, 8
      %v4279 = vpop.permute.xlu0 %4278
      %4280 = vrot.lane.b32.xlu0 %v3359, 8
      %v4281 = vpop.permute.xlu0 %4280
      %4282 = vrot.lane.b32.xlu0 %v3369, 8
      %v4283 = vpop.permute.xlu0 %4282
      %4284 = vrot.lane.b32.xlu0 %v3379, 8
      %v4285 = vpop.permute.xlu0 %4284
      %4286 = vrot.lane.b32.xlu0 %v3389, 8
      %v4287 = vpop.permute.xlu0 %4286
      %4288 = vrot.lane.b32.xlu0 %v3399, 8
      %v4289 = vpop.permute.xlu0 %4288
      %4290 = vrot.lane.b32.xlu0 %v3409, 8
      %v4291 = vpop.permute.xlu0 %4290
      %4292 = vrot.lane.b32.xlu0 %v3419, 8
      %v4293 = vpop.permute.xlu0 %4292
      %4294 = vrot.lane.b32.xlu0 %v3429, 8
      %v4295 = vpop.permute.xlu0 %4294
      %4296 = vrot.lane.b32.xlu0 %v3439, 8
      %v4297 = vpop.permute.xlu0 %4296
      %4298 = vrot.lane.b32.xlu0 %v3449, 8
      %v4299 = vpop.permute.xlu0 %4298
      %4300 = vrot.lane.b32.xlu0 %v3459, 8
      %v4301 = vpop.permute.xlu0 %4300
      %4302 = vrot.lane.b32.xlu0 %v3469, 8
      %v4303 = vpop.permute.xlu0 %4302
      %4304 = vrot.lane.b32.xlu0 %v3479, 8
      %v4305 = vpop.permute.xlu0 %4304
      %4306 = vrot.lane.b32.xlu0 %v3489, 8
      %v4307 = vpop.permute.xlu0 %4306
      %4308 = vrot.lane.b32.xlu0 %v3499, 8
      %v4309 = vpop.permute.xlu0 %4308
      %4310 = vrot.lane.b32.xlu0 %v3509, 8
      %v4311 = vpop.permute.xlu0 %4310
      %4312 = vrot.lane.b32.xlu0 %v3519, 8
      %v4313 = vpop.permute.xlu0 %4312
      %4314 = vrot.lane.b32.xlu0 %v3529, 8
      %v4315 = vpop.permute.xlu0 %4314
      %4316 = vrot.lane.b32.xlu0 %v3539, 8
      %v4317 = vpop.permute.xlu0 %4316
      %4318 = vrot.lane.b32.xlu0 %v3549, 8
      %v4319 = vpop.permute.xlu0 %4318
      %4320 = vrot.lane.b32.xlu0 %v3559, 8
      %v4321 = vpop.permute.xlu0 %4320
      %4322 = vrot.lane.b32.xlu0 %v3569, 8
      %v4323 = vpop.permute.xlu0 %4322
      %4324 = vrot.lane.b32.xlu0 %v3579, 8
      %v4325 = vpop.permute.xlu0 %4324
      %4326 = vrot.lane.b32.xlu0 %v3589, 8
      %v4327 = vpop.permute.xlu0 %4326
      %4328 = vrot.lane.b32.xlu0 %v3599, 8
      %v4329 = vpop.permute.xlu0 %4328
      %4330 = vrot.lane.b32.xlu0 %v3609, 8
      %v4331 = vpop.permute.xlu0 %4330
      %4332 = vrot.lane.b32.xlu0 %v3619, 8
      %v4333 = vpop.permute.xlu0 %4332
      %4334 = vrot.lane.b32.xlu0 %v3629, 8
      %v4335 = vpop.permute.xlu0 %4334
      %4336 = vrot.lane.b32.xlu0 %v3639, 8
      %v4337 = vpop.permute.xlu0 %4336
      %4338 = vrot.lane.b32.xlu0 %v3649, 8
      %v4339 = vpop.permute.xlu0 %4338
      %4340 = vrot.lane.b32.xlu0 %v3659, 8
      %v4341 = vpop.permute.xlu0 %4340
      %4342 = vrot.lane.b32.xlu0 %v3669, 8
      %v4343 = vpop.permute.xlu0 %4342
      %4344 = vrot.lane.b32.xlu0 %v3679, 8
      %v4345 = vpop.permute.xlu0 %4344
      %4346 = vrot.lane.b32.xlu0 %v3689, 8
      %v4347 = vpop.permute.xlu0 %4346
      %4348 = vrot.lane.b32.xlu0 %v3699, 8
      %v4349 = vpop.permute.xlu0 %4348
      %4350 = vrot.lane.b32.xlu0 %v3709, 8
      %v4351 = vpop.permute.xlu0 %4350
      %4352 = vrot.lane.b32.xlu0 %v3719, 8
      %v4353 = vpop.permute.xlu0 %4352
      %4354 = vrot.lane.b32.xlu0 %v3729, 8
      %v4355 = vpop.permute.xlu0 %4354
      %4356 = vrot.lane.b32.xlu0 %v3739, 8
      %v4357 = vpop.permute.xlu0 %4356
      %4358 = vrot.lane.b32.xlu0 %v3749, 8
      %v4359 = vpop.permute.xlu0 %4358
      %4360 = vrot.lane.b32.xlu0 %v3759, 8
      %v4361 = vpop.permute.xlu0 %4360
      %4362 = vrot.lane.b32.xlu0 %v3769, 8
      %v4363 = vpop.permute.xlu0 %4362
      %4364 = vrot.lane.b32.xlu0 %v3779, 8
      %v4365 = vpop.permute.xlu0 %4364
      %4366 = vrot.lane.b32.xlu0 %v3789, 8
      %v4367 = vpop.permute.xlu0 %4366
      %4368 = vrot.lane.b32.xlu0 %v3799, 8
      %v4369 = vpop.permute.xlu0 %4368
      %4370 = vrot.lane.b32.xlu0 %v3809, 8
      %v4371 = vpop.permute.xlu0 %4370
      %4372 = vrot.lane.b32.xlu0 %v3819, 8
      %v4373 = vpop.permute.xlu0 %4372
      %4374 = vrot.lane.b32.xlu0 %v3829, 8
      %v4375 = vpop.permute.xlu0 %4374
      %4376 = vrot.lane.b32.xlu0 %v3839, 8
      %v4377 = vpop.permute.xlu0 %4376
      %4378 = vrot.lane.b32.xlu0 %v3849, 8
      %v4379 = vpop.permute.xlu0 %4378
      %4380 = vrot.lane.b32.xlu0 %v3859, 8
      %v4381 = vpop.permute.xlu0 %4380
      %4382 = vrot.lane.b32.xlu0 %v3869, 8
      %v4383 = vpop.permute.xlu0 %4382
      %4384 = vrot.lane.b32.xlu0 %v3879, 8
      %v4385 = vpop.permute.xlu0 %4384
      %4386 = vrot.lane.b32.xlu0 %v3889, 8
      %v4387 = vpop.permute.xlu0 %4386
      %4388 = vrot.lane.b32.xlu0 %v3899, 8
      %v4389 = vpop.permute.xlu0 %4388
      %4390 = vrot.lane.b32.xlu0 %v3909, 8
      %v4391 = vpop.permute.xlu0 %4390
      %4392 = vrot.lane.b32.xlu0 %v3919, 8
      %v4393 = vpop.permute.xlu0 %4392
      %4394 = vrot.lane.b32.xlu0 %v3929, 8
      %v4395 = vpop.permute.xlu0 %4394
      %4396 = vrot.lane.b32.xlu0 %v3939, 8
      %v4397 = vpop.permute.xlu0 %4396
      %4398 = vrot.lane.b32.xlu0 %v3949, 8
      %v4399 = vpop.permute.xlu0 %4398
      %v4464 = vadd.f32 %v3314, %v4273
      %v4465 = vadd.f32 %v3324, %v4275
      %v4466 = vadd.f32 %v3334, %v4277
      %v4467 = vadd.f32 %v3344, %v4279
      %v4468 = vadd.f32 %v3354, %v4281
      %v4469 = vadd.f32 %v3364, %v4283
      %v4470 = vadd.f32 %v3374, %v4285
      %v4471 = vadd.f32 %v3384, %v4287
      %v4472 = vadd.f32 %v3394, %v4289
      %v4473 = vadd.f32 %v3404, %v4291
      %v4474 = vadd.f32 %v3414, %v4293
      %v4475 = vadd.f32 %v3424, %v4295
      %v4476 = vadd.f32 %v3434, %v4297
      %v4477 = vadd.f32 %v3444, %v4299
      %v4478 = vadd.f32 %v3454, %v4301
      %v4479 = vadd.f32 %v3464, %v4303
      %v4480 = vadd.f32 %v3474, %v4305
      %v4481 = vadd.f32 %v3484, %v4307
      %v4482 = vadd.f32 %v3494, %v4309
      %v4483 = vadd.f32 %v3504, %v4311
      %v4484 = vadd.f32 %v3514, %v4313
      %v4485 = vadd.f32 %v3524, %v4315
      %v4486 = vadd.f32 %v3534, %v4317
      %v4487 = vadd.f32 %v3544, %v4319
      %v4488 = vadd.f32 %v3554, %v4321
      %v4489 = vadd.f32 %v3564, %v4323
      %v4490 = vadd.f32 %v3574, %v4325
      %v4491 = vadd.f32 %v3584, %v4327
      %v4492 = vadd.f32 %v3594, %v4329
      %v4493 = vadd.f32 %v3604, %v4331
      %v4494 = vadd.f32 %v3614, %v4333
      %v4495 = vadd.f32 %v3624, %v4335
      %v4496 = vadd.f32 %v3634, %v4337
      %v4497 = vadd.f32 %v3644, %v4339
      %v4498 = vadd.f32 %v3654, %v4341
      %v4499 = vadd.f32 %v3664, %v4343
      %v4500 = vadd.f32 %v3674, %v4345
      %v4501 = vadd.f32 %v3684, %v4347
      %v4502 = vadd.f32 %v3694, %v4349
      %v4503 = vadd.f32 %v3704, %v4351
      %v4504 = vadd.f32 %v3714, %v4353
      %v4505 = vadd.f32 %v3724, %v4355
      %v4506 = vadd.f32 %v3734, %v4357
      %v4507 = vadd.f32 %v3744, %v4359
      %v4508 = vadd.f32 %v3754, %v4361
      %v4509 = vadd.f32 %v3764, %v4363
      %v4510 = vadd.f32 %v3774, %v4365
      %v4511 = vadd.f32 %v3784, %v4367
      %v4512 = vadd.f32 %v3794, %v4369
      %v4513 = vadd.f32 %v3804, %v4371
      %v4514 = vadd.f32 %v3814, %v4373
      %v4515 = vadd.f32 %v3824, %v4375
      %v4516 = vadd.f32 %v3834, %v4377
      %v4517 = vadd.f32 %v3844, %v4379
      %v4518 = vadd.f32 %v3854, %v4381
      %v4519 = vadd.f32 %v3864, %v4383
      %v4520 = vadd.f32 %v3874, %v4385
      %v4521 = vadd.f32 %v3884, %v4387
      %v4522 = vadd.f32 %v3894, %v4389
      %v4523 = vadd.f32 %v3904, %v4391
      %v4524 = vadd.f32 %v3914, %v4393
      %v4525 = vadd.f32 %v3924, %v4395
      %v4526 = vadd.f32 %v3934, %v4397
      %v4527 = vadd.f32 %v3944, %v4399
      %v4528 = vmul.f32 %v4208, %v4208
      %v4529 = vmul.f32 %v4209, %v4209
      %v4530 = vmul.f32 %v4210, %v4210
      %v4531 = vmul.f32 %v4211, %v4211
      %v4532 = vmul.f32 %v4212, %v4212
      %v4533 = vmul.f32 %v4213, %v4213
      %v4534 = vmul.f32 %v4214, %v4214
      %v4535 = vmul.f32 %v4215, %v4215
      %v4536 = vmul.f32 %v4216, %v4216
      %v4537 = vmul.f32 %v4217, %v4217
      %v4538 = vmul.f32 %v4218, %v4218
      %v4539 = vmul.f32 %v4219, %v4219
      %v4540 = vmul.f32 %v4220, %v4220
      %v4541 = vmul.f32 %v4221, %v4221
      %v4542 = vmul.f32 %v4222, %v4222
      %v4543 = vmul.f32 %v4223, %v4223
      %v4544 = vmul.f32 %v4224, %v4224
      %v4545 = vmul.f32 %v4225, %v4225
      %v4546 = vmul.f32 %v4226, %v4226
      %v4547 = vmul.f32 %v4227, %v4227
      %v4548 = vmul.f32 %v4228, %v4228
      %v4549 = vmul.f32 %v4229, %v4229
      %v4550 = vmul.f32 %v4230, %v4230
      %v4551 = vmul.f32 %v4231, %v4231
      %v4552 = vmul.f32 %v4232, %v4232
      %v4553 = vmul.f32 %v4233, %v4233
      %v4554 = vmul.f32 %v4234, %v4234
      %v4555 = vmul.f32 %v4235, %v4235
      %v4556 = vmul.f32 %v4236, %v4236
      %v4557 = vmul.f32 %v4237, %v4237
      %v4558 = vmul.f32 %v4238, %v4238
      %v4559 = vmul.f32 %v4239, %v4239
      %v4560 = vmul.f32 %v4240, %v4240
      %v4561 = vmul.f32 %v4241, %v4241
      %v4562 = vmul.f32 %v4242, %v4242
      %v4563 = vmul.f32 %v4243, %v4243
      %v4564 = vmul.f32 %v4244, %v4244
      %v4565 = vmul.f32 %v4245, %v4245
      %v4566 = vmul.f32 %v4246, %v4246
      %v4567 = vmul.f32 %v4247, %v4247
      %v4568 = vmul.f32 %v4248, %v4248
      %v4569 = vmul.f32 %v4249, %v4249
      %v4570 = vmul.f32 %v4250, %v4250
      %v4571 = vmul.f32 %v4251, %v4251
      %v4572 = vmul.f32 %v4252, %v4252
      %v4573 = vmul.f32 %v4253, %v4253
      %v4574 = vmul.f32 %v4254, %v4254
      %v4575 = vmul.f32 %v4255, %v4255
      %v4576 = vmul.f32 %v4256, %v4256
      %v4577 = vmul.f32 %v4257, %v4257
      %v4578 = vmul.f32 %v4258, %v4258
      %v4579 = vmul.f32 %v4259, %v4259
      %v4580 = vmul.f32 %v4260, %v4260
      %v4581 = vmul.f32 %v4261, %v4261
      %v4582 = vmul.f32 %v4262, %v4262
      %v4583 = vmul.f32 %v4263, %v4263
      %v4584 = vmul.f32 %v4264, %v4264
      %v4585 = vmul.f32 %v4265, %v4265
      %v4586 = vmul.f32 %v4266, %v4266
      %v4587 = vmul.f32 %v4267, %v4267
      %v4588 = vmul.f32 %v4268, %v4268
      %v4589 = vmul.f32 %v4269, %v4269
      %v4590 = vmul.f32 %v4270, %v4270
      %v4591 = vmul.f32 %v4271, %v4271
      %v4592 = vmul.f32 %v4464, %v4464
      %v4593 = vmul.f32 %v4465, %v4465
      %v4594 = vmul.f32 %v4466, %v4466
      %v4595 = vmul.f32 %v4467, %v4467
      %v4596 = vmul.f32 %v4468, %v4468
      %v4597 = vmul.f32 %v4469, %v4469
      %v4598 = vmul.f32 %v4470, %v4470
      %v4599 = vmul.f32 %v4471, %v4471
      %v4600 = vmul.f32 %v4472, %v4472
      %v4601 = vmul.f32 %v4473, %v4473
      %v4602 = vmul.f32 %v4474, %v4474
      %v4603 = vmul.f32 %v4475, %v4475
      %v4604 = vmul.f32 %v4476, %v4476
      %v4605 = vmul.f32 %v4477, %v4477
      %v4606 = vmul.f32 %v4478, %v4478
      %v4607 = vmul.f32 %v4479, %v4479
      %v4608 = vmul.f32 %v4480, %v4480
      %v4609 = vmul.f32 %v4481, %v4481
      %v4610 = vmul.f32 %v4482, %v4482
      %v4611 = vmul.f32 %v4483, %v4483
      %v4612 = vmul.f32 %v4484, %v4484
      %v4613 = vmul.f32 %v4485, %v4485
      %v4614 = vmul.f32 %v4486, %v4486
      %v4615 = vmul.f32 %v4487, %v4487
      %v4616 = vmul.f32 %v4488, %v4488
      %v4617 = vmul.f32 %v4489, %v4489
      %v4618 = vmul.f32 %v4490, %v4490
      %v4619 = vmul.f32 %v4491, %v4491
      %v4620 = vmul.f32 %v4492, %v4492
      %v4621 = vmul.f32 %v4493, %v4493
      %v4622 = vmul.f32 %v4494, %v4494
      %v4623 = vmul.f32 %v4495, %v4495
      %v4624 = vmul.f32 %v4496, %v4496
      %v4625 = vmul.f32 %v4497, %v4497
      %v4626 = vmul.f32 %v4498, %v4498
      %v4627 = vmul.f32 %v4499, %v4499
      %v4628 = vmul.f32 %v4500, %v4500
      %v4629 = vmul.f32 %v4501, %v4501
      %v4630 = vmul.f32 %v4502, %v4502
      %v4631 = vmul.f32 %v4503, %v4503
      %v4632 = vmul.f32 %v4504, %v4504
      %v4633 = vmul.f32 %v4505, %v4505
      %v4634 = vmul.f32 %v4506, %v4506
      %v4635 = vmul.f32 %v4507, %v4507
      %v4636 = vmul.f32 %v4508, %v4508
      %v4637 = vmul.f32 %v4509, %v4509
      %v4638 = vmul.f32 %v4510, %v4510
      %v4639 = vmul.f32 %v4511, %v4511
      %v4640 = vmul.f32 %v4512, %v4512
      %v4641 = vmul.f32 %v4513, %v4513
      %v4642 = vmul.f32 %v4514, %v4514
      %v4643 = vmul.f32 %v4515, %v4515
      %v4644 = vmul.f32 %v4516, %v4516
      %v4645 = vmul.f32 %v4517, %v4517
      %v4646 = vmul.f32 %v4518, %v4518
      %v4647 = vmul.f32 %v4519, %v4519
      %v4648 = vmul.f32 %v4520, %v4520
      %v4649 = vmul.f32 %v4521, %v4521
      %v4650 = vmul.f32 %v4522, %v4522
      %v4651 = vmul.f32 %v4523, %v4523
      %v4652 = vmul.f32 %v4524, %v4524
      %v4653 = vmul.f32 %v4525, %v4525
      %v4654 = vmul.f32 %v4526, %v4526
      %v4655 = vmul.f32 %v4527, %v4527
      %4720 = vrot.lane.b32.xlu0 %v4592, 120
      %v4721 = vpop.permute.xlu0 %4720
      %4722 = vrot.lane.b32.xlu0 %v4593, 120
      %v4723 = vpop.permute.xlu0 %4722
      %4724 = vrot.lane.b32.xlu0 %v4594, 120
      %v4725 = vpop.permute.xlu0 %4724
      %4726 = vrot.lane.b32.xlu0 %v4595, 120
      %v4727 = vpop.permute.xlu0 %4726
      %4728 = vrot.lane.b32.xlu0 %v4596, 120
      %v4729 = vpop.permute.xlu0 %4728
      %4730 = vrot.lane.b32.xlu0 %v4597, 120
      %v4731 = vpop.permute.xlu0 %4730
      %4732 = vrot.lane.b32.xlu0 %v4598, 120
      %v4733 = vpop.permute.xlu0 %4732
      %4734 = vrot.lane.b32.xlu0 %v4599, 120
      %v4735 = vpop.permute.xlu0 %4734
      %4736 = vrot.lane.b32.xlu0 %v4600, 120
      %v4737 = vpop.permute.xlu0 %4736
      %4738 = vrot.lane.b32.xlu0 %v4601, 120
      %v4739 = vpop.permute.xlu0 %4738
      %4740 = vrot.lane.b32.xlu0 %v4602, 120
      %v4741 = vpop.permute.xlu0 %4740
      %4742 = vrot.lane.b32.xlu0 %v4603, 120
      %v4743 = vpop.permute.xlu0 %4742
      %4744 = vrot.lane.b32.xlu0 %v4604, 120
      %v4745 = vpop.permute.xlu0 %4744
      %4746 = vrot.lane.b32.xlu0 %v4605, 120
      %v4747 = vpop.permute.xlu0 %4746
      %4748 = vrot.lane.b32.xlu0 %v4606, 120
      %v4749 = vpop.permute.xlu0 %4748
      %4750 = vrot.lane.b32.xlu0 %v4607, 120
      %v4751 = vpop.permute.xlu0 %4750
      %4752 = vrot.lane.b32.xlu0 %v4608, 120
      %v4753 = vpop.permute.xlu0 %4752
      %4754 = vrot.lane.b32.xlu0 %v4609, 120
      %v4755 = vpop.permute.xlu0 %4754
      %4756 = vrot.lane.b32.xlu0 %v4610, 120
      %v4757 = vpop.permute.xlu0 %4756
      %4758 = vrot.lane.b32.xlu0 %v4611, 120
      %v4759 = vpop.permute.xlu0 %4758
      %4760 = vrot.lane.b32.xlu0 %v4612, 120
      %v4761 = vpop.permute.xlu0 %4760
      %4762 = vrot.lane.b32.xlu0 %v4613, 120
      %v4763 = vpop.permute.xlu0 %4762
      %4764 = vrot.lane.b32.xlu0 %v4614, 120
      %v4765 = vpop.permute.xlu0 %4764
      %4766 = vrot.lane.b32.xlu0 %v4615, 120
      %v4767 = vpop.permute.xlu0 %4766
      %4768 = vrot.lane.b32.xlu0 %v4616, 120
      %v4769 = vpop.permute.xlu0 %4768
      %4770 = vrot.lane.b32.xlu0 %v4617, 120
      %v4771 = vpop.permute.xlu0 %4770
      %4772 = vrot.lane.b32.xlu0 %v4618, 120
      %v4773 = vpop.permute.xlu0 %4772
      %4774 = vrot.lane.b32.xlu0 %v4619, 120
      %v4775 = vpop.permute.xlu0 %4774
      %4776 = vrot.lane.b32.xlu0 %v4620, 120
      %v4777 = vpop.permute.xlu0 %4776
      %4778 = vrot.lane.b32.xlu0 %v4621, 120
      %v4779 = vpop.permute.xlu0 %4778
      %4780 = vrot.lane.b32.xlu0 %v4622, 120
      %v4781 = vpop.permute.xlu0 %4780
      %4782 = vrot.lane.b32.xlu0 %v4623, 120
      %v4783 = vpop.permute.xlu0 %4782
      %4784 = vrot.lane.b32.xlu0 %v4624, 120
      %v4785 = vpop.permute.xlu0 %4784
      %4786 = vrot.lane.b32.xlu0 %v4625, 120
      %v4787 = vpop.permute.xlu0 %4786
      %4788 = vrot.lane.b32.xlu0 %v4626, 120
      %v4789 = vpop.permute.xlu0 %4788
      %4790 = vrot.lane.b32.xlu0 %v4627, 120
      %v4791 = vpop.permute.xlu0 %4790
      %4792 = vrot.lane.b32.xlu0 %v4628, 120
      %v4793 = vpop.permute.xlu0 %4792
      %4794 = vrot.lane.b32.xlu0 %v4629, 120
      %v4795 = vpop.permute.xlu0 %4794
      %4796 = vrot.lane.b32.xlu0 %v4630, 120
      %v4797 = vpop.permute.xlu0 %4796
      %4798 = vrot.lane.b32.xlu0 %v4631, 120
      %v4799 = vpop.permute.xlu0 %4798
      %4800 = vrot.lane.b32.xlu0 %v4632, 120
      %v4801 = vpop.permute.xlu0 %4800
      %4802 = vrot.lane.b32.xlu0 %v4633, 120
      %v4803 = vpop.permute.xlu0 %4802
      %4804 = vrot.lane.b32.xlu0 %v4634, 120
      %v4805 = vpop.permute.xlu0 %4804
      %4806 = vrot.lane.b32.xlu0 %v4635, 120
      %v4807 = vpop.permute.xlu0 %4806
      %4808 = vrot.lane.b32.xlu0 %v4636, 120
      %v4809 = vpop.permute.xlu0 %4808
      %4810 = vrot.lane.b32.xlu0 %v4637, 120
      %v4811 = vpop.permute.xlu0 %4810
      %4812 = vrot.lane.b32.xlu0 %v4638, 120
      %v4813 = vpop.permute.xlu0 %4812
      %4814 = vrot.lane.b32.xlu0 %v4639, 120
      %v4815 = vpop.permute.xlu0 %4814
      %4816 = vrot.lane.b32.xlu0 %v4640, 120
      %v4817 = vpop.permute.xlu0 %4816
      %4818 = vrot.lane.b32.xlu0 %v4641, 120
      %v4819 = vpop.permute.xlu0 %4818
      %4820 = vrot.lane.b32.xlu0 %v4642, 120
      %v4821 = vpop.permute.xlu0 %4820
      %4822 = vrot.lane.b32.xlu0 %v4643, 120
      %v4823 = vpop.permute.xlu0 %4822
      %4824 = vrot.lane.b32.xlu0 %v4644, 120
      %v4825 = vpop.permute.xlu0 %4824
      %4826 = vrot.lane.b32.xlu0 %v4645, 120
      %v4827 = vpop.permute.xlu0 %4826
      %4828 = vrot.lane.b32.xlu0 %v4646, 120
      %v4829 = vpop.permute.xlu0 %4828
      %4830 = vrot.lane.b32.xlu0 %v4647, 120
      %v4831 = vpop.permute.xlu0 %4830
      %4832 = vrot.lane.b32.xlu0 %v4648, 120
      %v4833 = vpop.permute.xlu0 %4832
      %4834 = vrot.lane.b32.xlu0 %v4649, 120
      %v4835 = vpop.permute.xlu0 %4834
      %4836 = vrot.lane.b32.xlu0 %v4650, 120
      %v4837 = vpop.permute.xlu0 %4836
      %4838 = vrot.lane.b32.xlu0 %v4651, 120
      %v4839 = vpop.permute.xlu0 %4838
      %4840 = vrot.lane.b32.xlu0 %v4652, 120
      %v4841 = vpop.permute.xlu0 %4840
      %4842 = vrot.lane.b32.xlu0 %v4653, 120
      %v4843 = vpop.permute.xlu0 %4842
      %4844 = vrot.lane.b32.xlu0 %v4654, 120
      %v4845 = vpop.permute.xlu0 %4844
      %4846 = vrot.lane.b32.xlu0 %v4655, 120
      %v4847 = vpop.permute.xlu0 %4846
      %v4912 = vadd.f32 %v4528, %v4721
      %v4913 = vadd.f32 %v4529, %v4723
      %v4914 = vadd.f32 %v4530, %v4725
      %v4915 = vadd.f32 %v4531, %v4727
      %v4916 = vadd.f32 %v4532, %v4729
      %v4917 = vadd.f32 %v4533, %v4731
      %v4918 = vadd.f32 %v4534, %v4733
      %v4919 = vadd.f32 %v4535, %v4735
      %v4920 = vadd.f32 %v4536, %v4737
      %v4921 = vadd.f32 %v4537, %v4739
      %v4922 = vadd.f32 %v4538, %v4741
      %v4923 = vadd.f32 %v4539, %v4743
      %v4924 = vadd.f32 %v4540, %v4745
      %v4925 = vadd.f32 %v4541, %v4747
      %v4926 = vadd.f32 %v4542, %v4749
      %v4927 = vadd.f32 %v4543, %v4751
      %v4928 = vadd.f32 %v4544, %v4753
      %v4929 = vadd.f32 %v4545, %v4755
      %v4930 = vadd.f32 %v4546, %v4757
      %v4931 = vadd.f32 %v4547, %v4759
      %v4932 = vadd.f32 %v4548, %v4761
      %v4933 = vadd.f32 %v4549, %v4763
      %v4934 = vadd.f32 %v4550, %v4765
      %v4935 = vadd.f32 %v4551, %v4767
      %v4936 = vadd.f32 %v4552, %v4769
      %v4937 = vadd.f32 %v4553, %v4771
      %v4938 = vadd.f32 %v4554, %v4773
      %v4939 = vadd.f32 %v4555, %v4775
      %v4940 = vadd.f32 %v4556, %v4777
      %v4941 = vadd.f32 %v4557, %v4779
      %v4942 = vadd.f32 %v4558, %v4781
      %v4943 = vadd.f32 %v4559, %v4783
      %v4944 = vadd.f32 %v4560, %v4785
      %v4945 = vadd.f32 %v4561, %v4787
      %v4946 = vadd.f32 %v4562, %v4789
      %v4947 = vadd.f32 %v4563, %v4791
      %v4948 = vadd.f32 %v4564, %v4793
      %v4949 = vadd.f32 %v4565, %v4795
      %v4950 = vadd.f32 %v4566, %v4797
      %v4951 = vadd.f32 %v4567, %v4799
      %v4952 = vadd.f32 %v4568, %v4801
      %v4953 = vadd.f32 %v4569, %v4803
      %v4954 = vadd.f32 %v4570, %v4805
      %v4955 = vadd.f32 %v4571, %v4807
      %v4956 = vadd.f32 %v4572, %v4809
      %v4957 = vadd.f32 %v4573, %v4811
      %v4958 = vadd.f32 %v4574, %v4813
      %v4959 = vadd.f32 %v4575, %v4815
      %v4960 = vadd.f32 %v4576, %v4817
      %v4961 = vadd.f32 %v4577, %v4819
      %v4962 = vadd.f32 %v4578, %v4821
      %v4963 = vadd.f32 %v4579, %v4823
      %v4964 = vadd.f32 %v4580, %v4825
      %v4965 = vadd.f32 %v4581, %v4827
      %v4966 = vadd.f32 %v4582, %v4829
      %v4967 = vadd.f32 %v4583, %v4831
      %v4968 = vadd.f32 %v4584, %v4833
      %v4969 = vadd.f32 %v4585, %v4835
      %v4970 = vadd.f32 %v4586, %v4837
      %v4971 = vadd.f32 %v4587, %v4839
      %v4972 = vadd.f32 %v4588, %v4841
      %v4973 = vadd.f32 %v4589, %v4843
      %v4974 = vadd.f32 %v4590, %v4845
      %v4975 = vadd.f32 %v4591, %v4847
      %v4976 = vadd.f32 %v4912, 1e-16
      %v4977 = vadd.f32 %v4913, 1e-16
      %v4978 = vadd.f32 %v4914, 1e-16
      %v4979 = vadd.f32 %v4915, 1e-16
      %v4980 = vadd.f32 %v4916, 1e-16
      %v4981 = vadd.f32 %v4917, 1e-16
      %v4982 = vadd.f32 %v4918, 1e-16
      %v4983 = vadd.f32 %v4919, 1e-16
      %v4984 = vadd.f32 %v4920, 1e-16
      %v4985 = vadd.f32 %v4921, 1e-16
      %v4986 = vadd.f32 %v4922, 1e-16
      %v4987 = vadd.f32 %v4923, 1e-16
      %v4988 = vadd.f32 %v4924, 1e-16
      %v4989 = vadd.f32 %v4925, 1e-16
      %v4990 = vadd.f32 %v4926, 1e-16
      %v4991 = vadd.f32 %v4927, 1e-16
      %v4992 = vadd.f32 %v4928, 1e-16
      %v4993 = vadd.f32 %v4929, 1e-16
      %v4994 = vadd.f32 %v4930, 1e-16
      %v4995 = vadd.f32 %v4931, 1e-16
      %v4996 = vadd.f32 %v4932, 1e-16
      %v4997 = vadd.f32 %v4933, 1e-16
      %v4998 = vadd.f32 %v4934, 1e-16
      %v4999 = vadd.f32 %v4935, 1e-16
      %v5000 = vadd.f32 %v4936, 1e-16
      %v5001 = vadd.f32 %v4937, 1e-16
      %v5002 = vadd.f32 %v4938, 1e-16
      %v5003 = vadd.f32 %v4939, 1e-16
      %v5004 = vadd.f32 %v4940, 1e-16
      %v5005 = vadd.f32 %v4941, 1e-16
      %v5006 = vadd.f32 %v4942, 1e-16
      %v5007 = vadd.f32 %v4943, 1e-16
      %v5008 = vadd.f32 %v4944, 1e-16
      %v5009 = vadd.f32 %v4945, 1e-16
      %v5010 = vadd.f32 %v4946, 1e-16
      %v5011 = vadd.f32 %v4947, 1e-16
      %v5012 = vadd.f32 %v4948, 1e-16
      %v5013 = vadd.f32 %v4949, 1e-16
      %v5014 = vadd.f32 %v4950, 1e-16
      %v5015 = vadd.f32 %v4951, 1e-16
      %v5016 = vadd.f32 %v4952, 1e-16
      %v5017 = vadd.f32 %v4953, 1e-16
      %v5018 = vadd.f32 %v4954, 1e-16
      %v5019 = vadd.f32 %v4955, 1e-16
      %v5020 = vadd.f32 %v4956, 1e-16
      %v5021 = vadd.f32 %v4957, 1e-16
      %v5022 = vadd.f32 %v4958, 1e-16
      %v5023 = vadd.f32 %v4959, 1e-16
      %v5024 = vadd.f32 %v4960, 1e-16
      %v5025 = vadd.f32 %v4961, 1e-16
      %v5026 = vadd.f32 %v4962, 1e-16
      %v5027 = vadd.f32 %v4963, 1e-16
      %v5028 = vadd.f32 %v4964, 1e-16
      %v5029 = vadd.f32 %v4965, 1e-16
      %v5030 = vadd.f32 %v4966, 1e-16
      %v5031 = vadd.f32 %v4967, 1e-16
      %v5032 = vadd.f32 %v4968, 1e-16
      %v5033 = vadd.f32 %v4969, 1e-16
      %v5034 = vadd.f32 %v4970, 1e-16
      %v5035 = vadd.f32 %v4971, 1e-16
      %v5036 = vadd.f32 %v4972, 1e-16
      %v5037 = vadd.f32 %v4973, 1e-16
      %v5038 = vadd.f32 %v4974, 1e-16
      %v5039 = vadd.f32 %v4975, 1e-16
      %v5040 = vlog2.pop %v4976
      %v5041 = vmul.f32 %v5040, 0.6931472
      %v5042 = vlog2.pop %v4977
      %v5043 = vmul.f32 %v5042, 0.6931472
      %v5044 = vlog2.pop %v4978
      %v5045 = vmul.f32 %v5044, 0.6931472
      %v5046 = vlog2.pop %v4979
      %v5047 = vmul.f32 %v5046, 0.6931472
      %v5048 = vlog2.pop %v4980
      %v5049 = vmul.f32 %v5048, 0.6931472
      %v5050 = vlog2.pop %v4981
      %v5051 = vmul.f32 %v5050, 0.6931472
      %v5052 = vlog2.pop %v4982
      %v5053 = vmul.f32 %v5052, 0.6931472
      %v5054 = vlog2.pop %v4983
      %v5055 = vmul.f32 %v5054, 0.6931472
      %v5056 = vlog2.pop %v4984
      %v5057 = vmul.f32 %v5056, 0.6931472
      %v5058 = vlog2.pop %v4985
      %v5059 = vmul.f32 %v5058, 0.6931472
      %v5060 = vlog2.pop %v4986
      %v5061 = vmul.f32 %v5060, 0.6931472
      %v5062 = vlog2.pop %v4987
      %v5063 = vmul.f32 %v5062, 0.6931472
      %v5064 = vlog2.pop %v4988
      %v5065 = vmul.f32 %v5064, 0.6931472
      %v5066 = vlog2.pop %v4989
      %v5067 = vmul.f32 %v5066, 0.6931472
      %v5068 = vlog2.pop %v4990
      %v5069 = vmul.f32 %v5068, 0.6931472
      %v5070 = vlog2.pop %v4991
      %v5071 = vmul.f32 %v5070, 0.6931472
      %v5072 = vlog2.pop %v4992
      %v5073 = vmul.f32 %v5072, 0.6931472
      %v5074 = vlog2.pop %v4993
      %v5075 = vmul.f32 %v5074, 0.6931472
      %v5076 = vlog2.pop %v4994
      %v5077 = vmul.f32 %v5076, 0.6931472
      %v5078 = vlog2.pop %v4995
      %v5079 = vmul.f32 %v5078, 0.6931472
      %v5080 = vlog2.pop %v4996
      %v5081 = vmul.f32 %v5080, 0.6931472
      %v5082 = vlog2.pop %v4997
      %v5083 = vmul.f32 %v5082, 0.6931472
      %v5084 = vlog2.pop %v4998
      %v5085 = vmul.f32 %v5084, 0.6931472
      %v5086 = vlog2.pop %v4999
      %v5087 = vmul.f32 %v5086, 0.6931472
      %v5088 = vlog2.pop %v5000
      %v5089 = vmul.f32 %v5088, 0.6931472
      %v5090 = vlog2.pop %v5001
      %v5091 = vmul.f32 %v5090, 0.6931472
      %v5092 = vlog2.pop %v5002
      %v5093 = vmul.f32 %v5092, 0.6931472
      %v5094 = vlog2.pop %v5003
      %v5095 = vmul.f32 %v5094, 0.6931472
      %v5096 = vlog2.pop %v5004
      %v5097 = vmul.f32 %v5096, 0.6931472
      %v5098 = vlog2.pop %v5005
      %v5099 = vmul.f32 %v5098, 0.6931472
      %v5100 = vlog2.pop %v5006
      %v5101 = vmul.f32 %v5100, 0.6931472
      %v5102 = vlog2.pop %v5007
      %v5103 = vmul.f32 %v5102, 0.6931472
      %v5104 = vlog2.pop %v5008
      %v5105 = vmul.f32 %v5104, 0.6931472
      %v5106 = vlog2.pop %v5009
      %v5107 = vmul.f32 %v5106, 0.6931472
      %v5108 = vlog2.pop %v5010
      %v5109 = vmul.f32 %v5108, 0.6931472
      %v5110 = vlog2.pop %v5011
      %v5111 = vmul.f32 %v5110, 0.6931472
      %v5112 = vlog2.pop %v5012
      %v5113 = vmul.f32 %v5112, 0.6931472
      %v5114 = vlog2.pop %v5013
      %v5115 = vmul.f32 %v5114, 0.6931472
      %v5116 = vlog2.pop %v5014
      %v5117 = vmul.f32 %v5116, 0.6931472
      %v5118 = vlog2.pop %v5015
      %v5119 = vmul.f32 %v5118, 0.6931472
      %v5120 = vlog2.pop %v5016
      %v5121 = vmul.f32 %v5120, 0.6931472
      %v5122 = vlog2.pop %v5017
      %v5123 = vmul.f32 %v5122, 0.6931472
      %v5124 = vlog2.pop %v5018
      %v5125 = vmul.f32 %v5124, 0.6931472
      %v5126 = vlog2.pop %v5019
      %v5127 = vmul.f32 %v5126, 0.6931472
      %v5128 = vlog2.pop %v5020
      %v5129 = vmul.f32 %v5128, 0.6931472
      %v5130 = vlog2.pop %v5021
      %v5131 = vmul.f32 %v5130, 0.6931472
      %v5132 = vlog2.pop %v5022
      %v5133 = vmul.f32 %v5132, 0.6931472
      %v5134 = vlog2.pop %v5023
      %v5135 = vmul.f32 %v5134, 0.6931472
      %v5136 = vlog2.pop %v5024
      %v5137 = vmul.f32 %v5136, 0.6931472
      %v5138 = vlog2.pop %v5025
      %v5139 = vmul.f32 %v5138, 0.6931472
      %v5140 = vlog2.pop %v5026
      %v5141 = vmul.f32 %v5140, 0.6931472
      %v5142 = vlog2.pop %v5027
      %v5143 = vmul.f32 %v5142, 0.6931472
      %v5144 = vlog2.pop %v5028
      %v5145 = vmul.f32 %v5144, 0.6931472
      %v5146 = vlog2.pop %v5029
      %v5147 = vmul.f32 %v5146, 0.6931472
      %v5148 = vlog2.pop %v5030
      %v5149 = vmul.f32 %v5148, 0.6931472
      %v5150 = vlog2.pop %v5031
      %v5151 = vmul.f32 %v5150, 0.6931472
      %v5152 = vlog2.pop %v5032
      %v5153 = vmul.f32 %v5152, 0.6931472
      %v5154 = vlog2.pop %v5033
      %v5155 = vmul.f32 %v5154, 0.6931472
      %v5156 = vlog2.pop %v5034
      %v5157 = vmul.f32 %v5156, 0.6931472
      %v5158 = vlog2.pop %v5035
      %v5159 = vmul.f32 %v5158, 0.6931472
      %v5160 = vlog2.pop %v5036
      %v5161 = vmul.f32 %v5160, 0.6931472
      %v5162 = vlog2.pop %v5037
      %v5163 = vmul.f32 %v5162, 0.6931472
      %v5164 = vlog2.pop %v5038
      %v5165 = vmul.f32 %v5164, 0.6931472
      %v5166 = vlog2.pop %v5039
      %v5167 = vmul.f32 %v5166, 0.6931472
      %v5168 = vmul.f32 %v5041, 0.4
      %v5169 = vmul.f32 %v5043, 0.4
      %v5170 = vmul.f32 %v5045, 0.4
      %v5171 = vmul.f32 %v5047, 0.4
      %v5172 = vmul.f32 %v5049, 0.4
      %v5173 = vmul.f32 %v5051, 0.4
      %v5174 = vmul.f32 %v5053, 0.4
      %v5175 = vmul.f32 %v5055, 0.4
      %v5176 = vmul.f32 %v5057, 0.4
      %v5177 = vmul.f32 %v5059, 0.4
      %v5178 = vmul.f32 %v5061, 0.4
      %v5179 = vmul.f32 %v5063, 0.4
      %v5180 = vmul.f32 %v5065, 0.4
      %v5181 = vmul.f32 %v5067, 0.4
      %v5182 = vmul.f32 %v5069, 0.4
      %v5183 = vmul.f32 %v5071, 0.4
      %v5184 = vmul.f32 %v5073, 0.4
      %v5185 = vmul.f32 %v5075, 0.4
      %v5186 = vmul.f32 %v5077, 0.4
      %v5187 = vmul.f32 %v5079, 0.4
      %v5188 = vmul.f32 %v5081, 0.4
      %v5189 = vmul.f32 %v5083, 0.4
      %v5190 = vmul.f32 %v5085, 0.4
      %v5191 = vmul.f32 %v5087, 0.4
      %v5192 = vmul.f32 %v5089, 0.4
      %v5193 = vmul.f32 %v5091, 0.4
      %v5194 = vmul.f32 %v5093, 0.4
      %v5195 = vmul.f32 %v5095, 0.4
      %v5196 = vmul.f32 %v5097, 0.4
      %v5197 = vmul.f32 %v5099, 0.4
      %v5198 = vmul.f32 %v5101, 0.4
      %v5199 = vmul.f32 %v5103, 0.4
      %v5200 = vmul.f32 %v5105, 0.4
      %v5201 = vmul.f32 %v5107, 0.4
      %v5202 = vmul.f32 %v5109, 0.4
      %v5203 = vmul.f32 %v5111, 0.4
      %v5204 = vmul.f32 %v5113, 0.4
      %v5205 = vmul.f32 %v5115, 0.4
      %v5206 = vmul.f32 %v5117, 0.4
      %v5207 = vmul.f32 %v5119, 0.4
      %v5208 = vmul.f32 %v5121, 0.4
      %v5209 = vmul.f32 %v5123, 0.4
      %v5210 = vmul.f32 %v5125, 0.4
      %v5211 = vmul.f32 %v5127, 0.4
      %v5212 = vmul.f32 %v5129, 0.4
      %v5213 = vmul.f32 %v5131, 0.4
      %v5214 = vmul.f32 %v5133, 0.4
      %v5215 = vmul.f32 %v5135, 0.4
      %v5216 = vmul.f32 %v5137, 0.4
      %v5217 = vmul.f32 %v5139, 0.4
      %v5218 = vmul.f32 %v5141, 0.4
      %v5219 = vmul.f32 %v5143, 0.4
      %v5220 = vmul.f32 %v5145, 0.4
      %v5221 = vmul.f32 %v5147, 0.4
      %v5222 = vmul.f32 %v5149, 0.4
      %v5223 = vmul.f32 %v5151, 0.4
      %v5224 = vmul.f32 %v5153, 0.4
      %v5225 = vmul.f32 %v5155, 0.4
      %v5226 = vmul.f32 %v5157, 0.4
      %v5227 = vmul.f32 %v5159, 0.4
      %v5228 = vmul.f32 %v5161, 0.4
      %v5229 = vmul.f32 %v5163, 0.4
      %v5230 = vmul.f32 %v5165, 0.4
      %v5231 = vmul.f32 %v5167, 0.4
      %v5232 = vmul.f32 %v5168, 1.442695
      %v5233 = vpow.pop %v5232
      %v5234 = vmul.f32 %v5169, 1.442695
      %v5235 = vpow.pop %v5234
      %v5236 = vmul.f32 %v5170, 1.442695
      %v5237 = vpow.pop %v5236
      %v5238 = vmul.f32 %v5171, 1.442695
      %v5239 = vpow.pop %v5238
      %v5240 = vmul.f32 %v5172, 1.442695
      %v5241 = vpow.pop %v5240
      %v5242 = vmul.f32 %v5173, 1.442695
      %v5243 = vpow.pop %v5242
      %v5244 = vmul.f32 %v5174, 1.442695
      %v5245 = vpow.pop %v5244
      %v5246 = vmul.f32 %v5175, 1.442695
      %v5247 = vpow.pop %v5246
      %v5248 = vmul.f32 %v5176, 1.442695
      %v5249 = vpow.pop %v5248
      %v5250 = vmul.f32 %v5177, 1.442695
      %v5251 = vpow.pop %v5250
      %v5252 = vmul.f32 %v5178, 1.442695
      %v5253 = vpow.pop %v5252
      %v5254 = vmul.f32 %v5179, 1.442695
      %v5255 = vpow.pop %v5254
      %v5256 = vmul.f32 %v5180, 1.442695
      %v5257 = vpow.pop %v5256
      %v5258 = vmul.f32 %v5181, 1.442695
      %v5259 = vpow.pop %v5258
      %v5260 = vmul.f32 %v5182, 1.442695
      %v5261 = vpow.pop %v5260
      %v5262 = vmul.f32 %v5183, 1.442695
      %v5263 = vpow.pop %v5262
      %v5264 = vmul.f32 %v5184, 1.442695
      %v5265 = vpow.pop %v5264
      %v5266 = vmul.f32 %v5185, 1.442695
      %v5267 = vpow.pop %v5266
      %v5268 = vmul.f32 %v5186, 1.442695
      %v5269 = vpow.pop %v5268
      %v5270 = vmul.f32 %v5187, 1.442695
      %v5271 = vpow.pop %v5270
      %v5272 = vmul.f32 %v5188, 1.442695
      %v5273 = vpow.pop %v5272
      %v5274 = vmul.f32 %v5189, 1.442695
      %v5275 = vpow.pop %v5274
      %v5276 = vmul.f32 %v5190, 1.442695
      %v5277 = vpow.pop %v5276
      %v5278 = vmul.f32 %v5191, 1.442695
      %v5279 = vpow.pop %v5278
      %v5280 = vmul.f32 %v5192, 1.442695
      %v5281 = vpow.pop %v5280
      %v5282 = vmul.f32 %v5193, 1.442695
      %v5283 = vpow.pop %v5282
      %v5284 = vmul.f32 %v5194, 1.442695
      %v5285 = vpow.pop %v5284
      %v5286 = vmul.f32 %v5195, 1.442695
      %v5287 = vpow.pop %v5286
      %v5288 = vmul.f32 %v5196, 1.442695
      %v5289 = vpow.pop %v5288
      %v5290 = vmul.f32 %v5197, 1.442695
      %v5291 = vpow.pop %v5290
      %v5292 = vmul.f32 %v5198, 1.442695
      %v5293 = vpow.pop %v5292
      %v5294 = vmul.f32 %v5199, 1.442695
      %v5295 = vpow.pop %v5294
      %v5296 = vmul.f32 %v5200, 1.442695
      %v5297 = vpow.pop %v5296
      %v5298 = vmul.f32 %v5201, 1.442695
      %v5299 = vpow.pop %v5298
      %v5300 = vmul.f32 %v5202, 1.442695
      %v5301 = vpow.pop %v5300
      %v5302 = vmul.f32 %v5203, 1.442695
      %v5303 = vpow.pop %v5302
      %v5304 = vmul.f32 %v5204, 1.442695
      %v5305 = vpow.pop %v5304
      %v5306 = vmul.f32 %v5205, 1.442695
      %v5307 = vpow.pop %v5306
      %v5308 = vmul.f32 %v5206, 1.442695
      %v5309 = vpow.pop %v5308
      %v5310 = vmul.f32 %v5207, 1.442695
      %v5311 = vpow.pop %v5310
      %v5312 = vmul.f32 %v5208, 1.442695
      %v5313 = vpow.pop %v5312
      %v5314 = vmul.f32 %v5209, 1.442695
      %v5315 = vpow.pop %v5314
      %v5316 = vmul.f32 %v5210, 1.442695
      %v5317 = vpow.pop %v5316
      %v5318 = vmul.f32 %v5211, 1.442695
      %v5319 = vpow.pop %v5318
      %v5320 = vmul.f32 %v5212, 1.442695
      %v5321 = vpow.pop %v5320
      %v5322 = vmul.f32 %v5213, 1.442695
      %v5323 = vpow.pop %v5322
      %v5324 = vmul.f32 %v5214, 1.442695
      %v5325 = vpow.pop %v5324
      %v5326 = vmul.f32 %v5215, 1.442695
      %v5327 = vpow.pop %v5326
      %v5328 = vmul.f32 %v5216, 1.442695
      %v5329 = vpow.pop %v5328
      %v5330 = vmul.f32 %v5217, 1.442695
      %v5331 = vpow.pop %v5330
      %v5332 = vmul.f32 %v5218, 1.442695
      %v5333 = vpow.pop %v5332
      %v5334 = vmul.f32 %v5219, 1.442695
      %v5335 = vpow.pop %v5334
      %v5336 = vmul.f32 %v5220, 1.442695
      %v5337 = vpow.pop %v5336
      %v5338 = vmul.f32 %v5221, 1.442695
      %v5339 = vpow.pop %v5338
      %v5340 = vmul.f32 %v5222, 1.442695
      %v5341 = vpow.pop %v5340
      %v5342 = vmul.f32 %v5223, 1.442695
      %v5343 = vpow.pop %v5342
      %v5344 = vmul.f32 %v5224, 1.442695
      %v5345 = vpow.pop %v5344
      %v5346 = vmul.f32 %v5225, 1.442695
      %v5347 = vpow.pop %v5346
      %v5348 = vmul.f32 %v5226, 1.442695
      %v5349 = vpow.pop %v5348
      %v5350 = vmul.f32 %v5227, 1.442695
      %v5351 = vpow.pop %v5350
      %v5352 = vmul.f32 %v5228, 1.442695
      %v5353 = vpow.pop %v5352
      %v5354 = vmul.f32 %v5229, 1.442695
      %v5355 = vpow.pop %v5354
      %v5356 = vmul.f32 %v5230, 1.442695
      %v5357 = vpow.pop %v5356
      %v5358 = vmul.f32 %v5231, 1.442695
      %v5359 = vpow.pop %v5358
      %5360 = vst.msk [vmem:[%s170] sm:$0xff] %vm236, %v5233
      %5361 = vst.msk [vmem:[%s170 + $0x8] sm:$0xff] %vm236, %v5235
      %5362 = vst.msk [vmem:[%s170 + $0x10] sm:$0xff] %vm236, %v5237
      %5363 = vst.msk [vmem:[%s170 + $0x18] sm:$0xff] %vm236, %v5239
      %5364 = vst.msk [vmem:[%s170 + $0x20] sm:$0xff] %vm236, %v5241
      %5365 = vst.msk [vmem:[%s170 + $0x28] sm:$0xff] %vm236, %v5243
      %5366 = vst.msk [vmem:[%s170 + $0x30] sm:$0xff] %vm236, %v5245
      %5367 = vst.msk [vmem:[%s170 + $0x38] sm:$0xff] %vm236, %v5247
      %5368 = vst.msk [vmem:[%s170 + $0x40] sm:$0xff] %vm236, %v5249
      %5369 = vst.msk [vmem:[%s170 + $0x48] sm:$0xff] %vm236, %v5251
      %5370 = vst.msk [vmem:[%s170 + $0x50] sm:$0xff] %vm236, %v5253
      %5371 = vst.msk [vmem:[%s170 + $0x58] sm:$0xff] %vm236, %v5255
      %5372 = vst.msk [vmem:[%s170 + $0x60] sm:$0xff] %vm236, %v5257
      %5373 = vst.msk [vmem:[%s170 + $0x68] sm:$0xff] %vm236, %v5259
      %5374 = vst.msk [vmem:[%s170 + $0x70] sm:$0xff] %vm236, %v5261
      %5375 = vst.msk [vmem:[%s170 + $0x78] sm:$0xff] %vm236, %v5263
      %5376 = vst.msk [vmem:[%s170 + $0x80] sm:$0xff] %vm236, %v5265
      %5377 = vst.msk [vmem:[%s170 + $0x88] sm:$0xff] %vm236, %v5267
      %5378 = vst.msk [vmem:[%s170 + $0x90] sm:$0xff] %vm236, %v5269
      %5379 = vst.msk [vmem:[%s170 + $0x98] sm:$0xff] %vm236, %v5271
      %5380 = vst.msk [vmem:[%s170 + $0xa0] sm:$0xff] %vm236, %v5273
      %5381 = vst.msk [vmem:[%s170 + $0xa8] sm:$0xff] %vm236, %v5275
      %5382 = vst.msk [vmem:[%s170 + $0xb0] sm:$0xff] %vm236, %v5277
      %5383 = vst.msk [vmem:[%s170 + $0xb8] sm:$0xff] %vm236, %v5279
      %5384 = vst.msk [vmem:[%s170 + $0xc0] sm:$0xff] %vm236, %v5281
      %5385 = vst.msk [vmem:[%s170 + $0xc8] sm:$0xff] %vm236, %v5283
      %5386 = vst.msk [vmem:[%s170 + $0xd0] sm:$0xff] %vm236, %v5285
      %5387 = vst.msk [vmem:[%s170 + $0xd8] sm:$0xff] %vm236, %v5287
      %5388 = vst.msk [vmem:[%s170 + $0xe0] sm:$0xff] %vm236, %v5289
      %5389 = vst.msk [vmem:[%s170 + $0xe8] sm:$0xff] %vm236, %v5291
      %5390 = vst.msk [vmem:[%s170 + $0xf0] sm:$0xff] %vm236, %v5293
      %5391 = vst.msk [vmem:[%s170 + $0xf8] sm:$0xff] %vm236, %v5295
      %5392 = vst.msk [vmem:[%s170 + $0x100] sm:$0xff] %vm236, %v5297
      %5393 = vst.msk [vmem:[%s170 + $0x108] sm:$0xff] %vm236, %v5299
      %5394 = vst.msk [vmem:[%s170 + $0x110] sm:$0xff] %vm236, %v5301
      %5395 = vst.msk [vmem:[%s170 + $0x118] sm:$0xff] %vm236, %v5303
      %5396 = vst.msk [vmem:[%s170 + $0x120] sm:$0xff] %vm236, %v5305
      %5397 = vst.msk [vmem:[%s170 + $0x128] sm:$0xff] %vm236, %v5307
      %5398 = vst.msk [vmem:[%s170 + $0x130] sm:$0xff] %vm236, %v5309
      %5399 = vst.msk [vmem:[%s170 + $0x138] sm:$0xff] %vm236, %v5311
      %5400 = vst.msk [vmem:[%s170 + $0x140] sm:$0xff] %vm236, %v5313
      %5401 = vst.msk [vmem:[%s170 + $0x148] sm:$0xff] %vm236, %v5315
      %5402 = vst.msk [vmem:[%s170 + $0x150] sm:$0xff] %vm236, %v5317
      %5403 = vst.msk [vmem:[%s170 + $0x158] sm:$0xff] %vm236, %v5319
      %5404 = vst.msk [vmem:[%s170 + $0x160] sm:$0xff] %vm236, %v5321
      %5405 = vst.msk [vmem:[%s170 + $0x168] sm:$0xff] %vm236, %v5323
      %5406 = vst.msk [vmem:[%s170 + $0x170] sm:$0xff] %vm236, %v5325
      %5407 = vst.msk [vmem:[%s170 + $0x178] sm:$0xff] %vm236, %v5327
      %5408 = vst.msk [vmem:[%s170 + $0x180] sm:$0xff] %vm236, %v5329
      %5409 = vst.msk [vmem:[%s170 + $0x188] sm:$0xff] %vm236, %v5331
      %5410 = vst.msk [vmem:[%s170 + $0x190] sm:$0xff] %vm236, %v5333
      %5411 = vst.msk [vmem:[%s170 + $0x198] sm:$0xff] %vm236, %v5335
      %5412 = vst.msk [vmem:[%s170 + $0x1a0] sm:$0xff] %vm236, %v5337
      %5413 = vst.msk [vmem:[%s170 + $0x1a8] sm:$0xff] %vm236, %v5339
      %5414 = vst.msk [vmem:[%s170 + $0x1b0] sm:$0xff] %vm236, %v5341
      %5415 = vst.msk [vmem:[%s170 + $0x1b8] sm:$0xff] %vm236, %v5343
      %5416 = vst.msk [vmem:[%s170 + $0x1c0] sm:$0xff] %vm236, %v5345
      %5417 = vst.msk [vmem:[%s170 + $0x1c8] sm:$0xff] %vm236, %v5347
      %5418 = vst.msk [vmem:[%s170 + $0x1d0] sm:$0xff] %vm236, %v5349
      %5419 = vst.msk [vmem:[%s170 + $0x1d8] sm:$0xff] %vm236, %v5351
      %5420 = vst.msk [vmem:[%s170 + $0x1e0] sm:$0xff] %vm236, %v5353
      %5421 = vst.msk [vmem:[%s170 + $0x1e8] sm:$0xff] %vm236, %v5355
      %5422 = vst.msk [vmem:[%s170 + $0x1f0] sm:$0xff] %vm236, %v5357
      %5423 = vst.msk [vmem:[%s170 + $0x1f8] sm:$0xff] %vm236, %v5359
      %p5424 = scmp.lt.s32.totalorder %s14, 1
      %s5425 = scalar_select %p5424, %s14, 1
      %s5426 = smul.addr %s5425, 64
      %s5427 = smul.addr %s5426, 8
      %s5428 = scalar_lea.vmem %s3, %s5427
      // Predicated region
      $region33: #{sft_fcab_forward.4} parent=31 // pred_check
        %p5429 = pneg %p100
      $region34: #{sft_fcab_forward.4} parent=31 // pred_check_branch
        %5431 = sbr.rel (%p5429) target = $region36
      $region35: #{sft_fcab_forward.4} parent=31 // pred_region
        _
      $region36: #{sft_fcab_forward.4} parent=31 // pred_fallthru
        _
    $region32: #{sft_fcab_forward.4} parent=5 // pred_fallthru
      _
    %p5432 = scmp.le.s32.totalorder 2, %s9
    // Predicated region
    $region37: #{sft_fcab_forward.4} parent=5 // pred_check
      %p5433 = pneg %p5432
    $region38: #{sft_fcab_forward.4} parent=5 // pred_check_branch
      %5435 = sbr.rel (%p5433) target = $region40
    $region39: #{sft_fcab_forward.4} parent=5 // pred_region
      %s5436 = ssub.s32 %s9, 2
      // Predicated region
      $region41: #{sft_fcab_forward.4} parent=39 // pred_check
        %p5437 = pneg %p106
      $region42: #{sft_fcab_forward.4} parent=39 // pred_check_branch
        %5439 = sbr.rel (%p5437) target = $region44
      $region43: #{sft_fcab_forward.4} parent=39 // pred_region
        %p5440 = scmp.lt.s32.totalorder %s15, 1
        %s5441 = scalar_select %p5440, %s15, 1
        %s5442 = smul.addr %s5441, 64
        %s5443 = smul.addr %s5442, 8
        %s5444 = scalar_lea.vmem %s3, %s5443
      $region44: #{sft_fcab_forward.4} parent=39 // pred_fallthru
        _
    $region40: #{sft_fcab_forward.4} parent=5 // pred_fallthru
      _
  $region6: #{sft_fcab_forward.4} parent=0 // loop_footer
    %s13 = sadd.s32 1, %s9
  $region7: #{sft_fcab_forward.4} parent=0 // loop_footer_branch
    %8 = sbr.rel target = $region3
  $region8: #{sft_fcab_forward.4} parent=0 // loop_exit
    _

</llo_original>
